<compile_context>
chip_gen: v5e
topology: v5e:2x2
jax: 0.10.0
libtpu: 0.0.40
codegen_flags: <defaults>
</compile_context>

<pallas_src>
import functools

import jax
import jax.numpy as jnp
import numpy as np
from jax import lax
from jax.experimental import pallas as pl
from jax.experimental.pallas import tpu as pltpu


# ------------------------------ fused kernel -------------------------------
def _cstm_fused_kernel(band_ref, bd2_ref, maskh_ref, b1_ref, b2_ref,
                       x_ref, o_ref, apad_ref, *, T, C, H, W, PADL):
    """One batch element.

    band_ref : (T*C, T*C)   banded block-diag matrix for the temporal conv
    bd2_ref  : (9, T*C, T*C) block-diag (over T) copies of w2[:, :, dy, dx]
    maskh_ref: (3, H*W)     horizontal-validity masks for dx in {0,1,2}
    b1_ref   : (T*C, 1)     conv1d bias, broadcast per (t, c) row
    b2_ref   : (T*C, 1)     conv2d bias, broadcast per (t, c) row
    x_ref    : (1, T*C, H*W) input slab, rows ordered (t, c)
    o_ref    : (1, T*C, H*W) output slab, rows ordered (t, c)
    apad_ref : (T*C, H*W + 2*PADL) VMEM scratch (lane-padded stage-1 result)
    """
    HW = H * W
    TC = T * C
    x = x_ref[0]                                            # (T*C, HW)

    # ---- stage 1: depthwise temporal conv (k=7, 'same') + tanh -------------
    # single banded block-diagonal matmul on the MXU ('same' padding is
    # already folded into the band matrix).
    a1 = jnp.tanh(
        jnp.dot(band_ref[...], x,
                preferred_element_type=jnp.float32,
                precision=lax.Precision.HIGHEST)
        + b1_ref[...])                                      # (T*C, HW)

    # ---- stage 2: 3x3 'same' conv + tanh ------------------------------------
    # Hold a1 in a lane-padded VMEM scratch so every spatial shift is a static
    # (cheap) lane slice; vertical out-of-range taps read the zero padding,
    # horizontal wrap-around is masked.
    zpad = jnp.zeros((TC, PADL), jnp.float32)
    apad_ref[:, :PADL] = zpad
    apad_ref[:, PADL + HW:] = zpad
    apad_ref[:, PADL:PADL + HW] = a1

    acc = jnp.zeros((TC, HW), jnp.float32)
    for dy in range(3):
        for dx in range(3):
            k = dy * 3 + dx
            s = (dy - 1) * W + (dx - 1)                     # static lane shift
            shifted = (apad_ref[:, PADL + s:PADL + s + HW]
                       * maskh_ref[dx:dx + 1, :])           # (T*C, HW)
            acc = acc + jnp.dot(bd2_ref[k], shifted,
                                preferred_element_type=jnp.float32,
                                precision=lax.Precision.HIGHEST)
    o_ref[0] = jnp.tanh(acc + b2_ref[...])


# ------------------------------- CSTM forward ------------------------------
def cstm_forward(x, params):
    """x: (B, T, C, H, W); returns (B*T, C, H, W) matching PyTorch CSTM.forward."""
    B, T, C, H, W = x.shape
    HW = H * W
    TC = T * C
    w1, b1, w2, b2 = params
    K = w1.shape[1]
    pad = (K - 1) // 2

    # ---- tiny weight-only preprocessing (plain JAX, done once per call) ----
    # banded block-diagonal matrix: band[(to,c),(ti,c)] = w1[c, ti - to + pad]
    to = np.arange(T)[:, None]
    ti = np.arange(T)[None, :]
    d = ti - to + pad                                        # (T, T)
    valid = jnp.asarray((d >= 0) & (d < K), dtype=jnp.float32)
    dcl = np.clip(d, 0, K - 1)
    band_ct = w1[:, dcl].astype(jnp.float32) * valid[None]   # (C, T, T)
    eye_c = jnp.eye(C, dtype=jnp.float32)
    band = jnp.einsum('cab,cd->acbd', band_ct, eye_c).reshape(TC, TC)

    # 9 block-diagonal (over T) copies of w2[:, :, dy, dx]
    w2k = jnp.transpose(w2.reshape(C, C, 9), (2, 0, 1)).astype(jnp.float32)
    eye_t = jnp.eye(T, dtype=jnp.float32)
    bd2 = jnp.einsum('kij,ab->kaibj', w2k, eye_t).reshape(9, TC, TC)

    # horizontal-validity masks (column wrap) for the three dx taps
    col = np.arange(HW) % W
    maskh = np.stack([((col + dxm - 1 >= 0) & (col + dxm - 1 < W))
                      for dxm in range(3)]).astype(np.float32)   # (3, HW)
    maskh = jnp.asarray(maskh)

    b1_rows = jnp.tile(b1.astype(jnp.float32), T).reshape(TC, 1)
    b2_rows = jnp.tile(b2.astype(jnp.float32), T).reshape(TC, 1)

    # free reshape: rows ordered (t, c), lanes = flattened H*W
    x_flat = x.astype(jnp.float32).reshape(B, TC, HW)

    PADL = 128   # lane padding (>= W+1) keeps the interior store 128-aligned
    kernel = functools.partial(_cstm_fused_kernel,
                               T=T, C=C, H=H, W=W, PADL=PADL)
    out_flat = pl.pallas_call(
        kernel,
        out_shape=jax.ShapeDtypeStruct((B, TC, HW), jnp.float32),
        grid=(B,),
        in_specs=[
            pl.BlockSpec((TC, TC), lambda b: (0, 0)),          # band
            pl.BlockSpec((9, TC, TC), lambda b: (0, 0, 0)),    # bd2
            pl.BlockSpec((3, HW), lambda b: (0, 0)),           # maskh
            pl.BlockSpec((TC, 1), lambda b: (0, 0)),           # b1 rows
            pl.BlockSpec((TC, 1), lambda b: (0, 0)),           # b2 rows
            pl.BlockSpec((1, TC, HW), lambda b: (b, 0, 0)),    # x slab
        ],
        out_specs=pl.BlockSpec((1, TC, HW), lambda b: (b, 0, 0)),
        scratch_shapes=[pltpu.VMEM((TC, HW + 2 * PADL), jnp.float32)],
        compiler_params=pltpu.CompilerParams(
            dimension_semantics=("parallel",)),
    )(band, bd2, maskh, b1_rows, b2_rows, x_flat)

    # free reshapes back to the PyTorch output layout
    return out_flat.reshape(B * T, C, H, W)


# ------------------------------ pure-JAX reference -------------------------
def cstm_reference(x, params):
    B, T, C, H, W = x.shape
    w1, b1, w2, b2 = params
    xp = jnp.transpose(x, (0, 3, 4, 2, 1)).reshape(B * H * W, C, T)
    a1 = lax.conv_general_dilated(
        xp, w1[:, None, :], window_strides=(1,), padding="SAME",
        dimension_numbers=("NCH", "OIH", "NCH"), feature_group_count=C,
        precision=lax.Precision.HIGHEST)
    a1 = jnp.tanh(a1 + b1[None, :, None])
    a1 = a1.reshape(B, H, W, C, T)
    a1 = jnp.transpose(a1, (0, 4, 3, 1, 2)).reshape(B * T, C, H, W)
    a2 = lax.conv_general_dilated(
        a1, w2, window_strides=(1, 1), padding="SAME",
        dimension_numbers=("NCHW", "OIHW", "NCHW"),
        precision=lax.Precision.HIGHEST)
    return jnp.tanh(a2 + b2[None, :, None, None])


if __name__ == "__main__":
    B, T, C, H, W = 2, 8, 4, 16, 16
    key = jax.random.PRNGKey(0)
    k1, k2, k3, k4, k5 = jax.random.split(key, 5)

    x = jax.random.normal(k1, (B, T, C, H, W), dtype=jnp.float32)
    # deterministic synthetic parameters (shapes per nn.Conv1d / nn.Conv2d)
    w1 = jax.random.normal(k2, (C, 7), dtype=jnp.float32) * 0.2        # Conv1d weight (C,1,7) squeezed
    b1 = jax.random.normal(k3, (C,), dtype=jnp.float32) * 0.1
    w2 = jax.random.normal(k4, (C, C, 3, 3), dtype=jnp.float32) * 0.2  # Conv2d weight
    b2 = jax.random.normal(k5, (C,), dtype=jnp.float32) * 0.1
    params = (w1, b1, w2, b2)

    fwd = jax.jit(cstm_forward)
    out = fwd(x, params)
    jax.block_until_ready(out)

    ref = cstm_reference(x, params)
    assert out.shape == (B * T, C, H, W)
    np.testing.assert_allclose(np.asarray(out), np.asarray(ref),
                               rtol=1e-4, atol=1e-4)
    print("KERNEL_OK")
</pallas_src>

<mosaic_0001>
module attributes {stable_mosaic.version = 11 : i64} {
  func.func @_cstm_fused_kernel(%arg0: i32, %arg1: memref<32x32xf32, #tpu.memory_space<vmem>>, %arg2: memref<9x32x32xf32, #tpu.memory_space<vmem>>, %arg3: memref<3x256xf32, #tpu.memory_space<vmem>>, %arg4: memref<32x1xf32, #tpu.memory_space<vmem>>, %arg5: memref<32x1xf32, #tpu.memory_space<vmem>>, %arg6: memref<1x32x256xf32, #tpu.memory_space<vmem>>, %arg7: memref<1x32x256xf32, #tpu.memory_space<vmem>>, %arg8: memref<32x512xf32, #tpu.memory_space<vmem>>) attributes {dimension_semantics = [#tpu.dimension_semantics<parallel>], iteration_bounds = array<i64: 2>, scalar_prefetch = 0 : i64, scratch_operands = 1 : i64, tpu.core_type = #tpu.core_type<tc>, window_params = [{pipeline_mode = #tpu.pipeline_mode<synchronous>, transform_indices = @transform_0, window_bounds = array<i64: 32, 32>}, {pipeline_mode = #tpu.pipeline_mode<synchronous>, transform_indices = @transform_1, window_bounds = array<i64: 9, 32, 32>}, {pipeline_mode = #tpu.pipeline_mode<synchronous>, transform_indices = @transform_2, window_bounds = array<i64: 3, 256>}, {pipeline_mode = #tpu.pipeline_mode<synchronous>, transform_indices = @transform_3, window_bounds = array<i64: 32, 1>}, {pipeline_mode = #tpu.pipeline_mode<synchronous>, transform_indices = @transform_4, window_bounds = array<i64: 32, 1>}, {transform_indices = @transform_5, window_bounds = array<i64: 1, 32, 256>}, {transform_indices = @transform_6, window_bounds = array<i64: 1, 32, 256>}]} {
    %c0 = arith.constant 0 : index
    %c0_0 = arith.constant 0 : index
    %c0_1 = arith.constant 0 : index
    %0 = vector.load %arg6[%c0, %c0_0, %c0_1] : memref<1x32x256xf32, #tpu.memory_space<vmem>>, vector<1x32x256xf32>
    %1 = vector.shape_cast %0 : vector<1x32x256xf32> to vector<32x256xf32>
    %c0_2 = arith.constant 0 : index
    %c0_3 = arith.constant 0 : index
    %2 = vector.load %arg1[%c0_2, %c0_3] : memref<32x32xf32, #tpu.memory_space<vmem>>, vector<32x32xf32>
    %cst = arith.constant dense<0.000000e+00> : vector<32x256xf32>
    %3 = tpu.matmul %2, %1, %cst {dimension_numbers = #tpu.dot_dimension_numbers<[1], [0], [0], [1], [0, 0, 1, 1], [], []>, precision = #tpu.contract_precision<fp32>} : vector<32x32xf32>, vector<32x256xf32>, vector<32x256xf32> -> vector<32x256xf32>
    %c0_4 = arith.constant 0 : index
    %c0_5 = arith.constant 0 : index
    %4 = vector.load %arg4[%c0_4, %c0_5] : memref<32x1xf32, #tpu.memory_space<vmem>>, vector<32x1xf32>
    %5 = vector.broadcast %4 : vector<32x1xf32> to vector<32x256xf32>
    %6 = arith.addf %3, %5 : vector<32x256xf32>
    %7 = math.tanh %6 : vector<32x256xf32>
    %cst_6 = arith.constant 0.000000e+00 : f32
    %8 = vector.broadcast %cst_6 : f32 to vector<32x128xf32>
    %c0_7 = arith.constant 0 : index
    %c0_8 = arith.constant 0 : index
    %9 = vector.load %arg8[%c0_7, %c0_8] : memref<32x512xf32, #tpu.memory_space<vmem>>, vector<32x128xf32>
    tpu.vector_store %arg8[%c0_7, %c0_8], %8 {strides = array<i32>} : memref<32x512xf32, #tpu.memory_space<vmem>>, vector<32x128xf32>,
    %c0_9 = arith.constant 0 : index
    %c384 = arith.constant 384 : index
    %10 = vector.load %arg8[%c0_9, %c384] : memref<32x512xf32, #tpu.memory_space<vmem>>, vector<32x128xf32>
    tpu.vector_store %arg8[%c0_9, %c384], %8 {strides = array<i32>} : memref<32x512xf32, #tpu.memory_space<vmem>>, vector<32x128xf32>,
    %c0_10 = arith.constant 0 : index
    %c128 = arith.constant 128 : index
    %11 = vector.load %arg8[%c0_10, %c128] : memref<32x512xf32, #tpu.memory_space<vmem>>, vector<32x256xf32>
    tpu.vector_store %arg8[%c0_10, %c128], %7 {strides = array<i32>} : memref<32x512xf32, #tpu.memory_space<vmem>>, vector<32x256xf32>,
    %cst_11 = arith.constant 0.000000e+00 : f32
    %12 = vector.broadcast %cst_11 : f32 to vector<32x256xf32>
    %c0_12 = arith.constant 0 : index
    %c111 = arith.constant 111 : index
    %13 = vector.load %arg8[%c0_12, %c111] : memref<32x512xf32, #tpu.memory_space<vmem>>, vector<32x256xf32>
    %c0_13 = arith.constant 0 : index
    %c0_14 = arith.constant 0 : index
    %14 = vector.load %arg3[%c0_13, %c0_14] : memref<3x256xf32, #tpu.memory_space<vmem>>, vector<1x256xf32>
    %15 = vector.broadcast %14 : vector<1x256xf32> to vector<32x256xf32>
    %16 = arith.mulf %13, %15 : vector<32x256xf32>
    %c0_15 = arith.constant 0 : index
    %c0_16 = arith.constant 0 : index
    %c0_17 = arith.constant 0 : index
    %17 = vector.load %arg2[%c0_15, %c0_16, %c0_17] : memref<9x32x32xf32, #tpu.memory_space<vmem>>, vector<1x32x32xf32>
    %18 = vector.shape_cast %17 : vector<1x32x32xf32> to vector<32x32xf32>
    %cst_18 = arith.constant dense<0.000000e+00> : vector<32x256xf32>
    %19 = tpu.matmul %18, %16, %cst_18 {dimension_numbers = #tpu.dot_dimension_numbers<[1], [0], [0], [1], [0, 0, 1, 1], [], []>, precision = #tpu.contract_precision<fp32>} : vector<32x32xf32>, vector<32x256xf32>, vector<32x256xf32> -> vector<32x256xf32>
    %20 = arith.addf %12, %19 : vector<32x256xf32>
    %c0_19 = arith.constant 0 : index
    %c112 = arith.constant 112 : index
    %21 = vector.load %arg8[%c0_19, %c112] : memref<32x512xf32, #tpu.memory_space<vmem>>, vector<32x256xf32>
    %c1 = arith.constant 1 : index
    %c0_20 = arith.constant 0 : index
    %22 = vector.load %arg3[%c1, %c0_20] : memref<3x256xf32, #tpu.memory_space<vmem>>, vector<1x256xf32>
    %23 = vector.broadcast %22 : vector<1x256xf32> to vector<32x256xf32>
    %24 = arith.mulf %21, %23 : vector<32x256xf32>
    %c1_21 = arith.constant 1 : index
    %c0_22 = arith.constant 0 : index
    %c0_23 = arith.constant 0 : index
    %25 = vector.load %arg2[%c1_21, %c0_22, %c0_23] : memref<9x32x32xf32, #tpu.memory_space<vmem>>, vector<1x32x32xf32>
    %26 = vector.shape_cast %25 : vector<1x32x32xf32> to vector<32x32xf32>
    %cst_24 = arith.constant dense<0.000000e+00> : vector<32x256xf32>
    %27 = tpu.matmul %26, %24, %cst_24 {dimension_numbers = #tpu.dot_dimension_numbers<[1], [0], [0], [1], [0, 0, 1, 1], [], []>, precision = #tpu.contract_precision<fp32>} : vector<32x32xf32>, vector<32x256xf32>, vector<32x256xf32> -> vector<32x256xf32>
    %28 = arith.addf %20, %27 : vector<32x256xf32>
    %c0_25 = arith.constant 0 : index
    %c113 = arith.constant 113 : index
    %29 = vector.load %arg8[%c0_25, %c113] : memref<32x512xf32, #tpu.memory_space<vmem>>, vector<32x256xf32>
    %c2 = arith.constant 2 : index
    %c0_26 = arith.constant 0 : index
    %30 = vector.load %arg3[%c2, %c0_26] : memref<3x256xf32, #tpu.memory_space<vmem>>, vector<1x256xf32>
    %31 = vector.broadcast %30 : vector<1x256xf32> to vector<32x256xf32>
    %32 = arith.mulf %29, %31 : vector<32x256xf32>
    %c2_27 = arith.constant 2 : index
    %c0_28 = arith.constant 0 : index
    %c0_29 = arith.constant 0 : index
    %33 = vector.load %arg2[%c2_27, %c0_28, %c0_29] : memref<9x32x32xf32, #tpu.memory_space<vmem>>, vector<1x32x32xf32>
    %34 = vector.shape_cast %33 : vector<1x32x32xf32> to vector<32x32xf32>
    %cst_30 = arith.constant dense<0.000000e+00> : vector<32x256xf32>
    %35 = tpu.matmul %34, %32, %cst_30 {dimension_numbers = #tpu.dot_dimension_numbers<[1], [0], [0], [1], [0, 0, 1, 1], [], []>, precision = #tpu.contract_precision<fp32>} : vector<32x32xf32>, vector<32x256xf32>, vector<32x256xf32> -> vector<32x256xf32>
    %36 = arith.addf %28, %35 : vector<32x256xf32>
    %c0_31 = arith.constant 0 : index
    %c127 = arith.constant 127 : index
    %37 = vector.load %arg8[%c0_31, %c127] : memref<32x512xf32, #tpu.memory_space<vmem>>, vector<32x256xf32>
    %c0_32 = arith.constant 0 : index
    %c0_33 = arith.constant 0 : index
    %38 = vector.load %arg3[%c0_32, %c0_33] : memref<3x256xf32, #tpu.memory_space<vmem>>, vector<1x256xf32>
    %39 = vector.broadcast %38 : vector<1x256xf32> to vector<32x256xf32>
    %40 = arith.mulf %37, %39 : vector<32x256xf32>
    %c3 = arith.constant 3 : index
    %c0_34 = arith.constant 0 : index
    %c0_35 = arith.constant 0 : index
    %41 = vector.load %arg2[%c3, %c0_34, %c0_35] : memref<9x32x32xf32, #tpu.memory_space<vmem>>, vector<1x32x32xf32>
    %42 = vector.shape_cast %41 : vector<1x32x32xf32> to vector<32x32xf32>
    %cst_36 = arith.constant dense<0.000000e+00> : vector<32x256xf32>
    %43 = tpu.matmul %42, %40, %cst_36 {dimension_numbers = #tpu.dot_dimension_numbers<[1], [0], [0], [1], [0, 0, 1, 1], [], []>, precision = #tpu.contract_precision<fp32>} : vector<32x32xf32>, vector<32x256xf32>, vector<32x256xf32> -> vector<32x256xf32>
    %44 = arith.addf %36, %43 : vector<32x256xf32>
    %c0_37 = arith.constant 0 : index
    %c128_38 = arith.constant 128 : index
    %45 = vector.load %arg8[%c0_37, %c128_38] : memref<32x512xf32, #tpu.memory_space<vmem>>, vector<32x256xf32>
    %c1_39 = arith.constant 1 : index
    %c0_40 = arith.constant 0 : index
    %46 = vector.load %arg3[%c1_39, %c0_40] : memref<3x256xf32, #tpu.memory_space<vmem>>, vector<1x256xf32>
    %47 = vector.broadcast %46 : vector<1x256xf32> to vector<32x256xf32>
    %48 = arith.mulf %45, %47 : vector<32x256xf32>
    %c4 = arith.constant 4 : index
    %c0_41 = arith.constant 0 : index
    %c0_42 = arith.constant 0 : index
    %49 = vector.load %arg2[%c4, %c0_41, %c0_42] : memref<9x32x32xf32, #tpu.memory_space<vmem>>, vector<1x32x32xf32>
    %50 = vector.shape_cast %49 : vector<1x32x32xf32> to vector<32x32xf32>
    %cst_43 = arith.constant dense<0.000000e+00> : vector<32x256xf32>
    %51 = tpu.matmul %50, %48, %cst_43 {dimension_numbers = #tpu.dot_dimension_numbers<[1], [0], [0], [1], [0, 0, 1, 1], [], []>, precision = #tpu.contract_precision<fp32>} : vector<32x32xf32>, vector<32x256xf32>, vector<32x256xf32> -> vector<32x256xf32>
    %52 = arith.addf %44, %51 : vector<32x256xf32>
    %c0_44 = arith.constant 0 : index
    %c129 = arith.constant 129 : index
    %53 = vector.load %arg8[%c0_44, %c129] : memref<32x512xf32, #tpu.memory_space<vmem>>, vector<32x256xf32>
    %c2_45 = arith.constant 2 : index
    %c0_46 = arith.constant 0 : index
    %54 = vector.load %arg3[%c2_45, %c0_46] : memref<3x256xf32, #tpu.memory_space<vmem>>, vector<1x256xf32>
    %55 = vector.broadcast %54 : vector<1x256xf32> to vector<32x256xf32>
    %56 = arith.mulf %53, %55 : vector<32x256xf32>
    %c5 = arith.constant 5 : index
    %c0_47 = arith.constant 0 : index
    %c0_48 = arith.constant 0 : index
    %57 = vector.load %arg2[%c5, %c0_47, %c0_48] : memref<9x32x32xf32, #tpu.memory_space<vmem>>, vector<1x32x32xf32>
    %58 = vector.shape_cast %57 : vector<1x32x32xf32> to vector<32x32xf32>
    %cst_49 = arith.constant dense<0.000000e+00> : vector<32x256xf32>
    %59 = tpu.matmul %58, %56, %cst_49 {dimension_numbers = #tpu.dot_dimension_numbers<[1], [0], [0], [1], [0, 0, 1, 1], [], []>, precision = #tpu.contract_precision<fp32>} : vector<32x32xf32>, vector<32x256xf32>, vector<32x256xf32> -> vector<32x256xf32>
    %60 = arith.addf %52, %59 : vector<32x256xf32>
    %c0_50 = arith.constant 0 : index
    %c143 = arith.constant 143 : index
    %61 = vector.load %arg8[%c0_50, %c143] : memref<32x512xf32, #tpu.memory_space<vmem>>, vector<32x256xf32>
    %c0_51 = arith.constant 0 : index
    %c0_52 = arith.constant 0 : index
    %62 = vector.load %arg3[%c0_51, %c0_52] : memref<3x256xf32, #tpu.memory_space<vmem>>, vector<1x256xf32>
    %63 = vector.broadcast %62 : vector<1x256xf32> to vector<32x256xf32>
    %64 = arith.mulf %61, %63 : vector<32x256xf32>
    %c6 = arith.constant 6 : index
    %c0_53 = arith.constant 0 : index
    %c0_54 = arith.constant 0 : index
    %65 = vector.load %arg2[%c6, %c0_53, %c0_54] : memref<9x32x32xf32, #tpu.memory_space<vmem>>, vector<1x32x32xf32>
    %66 = vector.shape_cast %65 : vector<1x32x32xf32> to vector<32x32xf32>
    %cst_55 = arith.constant dense<0.000000e+00> : vector<32x256xf32>
    %67 = tpu.matmul %66, %64, %cst_55 {dimension_numbers = #tpu.dot_dimension_numbers<[1], [0], [0], [1], [0, 0, 1, 1], [], []>, precision = #tpu.contract_precision<fp32>} : vector<32x32xf32>, vector<32x256xf32>, vector<32x256xf32> -> vector<32x256xf32>
    %68 = arith.addf %60, %67 : vector<32x256xf32>
    %c0_56 = arith.constant 0 : index
    %c144 = arith.constant 144 : index
    %69 = vector.load %arg8[%c0_56, %c144] : memref<32x512xf32, #tpu.memory_space<vmem>>, vector<32x256xf32>
    %c1_57 = arith.constant 1 : index
    %c0_58 = arith.constant 0 : index
    %70 = vector.load %arg3[%c1_57, %c0_58] : memref<3x256xf32, #tpu.memory_space<vmem>>, vector<1x256xf32>
    %71 = vector.broadcast %70 : vector<1x256xf32> to vector<32x256xf32>
    %72 = arith.mulf %69, %71 : vector<32x256xf32>
    %c7 = arith.constant 7 : index
    %c0_59 = arith.constant 0 : index
    %c0_60 = arith.constant 0 : index
    %73 = vector.load %arg2[%c7, %c0_59, %c0_60] : memref<9x32x32xf32, #tpu.memory_space<vmem>>, vector<1x32x32xf32>
    %74 = vector.shape_cast %73 : vector<1x32x32xf32> to vector<32x32xf32>
    %cst_61 = arith.constant dense<0.000000e+00> : vector<32x256xf32>
    %75 = tpu.matmul %74, %72, %cst_61 {dimension_numbers = #tpu.dot_dimension_numbers<[1], [0], [0], [1], [0, 0, 1, 1], [], []>, precision = #tpu.contract_precision<fp32>} : vector<32x32xf32>, vector<32x256xf32>, vector<32x256xf32> -> vector<32x256xf32>
    %76 = arith.addf %68, %75 : vector<32x256xf32>
    %c0_62 = arith.constant 0 : index
    %c145 = arith.constant 145 : index
    %77 = vector.load %arg8[%c0_62, %c145] : memref<32x512xf32, #tpu.memory_space<vmem>>, vector<32x256xf32>
    %c2_63 = arith.constant 2 : index
    %c0_64 = arith.constant 0 : index
    %78 = vector.load %arg3[%c2_63, %c0_64] : memref<3x256xf32, #tpu.memory_space<vmem>>, vector<1x256xf32>
    %79 = vector.broadcast %78 : vector<1x256xf32> to vector<32x256xf32>
    %80 = arith.mulf %77, %79 : vector<32x256xf32>
    %c8 = arith.constant 8 : index
    %c0_65 = arith.constant 0 : index
    %c0_66 = arith.constant 0 : index
    %81 = vector.load %arg2[%c8, %c0_65, %c0_66] : memref<9x32x32xf32, #tpu.memory_space<vmem>>, vector<1x32x32xf32>
    %82 = vector.shape_cast %81 : vector<1x32x32xf32> to vector<32x32xf32>
    %cst_67 = arith.constant dense<0.000000e+00> : vector<32x256xf32>
    %83 = tpu.matmul %82, %80, %cst_67 {dimension_numbers = #tpu.dot_dimension_numbers<[1], [0], [0], [1], [0, 0, 1, 1], [], []>, precision = #tpu.contract_precision<fp32>} : vector<32x32xf32>, vector<32x256xf32>, vector<32x256xf32> -> vector<32x256xf32>
    %84 = arith.addf %76, %83 : vector<32x256xf32>
    %c0_68 = arith.constant 0 : index
    %c0_69 = arith.constant 0 : index
    %85 = vector.load %arg5[%c0_68, %c0_69] : memref<32x1xf32, #tpu.memory_space<vmem>>, vector<32x1xf32>
    %86 = vector.broadcast %85 : vector<32x1xf32> to vector<32x256xf32>
    %87 = arith.addf %84, %86 : vector<32x256xf32>
    %88 = math.tanh %87 : vector<32x256xf32>
    %c0_70 = arith.constant 0 : index
    %c0_71 = arith.constant 0 : index
    %c0_72 = arith.constant 0 : index
    %89 = vector.load %arg7[%c0_70, %c0_71, %c0_72] : memref<1x32x256xf32, #tpu.memory_space<vmem>>, vector<1x32x256xf32>
    %90 = vector.shape_cast %89 : vector<1x32x256xf32> to vector<32x256xf32>
    %91 = vector.shape_cast %88 : vector<32x256xf32> to vector<1x32x256xf32>
    tpu.vector_store %arg7[%c0_70, %c0_71, %c0_72], %91 {strides = array<i32>} : memref<1x32x256xf32, #tpu.memory_space<vmem>>, vector<1x32x256xf32>,
    return
  }
  func.func @transform_0(%arg0: i32) -> (i32, i32) {
    %c0_i32 = arith.constant 0 : i32
    %c0_i32_0 = arith.constant 0 : i32
    %c0_i32_1 = arith.constant 0 : i32
    return %c0_i32, %c0_i32_0 : i32, i32
  }
  func.func @transform_1(%arg0: i32) -> (i32, i32, i32) {
    %c0_i32 = arith.constant 0 : i32
    %c0_i32_0 = arith.constant 0 : i32
    %c0_i32_1 = arith.constant 0 : i32
    %c0_i32_2 = arith.constant 0 : i32
    return %c0_i32, %c0_i32_0, %c0_i32_1 : i32, i32, i32
  }
  func.func @transform_2(%arg0: i32) -> (i32, i32) {
    %c0_i32 = arith.constant 0 : i32
    %c0_i32_0 = arith.constant 0 : i32
    %c0_i32_1 = arith.constant 0 : i32
    return %c0_i32, %c0_i32_0 : i32, i32
  }
  func.func @transform_3(%arg0: i32) -> (i32, i32) {
    %c0_i32 = arith.constant 0 : i32
    %c0_i32_0 = arith.constant 0 : i32
    %c0_i32_1 = arith.constant 0 : i32
    return %c0_i32, %c0_i32_0 : i32, i32
  }
  func.func @transform_4(%arg0: i32) -> (i32, i32) {
    %c0_i32 = arith.constant 0 : i32
    %c0_i32_0 = arith.constant 0 : i32
    %c0_i32_1 = arith.constant 0 : i32
    return %c0_i32, %c0_i32_0 : i32, i32
  }
  func.func @transform_5(%arg0: i32) -> (i32, i32, i32) {
    %c0_i32 = arith.constant 0 : i32
    %c0_i32_0 = arith.constant 0 : i32
    %c0_i32_1 = arith.constant 0 : i32
    return %arg0, %c0_i32, %c0_i32_0 : i32, i32, i32
  }
  func.func @transform_6(%arg0: i32) -> (i32, i32, i32) {
    %c0_i32 = arith.constant 0 : i32
    %c0_i32_0 = arith.constant 0 : i32
    %c0_i32_1 = arith.constant 0 : i32
    return %arg0, %c0_i32, %c0_i32_0 : i32, i32, i32
  }
}

</mosaic_0001>

<llo_original>
// kernel: tile.13
$region0: #{tile.13}
  #allocation0 [shape = 's32[1]{0}', space=sflag, size = 0x4, scoped, tag = 'scoped memory for tile.13']
  %s0 = inlined_call_operand.vmem [shape: f32[4], index: 0, kind: input, shape index: {}]
  %s1 = inlined_call_operand.vmem [shape: f32[8,4], index: 1, kind: output, shape index: {}]
  // Predicated region
  $region2: #{tile.13} parent=0 // pred_check
    _
  $region3: #{tile.13} parent=0 // pred_check_branch
    %3 = sbr.rel (0) target = $region5
  $region4: #{tile.13} parent=0 // pred_region
    _
  $region5: #{tile.13} parent=0 // pred_fallthru
    _
  %v4 = vld [vmem:[%s0] ss:$0 sm:$0xff]
  %5 = vst [vmem:[%s1] sm:$0xff] %v4

// kernel: tile.0
$region0: #{tile.0}
  %s0 = inlined_call_operand.vmem [shape: f32[8,4], index: 0, kind: input, shape index: {}]
  %s1 = inlined_call_operand.vmem [shape: f32[32,1], index: 1, kind: output, shape index: {}]
  %v2 = vld [vmem:[%s0] sm:$0xff]
  %vm3 = vcmask 7168
  %4 = vst.msk [vmem:[%s1] ss:$4 sm:$0xff] %vm3, %v2
  %v5 = vld [vmem:[%s0] sm:$0xff]
  %6 = vrot.lane.b32.xlu0 %v5, 127
  %v7 = vpop.permute.xlu0 %6
  %vm8 = vcmask 7168
  %s9 = scalar_lea.vmem %s1, 1
  %10 = vst.msk [vmem:[%s9] ss:$4 sm:$0xff] %vm8, %v7
  %v11 = vld [vmem:[%s0] sm:$0xff]
  %12 = vrot.lane.b32.xlu0 %v11, 126
  %v13 = vpop.permute.xlu0 %12
  %vm14 = vcmask 7168
  %s15 = scalar_lea.vmem %s1, 2
  %16 = vst.msk [vmem:[%s15] ss:$4 sm:$0xff] %vm14, %v13
  %v17 = vld [vmem:[%s0] sm:$0xff]
  %18 = vrot.lane.b32.xlu0 %v17, 125
  %v19 = vpop.permute.xlu0 %18
  %vm20 = vcmask 7168
  %s21 = scalar_lea.vmem %s1, 3
  %22 = vst.msk [vmem:[%s21] ss:$4 sm:$0xff] %vm20, %v19

// kernel: cstm_forward.1
$region0: #{cstm_forward.1}
  #allocation0 [shape = 'u32[]', space=smem, size = 0x4, offset = 0x4, fixed_abs, tag = 'smem constant byte address 0x4 - core index']
  #allocation1 [shape = 'u32[72,128]{1,0:T(1,128)}', space=vmem, size = 0x9000, scoped, tag = 'internal scratch']
  #allocation2 [shape = 'f32[32,512]{1,0:T(8,128)}', space=vmem, size = 0x10000, scoped, tag = 'scratch operand']
  %s0 = inlined_call_operand.vmem [shape: f32[32,32], index: 0, kind: input, shape index: {}]
  %s1 = inlined_call_operand.vmem [shape: f32[9,32,32], index: 1, kind: input, shape index: {}]
  %s2 = inlined_call_operand.vmem [shape: f32[3,256], index: 2, kind: input, shape index: {}]
  %s3 = inlined_call_operand.vmem [shape: f32[32,1], index: 3, kind: input, shape index: {}]
  %s4 = inlined_call_operand.vmem [shape: f32[32,1], index: 4, kind: input, shape index: {}]
  %s5 = inlined_call_operand.vmem [shape: f32[2,32,256], index: 5, kind: input, shape index: {}]
  %s6 = inlined_call_operand.vmem [shape: f32[2,32,256], index: 6, kind: output, shape index: {}]
  %s7 = sld [smem:[#allocation0]]
  $region57: #{cstm_forward.1} parent=0
    _
  %s9 = ssub.s32 1, %s7
  %s10 = scalar_select 0, %s9, %s7
  loop: start=0, step=1, limit=4
  $region2: #{cstm_forward.1} parent=0 // loop_pre_header
    _
  $region3: #{cstm_forward.1} parent=0 // loop_header
    %s12 = sphi 0, %s16
    %p13 = scmp.ge.s32.totalorder %s12, 4
    %s20 = sphi 0, %s20
    %s22 = sphi 0, %s20
    %s23 = sphi 0, %s22
    %s37 = sphi 0, %s23
    %s41 = sphi 0, %s41
    %s43 = sphi 0, %s41
    %s44 = sphi 0, %s43
    %s58 = sphi 0, %s44
    %s62 = sphi 0, %s62
    %s64 = sphi 0, %s62
    %s65 = sphi 0, %s64
    %s79 = sphi 0, %s65
    %s83 = sphi 0, %s83
    %s85 = sphi 0, %s83
    %s86 = sphi 0, %s85
    %s100 = sphi 0, %s86
    %s104 = sphi 0, %s104
    %s106 = sphi 0, %s104
    %s107 = sphi 0, %s106
    %s121 = sphi 0, %s107
    %s127 = sphi 0, %s129
    %s130 = sphi 0, %s127
    %s131 = sphi 0, %s130
    %s147 = sphi 0, %s131
    %s153 = sphi 0, %s155
    %s156 = sphi 0, %s153
    %s157 = sphi 0, %s156
    %s173 = sphi 0, %s157
  $region4: #{cstm_forward.1} parent=0 // loop_header_branch
    %15 = sbr.rel (%p13) target = $region8
  $region5: #{cstm_forward.1} parent=0 // loop_body
    %s17 = ssub.s32 %s12, 1
    %s18 = ssub.s32 %s12, 2
    %s19 = sadd.s32 %s12, 1
    %s21 = sadd.s32 %s20, 1
    %p24 = scmp.eq.s32.totalorder %s12, 1
    %p25 = scmp.ne.s32.totalorder %s20, %s22
    %p26 = scmp.eq.s32.totalorder %s12, 0
    %p27 = por %p25, %p26
    %p28 = scmp.ne.s32.totalorder %s20, %s22
    %p29 = scmp.eq.s32.totalorder %s17, 1
    %p30 = por %p28, %p29
    %p31 = scmp.ne.s32.totalorder %s22, %s23
    %p32 = scmp.eq.s32.totalorder %s17, 0
    %p33 = por %p31, %p32
    %p34 = scmp.ne.s32.totalorder %s22, %s23
    %p35 = scmp.eq.s32.totalorder %s18, 1
    %p36 = por %p34, %p35
    %p38 = scmp.ne.s32.totalorder %s23, %s37
    %p39 = scmp.eq.s32.totalorder %s18, 0
    %p40 = por %p38, %p39
    %s42 = sadd.s32 %s41, 1
    %p45 = scmp.eq.s32.totalorder %s12, 1
    %p46 = scmp.ne.s32.totalorder %s41, %s43
    %p47 = scmp.eq.s32.totalorder %s12, 0
    %p48 = por %p46, %p47
    %p49 = scmp.ne.s32.totalorder %s41, %s43
    %p50 = scmp.eq.s32.totalorder %s17, 1
    %p51 = por %p49, %p50
    %p52 = scmp.ne.s32.totalorder %s43, %s44
    %p53 = scmp.eq.s32.totalorder %s17, 0
    %p54 = por %p52, %p53
    %p55 = scmp.ne.s32.totalorder %s43, %s44
    %p56 = scmp.eq.s32.totalorder %s18, 1
    %p57 = por %p55, %p56
    %p59 = scmp.ne.s32.totalorder %s44, %s58
    %p60 = scmp.eq.s32.totalorder %s18, 0
    %p61 = por %p59, %p60
    %s63 = sadd.s32 %s62, 1
    %p66 = scmp.eq.s32.totalorder %s12, 1
    %p67 = scmp.ne.s32.totalorder %s62, %s64
    %p68 = scmp.eq.s32.totalorder %s12, 0
    %p69 = por %p67, %p68
    %p70 = scmp.ne.s32.totalorder %s62, %s64
    %p71 = scmp.eq.s32.totalorder %s17, 1
    %p72 = por %p70, %p71
    %p73 = scmp.ne.s32.totalorder %s64, %s65
    %p74 = scmp.eq.s32.totalorder %s17, 0
    %p75 = por %p73, %p74
    %p76 = scmp.ne.s32.totalorder %s64, %s65
    %p77 = scmp.eq.s32.totalorder %s18, 1
    %p78 = por %p76, %p77
    %p80 = scmp.ne.s32.totalorder %s65, %s79
    %p81 = scmp.eq.s32.totalorder %s18, 0
    %p82 = por %p80, %p81
    %s84 = sadd.s32 %s83, 1
    %p87 = scmp.eq.s32.totalorder %s12, 1
    %p88 = scmp.ne.s32.totalorder %s83, %s85
    %p89 = scmp.eq.s32.totalorder %s12, 0
    %p90 = por %p88, %p89
    %p91 = scmp.ne.s32.totalorder %s83, %s85
    %p92 = scmp.eq.s32.totalorder %s17, 1
    %p93 = por %p91, %p92
    %p94 = scmp.ne.s32.totalorder %s85, %s86
    %p95 = scmp.eq.s32.totalorder %s17, 0
    %p96 = por %p94, %p95
    %p97 = scmp.ne.s32.totalorder %s85, %s86
    %p98 = scmp.eq.s32.totalorder %s18, 1
    %p99 = por %p97, %p98
    %p101 = scmp.ne.s32.totalorder %s86, %s100
    %p102 = scmp.eq.s32.totalorder %s18, 0
    %p103 = por %p101, %p102
    %s105 = sadd.s32 %s104, 1
    %p108 = scmp.eq.s32.totalorder %s12, 1
    %p109 = scmp.ne.s32.totalorder %s104, %s106
    %p110 = scmp.eq.s32.totalorder %s12, 0
    %p111 = por %p109, %p110
    %p112 = scmp.ne.s32.totalorder %s104, %s106
    %p113 = scmp.eq.s32.totalorder %s17, 1
    %p114 = por %p112, %p113
    %p115 = scmp.ne.s32.totalorder %s106, %s107
    %p116 = scmp.eq.s32.totalorder %s17, 0
    %p117 = por %p115, %p116
    %p118 = scmp.ne.s32.totalorder %s106, %s107
    %p119 = scmp.eq.s32.totalorder %s18, 1
    %p120 = por %p118, %p119
    %p122 = scmp.ne.s32.totalorder %s107, %s121
    %p123 = scmp.eq.s32.totalorder %s18, 0
    %p124 = por %p122, %p123
    %s125 = ssub.s32 %s12, %s19
    %p126 = scmp.eq.s32.totalorder %s125, 0
    %s128 = sadd.s32 %s127, 1
    %s129 = scalar_select %p126, %s127, %s128
    %p132 = pneg %p126
    %p133 = scmp.eq.s32.totalorder %s12, 1
    %p134 = por %p132, %p133
    %p135 = scmp.ne.s32.totalorder %s127, %s130
    %p136 = scmp.eq.s32.totalorder %s12, 0
    %p137 = por %p135, %p136
    %p138 = scmp.ne.s32.totalorder %s127, %s130
    %p139 = scmp.eq.s32.totalorder %s17, 1
    %p140 = por %p138, %p139
    %p141 = scmp.ne.s32.totalorder %s130, %s131
    %p142 = scmp.eq.s32.totalorder %s17, 0
    %p143 = por %p141, %p142
    %p144 = scmp.ne.s32.totalorder %s130, %s131
    %p145 = scmp.eq.s32.totalorder %s18, 1
    %p146 = por %p144, %p145
    %p148 = scmp.ne.s32.totalorder %s131, %s147
    %p149 = scmp.eq.s32.totalorder %s18, 0
    %p150 = por %p148, %p149
    %s151 = ssub.s32 %s12, %s19
    %p152 = scmp.eq.s32.totalorder %s151, 0
    %s154 = sadd.s32 %s153, 1
    %s155 = scalar_select %p152, %s153, %s154
    %p158 = pneg %p152
    %p159 = scmp.eq.s32.totalorder %s12, 1
    %p160 = por %p158, %p159
    %p161 = scmp.ne.s32.totalorder %s153, %s156
    %p162 = scmp.eq.s32.totalorder %s12, 0
    %p163 = por %p161, %p162
    %p164 = scmp.ne.s32.totalorder %s153, %s156
    %p165 = scmp.eq.s32.totalorder %s17, 1
    %p166 = por %p164, %p165
    %p167 = scmp.ne.s32.totalorder %s156, %s157
    %p168 = scmp.eq.s32.totalorder %s17, 0
    %p169 = por %p167, %p168
    %p170 = scmp.ne.s32.totalorder %s156, %s157
    %p171 = scmp.eq.s32.totalorder %s18, 1
    %p172 = por %p170, %p171
    %p174 = scmp.ne.s32.totalorder %s157, %s173
    %p175 = scmp.eq.s32.totalorder %s18, 0
    %p176 = por %p174, %p175
    %p177 = scmp.le.s32.totalorder 1, %s12
    %p178 = scmp.lt.s32.totalorder %s12, 3
    %p179 = pnand %p177, %p178
    %p180 = pneg %p179
    // Predicated region
    $region9: #{cstm_forward.1} parent=5 // pred_check
      _
    $region10: #{cstm_forward.1} parent=5 // pred_check_branch
      %182 = sbr.rel (%p179) target = $region12
    $region11: #{cstm_forward.1} parent=5 // pred_region
      %s183 = ssub.s32 %s12, 1
      // Predicated region
      $region13: #{cstm_forward.1} parent=11 // pred_check
        %p184 = pneg %p33
      $region14: #{cstm_forward.1} parent=11 // pred_check_branch
        %186 = sbr.rel (%p184) target = $region16
      $region15: #{cstm_forward.1} parent=11 // pred_region
        _
      $region16: #{cstm_forward.1} parent=11 // pred_fallthru
        _
      // Predicated region
      $region17: #{cstm_forward.1} parent=11 // pred_check
        %p187 = pneg %p54
      $region18: #{cstm_forward.1} parent=11 // pred_check_branch
        %189 = sbr.rel (%p187) target = $region20
      $region19: #{cstm_forward.1} parent=11 // pred_region
        _
      $region20: #{cstm_forward.1} parent=11 // pred_fallthru
        _
      // Predicated region
      $region21: #{cstm_forward.1} parent=11 // pred_check
        %p190 = pneg %p75
      $region22: #{cstm_forward.1} parent=11 // pred_check_branch
        %192 = sbr.rel (%p190) target = $region24
      $region23: #{cstm_forward.1} parent=11 // pred_region
        _
      $region24: #{cstm_forward.1} parent=11 // pred_fallthru
        _
      // Predicated region
      $region25: #{cstm_forward.1} parent=11 // pred_check
        %p193 = pneg %p96
      $region26: #{cstm_forward.1} parent=11 // pred_check_branch
        %195 = sbr.rel (%p193) target = $region28
      $region27: #{cstm_forward.1} parent=11 // pred_region
        _
      $region28: #{cstm_forward.1} parent=11 // pred_fallthru
        _
      // Predicated region
      $region29: #{cstm_forward.1} parent=11 // pred_check
        %p196 = pneg %p117
      $region30: #{cstm_forward.1} parent=11 // pred_check_branch
        %198 = sbr.rel (%p196) target = $region32
      $region31: #{cstm_forward.1} parent=11 // pred_region
        _
      $region32: #{cstm_forward.1} parent=11 // pred_fallthru
        _
    $region12: #{cstm_forward.1} parent=5 // pred_fallthru
      _
    %p199 = scmp.lt.s32.totalorder %s12, 2
    // Predicated region
    $region33: #{cstm_forward.1} parent=5 // pred_check
      %p200 = pneg %p199
    $region34: #{cstm_forward.1} parent=5 // pred_check_branch
      %202 = sbr.rel (%p200) target = $region36
    $region35: #{cstm_forward.1} parent=5 // pred_region
      // Predicated region
      $region37: #{cstm_forward.1} parent=35 // pred_check
        %p203 = pneg %p137
      $region38: #{cstm_forward.1} parent=35 // pred_check_branch
        %205 = sbr.rel (%p203) target = $region40
      $region39: #{cstm_forward.1} parent=35 // pred_region
        %p206 = scmp.lt.s32.totalorder %s12, 1
        %s207 = scalar_select %p206, %s12, 1
        %s208 = smul.addr %s207, 8
        %s209 = smul.addr %s208, 8
        %s210 = scalar_lea.vmem %s5, %s209
      $region40: #{cstm_forward.1} parent=35 // pred_fallthru
        _
    $region36: #{cstm_forward.1} parent=5 // pred_fallthru
      _
    %p211 = scmp.le.s32.totalorder 1, %s12
    %p212 = scmp.lt.s32.totalorder %s12, 3
    %p213 = pnand %p211, %p212
    %p214 = pneg %p213
    // Predicated region
    $region41: #{cstm_forward.1} parent=5 // pred_check
      _
    $region42: #{cstm_forward.1} parent=5 // pred_check_branch
      %216 = sbr.rel (%p213) target = $region44
    $region43: #{cstm_forward.1} parent=5 // pred_region
      %s217 = ssub.s32 %s12, 1
      %p218 = pneg %p33
      %p219 = pneg %p30
      %p220 = pneg %p54
      %p221 = pneg %p51
      %p222 = pneg %p75
      %p223 = pneg %p72
      %p224 = pneg %p96
      %p225 = pneg %p93
      %p226 = pneg %p117
      %p227 = pneg %p114
      %p228 = scmp.lt.s32.totalorder %s17, 1
      %s229 = scalar_select %p228, %s17, 1
      %s230 = smul.addr %s229, 8
      %s231 = smul.addr %s230, 8
      %s232 = scalar_lea.vmem %s5, %s231
      %p233 = pneg %p143
      %p234 = pneg %p140
      %p235 = pneg %p169
      %p236 = pneg %p166
      %p237 = scmp.lt.s32.totalorder %s17, 1
      %s238 = scalar_select %p237, %s17, 1
      %s239 = smul.addr %s238, 8
      %s240 = smul.addr %s239, 8
      %s241 = scalar_lea.vmem %s6, %s240
      %p242 = scmp.lt.s32.totalorder %s17, 1
      %s243 = scalar_select %p242, %s17, 1
      %s244 = smul.addr %s243, 8
      %s245 = smul.addr %s244, 8
      %s246 = scalar_lea.vmem %s5, %s245
      %p247 = scmp.lt.s32.totalorder %s17, 1
      %s248 = scalar_select %p247, %s17, 1
      %s249 = smul.addr %s248, 8
      %s250 = smul.addr %s249, 8
      %s251 = scalar_lea.vmem %s6, %s250
      %v252 = vld [vmem:[%s246] sm:$0xff]
      %v253 = vld [vmem:[%s246 + $0x8] sm:$0xff]
      %v254 = vld [vmem:[%s246 + $0x10] sm:$0xff]
      %v255 = vld [vmem:[%s246 + $0x18] sm:$0xff]
      %v256 = vld [vmem:[%s246 + $0x20] sm:$0xff]
      %v257 = vld [vmem:[%s246 + $0x28] sm:$0xff]
      %v258 = vld [vmem:[%s246 + $0x30] sm:$0xff]
      %v259 = vld [vmem:[%s246 + $0x38] sm:$0xff]
      %v260 = vld [vmem:[%s0] sm:$0xff]
      %v261 = vld [vmem:[%s0 + $0x8] sm:$0xff]
      %v262 = vld [vmem:[%s0 + $0x10] sm:$0xff]
      %v263 = vld [vmem:[%s0 + $0x18] sm:$0xff]
      %v264 = vld [vmem:[%s3] sm:$0xff]
      %v265 = vld [vmem:[%s3 + $0x8] sm:$0xff]
      %v266 = vld [vmem:[%s3 + $0x10] sm:$0xff]
      %v267 = vld [vmem:[%s3 + $0x18] sm:$0xff]
      %269 = vset.pattern.permute.xlu0 0
      %270 = vperm.xlu0 %269, %v264
      %v271 = vpop.permute.xlu0 %270
      %274 = vset.pattern.permute.xlu0 0
      %275 = vperm.xlu0 %274, %v265
      %v276 = vpop.permute.xlu0 %275
      %279 = vset.pattern.permute.xlu0 0
      %280 = vperm.xlu0 %279, %v266
      %v281 = vpop.permute.xlu0 %280
      %284 = vset.pattern.permute.xlu0 0
      %285 = vperm.xlu0 %284, %v267
      %v286 = vpop.permute.xlu0 %285
      %vm288 = vcmask 261120
      %v290 = vsel %vm288, %v260, 0
      %v293 = vsel %vm288, %v261, 0
      %v296 = vsel %vm288, %v262, 0
      %v299 = vsel %vm288, %v263, 0
      %301 = vmatpush.msra.mxu0 0.0
      %302 = vmatpush.msra.mxu0 0.0
      %303 = vmatpush.msra.mxu0 0.0
      %304 = vmatpush.msra.mxu0 0.0
      %305 = vmatpush.msra.mxu0 0.0
      %306 = vmatpush.msra.mxu0 0.0
      %307 = vmatpush.msra.mxu0 0.0
      %308 = vmatpush.msra.mxu0 0.0
      %309 = vmatpush.msra.mxu0 0.0
      %310 = vmatpush.msra.mxu0 0.0
      %311 = vmatpush.msra.mxu0 0.0
      %312 = vmatpush.msra.mxu0 0.0
      %v313 = vand.u32 %v258, 4294901760
      %314 = vmatpush.msra.mxu0 %v313
      %v315 = vand.u32 %v256, 4294901760
      %316 = vmatpush.msra.mxu0 %v315
      %v317 = vand.u32 %v254, 4294901760
      %318 = vmatpush.msra.mxu0 %v317
      %v319 = vand.u32 %v252, 4294901760
      %320 = vmatpush.msra.mxu0 %v319
      %v321 = vand.u32 %v290, 4294901760
      %v322 = vsub.f32 %v290, %v321
      %v323 = vand.u32 %v322, 4294901760
      %v324 = vsub.f32 %v322, %v323
      %v325 = vand.u32 %v324, 4294901760
      %326 = vmatmul.f32.gmra.mxu0 %v325
      %v327 = vpop.f32.mrf.mxu0
      %v328 = vadd.f32 %v271, %v327
      %v329 = vand.u32 %v293, 4294901760
      %v330 = vsub.f32 %v293, %v329
      %v331 = vand.u32 %v330, 4294901760
      %v332 = vsub.f32 %v330, %v331
      %v333 = vand.u32 %v332, 4294901760
      %334 = vmatmul.f32.gmra.mxu0 %v333
      %v335 = vpop.f32.mrf.mxu0
      %v336 = vadd.f32 %v276, %v335
      %v337 = vand.u32 %v296, 4294901760
      %v338 = vsub.f32 %v296, %v337
      %v339 = vand.u32 %v338, 4294901760
      %v340 = vsub.f32 %v338, %v339
      %v341 = vand.u32 %v340, 4294901760
      %342 = vmatmul.f32.gmra.mxu0 %v341
      %v343 = vpop.f32.mrf.mxu0
      %v344 = vadd.f32 %v281, %v343
      %v345 = vand.u32 %v299, 4294901760
      %v346 = vsub.f32 %v299, %v345
      %v347 = vand.u32 %v346, 4294901760
      %v348 = vsub.f32 %v346, %v347
      %v349 = vand.u32 %v348, 4294901760
      %350 = vmatmul.f32.gmra.mxu0 %v349
      %v351 = vpop.f32.mrf.mxu0
      %v352 = vadd.f32 %v286, %v351
      %353 = vdwg.mxu0
      %354 = vmatpush.msra.mxu0 0.0
      %355 = vmatpush.msra.mxu0 0.0
      %356 = vmatpush.msra.mxu0 0.0
      %357 = vmatpush.msra.mxu0 0.0
      %358 = vmatpush.msra.mxu0 0.0
      %359 = vmatpush.msra.mxu0 0.0
      %360 = vmatpush.msra.mxu0 0.0
      %361 = vmatpush.msra.mxu0 0.0
      %362 = vmatpush.msra.mxu0 0.0
      %363 = vmatpush.msra.mxu0 0.0
      %364 = vmatpush.msra.mxu0 0.0
      %365 = vmatpush.msra.mxu0 0.0
      %v366 = vand.u32 %v258, 4294901760
      %v367 = vsub.f32 %v258, %v366
      %v368 = vand.u32 %v367, 4294901760
      %v369 = vsub.f32 %v367, %v368
      %v370 = vand.u32 %v369, 4294901760
      %371 = vmatpush.msra.mxu0 %v370
      %v372 = vand.u32 %v256, 4294901760
      %v373 = vsub.f32 %v256, %v372
      %v374 = vand.u32 %v373, 4294901760
      %v375 = vsub.f32 %v373, %v374
      %v376 = vand.u32 %v375, 4294901760
      %377 = vmatpush.msra.mxu0 %v376
      %v378 = vand.u32 %v254, 4294901760
      %v379 = vsub.f32 %v254, %v378
      %v380 = vand.u32 %v379, 4294901760
      %v381 = vsub.f32 %v379, %v380
      %v382 = vand.u32 %v381, 4294901760
      %383 = vmatpush.msra.mxu0 %v382
      %v384 = vand.u32 %v252, 4294901760
      %v385 = vsub.f32 %v252, %v384
      %v386 = vand.u32 %v385, 4294901760
      %v387 = vsub.f32 %v385, %v386
      %v388 = vand.u32 %v387, 4294901760
      %389 = vmatpush.msra.mxu0 %v388
      %v390 = vand.u32 %v290, 4294901760
      %391 = vmatmul.f32.gmra.mxu0 %v390
      %v392 = vpop.f32.mrf.mxu0
      %v393 = vadd.f32 %v328, %v392
      %v394 = vand.u32 %v293, 4294901760
      %395 = vmatmul.f32.gmra.mxu0 %v394
      %v396 = vpop.f32.mrf.mxu0
      %v397 = vadd.f32 %v336, %v396
      %v398 = vand.u32 %v296, 4294901760
      %399 = vmatmul.f32.gmra.mxu0 %v398
      %v400 = vpop.f32.mrf.mxu0
      %v401 = vadd.f32 %v344, %v400
      %v402 = vand.u32 %v299, 4294901760
      %403 = vmatmul.f32.gmra.mxu0 %v402
      %v404 = vpop.f32.mrf.mxu0
      %v405 = vadd.f32 %v352, %v404
      %406 = vdwg.mxu0
      %407 = vmatpush.msra.mxu0 0.0
      %408 = vmatpush.msra.mxu0 0.0
      %409 = vmatpush.msra.mxu0 0.0
      %410 = vmatpush.msra.mxu0 0.0
      %411 = vmatpush.msra.mxu0 0.0
      %412 = vmatpush.msra.mxu0 0.0
      %413 = vmatpush.msra.mxu0 0.0
      %414 = vmatpush.msra.mxu0 0.0
      %415 = vmatpush.msra.mxu0 0.0
      %416 = vmatpush.msra.mxu0 0.0
      %417 = vmatpush.msra.mxu0 0.0
      %418 = vmatpush.msra.mxu0 0.0
      %v419 = vand.u32 %v258, 4294901760
      %v420 = vsub.f32 %v258, %v419
      %421 = vmatpush.msra.mxu0 %v420
      %v422 = vand.u32 %v256, 4294901760
      %v423 = vsub.f32 %v256, %v422
      %424 = vmatpush.msra.mxu0 %v423
      %v425 = vand.u32 %v254, 4294901760
      %v426 = vsub.f32 %v254, %v425
      %427 = vmatpush.msra.mxu0 %v426
      %v428 = vand.u32 %v252, 4294901760
      %v429 = vsub.f32 %v252, %v428
      %430 = vmatpush.msra.mxu0 %v429
      %v431 = vand.u32 %v290, 4294901760
      %v432 = vsub.f32 %v290, %v431
      %433 = vmatmul.f32.gmra.mxu0 %v432
      %v434 = vpop.f32.mrf.mxu0
      %v435 = vadd.f32 %v393, %v434
      %v436 = vand.u32 %v293, 4294901760
      %v437 = vsub.f32 %v293, %v436
      %438 = vmatmul.f32.gmra.mxu0 %v437
      %v439 = vpop.f32.mrf.mxu0
      %v440 = vadd.f32 %v397, %v439
      %v441 = vand.u32 %v296, 4294901760
      %v442 = vsub.f32 %v296, %v441
      %443 = vmatmul.f32.gmra.mxu0 %v442
      %v444 = vpop.f32.mrf.mxu0
      %v445 = vadd.f32 %v401, %v444
      %v446 = vand.u32 %v299, 4294901760
      %v447 = vsub.f32 %v299, %v446
      %448 = vmatmul.f32.gmra.mxu0 %v447
      %v449 = vpop.f32.mrf.mxu0
      %v450 = vadd.f32 %v405, %v449
      %451 = vdwg.mxu0
      %452 = vmatpush.msra.mxu0 0.0
      %453 = vmatpush.msra.mxu0 0.0
      %454 = vmatpush.msra.mxu0 0.0
      %455 = vmatpush.msra.mxu0 0.0
      %456 = vmatpush.msra.mxu0 0.0
      %457 = vmatpush.msra.mxu0 0.0
      %458 = vmatpush.msra.mxu0 0.0
      %459 = vmatpush.msra.mxu0 0.0
      %460 = vmatpush.msra.mxu0 0.0
      %461 = vmatpush.msra.mxu0 0.0
      %462 = vmatpush.msra.mxu0 0.0
      %463 = vmatpush.msra.mxu0 0.0
      %v464 = vand.u32 %v258, 4294901760
      %465 = vmatpush.msra.mxu0 %v464
      %v466 = vand.u32 %v256, 4294901760
      %467 = vmatpush.msra.mxu0 %v466
      %v468 = vand.u32 %v254, 4294901760
      %469 = vmatpush.msra.mxu0 %v468
      %v470 = vand.u32 %v252, 4294901760
      %471 = vmatpush.msra.mxu0 %v470
      %v472 = vand.u32 %v290, 4294901760
      %v473 = vsub.f32 %v290, %v472
      %v474 = vand.u32 %v473, 4294901760
      %475 = vmatmul.f32.gmra.mxu0 %v474
      %v476 = vpop.f32.mrf.mxu0
      %v477 = vadd.f32 %v435, %v476
      %v478 = vand.u32 %v293, 4294901760
      %v479 = vsub.f32 %v293, %v478
      %v480 = vand.u32 %v479, 4294901760
      %481 = vmatmul.f32.gmra.mxu0 %v480
      %v482 = vpop.f32.mrf.mxu0
      %v483 = vadd.f32 %v440, %v482
      %v484 = vand.u32 %v296, 4294901760
      %v485 = vsub.f32 %v296, %v484
      %v486 = vand.u32 %v485, 4294901760
      %487 = vmatmul.f32.gmra.mxu0 %v486
      %v488 = vpop.f32.mrf.mxu0
      %v489 = vadd.f32 %v445, %v488
      %v490 = vand.u32 %v299, 4294901760
      %v491 = vsub.f32 %v299, %v490
      %v492 = vand.u32 %v491, 4294901760
      %493 = vmatmul.f32.gmra.mxu0 %v492
      %v494 = vpop.f32.mrf.mxu0
      %v495 = vadd.f32 %v450, %v494
      %496 = vdwg.mxu0
      %497 = vmatpush.msra.mxu0 0.0
      %498 = vmatpush.msra.mxu0 0.0
      %499 = vmatpush.msra.mxu0 0.0
      %500 = vmatpush.msra.mxu0 0.0
      %501 = vmatpush.msra.mxu0 0.0
      %502 = vmatpush.msra.mxu0 0.0
      %503 = vmatpush.msra.mxu0 0.0
      %504 = vmatpush.msra.mxu0 0.0
      %505 = vmatpush.msra.mxu0 0.0
      %506 = vmatpush.msra.mxu0 0.0
      %507 = vmatpush.msra.mxu0 0.0
      %508 = vmatpush.msra.mxu0 0.0
      %v509 = vand.u32 %v258, 4294901760
      %v510 = vsub.f32 %v258, %v509
      %v511 = vand.u32 %v510, 4294901760
      %512 = vmatpush.msra.mxu0 %v511
      %v513 = vand.u32 %v256, 4294901760
      %v514 = vsub.f32 %v256, %v513
      %v515 = vand.u32 %v514, 4294901760
      %516 = vmatpush.msra.mxu0 %v515
      %v517 = vand.u32 %v254, 4294901760
      %v518 = vsub.f32 %v254, %v517
      %v519 = vand.u32 %v518, 4294901760
      %520 = vmatpush.msra.mxu0 %v519
      %v521 = vand.u32 %v252, 4294901760
      %v522 = vsub.f32 %v252, %v521
      %v523 = vand.u32 %v522, 4294901760
      %524 = vmatpush.msra.mxu0 %v523
      %v525 = vand.u32 %v290, 4294901760
      %526 = vmatmul.f32.gmra.mxu0 %v525
      %v527 = vpop.f32.mrf.mxu0
      %v528 = vadd.f32 %v477, %v527
      %v529 = vand.u32 %v293, 4294901760
      %530 = vmatmul.f32.gmra.mxu0 %v529
      %v531 = vpop.f32.mrf.mxu0
      %v532 = vadd.f32 %v483, %v531
      %v533 = vand.u32 %v296, 4294901760
      %534 = vmatmul.f32.gmra.mxu0 %v533
      %v535 = vpop.f32.mrf.mxu0
      %v536 = vadd.f32 %v489, %v535
      %v537 = vand.u32 %v299, 4294901760
      %538 = vmatmul.f32.gmra.mxu0 %v537
      %v539 = vpop.f32.mrf.mxu0
      %v540 = vadd.f32 %v495, %v539
      %541 = vdwg.mxu0
      %542 = vmatpush.msra.mxu0 0.0
      %543 = vmatpush.msra.mxu0 0.0
      %544 = vmatpush.msra.mxu0 0.0
      %545 = vmatpush.msra.mxu0 0.0
      %546 = vmatpush.msra.mxu0 0.0
      %547 = vmatpush.msra.mxu0 0.0
      %548 = vmatpush.msra.mxu0 0.0
      %549 = vmatpush.msra.mxu0 0.0
      %550 = vmatpush.msra.mxu0 0.0
      %551 = vmatpush.msra.mxu0 0.0
      %552 = vmatpush.msra.mxu0 0.0
      %553 = vmatpush.msra.mxu0 0.0
      %v554 = vand.u32 %v258, 4294901760
      %555 = vmatpush.msra.mxu0 %v554
      %v556 = vand.u32 %v256, 4294901760
      %557 = vmatpush.msra.mxu0 %v556
      %v558 = vand.u32 %v254, 4294901760
      %559 = vmatpush.msra.mxu0 %v558
      %v560 = vand.u32 %v252, 4294901760
      %561 = vmatpush.msra.mxu0 %v560
      %v562 = vand.u32 %v290, 4294901760
      %563 = vmatmul.f32.gmra.mxu0 %v562
      %v564 = vpop.f32.mrf.mxu0
      %v565 = vadd.f32 %v528, %v564
      %v566 = vand.u32 %v293, 4294901760
      %567 = vmatmul.f32.gmra.mxu0 %v566
      %v568 = vpop.f32.mrf.mxu0
      %v569 = vadd.f32 %v532, %v568
      %v570 = vand.u32 %v296, 4294901760
      %571 = vmatmul.f32.gmra.mxu0 %v570
      %v572 = vpop.f32.mrf.mxu0
      %v573 = vadd.f32 %v536, %v572
      %v574 = vand.u32 %v299, 4294901760
      %575 = vmatmul.f32.gmra.mxu0 %v574
      %v576 = vpop.f32.mrf.mxu0
      %v577 = vadd.f32 %v540, %v576
      %578 = vdwg.mxu0
      %579 = vmatpush.msra.mxu0 0.0
      %580 = vmatpush.msra.mxu0 0.0
      %581 = vmatpush.msra.mxu0 0.0
      %582 = vmatpush.msra.mxu0 0.0
      %583 = vmatpush.msra.mxu0 0.0
      %584 = vmatpush.msra.mxu0 0.0
      %585 = vmatpush.msra.mxu0 0.0
      %586 = vmatpush.msra.mxu0 0.0
      %587 = vmatpush.msra.mxu0 0.0
      %588 = vmatpush.msra.mxu0 0.0
      %589 = vmatpush.msra.mxu0 0.0
      %590 = vmatpush.msra.mxu0 0.0
      %v591 = vand.u32 %v259, 4294901760
      %592 = vmatpush.msra.mxu0 %v591
      %v593 = vand.u32 %v257, 4294901760
      %594 = vmatpush.msra.mxu0 %v593
      %v595 = vand.u32 %v255, 4294901760
      %596 = vmatpush.msra.mxu0 %v595
      %v597 = vand.u32 %v253, 4294901760
      %598 = vmatpush.msra.mxu0 %v597
      %v599 = vand.u32 %v290, 4294901760
      %v600 = vsub.f32 %v290, %v599
      %v601 = vand.u32 %v600, 4294901760
      %v602 = vsub.f32 %v600, %v601
      %v603 = vand.u32 %v602, 4294901760
      %604 = vmatmul.f32.gmra.mxu0 %v603
      %v605 = vpop.f32.mrf.mxu0
      %v606 = vadd.f32 %v271, %v605
      %v607 = vand.u32 %v293, 4294901760
      %v608 = vsub.f32 %v293, %v607
      %v609 = vand.u32 %v608, 4294901760
      %v610 = vsub.f32 %v608, %v609
      %v611 = vand.u32 %v610, 4294901760
      %612 = vmatmul.f32.gmra.mxu0 %v611
      %v613 = vpop.f32.mrf.mxu0
      %v614 = vadd.f32 %v276, %v613
      %v615 = vand.u32 %v296, 4294901760
      %v616 = vsub.f32 %v296, %v615
      %v617 = vand.u32 %v616, 4294901760
      %v618 = vsub.f32 %v616, %v617
      %v619 = vand.u32 %v618, 4294901760
      %620 = vmatmul.f32.gmra.mxu0 %v619
      %v621 = vpop.f32.mrf.mxu0
      %v622 = vadd.f32 %v281, %v621
      %v623 = vand.u32 %v299, 4294901760
      %v624 = vsub.f32 %v299, %v623
      %v625 = vand.u32 %v624, 4294901760
      %v626 = vsub.f32 %v624, %v625
      %v627 = vand.u32 %v626, 4294901760
      %628 = vmatmul.f32.gmra.mxu0 %v627
      %v629 = vpop.f32.mrf.mxu0
      %v630 = vadd.f32 %v286, %v629
      %631 = vdwg.mxu0
      %632 = vmatpush.msra.mxu0 0.0
      %633 = vmatpush.msra.mxu0 0.0
      %634 = vmatpush.msra.mxu0 0.0
      %635 = vmatpush.msra.mxu0 0.0
      %636 = vmatpush.msra.mxu0 0.0
      %637 = vmatpush.msra.mxu0 0.0
      %638 = vmatpush.msra.mxu0 0.0
      %639 = vmatpush.msra.mxu0 0.0
      %640 = vmatpush.msra.mxu0 0.0
      %641 = vmatpush.msra.mxu0 0.0
      %642 = vmatpush.msra.mxu0 0.0
      %643 = vmatpush.msra.mxu0 0.0
      %v644 = vand.u32 %v259, 4294901760
      %v645 = vsub.f32 %v259, %v644
      %v646 = vand.u32 %v645, 4294901760
      %v647 = vsub.f32 %v645, %v646
      %v648 = vand.u32 %v647, 4294901760
      %649 = vmatpush.msra.mxu0 %v648
      %v650 = vand.u32 %v257, 4294901760
      %v651 = vsub.f32 %v257, %v650
      %v652 = vand.u32 %v651, 4294901760
      %v653 = vsub.f32 %v651, %v652
      %v654 = vand.u32 %v653, 4294901760
      %655 = vmatpush.msra.mxu0 %v654
      %v656 = vand.u32 %v255, 4294901760
      %v657 = vsub.f32 %v255, %v656
      %v658 = vand.u32 %v657, 4294901760
      %v659 = vsub.f32 %v657, %v658
      %v660 = vand.u32 %v659, 4294901760
      %661 = vmatpush.msra.mxu0 %v660
      %v662 = vand.u32 %v253, 4294901760
      %v663 = vsub.f32 %v253, %v662
      %v664 = vand.u32 %v663, 4294901760
      %v665 = vsub.f32 %v663, %v664
      %v666 = vand.u32 %v665, 4294901760
      %667 = vmatpush.msra.mxu0 %v666
      %v668 = vand.u32 %v290, 4294901760
      %669 = vmatmul.f32.gmra.mxu0 %v668
      %v670 = vpop.f32.mrf.mxu0
      %v671 = vadd.f32 %v606, %v670
      %v672 = vand.u32 %v293, 4294901760
      %673 = vmatmul.f32.gmra.mxu0 %v672
      %v674 = vpop.f32.mrf.mxu0
      %v675 = vadd.f32 %v614, %v674
      %v676 = vand.u32 %v296, 4294901760
      %677 = vmatmul.f32.gmra.mxu0 %v676
      %v678 = vpop.f32.mrf.mxu0
      %v679 = vadd.f32 %v622, %v678
      %v680 = vand.u32 %v299, 4294901760
      %681 = vmatmul.f32.gmra.mxu0 %v680
      %v682 = vpop.f32.mrf.mxu0
      %v683 = vadd.f32 %v630, %v682
      %684 = vdwg.mxu0
      %685 = vmatpush.msra.mxu0 0.0
      %686 = vmatpush.msra.mxu0 0.0
      %687 = vmatpush.msra.mxu0 0.0
      %688 = vmatpush.msra.mxu0 0.0
      %689 = vmatpush.msra.mxu0 0.0
      %690 = vmatpush.msra.mxu0 0.0
      %691 = vmatpush.msra.mxu0 0.0
      %692 = vmatpush.msra.mxu0 0.0
      %693 = vmatpush.msra.mxu0 0.0
      %694 = vmatpush.msra.mxu0 0.0
      %695 = vmatpush.msra.mxu0 0.0
      %696 = vmatpush.msra.mxu0 0.0
      %v697 = vand.u32 %v259, 4294901760
      %v698 = vsub.f32 %v259, %v697
      %699 = vmatpush.msra.mxu0 %v698
      %v700 = vand.u32 %v257, 4294901760
      %v701 = vsub.f32 %v257, %v700
      %702 = vmatpush.msra.mxu0 %v701
      %v703 = vand.u32 %v255, 4294901760
      %v704 = vsub.f32 %v255, %v703
      %705 = vmatpush.msra.mxu0 %v704
      %v706 = vand.u32 %v253, 4294901760
      %v707 = vsub.f32 %v253, %v706
      %708 = vmatpush.msra.mxu0 %v707
      %v709 = vand.u32 %v290, 4294901760
      %v710 = vsub.f32 %v290, %v709
      %711 = vmatmul.f32.gmra.mxu0 %v710
      %v712 = vpop.f32.mrf.mxu0
      %v713 = vadd.f32 %v671, %v712
      %v714 = vand.u32 %v293, 4294901760
      %v715 = vsub.f32 %v293, %v714
      %716 = vmatmul.f32.gmra.mxu0 %v715
      %v717 = vpop.f32.mrf.mxu0
      %v718 = vadd.f32 %v675, %v717
      %v719 = vand.u32 %v296, 4294901760
      %v720 = vsub.f32 %v296, %v719
      %721 = vmatmul.f32.gmra.mxu0 %v720
      %v722 = vpop.f32.mrf.mxu0
      %v723 = vadd.f32 %v679, %v722
      %v724 = vand.u32 %v299, 4294901760
      %v725 = vsub.f32 %v299, %v724
      %726 = vmatmul.f32.gmra.mxu0 %v725
      %v727 = vpop.f32.mrf.mxu0
      %v728 = vadd.f32 %v683, %v727
      %729 = vdwg.mxu0
      %730 = vmatpush.msra.mxu0 0.0
      %731 = vmatpush.msra.mxu0 0.0
      %732 = vmatpush.msra.mxu0 0.0
      %733 = vmatpush.msra.mxu0 0.0
      %734 = vmatpush.msra.mxu0 0.0
      %735 = vmatpush.msra.mxu0 0.0
      %736 = vmatpush.msra.mxu0 0.0
      %737 = vmatpush.msra.mxu0 0.0
      %738 = vmatpush.msra.mxu0 0.0
      %739 = vmatpush.msra.mxu0 0.0
      %740 = vmatpush.msra.mxu0 0.0
      %741 = vmatpush.msra.mxu0 0.0
      %v742 = vand.u32 %v259, 4294901760
      %743 = vmatpush.msra.mxu0 %v742
      %v744 = vand.u32 %v257, 4294901760
      %745 = vmatpush.msra.mxu0 %v744
      %v746 = vand.u32 %v255, 4294901760
      %747 = vmatpush.msra.mxu0 %v746
      %v748 = vand.u32 %v253, 4294901760
      %749 = vmatpush.msra.mxu0 %v748
      %v750 = vand.u32 %v290, 4294901760
      %v751 = vsub.f32 %v290, %v750
      %v752 = vand.u32 %v751, 4294901760
      %753 = vmatmul.f32.gmra.mxu0 %v752
      %v754 = vpop.f32.mrf.mxu0
      %v755 = vadd.f32 %v713, %v754
      %v756 = vand.u32 %v293, 4294901760
      %v757 = vsub.f32 %v293, %v756
      %v758 = vand.u32 %v757, 4294901760
      %759 = vmatmul.f32.gmra.mxu0 %v758
      %v760 = vpop.f32.mrf.mxu0
      %v761 = vadd.f32 %v718, %v760
      %v762 = vand.u32 %v296, 4294901760
      %v763 = vsub.f32 %v296, %v762
      %v764 = vand.u32 %v763, 4294901760
      %765 = vmatmul.f32.gmra.mxu0 %v764
      %v766 = vpop.f32.mrf.mxu0
      %v767 = vadd.f32 %v723, %v766
      %v768 = vand.u32 %v299, 4294901760
      %v769 = vsub.f32 %v299, %v768
      %v770 = vand.u32 %v769, 4294901760
      %771 = vmatmul.f32.gmra.mxu0 %v770
      %v772 = vpop.f32.mrf.mxu0
      %v773 = vadd.f32 %v728, %v772
      %774 = vdwg.mxu0
      %775 = vmatpush.msra.mxu0 0.0
      %776 = vmatpush.msra.mxu0 0.0
      %777 = vmatpush.msra.mxu0 0.0
      %778 = vmatpush.msra.mxu0 0.0
      %779 = vmatpush.msra.mxu0 0.0
      %780 = vmatpush.msra.mxu0 0.0
      %781 = vmatpush.msra.mxu0 0.0
      %782 = vmatpush.msra.mxu0 0.0
      %783 = vmatpush.msra.mxu0 0.0
      %784 = vmatpush.msra.mxu0 0.0
      %785 = vmatpush.msra.mxu0 0.0
      %786 = vmatpush.msra.mxu0 0.0
      %v787 = vand.u32 %v259, 4294901760
      %v788 = vsub.f32 %v259, %v787
      %v789 = vand.u32 %v788, 4294901760
      %790 = vmatpush.msra.mxu0 %v789
      %v791 = vand.u32 %v257, 4294901760
      %v792 = vsub.f32 %v257, %v791
      %v793 = vand.u32 %v792, 4294901760
      %794 = vmatpush.msra.mxu0 %v793
      %v795 = vand.u32 %v255, 4294901760
      %v796 = vsub.f32 %v255, %v795
      %v797 = vand.u32 %v796, 4294901760
      %798 = vmatpush.msra.mxu0 %v797
      %v799 = vand.u32 %v253, 4294901760
      %v800 = vsub.f32 %v253, %v799
      %v801 = vand.u32 %v800, 4294901760
      %802 = vmatpush.msra.mxu0 %v801
      %v803 = vand.u32 %v290, 4294901760
      %804 = vmatmul.f32.gmra.mxu0 %v803
      %v805 = vpop.f32.mrf.mxu0
      %v806 = vadd.f32 %v755, %v805
      %v807 = vand.u32 %v293, 4294901760
      %808 = vmatmul.f32.gmra.mxu0 %v807
      %v809 = vpop.f32.mrf.mxu0
      %v810 = vadd.f32 %v761, %v809
      %v811 = vand.u32 %v296, 4294901760
      %812 = vmatmul.f32.gmra.mxu0 %v811
      %v813 = vpop.f32.mrf.mxu0
      %v814 = vadd.f32 %v767, %v813
      %v815 = vand.u32 %v299, 4294901760
      %816 = vmatmul.f32.gmra.mxu0 %v815
      %v817 = vpop.f32.mrf.mxu0
      %v818 = vadd.f32 %v773, %v817
      %819 = vdwg.mxu0
      %820 = vmatpush.msra.mxu0 0.0
      %821 = vmatpush.msra.mxu0 0.0
      %822 = vmatpush.msra.mxu0 0.0
      %823 = vmatpush.msra.mxu0 0.0
      %824 = vmatpush.msra.mxu0 0.0
      %825 = vmatpush.msra.mxu0 0.0
      %826 = vmatpush.msra.mxu0 0.0
      %827 = vmatpush.msra.mxu0 0.0
      %828 = vmatpush.msra.mxu0 0.0
      %829 = vmatpush.msra.mxu0 0.0
      %830 = vmatpush.msra.mxu0 0.0
      %831 = vmatpush.msra.mxu0 0.0
      %v832 = vand.u32 %v259, 4294901760
      %833 = vmatpush.msra.mxu0 %v832
      %v834 = vand.u32 %v257, 4294901760
      %835 = vmatpush.msra.mxu0 %v834
      %v836 = vand.u32 %v255, 4294901760
      %837 = vmatpush.msra.mxu0 %v836
      %v838 = vand.u32 %v253, 4294901760
      %839 = vmatpush.msra.mxu0 %v838
      %v840 = vand.u32 %v290, 4294901760
      %841 = vmatmul.f32.gmra.mxu0 %v840
      %v842 = vpop.f32.mrf.mxu0
      %v843 = vadd.f32 %v806, %v842
      %v844 = vand.u32 %v293, 4294901760
      %845 = vmatmul.f32.gmra.mxu0 %v844
      %v846 = vpop.f32.mrf.mxu0
      %v847 = vadd.f32 %v810, %v846
      %v848 = vand.u32 %v296, 4294901760
      %849 = vmatmul.f32.gmra.mxu0 %v848
      %v850 = vpop.f32.mrf.mxu0
      %v851 = vadd.f32 %v814, %v850
      %v852 = vand.u32 %v299, 4294901760
      %853 = vmatmul.f32.gmra.mxu0 %v852
      %v854 = vpop.f32.mrf.mxu0
      %v855 = vadd.f32 %v818, %v854
      %856 = vdwg.mxu0
      %v857 = vtanh.pop %v565
      %v858 = vtanh.pop %v843
      %v859 = vtanh.pop %v569
      %v860 = vtanh.pop %v847
      %v861 = vtanh.pop %v573
      %v862 = vtanh.pop %v851
      %v863 = vtanh.pop %v577
      %v864 = vtanh.pop %v855
      %865 = vst [vmem:[#allocation2] sm:$0xff] 0.0
      %866 = vst [vmem:[#allocation2 + $0x20] sm:$0xff] 0.0
      %867 = vst [vmem:[#allocation2 + $0x40] sm:$0xff] 0.0
      %868 = vst [vmem:[#allocation2 + $0x60] sm:$0xff] 0.0
      %869 = vst [vmem:[#allocation2 + $0x18] sm:$0xff] 0.0
      %870 = vst [vmem:[#allocation2 + $0x38] sm:$0xff] 0.0
      %871 = vst [vmem:[#allocation2 + $0x58] sm:$0xff] 0.0
      %872 = vst [vmem:[#allocation2 + $0x78] sm:$0xff] 0.0
      %873 = vst [vmem:[#allocation2 + $0x8] sm:$0xff] %v857
      %874 = vst [vmem:[#allocation2 + $0x10] sm:$0xff] %v858
      %875 = vst [vmem:[#allocation2 + $0x28] sm:$0xff] %v859
      %876 = vst [vmem:[#allocation2 + $0x30] sm:$0xff] %v860
      %877 = vst [vmem:[#allocation2 + $0x48] sm:$0xff] %v861
      %878 = vst [vmem:[#allocation2 + $0x50] sm:$0xff] %v862
      %879 = vst [vmem:[#allocation2 + $0x68] sm:$0xff] %v863
      %880 = vst [vmem:[#allocation2 + $0x70] sm:$0xff] %v864
      %v881 = vld [vmem:[#allocation2] sm:$0xff]
      %v882 = vld [vmem:[#allocation2 + $0x8] sm:$0xff]
      %v883 = vld [vmem:[#allocation2 + $0x10] sm:$0xff]
      %v884 = vld [vmem:[#allocation2 + $0x20] sm:$0xff]
      %v885 = vld [vmem:[#allocation2 + $0x28] sm:$0xff]
      %v886 = vld [vmem:[#allocation2 + $0x30] sm:$0xff]
      %v887 = vld [vmem:[#allocation2 + $0x40] sm:$0xff]
      %v888 = vld [vmem:[#allocation2 + $0x48] sm:$0xff]
      %v889 = vld [vmem:[#allocation2 + $0x50] sm:$0xff]
      %v890 = vld [vmem:[#allocation2 + $0x60] sm:$0xff]
      %v891 = vld [vmem:[#allocation2 + $0x68] sm:$0xff]
      %v892 = vld [vmem:[#allocation2 + $0x70] sm:$0xff]
      %v893 = vld [vmem:[%s2] ss:$4 sm:$0x3]
      %v895 = vperm.slane %v893, 0
      %v896 = vperm.slane %v893, 1
      %897 = vrot.lane.b32.xlu0 %v895, 111
      %v898 = vpop.permute.xlu0 %897
      %899 = vrot.lane.b32.xlu0 %v896, 111
      %v900 = vpop.permute.xlu0 %899
      %vm901 = vcmask 908288
      %v902 = vsel %vm901, %v898, %v900
      %v906 = vmul.f32 %v881, %v898
      %v907 = vmul.f32 %v882, %v902
      %v908 = vmul.f32 %v883, %v900
      %v909 = vmul.f32 %v884, %v898
      %v910 = vmul.f32 %v885, %v902
      %v911 = vmul.f32 %v886, %v900
      %v912 = vmul.f32 %v887, %v898
      %v913 = vmul.f32 %v888, %v902
      %v914 = vmul.f32 %v889, %v900
      %v915 = vmul.f32 %v890, %v898
      %v916 = vmul.f32 %v891, %v902
      %v917 = vmul.f32 %v892, %v900
      %v918 = vld [vmem:[%s1] sm:$0xff]
      %v919 = vld [vmem:[%s1 + $0x8] sm:$0xff]
      %v920 = vld [vmem:[%s1 + $0x10] sm:$0xff]
      %v921 = vld [vmem:[%s1 + $0x18] sm:$0xff]
      %s922 = scalar_lea.vmem %s2, 1
      %v923 = vld [vmem:[%s922] ss:$4 sm:$0x3]
      %v925 = vperm.slane %v923, 0
      %v926 = vperm.slane %v923, 1
      %929 = vrot.lane.b32.xlu0 %v925, 112
      %v930 = vpop.permute.xlu0 %929
      %931 = vrot.lane.b32.xlu0 %v926, 112
      %v932 = vpop.permute.xlu0 %931
      %vm933 = vcmask 916480
      %v934 = vsel %vm933, %v930, %v932
      %v938 = vmul.f32 %v881, %v930
      %v939 = vmul.f32 %v882, %v934
      %v940 = vmul.f32 %v883, %v932
      %v941 = vmul.f32 %v884, %v930
      %v942 = vmul.f32 %v885, %v934
      %v943 = vmul.f32 %v886, %v932
      %v944 = vmul.f32 %v887, %v930
      %v945 = vmul.f32 %v888, %v934
      %v946 = vmul.f32 %v889, %v932
      %v947 = vmul.f32 %v890, %v930
      %v948 = vmul.f32 %v891, %v934
      %v949 = vmul.f32 %v892, %v932
      %s950 = scalar_lea.vmem %s1, 32
      %v951 = vld [vmem:[%s950] sm:$0xff]
      %v952 = vld [vmem:[%s950 + $0x8] sm:$0xff]
      %v953 = vld [vmem:[%s950 + $0x10] sm:$0xff]
      %v954 = vld [vmem:[%s950 + $0x18] sm:$0xff]
      %967 = vrot.lane.b32.xlu0 %v938, 16
      %v968 = vpop.permute.xlu0 %967
      %969 = vrot.lane.b32.xlu0 %v939, 16
      %v970 = vpop.permute.xlu0 %969
      %971 = vrot.lane.b32.xlu0 %v940, 16
      %v972 = vpop.permute.xlu0 %971
      %973 = vrot.lane.b32.xlu0 %v941, 16
      %v974 = vpop.permute.xlu0 %973
      %975 = vrot.lane.b32.xlu0 %v942, 16
      %v976 = vpop.permute.xlu0 %975
      %977 = vrot.lane.b32.xlu0 %v943, 16
      %v978 = vpop.permute.xlu0 %977
      %979 = vrot.lane.b32.xlu0 %v944, 16
      %v980 = vpop.permute.xlu0 %979
      %981 = vrot.lane.b32.xlu0 %v945, 16
      %v982 = vpop.permute.xlu0 %981
      %983 = vrot.lane.b32.xlu0 %v946, 16
      %v984 = vpop.permute.xlu0 %983
      %985 = vrot.lane.b32.xlu0 %v947, 16
      %v986 = vpop.permute.xlu0 %985
      %987 = vrot.lane.b32.xlu0 %v948, 16
      %v988 = vpop.permute.xlu0 %987
      %989 = vrot.lane.b32.xlu0 %v949, 16
      %v990 = vpop.permute.xlu0 %989
      %vm991 = vcmask 130048
      %v992 = vsel %vm991, %v968, %v970
      %v993 = vsel %vm991, %v970, %v972
      %v994 = vsel %vm991, %v974, %v976
      %v995 = vsel %vm991, %v976, %v978
      %v996 = vsel %vm991, %v980, %v982
      %v997 = vsel %vm991, %v982, %v984
      %v998 = vsel %vm991, %v986, %v988
      %v999 = vsel %vm991, %v988, %v990
      %v1009 = vsel %vm288, %v951, 0
      %v1012 = vsel %vm288, %v952, 0
      %v1015 = vsel %vm288, %v953, 0
      %v1018 = vsel %vm288, %v954, 0
      %1020 = vmatpush.msra.mxu0 0.0
      %1021 = vmatpush.msra.mxu0 0.0
      %1022 = vmatpush.msra.mxu0 0.0
      %1023 = vmatpush.msra.mxu0 0.0
      %1024 = vmatpush.msra.mxu0 0.0
      %1025 = vmatpush.msra.mxu0 0.0
      %1026 = vmatpush.msra.mxu0 0.0
      %1027 = vmatpush.msra.mxu0 0.0
      %1028 = vmatpush.msra.mxu0 0.0
      %1029 = vmatpush.msra.mxu0 0.0
      %1030 = vmatpush.msra.mxu0 0.0
      %1031 = vmatpush.msra.mxu0 0.0
      %v1032 = vand.u32 %v998, 4294901760
      %1033 = vmatpush.msra.mxu0 %v1032
      %v1034 = vand.u32 %v996, 4294901760
      %1035 = vmatpush.msra.mxu0 %v1034
      %v1036 = vand.u32 %v994, 4294901760
      %1037 = vmatpush.msra.mxu0 %v1036
      %v1038 = vand.u32 %v992, 4294901760
      %1039 = vmatpush.msra.mxu0 %v1038
      %v1040 = vand.u32 %v1009, 4294901760
      %v1041 = vsub.f32 %v1009, %v1040
      %v1042 = vand.u32 %v1041, 4294901760
      %v1043 = vsub.f32 %v1041, %v1042
      %v1044 = vand.u32 %v1043, 4294901760
      %1045 = vmatmul.f32.gmra.mxu0 %v1044
      %v1046 = vpop.f32.mrf.mxu0
      %v1047 = vadd.f32 0.0, %v1046
      %v1048 = vand.u32 %v1012, 4294901760
      %v1049 = vsub.f32 %v1012, %v1048
      %v1050 = vand.u32 %v1049, 4294901760
      %v1051 = vsub.f32 %v1049, %v1050
      %v1052 = vand.u32 %v1051, 4294901760
      %1053 = vmatmul.f32.gmra.mxu0 %v1052
      %v1054 = vpop.f32.mrf.mxu0
      %v1055 = vadd.f32 0.0, %v1054
      %v1056 = vand.u32 %v1015, 4294901760
      %v1057 = vsub.f32 %v1015, %v1056
      %v1058 = vand.u32 %v1057, 4294901760
      %v1059 = vsub.f32 %v1057, %v1058
      %v1060 = vand.u32 %v1059, 4294901760
      %1061 = vmatmul.f32.gmra.mxu0 %v1060
      %v1062 = vpop.f32.mrf.mxu0
      %v1063 = vadd.f32 0.0, %v1062
      %v1064 = vand.u32 %v1018, 4294901760
      %v1065 = vsub.f32 %v1018, %v1064
      %v1066 = vand.u32 %v1065, 4294901760
      %v1067 = vsub.f32 %v1065, %v1066
      %v1068 = vand.u32 %v1067, 4294901760
      %1069 = vmatmul.f32.gmra.mxu0 %v1068
      %v1070 = vpop.f32.mrf.mxu0
      %v1071 = vadd.f32 0.0, %v1070
      %1072 = vdwg.mxu0
      %1073 = vmatpush.msra.mxu0 0.0
      %1074 = vmatpush.msra.mxu0 0.0
      %1075 = vmatpush.msra.mxu0 0.0
      %1076 = vmatpush.msra.mxu0 0.0
      %1077 = vmatpush.msra.mxu0 0.0
      %1078 = vmatpush.msra.mxu0 0.0
      %1079 = vmatpush.msra.mxu0 0.0
      %1080 = vmatpush.msra.mxu0 0.0
      %1081 = vmatpush.msra.mxu0 0.0
      %1082 = vmatpush.msra.mxu0 0.0
      %1083 = vmatpush.msra.mxu0 0.0
      %1084 = vmatpush.msra.mxu0 0.0
      %v1085 = vand.u32 %v998, 4294901760
      %v1086 = vsub.f32 %v998, %v1085
      %v1087 = vand.u32 %v1086, 4294901760
      %v1088 = vsub.f32 %v1086, %v1087
      %v1089 = vand.u32 %v1088, 4294901760
      %1090 = vmatpush.msra.mxu0 %v1089
      %v1091 = vand.u32 %v996, 4294901760
      %v1092 = vsub.f32 %v996, %v1091
      %v1093 = vand.u32 %v1092, 4294901760
      %v1094 = vsub.f32 %v1092, %v1093
      %v1095 = vand.u32 %v1094, 4294901760
      %1096 = vmatpush.msra.mxu0 %v1095
      %v1097 = vand.u32 %v994, 4294901760
      %v1098 = vsub.f32 %v994, %v1097
      %v1099 = vand.u32 %v1098, 4294901760
      %v1100 = vsub.f32 %v1098, %v1099
      %v1101 = vand.u32 %v1100, 4294901760
      %1102 = vmatpush.msra.mxu0 %v1101
      %v1103 = vand.u32 %v992, 4294901760
      %v1104 = vsub.f32 %v992, %v1103
      %v1105 = vand.u32 %v1104, 4294901760
      %v1106 = vsub.f32 %v1104, %v1105
      %v1107 = vand.u32 %v1106, 4294901760
      %1108 = vmatpush.msra.mxu0 %v1107
      %v1109 = vand.u32 %v1009, 4294901760
      %1110 = vmatmul.f32.gmra.mxu0 %v1109
      %v1111 = vpop.f32.mrf.mxu0
      %v1112 = vadd.f32 %v1047, %v1111
      %v1113 = vand.u32 %v1012, 4294901760
      %1114 = vmatmul.f32.gmra.mxu0 %v1113
      %v1115 = vpop.f32.mrf.mxu0
      %v1116 = vadd.f32 %v1055, %v1115
      %v1117 = vand.u32 %v1015, 4294901760
      %1118 = vmatmul.f32.gmra.mxu0 %v1117
      %v1119 = vpop.f32.mrf.mxu0
      %v1120 = vadd.f32 %v1063, %v1119
      %v1121 = vand.u32 %v1018, 4294901760
      %1122 = vmatmul.f32.gmra.mxu0 %v1121
      %v1123 = vpop.f32.mrf.mxu0
      %v1124 = vadd.f32 %v1071, %v1123
      %1125 = vdwg.mxu0
      %1126 = vmatpush.msra.mxu0 0.0
      %1127 = vmatpush.msra.mxu0 0.0
      %1128 = vmatpush.msra.mxu0 0.0
      %1129 = vmatpush.msra.mxu0 0.0
      %1130 = vmatpush.msra.mxu0 0.0
      %1131 = vmatpush.msra.mxu0 0.0
      %1132 = vmatpush.msra.mxu0 0.0
      %1133 = vmatpush.msra.mxu0 0.0
      %1134 = vmatpush.msra.mxu0 0.0
      %1135 = vmatpush.msra.mxu0 0.0
      %1136 = vmatpush.msra.mxu0 0.0
      %1137 = vmatpush.msra.mxu0 0.0
      %v1138 = vand.u32 %v998, 4294901760
      %v1139 = vsub.f32 %v998, %v1138
      %1140 = vmatpush.msra.mxu0 %v1139
      %v1141 = vand.u32 %v996, 4294901760
      %v1142 = vsub.f32 %v996, %v1141
      %1143 = vmatpush.msra.mxu0 %v1142
      %v1144 = vand.u32 %v994, 4294901760
      %v1145 = vsub.f32 %v994, %v1144
      %1146 = vmatpush.msra.mxu0 %v1145
      %v1147 = vand.u32 %v992, 4294901760
      %v1148 = vsub.f32 %v992, %v1147
      %1149 = vmatpush.msra.mxu0 %v1148
      %v1150 = vand.u32 %v1009, 4294901760
      %v1151 = vsub.f32 %v1009, %v1150
      %1152 = vmatmul.f32.gmra.mxu0 %v1151
      %v1153 = vpop.f32.mrf.mxu0
      %v1154 = vadd.f32 %v1112, %v1153
      %v1155 = vand.u32 %v1012, 4294901760
      %v1156 = vsub.f32 %v1012, %v1155
      %1157 = vmatmul.f32.gmra.mxu0 %v1156
      %v1158 = vpop.f32.mrf.mxu0
      %v1159 = vadd.f32 %v1116, %v1158
      %v1160 = vand.u32 %v1015, 4294901760
      %v1161 = vsub.f32 %v1015, %v1160
      %1162 = vmatmul.f32.gmra.mxu0 %v1161
      %v1163 = vpop.f32.mrf.mxu0
      %v1164 = vadd.f32 %v1120, %v1163
      %v1165 = vand.u32 %v1018, 4294901760
      %v1166 = vsub.f32 %v1018, %v1165
      %1167 = vmatmul.f32.gmra.mxu0 %v1166
      %v1168 = vpop.f32.mrf.mxu0
      %v1169 = vadd.f32 %v1124, %v1168
      %1170 = vdwg.mxu0
      %1171 = vmatpush.msra.mxu0 0.0
      %1172 = vmatpush.msra.mxu0 0.0
      %1173 = vmatpush.msra.mxu0 0.0
      %1174 = vmatpush.msra.mxu0 0.0
      %1175 = vmatpush.msra.mxu0 0.0
      %1176 = vmatpush.msra.mxu0 0.0
      %1177 = vmatpush.msra.mxu0 0.0
      %1178 = vmatpush.msra.mxu0 0.0
      %1179 = vmatpush.msra.mxu0 0.0
      %1180 = vmatpush.msra.mxu0 0.0
      %1181 = vmatpush.msra.mxu0 0.0
      %1182 = vmatpush.msra.mxu0 0.0
      %v1183 = vand.u32 %v998, 4294901760
      %1184 = vmatpush.msra.mxu0 %v1183
      %v1185 = vand.u32 %v996, 4294901760
      %1186 = vmatpush.msra.mxu0 %v1185
      %v1187 = vand.u32 %v994, 4294901760
      %1188 = vmatpush.msra.mxu0 %v1187
      %v1189 = vand.u32 %v992, 4294901760
      %1190 = vmatpush.msra.mxu0 %v1189
      %v1191 = vand.u32 %v1009, 4294901760
      %v1192 = vsub.f32 %v1009, %v1191
      %v1193 = vand.u32 %v1192, 4294901760
      %1194 = vmatmul.f32.gmra.mxu0 %v1193
      %v1195 = vpop.f32.mrf.mxu0
      %v1196 = vadd.f32 %v1154, %v1195
      %v1197 = vand.u32 %v1012, 4294901760
      %v1198 = vsub.f32 %v1012, %v1197
      %v1199 = vand.u32 %v1198, 4294901760
      %1200 = vmatmul.f32.gmra.mxu0 %v1199
      %v1201 = vpop.f32.mrf.mxu0
      %v1202 = vadd.f32 %v1159, %v1201
      %v1203 = vand.u32 %v1015, 4294901760
      %v1204 = vsub.f32 %v1015, %v1203
      %v1205 = vand.u32 %v1204, 4294901760
      %1206 = vmatmul.f32.gmra.mxu0 %v1205
      %v1207 = vpop.f32.mrf.mxu0
      %v1208 = vadd.f32 %v1164, %v1207
      %v1209 = vand.u32 %v1018, 4294901760
      %v1210 = vsub.f32 %v1018, %v1209
      %v1211 = vand.u32 %v1210, 4294901760
      %1212 = vmatmul.f32.gmra.mxu0 %v1211
      %v1213 = vpop.f32.mrf.mxu0
      %v1214 = vadd.f32 %v1169, %v1213
      %1215 = vdwg.mxu0
      %1216 = vmatpush.msra.mxu0 0.0
      %1217 = vmatpush.msra.mxu0 0.0
      %1218 = vmatpush.msra.mxu0 0.0
      %1219 = vmatpush.msra.mxu0 0.0
      %1220 = vmatpush.msra.mxu0 0.0
      %1221 = vmatpush.msra.mxu0 0.0
      %1222 = vmatpush.msra.mxu0 0.0
      %1223 = vmatpush.msra.mxu0 0.0
      %1224 = vmatpush.msra.mxu0 0.0
      %1225 = vmatpush.msra.mxu0 0.0
      %1226 = vmatpush.msra.mxu0 0.0
      %1227 = vmatpush.msra.mxu0 0.0
      %v1228 = vand.u32 %v998, 4294901760
      %v1229 = vsub.f32 %v998, %v1228
      %v1230 = vand.u32 %v1229, 4294901760
      %1231 = vmatpush.msra.mxu0 %v1230
      %v1232 = vand.u32 %v996, 4294901760
      %v1233 = vsub.f32 %v996, %v1232
      %v1234 = vand.u32 %v1233, 4294901760
      %1235 = vmatpush.msra.mxu0 %v1234
      %v1236 = vand.u32 %v994, 4294901760
      %v1237 = vsub.f32 %v994, %v1236
      %v1238 = vand.u32 %v1237, 4294901760
      %1239 = vmatpush.msra.mxu0 %v1238
      %v1240 = vand.u32 %v992, 4294901760
      %v1241 = vsub.f32 %v992, %v1240
      %v1242 = vand.u32 %v1241, 4294901760
      %1243 = vmatpush.msra.mxu0 %v1242
      %v1244 = vand.u32 %v1009, 4294901760
      %1245 = vmatmul.f32.gmra.mxu0 %v1244
      %v1246 = vpop.f32.mrf.mxu0
      %v1247 = vadd.f32 %v1196, %v1246
      %v1248 = vand.u32 %v1012, 4294901760
      %1249 = vmatmul.f32.gmra.mxu0 %v1248
      %v1250 = vpop.f32.mrf.mxu0
      %v1251 = vadd.f32 %v1202, %v1250
      %v1252 = vand.u32 %v1015, 4294901760
      %1253 = vmatmul.f32.gmra.mxu0 %v1252
      %v1254 = vpop.f32.mrf.mxu0
      %v1255 = vadd.f32 %v1208, %v1254
      %v1256 = vand.u32 %v1018, 4294901760
      %1257 = vmatmul.f32.gmra.mxu0 %v1256
      %v1258 = vpop.f32.mrf.mxu0
      %v1259 = vadd.f32 %v1214, %v1258
      %1260 = vdwg.mxu0
      %1261 = vmatpush.msra.mxu0 0.0
      %1262 = vmatpush.msra.mxu0 0.0
      %1263 = vmatpush.msra.mxu0 0.0
      %1264 = vmatpush.msra.mxu0 0.0
      %1265 = vmatpush.msra.mxu0 0.0
      %1266 = vmatpush.msra.mxu0 0.0
      %1267 = vmatpush.msra.mxu0 0.0
      %1268 = vmatpush.msra.mxu0 0.0
      %1269 = vmatpush.msra.mxu0 0.0
      %1270 = vmatpush.msra.mxu0 0.0
      %1271 = vmatpush.msra.mxu0 0.0
      %1272 = vmatpush.msra.mxu0 0.0
      %v1273 = vand.u32 %v998, 4294901760
      %1274 = vmatpush.msra.mxu0 %v1273
      %v1275 = vand.u32 %v996, 4294901760
      %1276 = vmatpush.msra.mxu0 %v1275
      %v1277 = vand.u32 %v994, 4294901760
      %1278 = vmatpush.msra.mxu0 %v1277
      %v1279 = vand.u32 %v992, 4294901760
      %1280 = vmatpush.msra.mxu0 %v1279
      %v1281 = vand.u32 %v1009, 4294901760
      %1282 = vmatmul.f32.gmra.mxu0 %v1281
      %v1283 = vpop.f32.mrf.mxu0
      %v1284 = vadd.f32 %v1247, %v1283
      %v1285 = vand.u32 %v1012, 4294901760
      %1286 = vmatmul.f32.gmra.mxu0 %v1285
      %v1287 = vpop.f32.mrf.mxu0
      %v1288 = vadd.f32 %v1251, %v1287
      %v1289 = vand.u32 %v1015, 4294901760
      %1290 = vmatmul.f32.gmra.mxu0 %v1289
      %v1291 = vpop.f32.mrf.mxu0
      %v1292 = vadd.f32 %v1255, %v1291
      %v1293 = vand.u32 %v1018, 4294901760
      %1294 = vmatmul.f32.gmra.mxu0 %v1293
      %v1295 = vpop.f32.mrf.mxu0
      %v1296 = vadd.f32 %v1259, %v1295
      %1297 = vdwg.mxu0
      %1298 = vmatpush.msra.mxu0 0.0
      %1299 = vmatpush.msra.mxu0 0.0
      %1300 = vmatpush.msra.mxu0 0.0
      %1301 = vmatpush.msra.mxu0 0.0
      %1302 = vmatpush.msra.mxu0 0.0
      %1303 = vmatpush.msra.mxu0 0.0
      %1304 = vmatpush.msra.mxu0 0.0
      %1305 = vmatpush.msra.mxu0 0.0
      %1306 = vmatpush.msra.mxu0 0.0
      %1307 = vmatpush.msra.mxu0 0.0
      %1308 = vmatpush.msra.mxu0 0.0
      %1309 = vmatpush.msra.mxu0 0.0
      %v1310 = vand.u32 %v999, 4294901760
      %1311 = vmatpush.msra.mxu0 %v1310
      %v1312 = vand.u32 %v997, 4294901760
      %1313 = vmatpush.msra.mxu0 %v1312
      %v1314 = vand.u32 %v995, 4294901760
      %1315 = vmatpush.msra.mxu0 %v1314
      %v1316 = vand.u32 %v993, 4294901760
      %1317 = vmatpush.msra.mxu0 %v1316
      %v1318 = vand.u32 %v1009, 4294901760
      %v1319 = vsub.f32 %v1009, %v1318
      %v1320 = vand.u32 %v1319, 4294901760
      %v1321 = vsub.f32 %v1319, %v1320
      %v1322 = vand.u32 %v1321, 4294901760
      %1323 = vmatmul.f32.gmra.mxu0 %v1322
      %v1324 = vpop.f32.mrf.mxu0
      %v1325 = vadd.f32 0.0, %v1324
      %v1326 = vand.u32 %v1012, 4294901760
      %v1327 = vsub.f32 %v1012, %v1326
      %v1328 = vand.u32 %v1327, 4294901760
      %v1329 = vsub.f32 %v1327, %v1328
      %v1330 = vand.u32 %v1329, 4294901760
      %1331 = vmatmul.f32.gmra.mxu0 %v1330
      %v1332 = vpop.f32.mrf.mxu0
      %v1333 = vadd.f32 0.0, %v1332
      %v1334 = vand.u32 %v1015, 4294901760
      %v1335 = vsub.f32 %v1015, %v1334
      %v1336 = vand.u32 %v1335, 4294901760
      %v1337 = vsub.f32 %v1335, %v1336
      %v1338 = vand.u32 %v1337, 4294901760
      %1339 = vmatmul.f32.gmra.mxu0 %v1338
      %v1340 = vpop.f32.mrf.mxu0
      %v1341 = vadd.f32 0.0, %v1340
      %v1342 = vand.u32 %v1018, 4294901760
      %v1343 = vsub.f32 %v1018, %v1342
      %v1344 = vand.u32 %v1343, 4294901760
      %v1345 = vsub.f32 %v1343, %v1344
      %v1346 = vand.u32 %v1345, 4294901760
      %1347 = vmatmul.f32.gmra.mxu0 %v1346
      %v1348 = vpop.f32.mrf.mxu0
      %v1349 = vadd.f32 0.0, %v1348
      %1350 = vdwg.mxu0
      %1351 = vmatpush.msra.mxu0 0.0
      %1352 = vmatpush.msra.mxu0 0.0
      %1353 = vmatpush.msra.mxu0 0.0
      %1354 = vmatpush.msra.mxu0 0.0
      %1355 = vmatpush.msra.mxu0 0.0
      %1356 = vmatpush.msra.mxu0 0.0
      %1357 = vmatpush.msra.mxu0 0.0
      %1358 = vmatpush.msra.mxu0 0.0
      %1359 = vmatpush.msra.mxu0 0.0
      %1360 = vmatpush.msra.mxu0 0.0
      %1361 = vmatpush.msra.mxu0 0.0
      %1362 = vmatpush.msra.mxu0 0.0
      %v1363 = vand.u32 %v999, 4294901760
      %v1364 = vsub.f32 %v999, %v1363
      %v1365 = vand.u32 %v1364, 4294901760
      %v1366 = vsub.f32 %v1364, %v1365
      %v1367 = vand.u32 %v1366, 4294901760
      %1368 = vmatpush.msra.mxu0 %v1367
      %v1369 = vand.u32 %v997, 4294901760
      %v1370 = vsub.f32 %v997, %v1369
      %v1371 = vand.u32 %v1370, 4294901760
      %v1372 = vsub.f32 %v1370, %v1371
      %v1373 = vand.u32 %v1372, 4294901760
      %1374 = vmatpush.msra.mxu0 %v1373
      %v1375 = vand.u32 %v995, 4294901760
      %v1376 = vsub.f32 %v995, %v1375
      %v1377 = vand.u32 %v1376, 4294901760
      %v1378 = vsub.f32 %v1376, %v1377
      %v1379 = vand.u32 %v1378, 4294901760
      %1380 = vmatpush.msra.mxu0 %v1379
      %v1381 = vand.u32 %v993, 4294901760
      %v1382 = vsub.f32 %v993, %v1381
      %v1383 = vand.u32 %v1382, 4294901760
      %v1384 = vsub.f32 %v1382, %v1383
      %v1385 = vand.u32 %v1384, 4294901760
      %1386 = vmatpush.msra.mxu0 %v1385
      %v1387 = vand.u32 %v1009, 4294901760
      %1388 = vmatmul.f32.gmra.mxu0 %v1387
      %v1389 = vpop.f32.mrf.mxu0
      %v1390 = vadd.f32 %v1325, %v1389
      %v1391 = vand.u32 %v1012, 4294901760
      %1392 = vmatmul.f32.gmra.mxu0 %v1391
      %v1393 = vpop.f32.mrf.mxu0
      %v1394 = vadd.f32 %v1333, %v1393
      %v1395 = vand.u32 %v1015, 4294901760
      %1396 = vmatmul.f32.gmra.mxu0 %v1395
      %v1397 = vpop.f32.mrf.mxu0
      %v1398 = vadd.f32 %v1341, %v1397
      %v1399 = vand.u32 %v1018, 4294901760
      %1400 = vmatmul.f32.gmra.mxu0 %v1399
      %v1401 = vpop.f32.mrf.mxu0
      %v1402 = vadd.f32 %v1349, %v1401
      %1403 = vdwg.mxu0
      %1404 = vmatpush.msra.mxu0 0.0
      %1405 = vmatpush.msra.mxu0 0.0
      %1406 = vmatpush.msra.mxu0 0.0
      %1407 = vmatpush.msra.mxu0 0.0
      %1408 = vmatpush.msra.mxu0 0.0
      %1409 = vmatpush.msra.mxu0 0.0
      %1410 = vmatpush.msra.mxu0 0.0
      %1411 = vmatpush.msra.mxu0 0.0
      %1412 = vmatpush.msra.mxu0 0.0
      %1413 = vmatpush.msra.mxu0 0.0
      %1414 = vmatpush.msra.mxu0 0.0
      %1415 = vmatpush.msra.mxu0 0.0
      %v1416 = vand.u32 %v999, 4294901760
      %v1417 = vsub.f32 %v999, %v1416
      %1418 = vmatpush.msra.mxu0 %v1417
      %v1419 = vand.u32 %v997, 4294901760
      %v1420 = vsub.f32 %v997, %v1419
      %1421 = vmatpush.msra.mxu0 %v1420
      %v1422 = vand.u32 %v995, 4294901760
      %v1423 = vsub.f32 %v995, %v1422
      %1424 = vmatpush.msra.mxu0 %v1423
      %v1425 = vand.u32 %v993, 4294901760
      %v1426 = vsub.f32 %v993, %v1425
      %1427 = vmatpush.msra.mxu0 %v1426
      %v1428 = vand.u32 %v1009, 4294901760
      %v1429 = vsub.f32 %v1009, %v1428
      %1430 = vmatmul.f32.gmra.mxu0 %v1429
      %v1431 = vpop.f32.mrf.mxu0
      %v1432 = vadd.f32 %v1390, %v1431
      %v1433 = vand.u32 %v1012, 4294901760
      %v1434 = vsub.f32 %v1012, %v1433
      %1435 = vmatmul.f32.gmra.mxu0 %v1434
      %v1436 = vpop.f32.mrf.mxu0
      %v1437 = vadd.f32 %v1394, %v1436
      %v1438 = vand.u32 %v1015, 4294901760
      %v1439 = vsub.f32 %v1015, %v1438
      %1440 = vmatmul.f32.gmra.mxu0 %v1439
      %v1441 = vpop.f32.mrf.mxu0
      %v1442 = vadd.f32 %v1398, %v1441
      %v1443 = vand.u32 %v1018, 4294901760
      %v1444 = vsub.f32 %v1018, %v1443
      %1445 = vmatmul.f32.gmra.mxu0 %v1444
      %v1446 = vpop.f32.mrf.mxu0
      %v1447 = vadd.f32 %v1402, %v1446
      %1448 = vdwg.mxu0
      %1449 = vmatpush.msra.mxu0 0.0
      %1450 = vmatpush.msra.mxu0 0.0
      %1451 = vmatpush.msra.mxu0 0.0
      %1452 = vmatpush.msra.mxu0 0.0
      %1453 = vmatpush.msra.mxu0 0.0
      %1454 = vmatpush.msra.mxu0 0.0
      %1455 = vmatpush.msra.mxu0 0.0
      %1456 = vmatpush.msra.mxu0 0.0
      %1457 = vmatpush.msra.mxu0 0.0
      %1458 = vmatpush.msra.mxu0 0.0
      %1459 = vmatpush.msra.mxu0 0.0
      %1460 = vmatpush.msra.mxu0 0.0
      %v1461 = vand.u32 %v999, 4294901760
      %1462 = vmatpush.msra.mxu0 %v1461
      %v1463 = vand.u32 %v997, 4294901760
      %1464 = vmatpush.msra.mxu0 %v1463
      %v1465 = vand.u32 %v995, 4294901760
      %1466 = vmatpush.msra.mxu0 %v1465
      %v1467 = vand.u32 %v993, 4294901760
      %1468 = vmatpush.msra.mxu0 %v1467
      %v1469 = vand.u32 %v1009, 4294901760
      %v1470 = vsub.f32 %v1009, %v1469
      %v1471 = vand.u32 %v1470, 4294901760
      %1472 = vmatmul.f32.gmra.mxu0 %v1471
      %v1473 = vpop.f32.mrf.mxu0
      %v1474 = vadd.f32 %v1432, %v1473
      %v1475 = vand.u32 %v1012, 4294901760
      %v1476 = vsub.f32 %v1012, %v1475
      %v1477 = vand.u32 %v1476, 4294901760
      %1478 = vmatmul.f32.gmra.mxu0 %v1477
      %v1479 = vpop.f32.mrf.mxu0
      %v1480 = vadd.f32 %v1437, %v1479
      %v1481 = vand.u32 %v1015, 4294901760
      %v1482 = vsub.f32 %v1015, %v1481
      %v1483 = vand.u32 %v1482, 4294901760
      %1484 = vmatmul.f32.gmra.mxu0 %v1483
      %v1485 = vpop.f32.mrf.mxu0
      %v1486 = vadd.f32 %v1442, %v1485
      %v1487 = vand.u32 %v1018, 4294901760
      %v1488 = vsub.f32 %v1018, %v1487
      %v1489 = vand.u32 %v1488, 4294901760
      %1490 = vmatmul.f32.gmra.mxu0 %v1489
      %v1491 = vpop.f32.mrf.mxu0
      %v1492 = vadd.f32 %v1447, %v1491
      %1493 = vdwg.mxu0
      %1494 = vmatpush.msra.mxu0 0.0
      %1495 = vmatpush.msra.mxu0 0.0
      %1496 = vmatpush.msra.mxu0 0.0
      %1497 = vmatpush.msra.mxu0 0.0
      %1498 = vmatpush.msra.mxu0 0.0
      %1499 = vmatpush.msra.mxu0 0.0
      %1500 = vmatpush.msra.mxu0 0.0
      %1501 = vmatpush.msra.mxu0 0.0
      %1502 = vmatpush.msra.mxu0 0.0
      %1503 = vmatpush.msra.mxu0 0.0
      %1504 = vmatpush.msra.mxu0 0.0
      %1505 = vmatpush.msra.mxu0 0.0
      %v1506 = vand.u32 %v999, 4294901760
      %v1507 = vsub.f32 %v999, %v1506
      %v1508 = vand.u32 %v1507, 4294901760
      %1509 = vmatpush.msra.mxu0 %v1508
      %v1510 = vand.u32 %v997, 4294901760
      %v1511 = vsub.f32 %v997, %v1510
      %v1512 = vand.u32 %v1511, 4294901760
      %1513 = vmatpush.msra.mxu0 %v1512
      %v1514 = vand.u32 %v995, 4294901760
      %v1515 = vsub.f32 %v995, %v1514
      %v1516 = vand.u32 %v1515, 4294901760
      %1517 = vmatpush.msra.mxu0 %v1516
      %v1518 = vand.u32 %v993, 4294901760
      %v1519 = vsub.f32 %v993, %v1518
      %v1520 = vand.u32 %v1519, 4294901760
      %1521 = vmatpush.msra.mxu0 %v1520
      %v1522 = vand.u32 %v1009, 4294901760
      %1523 = vmatmul.f32.gmra.mxu0 %v1522
      %v1524 = vpop.f32.mrf.mxu0
      %v1525 = vadd.f32 %v1474, %v1524
      %v1526 = vand.u32 %v1012, 4294901760
      %1527 = vmatmul.f32.gmra.mxu0 %v1526
      %v1528 = vpop.f32.mrf.mxu0
      %v1529 = vadd.f32 %v1480, %v1528
      %v1530 = vand.u32 %v1015, 4294901760
      %1531 = vmatmul.f32.gmra.mxu0 %v1530
      %v1532 = vpop.f32.mrf.mxu0
      %v1533 = vadd.f32 %v1486, %v1532
      %v1534 = vand.u32 %v1018, 4294901760
      %1535 = vmatmul.f32.gmra.mxu0 %v1534
      %v1536 = vpop.f32.mrf.mxu0
      %v1537 = vadd.f32 %v1492, %v1536
      %1538 = vdwg.mxu0
      %1539 = vmatpush.msra.mxu0 0.0
      %1540 = vmatpush.msra.mxu0 0.0
      %1541 = vmatpush.msra.mxu0 0.0
      %1542 = vmatpush.msra.mxu0 0.0
      %1543 = vmatpush.msra.mxu0 0.0
      %1544 = vmatpush.msra.mxu0 0.0
      %1545 = vmatpush.msra.mxu0 0.0
      %1546 = vmatpush.msra.mxu0 0.0
      %1547 = vmatpush.msra.mxu0 0.0
      %1548 = vmatpush.msra.mxu0 0.0
      %1549 = vmatpush.msra.mxu0 0.0
      %1550 = vmatpush.msra.mxu0 0.0
      %v1551 = vand.u32 %v999, 4294901760
      %1552 = vmatpush.msra.mxu0 %v1551
      %v1553 = vand.u32 %v997, 4294901760
      %1554 = vmatpush.msra.mxu0 %v1553
      %v1555 = vand.u32 %v995, 4294901760
      %1556 = vmatpush.msra.mxu0 %v1555
      %v1557 = vand.u32 %v993, 4294901760
      %1558 = vmatpush.msra.mxu0 %v1557
      %v1559 = vand.u32 %v1009, 4294901760
      %1560 = vmatmul.f32.gmra.mxu0 %v1559
      %v1561 = vpop.f32.mrf.mxu0
      %v1562 = vadd.f32 %v1525, %v1561
      %v1563 = vand.u32 %v1012, 4294901760
      %1564 = vmatmul.f32.gmra.mxu0 %v1563
      %v1565 = vpop.f32.mrf.mxu0
      %v1566 = vadd.f32 %v1529, %v1565
      %v1567 = vand.u32 %v1015, 4294901760
      %1568 = vmatmul.f32.gmra.mxu0 %v1567
      %v1569 = vpop.f32.mrf.mxu0
      %v1570 = vadd.f32 %v1533, %v1569
      %v1571 = vand.u32 %v1018, 4294901760
      %1572 = vmatmul.f32.gmra.mxu0 %v1571
      %v1573 = vpop.f32.mrf.mxu0
      %v1574 = vadd.f32 %v1537, %v1573
      %1575 = vdwg.mxu0
      %1588 = vrot.lane.b32.xlu0 %v906, 17
      %v1589 = vpop.permute.xlu0 %1588
      %1590 = vrot.lane.b32.xlu0 %v907, 17
      %v1591 = vpop.permute.xlu0 %1590
      %1592 = vrot.lane.b32.xlu0 %v908, 17
      %v1593 = vpop.permute.xlu0 %1592
      %1594 = vrot.lane.b32.xlu0 %v909, 17
      %v1595 = vpop.permute.xlu0 %1594
      %1596 = vrot.lane.b32.xlu0 %v910, 17
      %v1597 = vpop.permute.xlu0 %1596
      %1598 = vrot.lane.b32.xlu0 %v911, 17
      %v1599 = vpop.permute.xlu0 %1598
      %1600 = vrot.lane.b32.xlu0 %v912, 17
      %v1601 = vpop.permute.xlu0 %1600
      %1602 = vrot.lane.b32.xlu0 %v913, 17
      %v1603 = vpop.permute.xlu0 %1602
      %1604 = vrot.lane.b32.xlu0 %v914, 17
      %v1605 = vpop.permute.xlu0 %1604
      %1606 = vrot.lane.b32.xlu0 %v915, 17
      %v1607 = vpop.permute.xlu0 %1606
      %1608 = vrot.lane.b32.xlu0 %v916, 17
      %v1609 = vpop.permute.xlu0 %1608
      %1610 = vrot.lane.b32.xlu0 %v917, 17
      %v1611 = vpop.permute.xlu0 %1610
      %vm1612 = vcmask 138240
      %v1613 = vsel %vm1612, %v1589, %v1591
      %v1614 = vsel %vm1612, %v1591, %v1593
      %v1615 = vsel %vm1612, %v1595, %v1597
      %v1616 = vsel %vm1612, %v1597, %v1599
      %v1617 = vsel %vm1612, %v1601, %v1603
      %v1618 = vsel %vm1612, %v1603, %v1605
      %v1619 = vsel %vm1612, %v1607, %v1609
      %v1620 = vsel %vm1612, %v1609, %v1611
      %v1630 = vsel %vm288, %v918, 0
      %v1633 = vsel %vm288, %v919, 0
      %v1636 = vsel %vm288, %v920, 0
      %v1639 = vsel %vm288, %v921, 0
      %1641 = vmatpush.msra.mxu0 0.0
      %1642 = vmatpush.msra.mxu0 0.0
      %1643 = vmatpush.msra.mxu0 0.0
      %1644 = vmatpush.msra.mxu0 0.0
      %1645 = vmatpush.msra.mxu0 0.0
      %1646 = vmatpush.msra.mxu0 0.0
      %1647 = vmatpush.msra.mxu0 0.0
      %1648 = vmatpush.msra.mxu0 0.0
      %1649 = vmatpush.msra.mxu0 0.0
      %1650 = vmatpush.msra.mxu0 0.0
      %1651 = vmatpush.msra.mxu0 0.0
      %1652 = vmatpush.msra.mxu0 0.0
      %v1653 = vand.u32 %v1619, 4294901760
      %1654 = vmatpush.msra.mxu0 %v1653
      %v1655 = vand.u32 %v1617, 4294901760
      %1656 = vmatpush.msra.mxu0 %v1655
      %v1657 = vand.u32 %v1615, 4294901760
      %1658 = vmatpush.msra.mxu0 %v1657
      %v1659 = vand.u32 %v1613, 4294901760
      %1660 = vmatpush.msra.mxu0 %v1659
      %v1661 = vand.u32 %v1630, 4294901760
      %v1662 = vsub.f32 %v1630, %v1661
      %v1663 = vand.u32 %v1662, 4294901760
      %v1664 = vsub.f32 %v1662, %v1663
      %v1665 = vand.u32 %v1664, 4294901760
      %1666 = vmatmul.f32.gmra.mxu0 %v1665
      %v1667 = vpop.f32.mrf.mxu0
      %v1668 = vadd.f32 %v1284, %v1667
      %v1669 = vand.u32 %v1633, 4294901760
      %v1670 = vsub.f32 %v1633, %v1669
      %v1671 = vand.u32 %v1670, 4294901760
      %v1672 = vsub.f32 %v1670, %v1671
      %v1673 = vand.u32 %v1672, 4294901760
      %1674 = vmatmul.f32.gmra.mxu0 %v1673
      %v1675 = vpop.f32.mrf.mxu0
      %v1676 = vadd.f32 %v1288, %v1675
      %v1677 = vand.u32 %v1636, 4294901760
      %v1678 = vsub.f32 %v1636, %v1677
      %v1679 = vand.u32 %v1678, 4294901760
      %v1680 = vsub.f32 %v1678, %v1679
      %v1681 = vand.u32 %v1680, 4294901760
      %1682 = vmatmul.f32.gmra.mxu0 %v1681
      %v1683 = vpop.f32.mrf.mxu0
      %v1684 = vadd.f32 %v1292, %v1683
      %v1685 = vand.u32 %v1639, 4294901760
      %v1686 = vsub.f32 %v1639, %v1685
      %v1687 = vand.u32 %v1686, 4294901760
      %v1688 = vsub.f32 %v1686, %v1687
      %v1689 = vand.u32 %v1688, 4294901760
      %1690 = vmatmul.f32.gmra.mxu0 %v1689
      %v1691 = vpop.f32.mrf.mxu0
      %v1692 = vadd.f32 %v1296, %v1691
      %1693 = vdwg.mxu0
      %1694 = vmatpush.msra.mxu0 0.0
      %1695 = vmatpush.msra.mxu0 0.0
      %1696 = vmatpush.msra.mxu0 0.0
      %1697 = vmatpush.msra.mxu0 0.0
      %1698 = vmatpush.msra.mxu0 0.0
      %1699 = vmatpush.msra.mxu0 0.0
      %1700 = vmatpush.msra.mxu0 0.0
      %1701 = vmatpush.msra.mxu0 0.0
      %1702 = vmatpush.msra.mxu0 0.0
      %1703 = vmatpush.msra.mxu0 0.0
      %1704 = vmatpush.msra.mxu0 0.0
      %1705 = vmatpush.msra.mxu0 0.0
      %v1706 = vand.u32 %v1619, 4294901760
      %v1707 = vsub.f32 %v1619, %v1706
      %v1708 = vand.u32 %v1707, 4294901760
      %v1709 = vsub.f32 %v1707, %v1708
      %v1710 = vand.u32 %v1709, 4294901760
      %1711 = vmatpush.msra.mxu0 %v1710
      %v1712 = vand.u32 %v1617, 4294901760
      %v1713 = vsub.f32 %v1617, %v1712
      %v1714 = vand.u32 %v1713, 4294901760
      %v1715 = vsub.f32 %v1713, %v1714
      %v1716 = vand.u32 %v1715, 4294901760
      %1717 = vmatpush.msra.mxu0 %v1716
      %v1718 = vand.u32 %v1615, 4294901760
      %v1719 = vsub.f32 %v1615, %v1718
      %v1720 = vand.u32 %v1719, 4294901760
      %v1721 = vsub.f32 %v1719, %v1720
      %v1722 = vand.u32 %v1721, 4294901760
      %1723 = vmatpush.msra.mxu0 %v1722
      %v1724 = vand.u32 %v1613, 4294901760
      %v1725 = vsub.f32 %v1613, %v1724
      %v1726 = vand.u32 %v1725, 4294901760
      %v1727 = vsub.f32 %v1725, %v1726
      %v1728 = vand.u32 %v1727, 4294901760
      %1729 = vmatpush.msra.mxu0 %v1728
      %v1730 = vand.u32 %v1630, 4294901760
      %1731 = vmatmul.f32.gmra.mxu0 %v1730
      %v1732 = vpop.f32.mrf.mxu0
      %v1733 = vadd.f32 %v1668, %v1732
      %v1734 = vand.u32 %v1633, 4294901760
      %1735 = vmatmul.f32.gmra.mxu0 %v1734
      %v1736 = vpop.f32.mrf.mxu0
      %v1737 = vadd.f32 %v1676, %v1736
      %v1738 = vand.u32 %v1636, 4294901760
      %1739 = vmatmul.f32.gmra.mxu0 %v1738
      %v1740 = vpop.f32.mrf.mxu0
      %v1741 = vadd.f32 %v1684, %v1740
      %v1742 = vand.u32 %v1639, 4294901760
      %1743 = vmatmul.f32.gmra.mxu0 %v1742
      %v1744 = vpop.f32.mrf.mxu0
      %v1745 = vadd.f32 %v1692, %v1744
      %1746 = vdwg.mxu0
      %1747 = vmatpush.msra.mxu0 0.0
      %1748 = vmatpush.msra.mxu0 0.0
      %1749 = vmatpush.msra.mxu0 0.0
      %1750 = vmatpush.msra.mxu0 0.0
      %1751 = vmatpush.msra.mxu0 0.0
      %1752 = vmatpush.msra.mxu0 0.0
      %1753 = vmatpush.msra.mxu0 0.0
      %1754 = vmatpush.msra.mxu0 0.0
      %1755 = vmatpush.msra.mxu0 0.0
      %1756 = vmatpush.msra.mxu0 0.0
      %1757 = vmatpush.msra.mxu0 0.0
      %1758 = vmatpush.msra.mxu0 0.0
      %v1759 = vand.u32 %v1619, 4294901760
      %v1760 = vsub.f32 %v1619, %v1759
      %1761 = vmatpush.msra.mxu0 %v1760
      %v1762 = vand.u32 %v1617, 4294901760
      %v1763 = vsub.f32 %v1617, %v1762
      %1764 = vmatpush.msra.mxu0 %v1763
      %v1765 = vand.u32 %v1615, 4294901760
      %v1766 = vsub.f32 %v1615, %v1765
      %1767 = vmatpush.msra.mxu0 %v1766
      %v1768 = vand.u32 %v1613, 4294901760
      %v1769 = vsub.f32 %v1613, %v1768
      %1770 = vmatpush.msra.mxu0 %v1769
      %v1771 = vand.u32 %v1630, 4294901760
      %v1772 = vsub.f32 %v1630, %v1771
      %1773 = vmatmul.f32.gmra.mxu0 %v1772
      %v1774 = vpop.f32.mrf.mxu0
      %v1775 = vadd.f32 %v1733, %v1774
      %v1776 = vand.u32 %v1633, 4294901760
      %v1777 = vsub.f32 %v1633, %v1776
      %1778 = vmatmul.f32.gmra.mxu0 %v1777
      %v1779 = vpop.f32.mrf.mxu0
      %v1780 = vadd.f32 %v1737, %v1779
      %v1781 = vand.u32 %v1636, 4294901760
      %v1782 = vsub.f32 %v1636, %v1781
      %1783 = vmatmul.f32.gmra.mxu0 %v1782
      %v1784 = vpop.f32.mrf.mxu0
      %v1785 = vadd.f32 %v1741, %v1784
      %v1786 = vand.u32 %v1639, 4294901760
      %v1787 = vsub.f32 %v1639, %v1786
      %1788 = vmatmul.f32.gmra.mxu0 %v1787
      %v1789 = vpop.f32.mrf.mxu0
      %v1790 = vadd.f32 %v1745, %v1789
      %1791 = vdwg.mxu0
      %1792 = vmatpush.msra.mxu0 0.0
      %1793 = vmatpush.msra.mxu0 0.0
      %1794 = vmatpush.msra.mxu0 0.0
      %1795 = vmatpush.msra.mxu0 0.0
      %1796 = vmatpush.msra.mxu0 0.0
      %1797 = vmatpush.msra.mxu0 0.0
      %1798 = vmatpush.msra.mxu0 0.0
      %1799 = vmatpush.msra.mxu0 0.0
      %1800 = vmatpush.msra.mxu0 0.0
      %1801 = vmatpush.msra.mxu0 0.0
      %1802 = vmatpush.msra.mxu0 0.0
      %1803 = vmatpush.msra.mxu0 0.0
      %v1804 = vand.u32 %v1619, 4294901760
      %1805 = vmatpush.msra.mxu0 %v1804
      %v1806 = vand.u32 %v1617, 4294901760
      %1807 = vmatpush.msra.mxu0 %v1806
      %v1808 = vand.u32 %v1615, 4294901760
      %1809 = vmatpush.msra.mxu0 %v1808
      %v1810 = vand.u32 %v1613, 4294901760
      %1811 = vmatpush.msra.mxu0 %v1810
      %v1812 = vand.u32 %v1630, 4294901760
      %v1813 = vsub.f32 %v1630, %v1812
      %v1814 = vand.u32 %v1813, 4294901760
      %1815 = vmatmul.f32.gmra.mxu0 %v1814
      %v1816 = vpop.f32.mrf.mxu0
      %v1817 = vadd.f32 %v1775, %v1816
      %v1818 = vand.u32 %v1633, 4294901760
      %v1819 = vsub.f32 %v1633, %v1818
      %v1820 = vand.u32 %v1819, 4294901760
      %1821 = vmatmul.f32.gmra.mxu0 %v1820
      %v1822 = vpop.f32.mrf.mxu0
      %v1823 = vadd.f32 %v1780, %v1822
      %v1824 = vand.u32 %v1636, 4294901760
      %v1825 = vsub.f32 %v1636, %v1824
      %v1826 = vand.u32 %v1825, 4294901760
      %1827 = vmatmul.f32.gmra.mxu0 %v1826
      %v1828 = vpop.f32.mrf.mxu0
      %v1829 = vadd.f32 %v1785, %v1828
      %v1830 = vand.u32 %v1639, 4294901760
      %v1831 = vsub.f32 %v1639, %v1830
      %v1832 = vand.u32 %v1831, 4294901760
      %1833 = vmatmul.f32.gmra.mxu0 %v1832
      %v1834 = vpop.f32.mrf.mxu0
      %v1835 = vadd.f32 %v1790, %v1834
      %1836 = vdwg.mxu0
      %1837 = vmatpush.msra.mxu0 0.0
      %1838 = vmatpush.msra.mxu0 0.0
      %1839 = vmatpush.msra.mxu0 0.0
      %1840 = vmatpush.msra.mxu0 0.0
      %1841 = vmatpush.msra.mxu0 0.0
      %1842 = vmatpush.msra.mxu0 0.0
      %1843 = vmatpush.msra.mxu0 0.0
      %1844 = vmatpush.msra.mxu0 0.0
      %1845 = vmatpush.msra.mxu0 0.0
      %1846 = vmatpush.msra.mxu0 0.0
      %1847 = vmatpush.msra.mxu0 0.0
      %1848 = vmatpush.msra.mxu0 0.0
      %v1849 = vand.u32 %v1619, 4294901760
      %v1850 = vsub.f32 %v1619, %v1849
      %v1851 = vand.u32 %v1850, 4294901760
      %1852 = vmatpush.msra.mxu0 %v1851
      %v1853 = vand.u32 %v1617, 4294901760
      %v1854 = vsub.f32 %v1617, %v1853
      %v1855 = vand.u32 %v1854, 4294901760
      %1856 = vmatpush.msra.mxu0 %v1855
      %v1857 = vand.u32 %v1615, 4294901760
      %v1858 = vsub.f32 %v1615, %v1857
      %v1859 = vand.u32 %v1858, 4294901760
      %1860 = vmatpush.msra.mxu0 %v1859
      %v1861 = vand.u32 %v1613, 4294901760
      %v1862 = vsub.f32 %v1613, %v1861
      %v1863 = vand.u32 %v1862, 4294901760
      %1864 = vmatpush.msra.mxu0 %v1863
      %v1865 = vand.u32 %v1630, 4294901760
      %1866 = vmatmul.f32.gmra.mxu0 %v1865
      %v1867 = vpop.f32.mrf.mxu0
      %v1868 = vadd.f32 %v1817, %v1867
      %v1869 = vand.u32 %v1633, 4294901760
      %1870 = vmatmul.f32.gmra.mxu0 %v1869
      %v1871 = vpop.f32.mrf.mxu0
      %v1872 = vadd.f32 %v1823, %v1871
      %v1873 = vand.u32 %v1636, 4294901760
      %1874 = vmatmul.f32.gmra.mxu0 %v1873
      %v1875 = vpop.f32.mrf.mxu0
      %v1876 = vadd.f32 %v1829, %v1875
      %v1877 = vand.u32 %v1639, 4294901760
      %1878 = vmatmul.f32.gmra.mxu0 %v1877
      %v1879 = vpop.f32.mrf.mxu0
      %v1880 = vadd.f32 %v1835, %v1879
      %1881 = vdwg.mxu0
      %1882 = vmatpush.msra.mxu0 0.0
      %1883 = vmatpush.msra.mxu0 0.0
      %1884 = vmatpush.msra.mxu0 0.0
      %1885 = vmatpush.msra.mxu0 0.0
      %1886 = vmatpush.msra.mxu0 0.0
      %1887 = vmatpush.msra.mxu0 0.0
      %1888 = vmatpush.msra.mxu0 0.0
      %1889 = vmatpush.msra.mxu0 0.0
      %1890 = vmatpush.msra.mxu0 0.0
      %1891 = vmatpush.msra.mxu0 0.0
      %1892 = vmatpush.msra.mxu0 0.0
      %1893 = vmatpush.msra.mxu0 0.0
      %v1894 = vand.u32 %v1619, 4294901760
      %1895 = vmatpush.msra.mxu0 %v1894
      %v1896 = vand.u32 %v1617, 4294901760
      %1897 = vmatpush.msra.mxu0 %v1896
      %v1898 = vand.u32 %v1615, 4294901760
      %1899 = vmatpush.msra.mxu0 %v1898
      %v1900 = vand.u32 %v1613, 4294901760
      %1901 = vmatpush.msra.mxu0 %v1900
      %v1902 = vand.u32 %v1630, 4294901760
      %1903 = vmatmul.f32.gmra.mxu0 %v1902
      %v1904 = vpop.f32.mrf.mxu0
      %v1905 = vadd.f32 %v1868, %v1904
      %v1906 = vand.u32 %v1633, 4294901760
      %1907 = vmatmul.f32.gmra.mxu0 %v1906
      %v1908 = vpop.f32.mrf.mxu0
      %v1909 = vadd.f32 %v1872, %v1908
      %v1910 = vand.u32 %v1636, 4294901760
      %1911 = vmatmul.f32.gmra.mxu0 %v1910
      %v1912 = vpop.f32.mrf.mxu0
      %v1913 = vadd.f32 %v1876, %v1912
      %v1914 = vand.u32 %v1639, 4294901760
      %1915 = vmatmul.f32.gmra.mxu0 %v1914
      %v1916 = vpop.f32.mrf.mxu0
      %v1917 = vadd.f32 %v1880, %v1916
      %1918 = vdwg.mxu0
      %1919 = vmatpush.msra.mxu0 0.0
      %1920 = vmatpush.msra.mxu0 0.0
      %1921 = vmatpush.msra.mxu0 0.0
      %1922 = vmatpush.msra.mxu0 0.0
      %1923 = vmatpush.msra.mxu0 0.0
      %1924 = vmatpush.msra.mxu0 0.0
      %1925 = vmatpush.msra.mxu0 0.0
      %1926 = vmatpush.msra.mxu0 0.0
      %1927 = vmatpush.msra.mxu0 0.0
      %1928 = vmatpush.msra.mxu0 0.0
      %1929 = vmatpush.msra.mxu0 0.0
      %1930 = vmatpush.msra.mxu0 0.0
      %v1931 = vand.u32 %v1620, 4294901760
      %1932 = vmatpush.msra.mxu0 %v1931
      %v1933 = vand.u32 %v1618, 4294901760
      %1934 = vmatpush.msra.mxu0 %v1933
      %v1935 = vand.u32 %v1616, 4294901760
      %1936 = vmatpush.msra.mxu0 %v1935
      %v1937 = vand.u32 %v1614, 4294901760
      %1938 = vmatpush.msra.mxu0 %v1937
      %v1939 = vand.u32 %v1630, 4294901760
      %v1940 = vsub.f32 %v1630, %v1939
      %v1941 = vand.u32 %v1940, 4294901760
      %v1942 = vsub.f32 %v1940, %v1941
      %v1943 = vand.u32 %v1942, 4294901760
      %1944 = vmatmul.f32.gmra.mxu0 %v1943
      %v1945 = vpop.f32.mrf.mxu0
      %v1946 = vadd.f32 %v1562, %v1945
      %v1947 = vand.u32 %v1633, 4294901760
      %v1948 = vsub.f32 %v1633, %v1947
      %v1949 = vand.u32 %v1948, 4294901760
      %v1950 = vsub.f32 %v1948, %v1949
      %v1951 = vand.u32 %v1950, 4294901760
      %1952 = vmatmul.f32.gmra.mxu0 %v1951
      %v1953 = vpop.f32.mrf.mxu0
      %v1954 = vadd.f32 %v1566, %v1953
      %v1955 = vand.u32 %v1636, 4294901760
      %v1956 = vsub.f32 %v1636, %v1955
      %v1957 = vand.u32 %v1956, 4294901760
      %v1958 = vsub.f32 %v1956, %v1957
      %v1959 = vand.u32 %v1958, 4294901760
      %1960 = vmatmul.f32.gmra.mxu0 %v1959
      %v1961 = vpop.f32.mrf.mxu0
      %v1962 = vadd.f32 %v1570, %v1961
      %v1963 = vand.u32 %v1639, 4294901760
      %v1964 = vsub.f32 %v1639, %v1963
      %v1965 = vand.u32 %v1964, 4294901760
      %v1966 = vsub.f32 %v1964, %v1965
      %v1967 = vand.u32 %v1966, 4294901760
      %1968 = vmatmul.f32.gmra.mxu0 %v1967
      %v1969 = vpop.f32.mrf.mxu0
      %v1970 = vadd.f32 %v1574, %v1969
      %1971 = vdwg.mxu0
      %1972 = vmatpush.msra.mxu0 0.0
      %1973 = vmatpush.msra.mxu0 0.0
      %1974 = vmatpush.msra.mxu0 0.0
      %1975 = vmatpush.msra.mxu0 0.0
      %1976 = vmatpush.msra.mxu0 0.0
      %1977 = vmatpush.msra.mxu0 0.0
      %1978 = vmatpush.msra.mxu0 0.0
      %1979 = vmatpush.msra.mxu0 0.0
      %1980 = vmatpush.msra.mxu0 0.0
      %1981 = vmatpush.msra.mxu0 0.0
      %1982 = vmatpush.msra.mxu0 0.0
      %1983 = vmatpush.msra.mxu0 0.0
      %v1984 = vand.u32 %v1620, 4294901760
      %v1985 = vsub.f32 %v1620, %v1984
      %v1986 = vand.u32 %v1985, 4294901760
      %v1987 = vsub.f32 %v1985, %v1986
      %v1988 = vand.u32 %v1987, 4294901760
      %1989 = vmatpush.msra.mxu0 %v1988
      %v1990 = vand.u32 %v1618, 4294901760
      %v1991 = vsub.f32 %v1618, %v1990
      %v1992 = vand.u32 %v1991, 4294901760
      %v1993 = vsub.f32 %v1991, %v1992
      %v1994 = vand.u32 %v1993, 4294901760
      %1995 = vmatpush.msra.mxu0 %v1994
      %v1996 = vand.u32 %v1616, 4294901760
      %v1997 = vsub.f32 %v1616, %v1996
      %v1998 = vand.u32 %v1997, 4294901760
      %v1999 = vsub.f32 %v1997, %v1998
      %v2000 = vand.u32 %v1999, 4294901760
      %2001 = vmatpush.msra.mxu0 %v2000
      %v2002 = vand.u32 %v1614, 4294901760
      %v2003 = vsub.f32 %v1614, %v2002
      %v2004 = vand.u32 %v2003, 4294901760
      %v2005 = vsub.f32 %v2003, %v2004
      %v2006 = vand.u32 %v2005, 4294901760
      %2007 = vmatpush.msra.mxu0 %v2006
      %v2008 = vand.u32 %v1630, 4294901760
      %2009 = vmatmul.f32.gmra.mxu0 %v2008
      %v2010 = vpop.f32.mrf.mxu0
      %v2011 = vadd.f32 %v1946, %v2010
      %v2012 = vand.u32 %v1633, 4294901760
      %2013 = vmatmul.f32.gmra.mxu0 %v2012
      %v2014 = vpop.f32.mrf.mxu0
      %v2015 = vadd.f32 %v1954, %v2014
      %v2016 = vand.u32 %v1636, 4294901760
      %2017 = vmatmul.f32.gmra.mxu0 %v2016
      %v2018 = vpop.f32.mrf.mxu0
      %v2019 = vadd.f32 %v1962, %v2018
      %v2020 = vand.u32 %v1639, 4294901760
      %2021 = vmatmul.f32.gmra.mxu0 %v2020
      %v2022 = vpop.f32.mrf.mxu0
      %v2023 = vadd.f32 %v1970, %v2022
      %2024 = vdwg.mxu0
      %2025 = vmatpush.msra.mxu0 0.0
      %2026 = vmatpush.msra.mxu0 0.0
      %2027 = vmatpush.msra.mxu0 0.0
      %2028 = vmatpush.msra.mxu0 0.0
      %2029 = vmatpush.msra.mxu0 0.0
      %2030 = vmatpush.msra.mxu0 0.0
      %2031 = vmatpush.msra.mxu0 0.0
      %2032 = vmatpush.msra.mxu0 0.0
      %2033 = vmatpush.msra.mxu0 0.0
      %2034 = vmatpush.msra.mxu0 0.0
      %2035 = vmatpush.msra.mxu0 0.0
      %2036 = vmatpush.msra.mxu0 0.0
      %v2037 = vand.u32 %v1620, 4294901760
      %v2038 = vsub.f32 %v1620, %v2037
      %2039 = vmatpush.msra.mxu0 %v2038
      %v2040 = vand.u32 %v1618, 4294901760
      %v2041 = vsub.f32 %v1618, %v2040
      %2042 = vmatpush.msra.mxu0 %v2041
      %v2043 = vand.u32 %v1616, 4294901760
      %v2044 = vsub.f32 %v1616, %v2043
      %2045 = vmatpush.msra.mxu0 %v2044
      %v2046 = vand.u32 %v1614, 4294901760
      %v2047 = vsub.f32 %v1614, %v2046
      %2048 = vmatpush.msra.mxu0 %v2047
      %v2049 = vand.u32 %v1630, 4294901760
      %v2050 = vsub.f32 %v1630, %v2049
      %2051 = vmatmul.f32.gmra.mxu0 %v2050
      %v2052 = vpop.f32.mrf.mxu0
      %v2053 = vadd.f32 %v2011, %v2052
      %v2054 = vand.u32 %v1633, 4294901760
      %v2055 = vsub.f32 %v1633, %v2054
      %2056 = vmatmul.f32.gmra.mxu0 %v2055
      %v2057 = vpop.f32.mrf.mxu0
      %v2058 = vadd.f32 %v2015, %v2057
      %v2059 = vand.u32 %v1636, 4294901760
      %v2060 = vsub.f32 %v1636, %v2059
      %2061 = vmatmul.f32.gmra.mxu0 %v2060
      %v2062 = vpop.f32.mrf.mxu0
      %v2063 = vadd.f32 %v2019, %v2062
      %v2064 = vand.u32 %v1639, 4294901760
      %v2065 = vsub.f32 %v1639, %v2064
      %2066 = vmatmul.f32.gmra.mxu0 %v2065
      %v2067 = vpop.f32.mrf.mxu0
      %v2068 = vadd.f32 %v2023, %v2067
      %2069 = vdwg.mxu0
      %2070 = vmatpush.msra.mxu0 0.0
      %2071 = vmatpush.msra.mxu0 0.0
      %2072 = vmatpush.msra.mxu0 0.0
      %2073 = vmatpush.msra.mxu0 0.0
      %2074 = vmatpush.msra.mxu0 0.0
      %2075 = vmatpush.msra.mxu0 0.0
      %2076 = vmatpush.msra.mxu0 0.0
      %2077 = vmatpush.msra.mxu0 0.0
      %2078 = vmatpush.msra.mxu0 0.0
      %2079 = vmatpush.msra.mxu0 0.0
      %2080 = vmatpush.msra.mxu0 0.0
      %2081 = vmatpush.msra.mxu0 0.0
      %v2082 = vand.u32 %v1620, 4294901760
      %2083 = vmatpush.msra.mxu0 %v2082
      %v2084 = vand.u32 %v1618, 4294901760
      %2085 = vmatpush.msra.mxu0 %v2084
      %v2086 = vand.u32 %v1616, 4294901760
      %2087 = vmatpush.msra.mxu0 %v2086
      %v2088 = vand.u32 %v1614, 4294901760
      %2089 = vmatpush.msra.mxu0 %v2088
      %v2090 = vand.u32 %v1630, 4294901760
      %v2091 = vsub.f32 %v1630, %v2090
      %v2092 = vand.u32 %v2091, 4294901760
      %2093 = vmatmul.f32.gmra.mxu0 %v2092
      %v2094 = vpop.f32.mrf.mxu0
      %v2095 = vadd.f32 %v2053, %v2094
      %v2096 = vand.u32 %v1633, 4294901760
      %v2097 = vsub.f32 %v1633, %v2096
      %v2098 = vand.u32 %v2097, 4294901760
      %2099 = vmatmul.f32.gmra.mxu0 %v2098
      %v2100 = vpop.f32.mrf.mxu0
      %v2101 = vadd.f32 %v2058, %v2100
      %v2102 = vand.u32 %v1636, 4294901760
      %v2103 = vsub.f32 %v1636, %v2102
      %v2104 = vand.u32 %v2103, 4294901760
      %2105 = vmatmul.f32.gmra.mxu0 %v2104
      %v2106 = vpop.f32.mrf.mxu0
      %v2107 = vadd.f32 %v2063, %v2106
      %v2108 = vand.u32 %v1639, 4294901760
      %v2109 = vsub.f32 %v1639, %v2108
      %v2110 = vand.u32 %v2109, 4294901760
      %2111 = vmatmul.f32.gmra.mxu0 %v2110
      %v2112 = vpop.f32.mrf.mxu0
      %v2113 = vadd.f32 %v2068, %v2112
      %2114 = vdwg.mxu0
      %2115 = vmatpush.msra.mxu0 0.0
      %2116 = vmatpush.msra.mxu0 0.0
      %2117 = vmatpush.msra.mxu0 0.0
      %2118 = vmatpush.msra.mxu0 0.0
      %2119 = vmatpush.msra.mxu0 0.0
      %2120 = vmatpush.msra.mxu0 0.0
      %2121 = vmatpush.msra.mxu0 0.0
      %2122 = vmatpush.msra.mxu0 0.0
      %2123 = vmatpush.msra.mxu0 0.0
      %2124 = vmatpush.msra.mxu0 0.0
      %2125 = vmatpush.msra.mxu0 0.0
      %2126 = vmatpush.msra.mxu0 0.0
      %v2127 = vand.u32 %v1620, 4294901760
      %v2128 = vsub.f32 %v1620, %v2127
      %v2129 = vand.u32 %v2128, 4294901760
      %2130 = vmatpush.msra.mxu0 %v2129
      %v2131 = vand.u32 %v1618, 4294901760
      %v2132 = vsub.f32 %v1618, %v2131
      %v2133 = vand.u32 %v2132, 4294901760
      %2134 = vmatpush.msra.mxu0 %v2133
      %v2135 = vand.u32 %v1616, 4294901760
      %v2136 = vsub.f32 %v1616, %v2135
      %v2137 = vand.u32 %v2136, 4294901760
      %2138 = vmatpush.msra.mxu0 %v2137
      %v2139 = vand.u32 %v1614, 4294901760
      %v2140 = vsub.f32 %v1614, %v2139
      %v2141 = vand.u32 %v2140, 4294901760
      %2142 = vmatpush.msra.mxu0 %v2141
      %v2143 = vand.u32 %v1630, 4294901760
      %2144 = vmatmul.f32.gmra.mxu0 %v2143
      %v2145 = vpop.f32.mrf.mxu0
      %v2146 = vadd.f32 %v2095, %v2145
      %v2147 = vand.u32 %v1633, 4294901760
      %2148 = vmatmul.f32.gmra.mxu0 %v2147
      %v2149 = vpop.f32.mrf.mxu0
      %v2150 = vadd.f32 %v2101, %v2149
      %v2151 = vand.u32 %v1636, 4294901760
      %2152 = vmatmul.f32.gmra.mxu0 %v2151
      %v2153 = vpop.f32.mrf.mxu0
      %v2154 = vadd.f32 %v2107, %v2153
      %v2155 = vand.u32 %v1639, 4294901760
      %2156 = vmatmul.f32.gmra.mxu0 %v2155
      %v2157 = vpop.f32.mrf.mxu0
      %v2158 = vadd.f32 %v2113, %v2157
      %2159 = vdwg.mxu0
      %2160 = vmatpush.msra.mxu0 0.0
      %2161 = vmatpush.msra.mxu0 0.0
      %2162 = vmatpush.msra.mxu0 0.0
      %2163 = vmatpush.msra.mxu0 0.0
      %2164 = vmatpush.msra.mxu0 0.0
      %2165 = vmatpush.msra.mxu0 0.0
      %2166 = vmatpush.msra.mxu0 0.0
      %2167 = vmatpush.msra.mxu0 0.0
      %2168 = vmatpush.msra.mxu0 0.0
      %2169 = vmatpush.msra.mxu0 0.0
      %2170 = vmatpush.msra.mxu0 0.0
      %2171 = vmatpush.msra.mxu0 0.0
      %v2172 = vand.u32 %v1620, 4294901760
      %2173 = vmatpush.msra.mxu0 %v2172
      %v2174 = vand.u32 %v1618, 4294901760
      %2175 = vmatpush.msra.mxu0 %v2174
      %v2176 = vand.u32 %v1616, 4294901760
      %2177 = vmatpush.msra.mxu0 %v2176
      %v2178 = vand.u32 %v1614, 4294901760
      %2179 = vmatpush.msra.mxu0 %v2178
      %v2180 = vand.u32 %v1630, 4294901760
      %2181 = vmatmul.f32.gmra.mxu0 %v2180
      %v2182 = vpop.f32.mrf.mxu0
      %v2183 = vadd.f32 %v2146, %v2182
      %v2184 = vand.u32 %v1633, 4294901760
      %2185 = vmatmul.f32.gmra.mxu0 %v2184
      %v2186 = vpop.f32.mrf.mxu0
      %v2187 = vadd.f32 %v2150, %v2186
      %v2188 = vand.u32 %v1636, 4294901760
      %2189 = vmatmul.f32.gmra.mxu0 %v2188
      %v2190 = vpop.f32.mrf.mxu0
      %v2191 = vadd.f32 %v2154, %v2190
      %v2192 = vand.u32 %v1639, 4294901760
      %2193 = vmatmul.f32.gmra.mxu0 %v2192
      %v2194 = vpop.f32.mrf.mxu0
      %v2195 = vadd.f32 %v2158, %v2194
      %2196 = vdwg.mxu0
      %s2197 = scalar_lea.vmem %s2, 2
      %v2198 = vld [vmem:[%s2197] ss:$4 sm:$0x3]
      %v2200 = vperm.slane %v2198, 0
      %v2201 = vperm.slane %v2198, 1
      %2202 = vrot.lane.b32.xlu0 %v2200, 113
      %v2203 = vpop.permute.xlu0 %2202
      %2204 = vrot.lane.b32.xlu0 %v2201, 113
      %v2205 = vpop.permute.xlu0 %2204
      %vm2206 = vcmask 924672
      %v2207 = vsel %vm2206, %v2203, %v2205
      %v2211 = vmul.f32 %v881, %v2203
      %v2212 = vmul.f32 %v882, %v2207
      %v2213 = vmul.f32 %v883, %v2205
      %v2214 = vmul.f32 %v884, %v2203
      %v2215 = vmul.f32 %v885, %v2207
      %v2216 = vmul.f32 %v886, %v2205
      %v2217 = vmul.f32 %v887, %v2203
      %v2218 = vmul.f32 %v888, %v2207
      %v2219 = vmul.f32 %v889, %v2205
      %v2220 = vmul.f32 %v890, %v2203
      %v2221 = vmul.f32 %v891, %v2207
      %v2222 = vmul.f32 %v892, %v2205
      %s2223 = scalar_lea.vmem %s1, 64
      %v2224 = vld [vmem:[%s2223] sm:$0xff]
      %v2225 = vld [vmem:[%s2223 + $0x8] sm:$0xff]
      %v2226 = vld [vmem:[%s2223 + $0x10] sm:$0xff]
      %v2227 = vld [vmem:[%s2223 + $0x18] sm:$0xff]
      %2240 = vrot.lane.b32.xlu0 %v2211, 15
      %v2241 = vpop.permute.xlu0 %2240
      %2242 = vrot.lane.b32.xlu0 %v2212, 15
      %v2243 = vpop.permute.xlu0 %2242
      %2244 = vrot.lane.b32.xlu0 %v2213, 15
      %v2245 = vpop.permute.xlu0 %2244
      %2246 = vrot.lane.b32.xlu0 %v2214, 15
      %v2247 = vpop.permute.xlu0 %2246
      %2248 = vrot.lane.b32.xlu0 %v2215, 15
      %v2249 = vpop.permute.xlu0 %2248
      %2250 = vrot.lane.b32.xlu0 %v2216, 15
      %v2251 = vpop.permute.xlu0 %2250
      %2252 = vrot.lane.b32.xlu0 %v2217, 15
      %v2253 = vpop.permute.xlu0 %2252
      %2254 = vrot.lane.b32.xlu0 %v2218, 15
      %v2255 = vpop.permute.xlu0 %2254
      %2256 = vrot.lane.b32.xlu0 %v2219, 15
      %v2257 = vpop.permute.xlu0 %2256
      %2258 = vrot.lane.b32.xlu0 %v2220, 15
      %v2259 = vpop.permute.xlu0 %2258
      %2260 = vrot.lane.b32.xlu0 %v2221, 15
      %v2261 = vpop.permute.xlu0 %2260
      %2262 = vrot.lane.b32.xlu0 %v2222, 15
      %v2263 = vpop.permute.xlu0 %2262
      %vm2264 = vcmask 121856
      %v2265 = vsel %vm2264, %v2241, %v2243
      %v2266 = vsel %vm2264, %v2243, %v2245
      %v2267 = vsel %vm2264, %v2247, %v2249
      %v2268 = vsel %vm2264, %v2249, %v2251
      %v2269 = vsel %vm2264, %v2253, %v2255
      %v2270 = vsel %vm2264, %v2255, %v2257
      %v2271 = vsel %vm2264, %v2259, %v2261
      %v2272 = vsel %vm2264, %v2261, %v2263
      %v2282 = vsel %vm288, %v2224, 0
      %v2285 = vsel %vm288, %v2225, 0
      %v2288 = vsel %vm288, %v2226, 0
      %v2291 = vsel %vm288, %v2227, 0
      %2293 = vmatpush.msra.mxu0 0.0
      %2294 = vmatpush.msra.mxu0 0.0
      %2295 = vmatpush.msra.mxu0 0.0
      %2296 = vmatpush.msra.mxu0 0.0
      %2297 = vmatpush.msra.mxu0 0.0
      %2298 = vmatpush.msra.mxu0 0.0
      %2299 = vmatpush.msra.mxu0 0.0
      %2300 = vmatpush.msra.mxu0 0.0
      %2301 = vmatpush.msra.mxu0 0.0
      %2302 = vmatpush.msra.mxu0 0.0
      %2303 = vmatpush.msra.mxu0 0.0
      %2304 = vmatpush.msra.mxu0 0.0
      %v2305 = vand.u32 %v2271, 4294901760
      %2306 = vmatpush.msra.mxu0 %v2305
      %v2307 = vand.u32 %v2269, 4294901760
      %2308 = vmatpush.msra.mxu0 %v2307
      %v2309 = vand.u32 %v2267, 4294901760
      %2310 = vmatpush.msra.mxu0 %v2309
      %v2311 = vand.u32 %v2265, 4294901760
      %2312 = vmatpush.msra.mxu0 %v2311
      %v2313 = vand.u32 %v2282, 4294901760
      %v2314 = vsub.f32 %v2282, %v2313
      %v2315 = vand.u32 %v2314, 4294901760
      %v2316 = vsub.f32 %v2314, %v2315
      %v2317 = vand.u32 %v2316, 4294901760
      %2318 = vmatmul.f32.gmra.mxu0 %v2317
      %v2319 = vpop.f32.mrf.mxu0
      %v2320 = vadd.f32 0.0, %v2319
      %v2321 = vand.u32 %v2285, 4294901760
      %v2322 = vsub.f32 %v2285, %v2321
      %v2323 = vand.u32 %v2322, 4294901760
      %v2324 = vsub.f32 %v2322, %v2323
      %v2325 = vand.u32 %v2324, 4294901760
      %2326 = vmatmul.f32.gmra.mxu0 %v2325
      %v2327 = vpop.f32.mrf.mxu0
      %v2328 = vadd.f32 0.0, %v2327
      %v2329 = vand.u32 %v2288, 4294901760
      %v2330 = vsub.f32 %v2288, %v2329
      %v2331 = vand.u32 %v2330, 4294901760
      %v2332 = vsub.f32 %v2330, %v2331
      %v2333 = vand.u32 %v2332, 4294901760
      %2334 = vmatmul.f32.gmra.mxu0 %v2333
      %v2335 = vpop.f32.mrf.mxu0
      %v2336 = vadd.f32 0.0, %v2335
      %v2337 = vand.u32 %v2291, 4294901760
      %v2338 = vsub.f32 %v2291, %v2337
      %v2339 = vand.u32 %v2338, 4294901760
      %v2340 = vsub.f32 %v2338, %v2339
      %v2341 = vand.u32 %v2340, 4294901760
      %2342 = vmatmul.f32.gmra.mxu0 %v2341
      %v2343 = vpop.f32.mrf.mxu0
      %v2344 = vadd.f32 0.0, %v2343
      %2345 = vdwg.mxu0
      %2346 = vmatpush.msra.mxu0 0.0
      %2347 = vmatpush.msra.mxu0 0.0
      %2348 = vmatpush.msra.mxu0 0.0
      %2349 = vmatpush.msra.mxu0 0.0
      %2350 = vmatpush.msra.mxu0 0.0
      %2351 = vmatpush.msra.mxu0 0.0
      %2352 = vmatpush.msra.mxu0 0.0
      %2353 = vmatpush.msra.mxu0 0.0
      %2354 = vmatpush.msra.mxu0 0.0
      %2355 = vmatpush.msra.mxu0 0.0
      %2356 = vmatpush.msra.mxu0 0.0
      %2357 = vmatpush.msra.mxu0 0.0
      %v2358 = vand.u32 %v2271, 4294901760
      %v2359 = vsub.f32 %v2271, %v2358
      %v2360 = vand.u32 %v2359, 4294901760
      %v2361 = vsub.f32 %v2359, %v2360
      %v2362 = vand.u32 %v2361, 4294901760
      %2363 = vmatpush.msra.mxu0 %v2362
      %v2364 = vand.u32 %v2269, 4294901760
      %v2365 = vsub.f32 %v2269, %v2364
      %v2366 = vand.u32 %v2365, 4294901760
      %v2367 = vsub.f32 %v2365, %v2366
      %v2368 = vand.u32 %v2367, 4294901760
      %2369 = vmatpush.msra.mxu0 %v2368
      %v2370 = vand.u32 %v2267, 4294901760
      %v2371 = vsub.f32 %v2267, %v2370
      %v2372 = vand.u32 %v2371, 4294901760
      %v2373 = vsub.f32 %v2371, %v2372
      %v2374 = vand.u32 %v2373, 4294901760
      %2375 = vmatpush.msra.mxu0 %v2374
      %v2376 = vand.u32 %v2265, 4294901760
      %v2377 = vsub.f32 %v2265, %v2376
      %v2378 = vand.u32 %v2377, 4294901760
      %v2379 = vsub.f32 %v2377, %v2378
      %v2380 = vand.u32 %v2379, 4294901760
      %2381 = vmatpush.msra.mxu0 %v2380
      %v2382 = vand.u32 %v2282, 4294901760
      %2383 = vmatmul.f32.gmra.mxu0 %v2382
      %v2384 = vpop.f32.mrf.mxu0
      %v2385 = vadd.f32 %v2320, %v2384
      %v2386 = vand.u32 %v2285, 4294901760
      %2387 = vmatmul.f32.gmra.mxu0 %v2386
      %v2388 = vpop.f32.mrf.mxu0
      %v2389 = vadd.f32 %v2328, %v2388
      %v2390 = vand.u32 %v2288, 4294901760
      %2391 = vmatmul.f32.gmra.mxu0 %v2390
      %v2392 = vpop.f32.mrf.mxu0
      %v2393 = vadd.f32 %v2336, %v2392
      %v2394 = vand.u32 %v2291, 4294901760
      %2395 = vmatmul.f32.gmra.mxu0 %v2394
      %v2396 = vpop.f32.mrf.mxu0
      %v2397 = vadd.f32 %v2344, %v2396
      %2398 = vdwg.mxu0
      %2399 = vmatpush.msra.mxu0 0.0
      %2400 = vmatpush.msra.mxu0 0.0
      %2401 = vmatpush.msra.mxu0 0.0
      %2402 = vmatpush.msra.mxu0 0.0
      %2403 = vmatpush.msra.mxu0 0.0
      %2404 = vmatpush.msra.mxu0 0.0
      %2405 = vmatpush.msra.mxu0 0.0
      %2406 = vmatpush.msra.mxu0 0.0
      %2407 = vmatpush.msra.mxu0 0.0
      %2408 = vmatpush.msra.mxu0 0.0
      %2409 = vmatpush.msra.mxu0 0.0
      %2410 = vmatpush.msra.mxu0 0.0
      %v2411 = vand.u32 %v2271, 4294901760
      %v2412 = vsub.f32 %v2271, %v2411
      %2413 = vmatpush.msra.mxu0 %v2412
      %v2414 = vand.u32 %v2269, 4294901760
      %v2415 = vsub.f32 %v2269, %v2414
      %2416 = vmatpush.msra.mxu0 %v2415
      %v2417 = vand.u32 %v2267, 4294901760
      %v2418 = vsub.f32 %v2267, %v2417
      %2419 = vmatpush.msra.mxu0 %v2418
      %v2420 = vand.u32 %v2265, 4294901760
      %v2421 = vsub.f32 %v2265, %v2420
      %2422 = vmatpush.msra.mxu0 %v2421
      %v2423 = vand.u32 %v2282, 4294901760
      %v2424 = vsub.f32 %v2282, %v2423
      %2425 = vmatmul.f32.gmra.mxu0 %v2424
      %v2426 = vpop.f32.mrf.mxu0
      %v2427 = vadd.f32 %v2385, %v2426
      %v2428 = vand.u32 %v2285, 4294901760
      %v2429 = vsub.f32 %v2285, %v2428
      %2430 = vmatmul.f32.gmra.mxu0 %v2429
      %v2431 = vpop.f32.mrf.mxu0
      %v2432 = vadd.f32 %v2389, %v2431
      %v2433 = vand.u32 %v2288, 4294901760
      %v2434 = vsub.f32 %v2288, %v2433
      %2435 = vmatmul.f32.gmra.mxu0 %v2434
      %v2436 = vpop.f32.mrf.mxu0
      %v2437 = vadd.f32 %v2393, %v2436
      %v2438 = vand.u32 %v2291, 4294901760
      %v2439 = vsub.f32 %v2291, %v2438
      %2440 = vmatmul.f32.gmra.mxu0 %v2439
      %v2441 = vpop.f32.mrf.mxu0
      %v2442 = vadd.f32 %v2397, %v2441
      %2443 = vdwg.mxu0
      %2444 = vmatpush.msra.mxu0 0.0
      %2445 = vmatpush.msra.mxu0 0.0
      %2446 = vmatpush.msra.mxu0 0.0
      %2447 = vmatpush.msra.mxu0 0.0
      %2448 = vmatpush.msra.mxu0 0.0
      %2449 = vmatpush.msra.mxu0 0.0
      %2450 = vmatpush.msra.mxu0 0.0
      %2451 = vmatpush.msra.mxu0 0.0
      %2452 = vmatpush.msra.mxu0 0.0
      %2453 = vmatpush.msra.mxu0 0.0
      %2454 = vmatpush.msra.mxu0 0.0
      %2455 = vmatpush.msra.mxu0 0.0
      %v2456 = vand.u32 %v2271, 4294901760
      %2457 = vmatpush.msra.mxu0 %v2456
      %v2458 = vand.u32 %v2269, 4294901760
      %2459 = vmatpush.msra.mxu0 %v2458
      %v2460 = vand.u32 %v2267, 4294901760
      %2461 = vmatpush.msra.mxu0 %v2460
      %v2462 = vand.u32 %v2265, 4294901760
      %2463 = vmatpush.msra.mxu0 %v2462
      %v2464 = vand.u32 %v2282, 4294901760
      %v2465 = vsub.f32 %v2282, %v2464
      %v2466 = vand.u32 %v2465, 4294901760
      %2467 = vmatmul.f32.gmra.mxu0 %v2466
      %v2468 = vpop.f32.mrf.mxu0
      %v2469 = vadd.f32 %v2427, %v2468
      %v2470 = vand.u32 %v2285, 4294901760
      %v2471 = vsub.f32 %v2285, %v2470
      %v2472 = vand.u32 %v2471, 4294901760
      %2473 = vmatmul.f32.gmra.mxu0 %v2472
      %v2474 = vpop.f32.mrf.mxu0
      %v2475 = vadd.f32 %v2432, %v2474
      %v2476 = vand.u32 %v2288, 4294901760
      %v2477 = vsub.f32 %v2288, %v2476
      %v2478 = vand.u32 %v2477, 4294901760
      %2479 = vmatmul.f32.gmra.mxu0 %v2478
      %v2480 = vpop.f32.mrf.mxu0
      %v2481 = vadd.f32 %v2437, %v2480
      %v2482 = vand.u32 %v2291, 4294901760
      %v2483 = vsub.f32 %v2291, %v2482
      %v2484 = vand.u32 %v2483, 4294901760
      %2485 = vmatmul.f32.gmra.mxu0 %v2484
      %v2486 = vpop.f32.mrf.mxu0
      %v2487 = vadd.f32 %v2442, %v2486
      %2488 = vdwg.mxu0
      %2489 = vmatpush.msra.mxu0 0.0
      %2490 = vmatpush.msra.mxu0 0.0
      %2491 = vmatpush.msra.mxu0 0.0
      %2492 = vmatpush.msra.mxu0 0.0
      %2493 = vmatpush.msra.mxu0 0.0
      %2494 = vmatpush.msra.mxu0 0.0
      %2495 = vmatpush.msra.mxu0 0.0
      %2496 = vmatpush.msra.mxu0 0.0
      %2497 = vmatpush.msra.mxu0 0.0
      %2498 = vmatpush.msra.mxu0 0.0
      %2499 = vmatpush.msra.mxu0 0.0
      %2500 = vmatpush.msra.mxu0 0.0
      %v2501 = vand.u32 %v2271, 4294901760
      %v2502 = vsub.f32 %v2271, %v2501
      %v2503 = vand.u32 %v2502, 4294901760
      %2504 = vmatpush.msra.mxu0 %v2503
      %v2505 = vand.u32 %v2269, 4294901760
      %v2506 = vsub.f32 %v2269, %v2505
      %v2507 = vand.u32 %v2506, 4294901760
      %2508 = vmatpush.msra.mxu0 %v2507
      %v2509 = vand.u32 %v2267, 4294901760
      %v2510 = vsub.f32 %v2267, %v2509
      %v2511 = vand.u32 %v2510, 4294901760
      %2512 = vmatpush.msra.mxu0 %v2511
      %v2513 = vand.u32 %v2265, 4294901760
      %v2514 = vsub.f32 %v2265, %v2513
      %v2515 = vand.u32 %v2514, 4294901760
      %2516 = vmatpush.msra.mxu0 %v2515
      %v2517 = vand.u32 %v2282, 4294901760
      %2518 = vmatmul.f32.gmra.mxu0 %v2517
      %v2519 = vpop.f32.mrf.mxu0
      %v2520 = vadd.f32 %v2469, %v2519
      %v2521 = vand.u32 %v2285, 4294901760
      %2522 = vmatmul.f32.gmra.mxu0 %v2521
      %v2523 = vpop.f32.mrf.mxu0
      %v2524 = vadd.f32 %v2475, %v2523
      %v2525 = vand.u32 %v2288, 4294901760
      %2526 = vmatmul.f32.gmra.mxu0 %v2525
      %v2527 = vpop.f32.mrf.mxu0
      %v2528 = vadd.f32 %v2481, %v2527
      %v2529 = vand.u32 %v2291, 4294901760
      %2530 = vmatmul.f32.gmra.mxu0 %v2529
      %v2531 = vpop.f32.mrf.mxu0
      %v2532 = vadd.f32 %v2487, %v2531
      %2533 = vdwg.mxu0
      %2534 = vmatpush.msra.mxu0 0.0
      %2535 = vmatpush.msra.mxu0 0.0
      %2536 = vmatpush.msra.mxu0 0.0
      %2537 = vmatpush.msra.mxu0 0.0
      %2538 = vmatpush.msra.mxu0 0.0
      %2539 = vmatpush.msra.mxu0 0.0
      %2540 = vmatpush.msra.mxu0 0.0
      %2541 = vmatpush.msra.mxu0 0.0
      %2542 = vmatpush.msra.mxu0 0.0
      %2543 = vmatpush.msra.mxu0 0.0
      %2544 = vmatpush.msra.mxu0 0.0
      %2545 = vmatpush.msra.mxu0 0.0
      %v2546 = vand.u32 %v2271, 4294901760
      %2547 = vmatpush.msra.mxu0 %v2546
      %v2548 = vand.u32 %v2269, 4294901760
      %2549 = vmatpush.msra.mxu0 %v2548
      %v2550 = vand.u32 %v2267, 4294901760
      %2551 = vmatpush.msra.mxu0 %v2550
      %v2552 = vand.u32 %v2265, 4294901760
      %2553 = vmatpush.msra.mxu0 %v2552
      %v2554 = vand.u32 %v2282, 4294901760
      %2555 = vmatmul.f32.gmra.mxu0 %v2554
      %v2556 = vpop.f32.mrf.mxu0
      %v2557 = vadd.f32 %v2520, %v2556
      %v2558 = vand.u32 %v2285, 4294901760
      %2559 = vmatmul.f32.gmra.mxu0 %v2558
      %v2560 = vpop.f32.mrf.mxu0
      %v2561 = vadd.f32 %v2524, %v2560
      %v2562 = vand.u32 %v2288, 4294901760
      %2563 = vmatmul.f32.gmra.mxu0 %v2562
      %v2564 = vpop.f32.mrf.mxu0
      %v2565 = vadd.f32 %v2528, %v2564
      %v2566 = vand.u32 %v2291, 4294901760
      %2567 = vmatmul.f32.gmra.mxu0 %v2566
      %v2568 = vpop.f32.mrf.mxu0
      %v2569 = vadd.f32 %v2532, %v2568
      %2570 = vdwg.mxu0
      %2571 = vmatpush.msra.mxu0 0.0
      %2572 = vmatpush.msra.mxu0 0.0
      %2573 = vmatpush.msra.mxu0 0.0
      %2574 = vmatpush.msra.mxu0 0.0
      %2575 = vmatpush.msra.mxu0 0.0
      %2576 = vmatpush.msra.mxu0 0.0
      %2577 = vmatpush.msra.mxu0 0.0
      %2578 = vmatpush.msra.mxu0 0.0
      %2579 = vmatpush.msra.mxu0 0.0
      %2580 = vmatpush.msra.mxu0 0.0
      %2581 = vmatpush.msra.mxu0 0.0
      %2582 = vmatpush.msra.mxu0 0.0
      %v2583 = vand.u32 %v2272, 4294901760
      %2584 = vmatpush.msra.mxu0 %v2583
      %v2585 = vand.u32 %v2270, 4294901760
      %2586 = vmatpush.msra.mxu0 %v2585
      %v2587 = vand.u32 %v2268, 4294901760
      %2588 = vmatpush.msra.mxu0 %v2587
      %v2589 = vand.u32 %v2266, 4294901760
      %2590 = vmatpush.msra.mxu0 %v2589
      %v2591 = vand.u32 %v2282, 4294901760
      %v2592 = vsub.f32 %v2282, %v2591
      %v2593 = vand.u32 %v2592, 4294901760
      %v2594 = vsub.f32 %v2592, %v2593
      %v2595 = vand.u32 %v2594, 4294901760
      %2596 = vmatmul.f32.gmra.mxu0 %v2595
      %v2597 = vpop.f32.mrf.mxu0
      %v2598 = vadd.f32 0.0, %v2597
      %v2599 = vand.u32 %v2285, 4294901760
      %v2600 = vsub.f32 %v2285, %v2599
      %v2601 = vand.u32 %v2600, 4294901760
      %v2602 = vsub.f32 %v2600, %v2601
      %v2603 = vand.u32 %v2602, 4294901760
      %2604 = vmatmul.f32.gmra.mxu0 %v2603
      %v2605 = vpop.f32.mrf.mxu0
      %v2606 = vadd.f32 0.0, %v2605
      %v2607 = vand.u32 %v2288, 4294901760
      %v2608 = vsub.f32 %v2288, %v2607
      %v2609 = vand.u32 %v2608, 4294901760
      %v2610 = vsub.f32 %v2608, %v2609
      %v2611 = vand.u32 %v2610, 4294901760
      %2612 = vmatmul.f32.gmra.mxu0 %v2611
      %v2613 = vpop.f32.mrf.mxu0
      %v2614 = vadd.f32 0.0, %v2613
      %v2615 = vand.u32 %v2291, 4294901760
      %v2616 = vsub.f32 %v2291, %v2615
      %v2617 = vand.u32 %v2616, 4294901760
      %v2618 = vsub.f32 %v2616, %v2617
      %v2619 = vand.u32 %v2618, 4294901760
      %2620 = vmatmul.f32.gmra.mxu0 %v2619
      %v2621 = vpop.f32.mrf.mxu0
      %v2622 = vadd.f32 0.0, %v2621
      %2623 = vdwg.mxu0
      %2624 = vmatpush.msra.mxu0 0.0
      %2625 = vmatpush.msra.mxu0 0.0
      %2626 = vmatpush.msra.mxu0 0.0
      %2627 = vmatpush.msra.mxu0 0.0
      %2628 = vmatpush.msra.mxu0 0.0
      %2629 = vmatpush.msra.mxu0 0.0
      %2630 = vmatpush.msra.mxu0 0.0
      %2631 = vmatpush.msra.mxu0 0.0
      %2632 = vmatpush.msra.mxu0 0.0
      %2633 = vmatpush.msra.mxu0 0.0
      %2634 = vmatpush.msra.mxu0 0.0
      %2635 = vmatpush.msra.mxu0 0.0
      %v2636 = vand.u32 %v2272, 4294901760
      %v2637 = vsub.f32 %v2272, %v2636
      %v2638 = vand.u32 %v2637, 4294901760
      %v2639 = vsub.f32 %v2637, %v2638
      %v2640 = vand.u32 %v2639, 4294901760
      %2641 = vmatpush.msra.mxu0 %v2640
      %v2642 = vand.u32 %v2270, 4294901760
      %v2643 = vsub.f32 %v2270, %v2642
      %v2644 = vand.u32 %v2643, 4294901760
      %v2645 = vsub.f32 %v2643, %v2644
      %v2646 = vand.u32 %v2645, 4294901760
      %2647 = vmatpush.msra.mxu0 %v2646
      %v2648 = vand.u32 %v2268, 4294901760
      %v2649 = vsub.f32 %v2268, %v2648
      %v2650 = vand.u32 %v2649, 4294901760
      %v2651 = vsub.f32 %v2649, %v2650
      %v2652 = vand.u32 %v2651, 4294901760
      %2653 = vmatpush.msra.mxu0 %v2652
      %v2654 = vand.u32 %v2266, 4294901760
      %v2655 = vsub.f32 %v2266, %v2654
      %v2656 = vand.u32 %v2655, 4294901760
      %v2657 = vsub.f32 %v2655, %v2656
      %v2658 = vand.u32 %v2657, 4294901760
      %2659 = vmatpush.msra.mxu0 %v2658
      %v2660 = vand.u32 %v2282, 4294901760
      %2661 = vmatmul.f32.gmra.mxu0 %v2660
      %v2662 = vpop.f32.mrf.mxu0
      %v2663 = vadd.f32 %v2598, %v2662
      %v2664 = vand.u32 %v2285, 4294901760
      %2665 = vmatmul.f32.gmra.mxu0 %v2664
      %v2666 = vpop.f32.mrf.mxu0
      %v2667 = vadd.f32 %v2606, %v2666
      %v2668 = vand.u32 %v2288, 4294901760
      %2669 = vmatmul.f32.gmra.mxu0 %v2668
      %v2670 = vpop.f32.mrf.mxu0
      %v2671 = vadd.f32 %v2614, %v2670
      %v2672 = vand.u32 %v2291, 4294901760
      %2673 = vmatmul.f32.gmra.mxu0 %v2672
      %v2674 = vpop.f32.mrf.mxu0
      %v2675 = vadd.f32 %v2622, %v2674
      %2676 = vdwg.mxu0
      %2677 = vmatpush.msra.mxu0 0.0
      %2678 = vmatpush.msra.mxu0 0.0
      %2679 = vmatpush.msra.mxu0 0.0
      %2680 = vmatpush.msra.mxu0 0.0
      %2681 = vmatpush.msra.mxu0 0.0
      %2682 = vmatpush.msra.mxu0 0.0
      %2683 = vmatpush.msra.mxu0 0.0
      %2684 = vmatpush.msra.mxu0 0.0
      %2685 = vmatpush.msra.mxu0 0.0
      %2686 = vmatpush.msra.mxu0 0.0
      %2687 = vmatpush.msra.mxu0 0.0
      %2688 = vmatpush.msra.mxu0 0.0
      %v2689 = vand.u32 %v2272, 4294901760
      %v2690 = vsub.f32 %v2272, %v2689
      %2691 = vmatpush.msra.mxu0 %v2690
      %v2692 = vand.u32 %v2270, 4294901760
      %v2693 = vsub.f32 %v2270, %v2692
      %2694 = vmatpush.msra.mxu0 %v2693
      %v2695 = vand.u32 %v2268, 4294901760
      %v2696 = vsub.f32 %v2268, %v2695
      %2697 = vmatpush.msra.mxu0 %v2696
      %v2698 = vand.u32 %v2266, 4294901760
      %v2699 = vsub.f32 %v2266, %v2698
      %2700 = vmatpush.msra.mxu0 %v2699
      %v2701 = vand.u32 %v2282, 4294901760
      %v2702 = vsub.f32 %v2282, %v2701
      %2703 = vmatmul.f32.gmra.mxu0 %v2702
      %v2704 = vpop.f32.mrf.mxu0
      %v2705 = vadd.f32 %v2663, %v2704
      %v2706 = vand.u32 %v2285, 4294901760
      %v2707 = vsub.f32 %v2285, %v2706
      %2708 = vmatmul.f32.gmra.mxu0 %v2707
      %v2709 = vpop.f32.mrf.mxu0
      %v2710 = vadd.f32 %v2667, %v2709
      %v2711 = vand.u32 %v2288, 4294901760
      %v2712 = vsub.f32 %v2288, %v2711
      %2713 = vmatmul.f32.gmra.mxu0 %v2712
      %v2714 = vpop.f32.mrf.mxu0
      %v2715 = vadd.f32 %v2671, %v2714
      %v2716 = vand.u32 %v2291, 4294901760
      %v2717 = vsub.f32 %v2291, %v2716
      %2718 = vmatmul.f32.gmra.mxu0 %v2717
      %v2719 = vpop.f32.mrf.mxu0
      %v2720 = vadd.f32 %v2675, %v2719
      %2721 = vdwg.mxu0
      %2722 = vmatpush.msra.mxu0 0.0
      %2723 = vmatpush.msra.mxu0 0.0
      %2724 = vmatpush.msra.mxu0 0.0
      %2725 = vmatpush.msra.mxu0 0.0
      %2726 = vmatpush.msra.mxu0 0.0
      %2727 = vmatpush.msra.mxu0 0.0
      %2728 = vmatpush.msra.mxu0 0.0
      %2729 = vmatpush.msra.mxu0 0.0
      %2730 = vmatpush.msra.mxu0 0.0
      %2731 = vmatpush.msra.mxu0 0.0
      %2732 = vmatpush.msra.mxu0 0.0
      %2733 = vmatpush.msra.mxu0 0.0
      %v2734 = vand.u32 %v2272, 4294901760
      %2735 = vmatpush.msra.mxu0 %v2734
      %v2736 = vand.u32 %v2270, 4294901760
      %2737 = vmatpush.msra.mxu0 %v2736
      %v2738 = vand.u32 %v2268, 4294901760
      %2739 = vmatpush.msra.mxu0 %v2738
      %v2740 = vand.u32 %v2266, 4294901760
      %2741 = vmatpush.msra.mxu0 %v2740
      %v2742 = vand.u32 %v2282, 4294901760
      %v2743 = vsub.f32 %v2282, %v2742
      %v2744 = vand.u32 %v2743, 4294901760
      %2745 = vmatmul.f32.gmra.mxu0 %v2744
      %v2746 = vpop.f32.mrf.mxu0
      %v2747 = vadd.f32 %v2705, %v2746
      %v2748 = vand.u32 %v2285, 4294901760
      %v2749 = vsub.f32 %v2285, %v2748
      %v2750 = vand.u32 %v2749, 4294901760
      %2751 = vmatmul.f32.gmra.mxu0 %v2750
      %v2752 = vpop.f32.mrf.mxu0
      %v2753 = vadd.f32 %v2710, %v2752
      %v2754 = vand.u32 %v2288, 4294901760
      %v2755 = vsub.f32 %v2288, %v2754
      %v2756 = vand.u32 %v2755, 4294901760
      %2757 = vmatmul.f32.gmra.mxu0 %v2756
      %v2758 = vpop.f32.mrf.mxu0
      %v2759 = vadd.f32 %v2715, %v2758
      %v2760 = vand.u32 %v2291, 4294901760
      %v2761 = vsub.f32 %v2291, %v2760
      %v2762 = vand.u32 %v2761, 4294901760
      %2763 = vmatmul.f32.gmra.mxu0 %v2762
      %v2764 = vpop.f32.mrf.mxu0
      %v2765 = vadd.f32 %v2720, %v2764
      %2766 = vdwg.mxu0
      %2767 = vmatpush.msra.mxu0 0.0
      %2768 = vmatpush.msra.mxu0 0.0
      %2769 = vmatpush.msra.mxu0 0.0
      %2770 = vmatpush.msra.mxu0 0.0
      %2771 = vmatpush.msra.mxu0 0.0
      %2772 = vmatpush.msra.mxu0 0.0
      %2773 = vmatpush.msra.mxu0 0.0
      %2774 = vmatpush.msra.mxu0 0.0
      %2775 = vmatpush.msra.mxu0 0.0
      %2776 = vmatpush.msra.mxu0 0.0
      %2777 = vmatpush.msra.mxu0 0.0
      %2778 = vmatpush.msra.mxu0 0.0
      %v2779 = vand.u32 %v2272, 4294901760
      %v2780 = vsub.f32 %v2272, %v2779
      %v2781 = vand.u32 %v2780, 4294901760
      %2782 = vmatpush.msra.mxu0 %v2781
      %v2783 = vand.u32 %v2270, 4294901760
      %v2784 = vsub.f32 %v2270, %v2783
      %v2785 = vand.u32 %v2784, 4294901760
      %2786 = vmatpush.msra.mxu0 %v2785
      %v2787 = vand.u32 %v2268, 4294901760
      %v2788 = vsub.f32 %v2268, %v2787
      %v2789 = vand.u32 %v2788, 4294901760
      %2790 = vmatpush.msra.mxu0 %v2789
      %v2791 = vand.u32 %v2266, 4294901760
      %v2792 = vsub.f32 %v2266, %v2791
      %v2793 = vand.u32 %v2792, 4294901760
      %2794 = vmatpush.msra.mxu0 %v2793
      %v2795 = vand.u32 %v2282, 4294901760
      %2796 = vmatmul.f32.gmra.mxu0 %v2795
      %v2797 = vpop.f32.mrf.mxu0
      %v2798 = vadd.f32 %v2747, %v2797
      %v2799 = vand.u32 %v2285, 4294901760
      %2800 = vmatmul.f32.gmra.mxu0 %v2799
      %v2801 = vpop.f32.mrf.mxu0
      %v2802 = vadd.f32 %v2753, %v2801
      %v2803 = vand.u32 %v2288, 4294901760
      %2804 = vmatmul.f32.gmra.mxu0 %v2803
      %v2805 = vpop.f32.mrf.mxu0
      %v2806 = vadd.f32 %v2759, %v2805
      %v2807 = vand.u32 %v2291, 4294901760
      %2808 = vmatmul.f32.gmra.mxu0 %v2807
      %v2809 = vpop.f32.mrf.mxu0
      %v2810 = vadd.f32 %v2765, %v2809
      %2811 = vdwg.mxu0
      %2812 = vmatpush.msra.mxu0 0.0
      %2813 = vmatpush.msra.mxu0 0.0
      %2814 = vmatpush.msra.mxu0 0.0
      %2815 = vmatpush.msra.mxu0 0.0
      %2816 = vmatpush.msra.mxu0 0.0
      %2817 = vmatpush.msra.mxu0 0.0
      %2818 = vmatpush.msra.mxu0 0.0
      %2819 = vmatpush.msra.mxu0 0.0
      %2820 = vmatpush.msra.mxu0 0.0
      %2821 = vmatpush.msra.mxu0 0.0
      %2822 = vmatpush.msra.mxu0 0.0
      %2823 = vmatpush.msra.mxu0 0.0
      %v2824 = vand.u32 %v2272, 4294901760
      %2825 = vmatpush.msra.mxu0 %v2824
      %v2826 = vand.u32 %v2270, 4294901760
      %2827 = vmatpush.msra.mxu0 %v2826
      %v2828 = vand.u32 %v2268, 4294901760
      %2829 = vmatpush.msra.mxu0 %v2828
      %v2830 = vand.u32 %v2266, 4294901760
      %2831 = vmatpush.msra.mxu0 %v2830
      %v2832 = vand.u32 %v2282, 4294901760
      %2833 = vmatmul.f32.gmra.mxu0 %v2832
      %v2834 = vpop.f32.mrf.mxu0
      %v2835 = vadd.f32 %v2798, %v2834
      %v2836 = vand.u32 %v2285, 4294901760
      %2837 = vmatmul.f32.gmra.mxu0 %v2836
      %v2838 = vpop.f32.mrf.mxu0
      %v2839 = vadd.f32 %v2802, %v2838
      %v2840 = vand.u32 %v2288, 4294901760
      %2841 = vmatmul.f32.gmra.mxu0 %v2840
      %v2842 = vpop.f32.mrf.mxu0
      %v2843 = vadd.f32 %v2806, %v2842
      %v2844 = vand.u32 %v2291, 4294901760
      %2845 = vmatmul.f32.gmra.mxu0 %v2844
      %v2846 = vpop.f32.mrf.mxu0
      %v2847 = vadd.f32 %v2810, %v2846
      %2848 = vdwg.mxu0
      %v2849 = vadd.f32 %v1905, %v2557
      %v2850 = vadd.f32 %v2183, %v2835
      %v2851 = vadd.f32 %v1909, %v2561
      %v2852 = vadd.f32 %v2187, %v2839
      %v2853 = vadd.f32 %v1913, %v2565
      %v2854 = vadd.f32 %v2191, %v2843
      %v2855 = vadd.f32 %v1917, %v2569
      %v2856 = vadd.f32 %v2195, %v2847
      %2857 = vrot.lane.b32.xlu0 %v895, 127
      %v2858 = vpop.permute.xlu0 %2857
      %2859 = vrot.lane.b32.xlu0 %v896, 127
      %v2860 = vpop.permute.xlu0 %2859
      %vm2861 = vcmask 1039360
      %v2862 = vsel %vm2861, %v2858, %v2860
      %v2866 = vmul.f32 %v881, %v2858
      %v2867 = vmul.f32 %v882, %v2862
      %v2868 = vmul.f32 %v883, %v2860
      %v2869 = vmul.f32 %v884, %v2858
      %v2870 = vmul.f32 %v885, %v2862
      %v2871 = vmul.f32 %v886, %v2860
      %v2872 = vmul.f32 %v887, %v2858
      %v2873 = vmul.f32 %v888, %v2862
      %v2874 = vmul.f32 %v889, %v2860
      %v2875 = vmul.f32 %v890, %v2858
      %v2876 = vmul.f32 %v891, %v2862
      %v2877 = vmul.f32 %v892, %v2860
      %s2878 = scalar_lea.vmem %s1, 96
      %v2879 = vld [vmem:[%s2878] sm:$0xff]
      %v2880 = vld [vmem:[%s2878 + $0x8] sm:$0xff]
      %v2881 = vld [vmem:[%s2878 + $0x10] sm:$0xff]
      %v2882 = vld [vmem:[%s2878 + $0x18] sm:$0xff]
      %2895 = vrot.lane.b32.xlu0 %v2866, 1
      %v2896 = vpop.permute.xlu0 %2895
      %2897 = vrot.lane.b32.xlu0 %v2867, 1
      %v2898 = vpop.permute.xlu0 %2897
      %2899 = vrot.lane.b32.xlu0 %v2868, 1
      %v2900 = vpop.permute.xlu0 %2899
      %2901 = vrot.lane.b32.xlu0 %v2869, 1
      %v2902 = vpop.permute.xlu0 %2901
      %2903 = vrot.lane.b32.xlu0 %v2870, 1
      %v2904 = vpop.permute.xlu0 %2903
      %2905 = vrot.lane.b32.xlu0 %v2871, 1
      %v2906 = vpop.permute.xlu0 %2905
      %2907 = vrot.lane.b32.xlu0 %v2872, 1
      %v2908 = vpop.permute.xlu0 %2907
      %2909 = vrot.lane.b32.xlu0 %v2873, 1
      %v2910 = vpop.permute.xlu0 %2909
      %2911 = vrot.lane.b32.xlu0 %v2874, 1
      %v2912 = vpop.permute.xlu0 %2911
      %2913 = vrot.lane.b32.xlu0 %v2875, 1
      %v2914 = vpop.permute.xlu0 %2913
      %2915 = vrot.lane.b32.xlu0 %v2876, 1
      %v2916 = vpop.permute.xlu0 %2915
      %2917 = vrot.lane.b32.xlu0 %v2877, 1
      %v2918 = vpop.permute.xlu0 %2917
      %vm2919 = vcmask 7168
      %v2920 = vsel %vm2919, %v2896, %v2898
      %v2921 = vsel %vm2919, %v2898, %v2900
      %v2922 = vsel %vm2919, %v2902, %v2904
      %v2923 = vsel %vm2919, %v2904, %v2906
      %v2924 = vsel %vm2919, %v2908, %v2910
      %v2925 = vsel %vm2919, %v2910, %v2912
      %v2926 = vsel %vm2919, %v2914, %v2916
      %v2927 = vsel %vm2919, %v2916, %v2918
      %v2937 = vsel %vm288, %v2879, 0
      %v2940 = vsel %vm288, %v2880, 0
      %v2943 = vsel %vm288, %v2881, 0
      %v2946 = vsel %vm288, %v2882, 0
      %2948 = vmatpush.msra.mxu0 0.0
      %2949 = vmatpush.msra.mxu0 0.0
      %2950 = vmatpush.msra.mxu0 0.0
      %2951 = vmatpush.msra.mxu0 0.0
      %2952 = vmatpush.msra.mxu0 0.0
      %2953 = vmatpush.msra.mxu0 0.0
      %2954 = vmatpush.msra.mxu0 0.0
      %2955 = vmatpush.msra.mxu0 0.0
      %2956 = vmatpush.msra.mxu0 0.0
      %2957 = vmatpush.msra.mxu0 0.0
      %2958 = vmatpush.msra.mxu0 0.0
      %2959 = vmatpush.msra.mxu0 0.0
      %v2960 = vand.u32 %v2926, 4294901760
      %2961 = vmatpush.msra.mxu0 %v2960
      %v2962 = vand.u32 %v2924, 4294901760
      %2963 = vmatpush.msra.mxu0 %v2962
      %v2964 = vand.u32 %v2922, 4294901760
      %2965 = vmatpush.msra.mxu0 %v2964
      %v2966 = vand.u32 %v2920, 4294901760
      %2967 = vmatpush.msra.mxu0 %v2966
      %v2968 = vand.u32 %v2937, 4294901760
      %v2969 = vsub.f32 %v2937, %v2968
      %v2970 = vand.u32 %v2969, 4294901760
      %v2971 = vsub.f32 %v2969, %v2970
      %v2972 = vand.u32 %v2971, 4294901760
      %2973 = vmatmul.f32.gmra.mxu0 %v2972
      %v2974 = vpop.f32.mrf.mxu0
      %v2975 = vadd.f32 0.0, %v2974
      %v2976 = vand.u32 %v2940, 4294901760
      %v2977 = vsub.f32 %v2940, %v2976
      %v2978 = vand.u32 %v2977, 4294901760
      %v2979 = vsub.f32 %v2977, %v2978
      %v2980 = vand.u32 %v2979, 4294901760
      %2981 = vmatmul.f32.gmra.mxu0 %v2980
      %v2982 = vpop.f32.mrf.mxu0
      %v2983 = vadd.f32 0.0, %v2982
      %v2984 = vand.u32 %v2943, 4294901760
      %v2985 = vsub.f32 %v2943, %v2984
      %v2986 = vand.u32 %v2985, 4294901760
      %v2987 = vsub.f32 %v2985, %v2986
      %v2988 = vand.u32 %v2987, 4294901760
      %2989 = vmatmul.f32.gmra.mxu0 %v2988
      %v2990 = vpop.f32.mrf.mxu0
      %v2991 = vadd.f32 0.0, %v2990
      %v2992 = vand.u32 %v2946, 4294901760
      %v2993 = vsub.f32 %v2946, %v2992
      %v2994 = vand.u32 %v2993, 4294901760
      %v2995 = vsub.f32 %v2993, %v2994
      %v2996 = vand.u32 %v2995, 4294901760
      %2997 = vmatmul.f32.gmra.mxu0 %v2996
      %v2998 = vpop.f32.mrf.mxu0
      %v2999 = vadd.f32 0.0, %v2998
      %3000 = vdwg.mxu0
      %3001 = vmatpush.msra.mxu0 0.0
      %3002 = vmatpush.msra.mxu0 0.0
      %3003 = vmatpush.msra.mxu0 0.0
      %3004 = vmatpush.msra.mxu0 0.0
      %3005 = vmatpush.msra.mxu0 0.0
      %3006 = vmatpush.msra.mxu0 0.0
      %3007 = vmatpush.msra.mxu0 0.0
      %3008 = vmatpush.msra.mxu0 0.0
      %3009 = vmatpush.msra.mxu0 0.0
      %3010 = vmatpush.msra.mxu0 0.0
      %3011 = vmatpush.msra.mxu0 0.0
      %3012 = vmatpush.msra.mxu0 0.0
      %v3013 = vand.u32 %v2926, 4294901760
      %v3014 = vsub.f32 %v2926, %v3013
      %v3015 = vand.u32 %v3014, 4294901760
      %v3016 = vsub.f32 %v3014, %v3015
      %v3017 = vand.u32 %v3016, 4294901760
      %3018 = vmatpush.msra.mxu0 %v3017
      %v3019 = vand.u32 %v2924, 4294901760
      %v3020 = vsub.f32 %v2924, %v3019
      %v3021 = vand.u32 %v3020, 4294901760
      %v3022 = vsub.f32 %v3020, %v3021
      %v3023 = vand.u32 %v3022, 4294901760
      %3024 = vmatpush.msra.mxu0 %v3023
      %v3025 = vand.u32 %v2922, 4294901760
      %v3026 = vsub.f32 %v2922, %v3025
      %v3027 = vand.u32 %v3026, 4294901760
      %v3028 = vsub.f32 %v3026, %v3027
      %v3029 = vand.u32 %v3028, 4294901760
      %3030 = vmatpush.msra.mxu0 %v3029
      %v3031 = vand.u32 %v2920, 4294901760
      %v3032 = vsub.f32 %v2920, %v3031
      %v3033 = vand.u32 %v3032, 4294901760
      %v3034 = vsub.f32 %v3032, %v3033
      %v3035 = vand.u32 %v3034, 4294901760
      %3036 = vmatpush.msra.mxu0 %v3035
      %v3037 = vand.u32 %v2937, 4294901760
      %3038 = vmatmul.f32.gmra.mxu0 %v3037
      %v3039 = vpop.f32.mrf.mxu0
      %v3040 = vadd.f32 %v2975, %v3039
      %v3041 = vand.u32 %v2940, 4294901760
      %3042 = vmatmul.f32.gmra.mxu0 %v3041
      %v3043 = vpop.f32.mrf.mxu0
      %v3044 = vadd.f32 %v2983, %v3043
      %v3045 = vand.u32 %v2943, 4294901760
      %3046 = vmatmul.f32.gmra.mxu0 %v3045
      %v3047 = vpop.f32.mrf.mxu0
      %v3048 = vadd.f32 %v2991, %v3047
      %v3049 = vand.u32 %v2946, 4294901760
      %3050 = vmatmul.f32.gmra.mxu0 %v3049
      %v3051 = vpop.f32.mrf.mxu0
      %v3052 = vadd.f32 %v2999, %v3051
      %3053 = vdwg.mxu0
      %3054 = vmatpush.msra.mxu0 0.0
      %3055 = vmatpush.msra.mxu0 0.0
      %3056 = vmatpush.msra.mxu0 0.0
      %3057 = vmatpush.msra.mxu0 0.0
      %3058 = vmatpush.msra.mxu0 0.0
      %3059 = vmatpush.msra.mxu0 0.0
      %3060 = vmatpush.msra.mxu0 0.0
      %3061 = vmatpush.msra.mxu0 0.0
      %3062 = vmatpush.msra.mxu0 0.0
      %3063 = vmatpush.msra.mxu0 0.0
      %3064 = vmatpush.msra.mxu0 0.0
      %3065 = vmatpush.msra.mxu0 0.0
      %v3066 = vand.u32 %v2926, 4294901760
      %v3067 = vsub.f32 %v2926, %v3066
      %3068 = vmatpush.msra.mxu0 %v3067
      %v3069 = vand.u32 %v2924, 4294901760
      %v3070 = vsub.f32 %v2924, %v3069
      %3071 = vmatpush.msra.mxu0 %v3070
      %v3072 = vand.u32 %v2922, 4294901760
      %v3073 = vsub.f32 %v2922, %v3072
      %3074 = vmatpush.msra.mxu0 %v3073
      %v3075 = vand.u32 %v2920, 4294901760
      %v3076 = vsub.f32 %v2920, %v3075
      %3077 = vmatpush.msra.mxu0 %v3076
      %v3078 = vand.u32 %v2937, 4294901760
      %v3079 = vsub.f32 %v2937, %v3078
      %3080 = vmatmul.f32.gmra.mxu0 %v3079
      %v3081 = vpop.f32.mrf.mxu0
      %v3082 = vadd.f32 %v3040, %v3081
      %v3083 = vand.u32 %v2940, 4294901760
      %v3084 = vsub.f32 %v2940, %v3083
      %3085 = vmatmul.f32.gmra.mxu0 %v3084
      %v3086 = vpop.f32.mrf.mxu0
      %v3087 = vadd.f32 %v3044, %v3086
      %v3088 = vand.u32 %v2943, 4294901760
      %v3089 = vsub.f32 %v2943, %v3088
      %3090 = vmatmul.f32.gmra.mxu0 %v3089
      %v3091 = vpop.f32.mrf.mxu0
      %v3092 = vadd.f32 %v3048, %v3091
      %v3093 = vand.u32 %v2946, 4294901760
      %v3094 = vsub.f32 %v2946, %v3093
      %3095 = vmatmul.f32.gmra.mxu0 %v3094
      %v3096 = vpop.f32.mrf.mxu0
      %v3097 = vadd.f32 %v3052, %v3096
      %3098 = vdwg.mxu0
      %3099 = vmatpush.msra.mxu0 0.0
      %3100 = vmatpush.msra.mxu0 0.0
      %3101 = vmatpush.msra.mxu0 0.0
      %3102 = vmatpush.msra.mxu0 0.0
      %3103 = vmatpush.msra.mxu0 0.0
      %3104 = vmatpush.msra.mxu0 0.0
      %3105 = vmatpush.msra.mxu0 0.0
      %3106 = vmatpush.msra.mxu0 0.0
      %3107 = vmatpush.msra.mxu0 0.0
      %3108 = vmatpush.msra.mxu0 0.0
      %3109 = vmatpush.msra.mxu0 0.0
      %3110 = vmatpush.msra.mxu0 0.0
      %v3111 = vand.u32 %v2926, 4294901760
      %3112 = vmatpush.msra.mxu0 %v3111
      %v3113 = vand.u32 %v2924, 4294901760
      %3114 = vmatpush.msra.mxu0 %v3113
      %v3115 = vand.u32 %v2922, 4294901760
      %3116 = vmatpush.msra.mxu0 %v3115
      %v3117 = vand.u32 %v2920, 4294901760
      %3118 = vmatpush.msra.mxu0 %v3117
      %v3119 = vand.u32 %v2937, 4294901760
      %v3120 = vsub.f32 %v2937, %v3119
      %v3121 = vand.u32 %v3120, 4294901760
      %3122 = vmatmul.f32.gmra.mxu0 %v3121
      %v3123 = vpop.f32.mrf.mxu0
      %v3124 = vadd.f32 %v3082, %v3123
      %v3125 = vand.u32 %v2940, 4294901760
      %v3126 = vsub.f32 %v2940, %v3125
      %v3127 = vand.u32 %v3126, 4294901760
      %3128 = vmatmul.f32.gmra.mxu0 %v3127
      %v3129 = vpop.f32.mrf.mxu0
      %v3130 = vadd.f32 %v3087, %v3129
      %v3131 = vand.u32 %v2943, 4294901760
      %v3132 = vsub.f32 %v2943, %v3131
      %v3133 = vand.u32 %v3132, 4294901760
      %3134 = vmatmul.f32.gmra.mxu0 %v3133
      %v3135 = vpop.f32.mrf.mxu0
      %v3136 = vadd.f32 %v3092, %v3135
      %v3137 = vand.u32 %v2946, 4294901760
      %v3138 = vsub.f32 %v2946, %v3137
      %v3139 = vand.u32 %v3138, 4294901760
      %3140 = vmatmul.f32.gmra.mxu0 %v3139
      %v3141 = vpop.f32.mrf.mxu0
      %v3142 = vadd.f32 %v3097, %v3141
      %3143 = vdwg.mxu0
      %3144 = vmatpush.msra.mxu0 0.0
      %3145 = vmatpush.msra.mxu0 0.0
      %3146 = vmatpush.msra.mxu0 0.0
      %3147 = vmatpush.msra.mxu0 0.0
      %3148 = vmatpush.msra.mxu0 0.0
      %3149 = vmatpush.msra.mxu0 0.0
      %3150 = vmatpush.msra.mxu0 0.0
      %3151 = vmatpush.msra.mxu0 0.0
      %3152 = vmatpush.msra.mxu0 0.0
      %3153 = vmatpush.msra.mxu0 0.0
      %3154 = vmatpush.msra.mxu0 0.0
      %3155 = vmatpush.msra.mxu0 0.0
      %v3156 = vand.u32 %v2926, 4294901760
      %v3157 = vsub.f32 %v2926, %v3156
      %v3158 = vand.u32 %v3157, 4294901760
      %3159 = vmatpush.msra.mxu0 %v3158
      %v3160 = vand.u32 %v2924, 4294901760
      %v3161 = vsub.f32 %v2924, %v3160
      %v3162 = vand.u32 %v3161, 4294901760
      %3163 = vmatpush.msra.mxu0 %v3162
      %v3164 = vand.u32 %v2922, 4294901760
      %v3165 = vsub.f32 %v2922, %v3164
      %v3166 = vand.u32 %v3165, 4294901760
      %3167 = vmatpush.msra.mxu0 %v3166
      %v3168 = vand.u32 %v2920, 4294901760
      %v3169 = vsub.f32 %v2920, %v3168
      %v3170 = vand.u32 %v3169, 4294901760
      %3171 = vmatpush.msra.mxu0 %v3170
      %v3172 = vand.u32 %v2937, 4294901760
      %3173 = vmatmul.f32.gmra.mxu0 %v3172
      %v3174 = vpop.f32.mrf.mxu0
      %v3175 = vadd.f32 %v3124, %v3174
      %v3176 = vand.u32 %v2940, 4294901760
      %3177 = vmatmul.f32.gmra.mxu0 %v3176
      %v3178 = vpop.f32.mrf.mxu0
      %v3179 = vadd.f32 %v3130, %v3178
      %v3180 = vand.u32 %v2943, 4294901760
      %3181 = vmatmul.f32.gmra.mxu0 %v3180
      %v3182 = vpop.f32.mrf.mxu0
      %v3183 = vadd.f32 %v3136, %v3182
      %v3184 = vand.u32 %v2946, 4294901760
      %3185 = vmatmul.f32.gmra.mxu0 %v3184
      %v3186 = vpop.f32.mrf.mxu0
      %v3187 = vadd.f32 %v3142, %v3186
      %3188 = vdwg.mxu0
      %3189 = vmatpush.msra.mxu0 0.0
      %3190 = vmatpush.msra.mxu0 0.0
      %3191 = vmatpush.msra.mxu0 0.0
      %3192 = vmatpush.msra.mxu0 0.0
      %3193 = vmatpush.msra.mxu0 0.0
      %3194 = vmatpush.msra.mxu0 0.0
      %3195 = vmatpush.msra.mxu0 0.0
      %3196 = vmatpush.msra.mxu0 0.0
      %3197 = vmatpush.msra.mxu0 0.0
      %3198 = vmatpush.msra.mxu0 0.0
      %3199 = vmatpush.msra.mxu0 0.0
      %3200 = vmatpush.msra.mxu0 0.0
      %v3201 = vand.u32 %v2926, 4294901760
      %3202 = vmatpush.msra.mxu0 %v3201
      %v3203 = vand.u32 %v2924, 4294901760
      %3204 = vmatpush.msra.mxu0 %v3203
      %v3205 = vand.u32 %v2922, 4294901760
      %3206 = vmatpush.msra.mxu0 %v3205
      %v3207 = vand.u32 %v2920, 4294901760
      %3208 = vmatpush.msra.mxu0 %v3207
      %v3209 = vand.u32 %v2937, 4294901760
      %3210 = vmatmul.f32.gmra.mxu0 %v3209
      %v3211 = vpop.f32.mrf.mxu0
      %v3212 = vadd.f32 %v3175, %v3211
      %v3213 = vand.u32 %v2940, 4294901760
      %3214 = vmatmul.f32.gmra.mxu0 %v3213
      %v3215 = vpop.f32.mrf.mxu0
      %v3216 = vadd.f32 %v3179, %v3215
      %v3217 = vand.u32 %v2943, 4294901760
      %3218 = vmatmul.f32.gmra.mxu0 %v3217
      %v3219 = vpop.f32.mrf.mxu0
      %v3220 = vadd.f32 %v3183, %v3219
      %v3221 = vand.u32 %v2946, 4294901760
      %3222 = vmatmul.f32.gmra.mxu0 %v3221
      %v3223 = vpop.f32.mrf.mxu0
      %v3224 = vadd.f32 %v3187, %v3223
      %3225 = vdwg.mxu0
      %3226 = vmatpush.msra.mxu0 0.0
      %3227 = vmatpush.msra.mxu0 0.0
      %3228 = vmatpush.msra.mxu0 0.0
      %3229 = vmatpush.msra.mxu0 0.0
      %3230 = vmatpush.msra.mxu0 0.0
      %3231 = vmatpush.msra.mxu0 0.0
      %3232 = vmatpush.msra.mxu0 0.0
      %3233 = vmatpush.msra.mxu0 0.0
      %3234 = vmatpush.msra.mxu0 0.0
      %3235 = vmatpush.msra.mxu0 0.0
      %3236 = vmatpush.msra.mxu0 0.0
      %3237 = vmatpush.msra.mxu0 0.0
      %v3238 = vand.u32 %v2927, 4294901760
      %3239 = vmatpush.msra.mxu0 %v3238
      %v3240 = vand.u32 %v2925, 4294901760
      %3241 = vmatpush.msra.mxu0 %v3240
      %v3242 = vand.u32 %v2923, 4294901760
      %3243 = vmatpush.msra.mxu0 %v3242
      %v3244 = vand.u32 %v2921, 4294901760
      %3245 = vmatpush.msra.mxu0 %v3244
      %v3246 = vand.u32 %v2937, 4294901760
      %v3247 = vsub.f32 %v2937, %v3246
      %v3248 = vand.u32 %v3247, 4294901760
      %v3249 = vsub.f32 %v3247, %v3248
      %v3250 = vand.u32 %v3249, 4294901760
      %3251 = vmatmul.f32.gmra.mxu0 %v3250
      %v3252 = vpop.f32.mrf.mxu0
      %v3253 = vadd.f32 0.0, %v3252
      %v3254 = vand.u32 %v2940, 4294901760
      %v3255 = vsub.f32 %v2940, %v3254
      %v3256 = vand.u32 %v3255, 4294901760
      %v3257 = vsub.f32 %v3255, %v3256
      %v3258 = vand.u32 %v3257, 4294901760
      %3259 = vmatmul.f32.gmra.mxu0 %v3258
      %v3260 = vpop.f32.mrf.mxu0
      %v3261 = vadd.f32 0.0, %v3260
      %v3262 = vand.u32 %v2943, 4294901760
      %v3263 = vsub.f32 %v2943, %v3262
      %v3264 = vand.u32 %v3263, 4294901760
      %v3265 = vsub.f32 %v3263, %v3264
      %v3266 = vand.u32 %v3265, 4294901760
      %3267 = vmatmul.f32.gmra.mxu0 %v3266
      %v3268 = vpop.f32.mrf.mxu0
      %v3269 = vadd.f32 0.0, %v3268
      %v3270 = vand.u32 %v2946, 4294901760
      %v3271 = vsub.f32 %v2946, %v3270
      %v3272 = vand.u32 %v3271, 4294901760
      %v3273 = vsub.f32 %v3271, %v3272
      %v3274 = vand.u32 %v3273, 4294901760
      %3275 = vmatmul.f32.gmra.mxu0 %v3274
      %v3276 = vpop.f32.mrf.mxu0
      %v3277 = vadd.f32 0.0, %v3276
      %3278 = vdwg.mxu0
      %3279 = vmatpush.msra.mxu0 0.0
      %3280 = vmatpush.msra.mxu0 0.0
      %3281 = vmatpush.msra.mxu0 0.0
      %3282 = vmatpush.msra.mxu0 0.0
      %3283 = vmatpush.msra.mxu0 0.0
      %3284 = vmatpush.msra.mxu0 0.0
      %3285 = vmatpush.msra.mxu0 0.0
      %3286 = vmatpush.msra.mxu0 0.0
      %3287 = vmatpush.msra.mxu0 0.0
      %3288 = vmatpush.msra.mxu0 0.0
      %3289 = vmatpush.msra.mxu0 0.0
      %3290 = vmatpush.msra.mxu0 0.0
      %v3291 = vand.u32 %v2927, 4294901760
      %v3292 = vsub.f32 %v2927, %v3291
      %v3293 = vand.u32 %v3292, 4294901760
      %v3294 = vsub.f32 %v3292, %v3293
      %v3295 = vand.u32 %v3294, 4294901760
      %3296 = vmatpush.msra.mxu0 %v3295
      %v3297 = vand.u32 %v2925, 4294901760
      %v3298 = vsub.f32 %v2925, %v3297
      %v3299 = vand.u32 %v3298, 4294901760
      %v3300 = vsub.f32 %v3298, %v3299
      %v3301 = vand.u32 %v3300, 4294901760
      %3302 = vmatpush.msra.mxu0 %v3301
      %v3303 = vand.u32 %v2923, 4294901760
      %v3304 = vsub.f32 %v2923, %v3303
      %v3305 = vand.u32 %v3304, 4294901760
      %v3306 = vsub.f32 %v3304, %v3305
      %v3307 = vand.u32 %v3306, 4294901760
      %3308 = vmatpush.msra.mxu0 %v3307
      %v3309 = vand.u32 %v2921, 4294901760
      %v3310 = vsub.f32 %v2921, %v3309
      %v3311 = vand.u32 %v3310, 4294901760
      %v3312 = vsub.f32 %v3310, %v3311
      %v3313 = vand.u32 %v3312, 4294901760
      %3314 = vmatpush.msra.mxu0 %v3313
      %v3315 = vand.u32 %v2937, 4294901760
      %3316 = vmatmul.f32.gmra.mxu0 %v3315
      %v3317 = vpop.f32.mrf.mxu0
      %v3318 = vadd.f32 %v3253, %v3317
      %v3319 = vand.u32 %v2940, 4294901760
      %3320 = vmatmul.f32.gmra.mxu0 %v3319
      %v3321 = vpop.f32.mrf.mxu0
      %v3322 = vadd.f32 %v3261, %v3321
      %v3323 = vand.u32 %v2943, 4294901760
      %3324 = vmatmul.f32.gmra.mxu0 %v3323
      %v3325 = vpop.f32.mrf.mxu0
      %v3326 = vadd.f32 %v3269, %v3325
      %v3327 = vand.u32 %v2946, 4294901760
      %3328 = vmatmul.f32.gmra.mxu0 %v3327
      %v3329 = vpop.f32.mrf.mxu0
      %v3330 = vadd.f32 %v3277, %v3329
      %3331 = vdwg.mxu0
      %3332 = vmatpush.msra.mxu0 0.0
      %3333 = vmatpush.msra.mxu0 0.0
      %3334 = vmatpush.msra.mxu0 0.0
      %3335 = vmatpush.msra.mxu0 0.0
      %3336 = vmatpush.msra.mxu0 0.0
      %3337 = vmatpush.msra.mxu0 0.0
      %3338 = vmatpush.msra.mxu0 0.0
      %3339 = vmatpush.msra.mxu0 0.0
      %3340 = vmatpush.msra.mxu0 0.0
      %3341 = vmatpush.msra.mxu0 0.0
      %3342 = vmatpush.msra.mxu0 0.0
      %3343 = vmatpush.msra.mxu0 0.0
      %v3344 = vand.u32 %v2927, 4294901760
      %v3345 = vsub.f32 %v2927, %v3344
      %3346 = vmatpush.msra.mxu0 %v3345
      %v3347 = vand.u32 %v2925, 4294901760
      %v3348 = vsub.f32 %v2925, %v3347
      %3349 = vmatpush.msra.mxu0 %v3348
      %v3350 = vand.u32 %v2923, 4294901760
      %v3351 = vsub.f32 %v2923, %v3350
      %3352 = vmatpush.msra.mxu0 %v3351
      %v3353 = vand.u32 %v2921, 4294901760
      %v3354 = vsub.f32 %v2921, %v3353
      %3355 = vmatpush.msra.mxu0 %v3354
      %v3356 = vand.u32 %v2937, 4294901760
      %v3357 = vsub.f32 %v2937, %v3356
      %3358 = vmatmul.f32.gmra.mxu0 %v3357
      %v3359 = vpop.f32.mrf.mxu0
      %v3360 = vadd.f32 %v3318, %v3359
      %v3361 = vand.u32 %v2940, 4294901760
      %v3362 = vsub.f32 %v2940, %v3361
      %3363 = vmatmul.f32.gmra.mxu0 %v3362
      %v3364 = vpop.f32.mrf.mxu0
      %v3365 = vadd.f32 %v3322, %v3364
      %v3366 = vand.u32 %v2943, 4294901760
      %v3367 = vsub.f32 %v2943, %v3366
      %3368 = vmatmul.f32.gmra.mxu0 %v3367
      %v3369 = vpop.f32.mrf.mxu0
      %v3370 = vadd.f32 %v3326, %v3369
      %v3371 = vand.u32 %v2946, 4294901760
      %v3372 = vsub.f32 %v2946, %v3371
      %3373 = vmatmul.f32.gmra.mxu0 %v3372
      %v3374 = vpop.f32.mrf.mxu0
      %v3375 = vadd.f32 %v3330, %v3374
      %3376 = vdwg.mxu0
      %3377 = vmatpush.msra.mxu0 0.0
      %3378 = vmatpush.msra.mxu0 0.0
      %3379 = vmatpush.msra.mxu0 0.0
      %3380 = vmatpush.msra.mxu0 0.0
      %3381 = vmatpush.msra.mxu0 0.0
      %3382 = vmatpush.msra.mxu0 0.0
      %3383 = vmatpush.msra.mxu0 0.0
      %3384 = vmatpush.msra.mxu0 0.0
      %3385 = vmatpush.msra.mxu0 0.0
      %3386 = vmatpush.msra.mxu0 0.0
      %3387 = vmatpush.msra.mxu0 0.0
      %3388 = vmatpush.msra.mxu0 0.0
      %v3389 = vand.u32 %v2927, 4294901760
      %3390 = vmatpush.msra.mxu0 %v3389
      %v3391 = vand.u32 %v2925, 4294901760
      %3392 = vmatpush.msra.mxu0 %v3391
      %v3393 = vand.u32 %v2923, 4294901760
      %3394 = vmatpush.msra.mxu0 %v3393
      %v3395 = vand.u32 %v2921, 4294901760
      %3396 = vmatpush.msra.mxu0 %v3395
      %v3397 = vand.u32 %v2937, 4294901760
      %v3398 = vsub.f32 %v2937, %v3397
      %v3399 = vand.u32 %v3398, 4294901760
      %3400 = vmatmul.f32.gmra.mxu0 %v3399
      %v3401 = vpop.f32.mrf.mxu0
      %v3402 = vadd.f32 %v3360, %v3401
      %v3403 = vand.u32 %v2940, 4294901760
      %v3404 = vsub.f32 %v2940, %v3403
      %v3405 = vand.u32 %v3404, 4294901760
      %3406 = vmatmul.f32.gmra.mxu0 %v3405
      %v3407 = vpop.f32.mrf.mxu0
      %v3408 = vadd.f32 %v3365, %v3407
      %v3409 = vand.u32 %v2943, 4294901760
      %v3410 = vsub.f32 %v2943, %v3409
      %v3411 = vand.u32 %v3410, 4294901760
      %3412 = vmatmul.f32.gmra.mxu0 %v3411
      %v3413 = vpop.f32.mrf.mxu0
      %v3414 = vadd.f32 %v3370, %v3413
      %v3415 = vand.u32 %v2946, 4294901760
      %v3416 = vsub.f32 %v2946, %v3415
      %v3417 = vand.u32 %v3416, 4294901760
      %3418 = vmatmul.f32.gmra.mxu0 %v3417
      %v3419 = vpop.f32.mrf.mxu0
      %v3420 = vadd.f32 %v3375, %v3419
      %3421 = vdwg.mxu0
      %3422 = vmatpush.msra.mxu0 0.0
      %3423 = vmatpush.msra.mxu0 0.0
      %3424 = vmatpush.msra.mxu0 0.0
      %3425 = vmatpush.msra.mxu0 0.0
      %3426 = vmatpush.msra.mxu0 0.0
      %3427 = vmatpush.msra.mxu0 0.0
      %3428 = vmatpush.msra.mxu0 0.0
      %3429 = vmatpush.msra.mxu0 0.0
      %3430 = vmatpush.msra.mxu0 0.0
      %3431 = vmatpush.msra.mxu0 0.0
      %3432 = vmatpush.msra.mxu0 0.0
      %3433 = vmatpush.msra.mxu0 0.0
      %v3434 = vand.u32 %v2927, 4294901760
      %v3435 = vsub.f32 %v2927, %v3434
      %v3436 = vand.u32 %v3435, 4294901760
      %3437 = vmatpush.msra.mxu0 %v3436
      %v3438 = vand.u32 %v2925, 4294901760
      %v3439 = vsub.f32 %v2925, %v3438
      %v3440 = vand.u32 %v3439, 4294901760
      %3441 = vmatpush.msra.mxu0 %v3440
      %v3442 = vand.u32 %v2923, 4294901760
      %v3443 = vsub.f32 %v2923, %v3442
      %v3444 = vand.u32 %v3443, 4294901760
      %3445 = vmatpush.msra.mxu0 %v3444
      %v3446 = vand.u32 %v2921, 4294901760
      %v3447 = vsub.f32 %v2921, %v3446
      %v3448 = vand.u32 %v3447, 4294901760
      %3449 = vmatpush.msra.mxu0 %v3448
      %v3450 = vand.u32 %v2937, 4294901760
      %3451 = vmatmul.f32.gmra.mxu0 %v3450
      %v3452 = vpop.f32.mrf.mxu0
      %v3453 = vadd.f32 %v3402, %v3452
      %v3454 = vand.u32 %v2940, 4294901760
      %3455 = vmatmul.f32.gmra.mxu0 %v3454
      %v3456 = vpop.f32.mrf.mxu0
      %v3457 = vadd.f32 %v3408, %v3456
      %v3458 = vand.u32 %v2943, 4294901760
      %3459 = vmatmul.f32.gmra.mxu0 %v3458
      %v3460 = vpop.f32.mrf.mxu0
      %v3461 = vadd.f32 %v3414, %v3460
      %v3462 = vand.u32 %v2946, 4294901760
      %3463 = vmatmul.f32.gmra.mxu0 %v3462
      %v3464 = vpop.f32.mrf.mxu0
      %v3465 = vadd.f32 %v3420, %v3464
      %3466 = vdwg.mxu0
      %3467 = vmatpush.msra.mxu0 0.0
      %3468 = vmatpush.msra.mxu0 0.0
      %3469 = vmatpush.msra.mxu0 0.0
      %3470 = vmatpush.msra.mxu0 0.0
      %3471 = vmatpush.msra.mxu0 0.0
      %3472 = vmatpush.msra.mxu0 0.0
      %3473 = vmatpush.msra.mxu0 0.0
      %3474 = vmatpush.msra.mxu0 0.0
      %3475 = vmatpush.msra.mxu0 0.0
      %3476 = vmatpush.msra.mxu0 0.0
      %3477 = vmatpush.msra.mxu0 0.0
      %3478 = vmatpush.msra.mxu0 0.0
      %v3479 = vand.u32 %v2927, 4294901760
      %3480 = vmatpush.msra.mxu0 %v3479
      %v3481 = vand.u32 %v2925, 4294901760
      %3482 = vmatpush.msra.mxu0 %v3481
      %v3483 = vand.u32 %v2923, 4294901760
      %3484 = vmatpush.msra.mxu0 %v3483
      %v3485 = vand.u32 %v2921, 4294901760
      %3486 = vmatpush.msra.mxu0 %v3485
      %v3487 = vand.u32 %v2937, 4294901760
      %3488 = vmatmul.f32.gmra.mxu0 %v3487
      %v3489 = vpop.f32.mrf.mxu0
      %v3490 = vadd.f32 %v3453, %v3489
      %v3491 = vand.u32 %v2940, 4294901760
      %3492 = vmatmul.f32.gmra.mxu0 %v3491
      %v3493 = vpop.f32.mrf.mxu0
      %v3494 = vadd.f32 %v3457, %v3493
      %v3495 = vand.u32 %v2943, 4294901760
      %3496 = vmatmul.f32.gmra.mxu0 %v3495
      %v3497 = vpop.f32.mrf.mxu0
      %v3498 = vadd.f32 %v3461, %v3497
      %v3499 = vand.u32 %v2946, 4294901760
      %3500 = vmatmul.f32.gmra.mxu0 %v3499
      %v3501 = vpop.f32.mrf.mxu0
      %v3502 = vadd.f32 %v3465, %v3501
      %3503 = vdwg.mxu0
      %v3504 = vadd.f32 %v2849, %v3212
      %v3505 = vadd.f32 %v2850, %v3490
      %v3506 = vadd.f32 %v2851, %v3216
      %v3507 = vadd.f32 %v2852, %v3494
      %v3508 = vadd.f32 %v2853, %v3220
      %v3509 = vadd.f32 %v2854, %v3498
      %v3510 = vadd.f32 %v2855, %v3224
      %v3511 = vadd.f32 %v2856, %v3502
      %v3512 = vmul.f32 %v882, %v925
      %v3513 = vmul.f32 %v883, %v926
      %v3514 = vmul.f32 %v885, %v925
      %v3515 = vmul.f32 %v886, %v926
      %v3516 = vmul.f32 %v888, %v925
      %v3517 = vmul.f32 %v889, %v926
      %v3518 = vmul.f32 %v891, %v925
      %v3519 = vmul.f32 %v892, %v926
      %s3520 = scalar_lea.vmem %s1, 128
      %v3521 = vld [vmem:[%s3520] sm:$0xff]
      %v3522 = vld [vmem:[%s3520 + $0x8] sm:$0xff]
      %v3523 = vld [vmem:[%s3520 + $0x10] sm:$0xff]
      %v3524 = vld [vmem:[%s3520 + $0x18] sm:$0xff]
      %v3526 = vsel %vm288, %v3521, 0
      %v3529 = vsel %vm288, %v3522, 0
      %v3532 = vsel %vm288, %v3523, 0
      %v3535 = vsel %vm288, %v3524, 0
      %3537 = vmatpush.msra.mxu0 0.0
      %3538 = vmatpush.msra.mxu0 0.0
      %3539 = vmatpush.msra.mxu0 0.0
      %3540 = vmatpush.msra.mxu0 0.0
      %3541 = vmatpush.msra.mxu0 0.0
      %3542 = vmatpush.msra.mxu0 0.0
      %3543 = vmatpush.msra.mxu0 0.0
      %3544 = vmatpush.msra.mxu0 0.0
      %3545 = vmatpush.msra.mxu0 0.0
      %3546 = vmatpush.msra.mxu0 0.0
      %3547 = vmatpush.msra.mxu0 0.0
      %3548 = vmatpush.msra.mxu0 0.0
      %v3549 = vand.u32 %v3518, 4294901760
      %3550 = vmatpush.msra.mxu0 %v3549
      %v3551 = vand.u32 %v3516, 4294901760
      %3552 = vmatpush.msra.mxu0 %v3551
      %v3553 = vand.u32 %v3514, 4294901760
      %3554 = vmatpush.msra.mxu0 %v3553
      %v3555 = vand.u32 %v3512, 4294901760
      %3556 = vmatpush.msra.mxu0 %v3555
      %v3557 = vand.u32 %v3526, 4294901760
      %v3558 = vsub.f32 %v3526, %v3557
      %v3559 = vand.u32 %v3558, 4294901760
      %v3560 = vsub.f32 %v3558, %v3559
      %v3561 = vand.u32 %v3560, 4294901760
      %3562 = vmatmul.f32.gmra.mxu0 %v3561
      %v3563 = vpop.f32.mrf.mxu0
      %v3564 = vadd.f32 0.0, %v3563
      %v3565 = vand.u32 %v3529, 4294901760
      %v3566 = vsub.f32 %v3529, %v3565
      %v3567 = vand.u32 %v3566, 4294901760
      %v3568 = vsub.f32 %v3566, %v3567
      %v3569 = vand.u32 %v3568, 4294901760
      %3570 = vmatmul.f32.gmra.mxu0 %v3569
      %v3571 = vpop.f32.mrf.mxu0
      %v3572 = vadd.f32 0.0, %v3571
      %v3573 = vand.u32 %v3532, 4294901760
      %v3574 = vsub.f32 %v3532, %v3573
      %v3575 = vand.u32 %v3574, 4294901760
      %v3576 = vsub.f32 %v3574, %v3575
      %v3577 = vand.u32 %v3576, 4294901760
      %3578 = vmatmul.f32.gmra.mxu0 %v3577
      %v3579 = vpop.f32.mrf.mxu0
      %v3580 = vadd.f32 0.0, %v3579
      %v3581 = vand.u32 %v3535, 4294901760
      %v3582 = vsub.f32 %v3535, %v3581
      %v3583 = vand.u32 %v3582, 4294901760
      %v3584 = vsub.f32 %v3582, %v3583
      %v3585 = vand.u32 %v3584, 4294901760
      %3586 = vmatmul.f32.gmra.mxu0 %v3585
      %v3587 = vpop.f32.mrf.mxu0
      %v3588 = vadd.f32 0.0, %v3587
      %3589 = vdwg.mxu0
      %3590 = vmatpush.msra.mxu0 0.0
      %3591 = vmatpush.msra.mxu0 0.0
      %3592 = vmatpush.msra.mxu0 0.0
      %3593 = vmatpush.msra.mxu0 0.0
      %3594 = vmatpush.msra.mxu0 0.0
      %3595 = vmatpush.msra.mxu0 0.0
      %3596 = vmatpush.msra.mxu0 0.0
      %3597 = vmatpush.msra.mxu0 0.0
      %3598 = vmatpush.msra.mxu0 0.0
      %3599 = vmatpush.msra.mxu0 0.0
      %3600 = vmatpush.msra.mxu0 0.0
      %3601 = vmatpush.msra.mxu0 0.0
      %v3602 = vand.u32 %v3518, 4294901760
      %v3603 = vsub.f32 %v3518, %v3602
      %v3604 = vand.u32 %v3603, 4294901760
      %v3605 = vsub.f32 %v3603, %v3604
      %v3606 = vand.u32 %v3605, 4294901760
      %3607 = vmatpush.msra.mxu0 %v3606
      %v3608 = vand.u32 %v3516, 4294901760
      %v3609 = vsub.f32 %v3516, %v3608
      %v3610 = vand.u32 %v3609, 4294901760
      %v3611 = vsub.f32 %v3609, %v3610
      %v3612 = vand.u32 %v3611, 4294901760
      %3613 = vmatpush.msra.mxu0 %v3612
      %v3614 = vand.u32 %v3514, 4294901760
      %v3615 = vsub.f32 %v3514, %v3614
      %v3616 = vand.u32 %v3615, 4294901760
      %v3617 = vsub.f32 %v3615, %v3616
      %v3618 = vand.u32 %v3617, 4294901760
      %3619 = vmatpush.msra.mxu0 %v3618
      %v3620 = vand.u32 %v3512, 4294901760
      %v3621 = vsub.f32 %v3512, %v3620
      %v3622 = vand.u32 %v3621, 4294901760
      %v3623 = vsub.f32 %v3621, %v3622
      %v3624 = vand.u32 %v3623, 4294901760
      %3625 = vmatpush.msra.mxu0 %v3624
      %v3626 = vand.u32 %v3526, 4294901760
      %3627 = vmatmul.f32.gmra.mxu0 %v3626
      %v3628 = vpop.f32.mrf.mxu0
      %v3629 = vadd.f32 %v3564, %v3628
      %v3630 = vand.u32 %v3529, 4294901760
      %3631 = vmatmul.f32.gmra.mxu0 %v3630
      %v3632 = vpop.f32.mrf.mxu0
      %v3633 = vadd.f32 %v3572, %v3632
      %v3634 = vand.u32 %v3532, 4294901760
      %3635 = vmatmul.f32.gmra.mxu0 %v3634
      %v3636 = vpop.f32.mrf.mxu0
      %v3637 = vadd.f32 %v3580, %v3636
      %v3638 = vand.u32 %v3535, 4294901760
      %3639 = vmatmul.f32.gmra.mxu0 %v3638
      %v3640 = vpop.f32.mrf.mxu0
      %v3641 = vadd.f32 %v3588, %v3640
      %3642 = vdwg.mxu0
      %3643 = vmatpush.msra.mxu0 0.0
      %3644 = vmatpush.msra.mxu0 0.0
      %3645 = vmatpush.msra.mxu0 0.0
      %3646 = vmatpush.msra.mxu0 0.0
      %3647 = vmatpush.msra.mxu0 0.0
      %3648 = vmatpush.msra.mxu0 0.0
      %3649 = vmatpush.msra.mxu0 0.0
      %3650 = vmatpush.msra.mxu0 0.0
      %3651 = vmatpush.msra.mxu0 0.0
      %3652 = vmatpush.msra.mxu0 0.0
      %3653 = vmatpush.msra.mxu0 0.0
      %3654 = vmatpush.msra.mxu0 0.0
      %v3655 = vand.u32 %v3518, 4294901760
      %v3656 = vsub.f32 %v3518, %v3655
      %3657 = vmatpush.msra.mxu0 %v3656
      %v3658 = vand.u32 %v3516, 4294901760
      %v3659 = vsub.f32 %v3516, %v3658
      %3660 = vmatpush.msra.mxu0 %v3659
      %v3661 = vand.u32 %v3514, 4294901760
      %v3662 = vsub.f32 %v3514, %v3661
      %3663 = vmatpush.msra.mxu0 %v3662
      %v3664 = vand.u32 %v3512, 4294901760
      %v3665 = vsub.f32 %v3512, %v3664
      %3666 = vmatpush.msra.mxu0 %v3665
      %v3667 = vand.u32 %v3526, 4294901760
      %v3668 = vsub.f32 %v3526, %v3667
      %3669 = vmatmul.f32.gmra.mxu0 %v3668
      %v3670 = vpop.f32.mrf.mxu0
      %v3671 = vadd.f32 %v3629, %v3670
      %v3672 = vand.u32 %v3529, 4294901760
      %v3673 = vsub.f32 %v3529, %v3672
      %3674 = vmatmul.f32.gmra.mxu0 %v3673
      %v3675 = vpop.f32.mrf.mxu0
      %v3676 = vadd.f32 %v3633, %v3675
      %v3677 = vand.u32 %v3532, 4294901760
      %v3678 = vsub.f32 %v3532, %v3677
      %3679 = vmatmul.f32.gmra.mxu0 %v3678
      %v3680 = vpop.f32.mrf.mxu0
      %v3681 = vadd.f32 %v3637, %v3680
      %v3682 = vand.u32 %v3535, 4294901760
      %v3683 = vsub.f32 %v3535, %v3682
      %3684 = vmatmul.f32.gmra.mxu0 %v3683
      %v3685 = vpop.f32.mrf.mxu0
      %v3686 = vadd.f32 %v3641, %v3685
      %3687 = vdwg.mxu0
      %3688 = vmatpush.msra.mxu0 0.0
      %3689 = vmatpush.msra.mxu0 0.0
      %3690 = vmatpush.msra.mxu0 0.0
      %3691 = vmatpush.msra.mxu0 0.0
      %3692 = vmatpush.msra.mxu0 0.0
      %3693 = vmatpush.msra.mxu0 0.0
      %3694 = vmatpush.msra.mxu0 0.0
      %3695 = vmatpush.msra.mxu0 0.0
      %3696 = vmatpush.msra.mxu0 0.0
      %3697 = vmatpush.msra.mxu0 0.0
      %3698 = vmatpush.msra.mxu0 0.0
      %3699 = vmatpush.msra.mxu0 0.0
      %v3700 = vand.u32 %v3518, 4294901760
      %3701 = vmatpush.msra.mxu0 %v3700
      %v3702 = vand.u32 %v3516, 4294901760
      %3703 = vmatpush.msra.mxu0 %v3702
      %v3704 = vand.u32 %v3514, 4294901760
      %3705 = vmatpush.msra.mxu0 %v3704
      %v3706 = vand.u32 %v3512, 4294901760
      %3707 = vmatpush.msra.mxu0 %v3706
      %v3708 = vand.u32 %v3526, 4294901760
      %v3709 = vsub.f32 %v3526, %v3708
      %v3710 = vand.u32 %v3709, 4294901760
      %3711 = vmatmul.f32.gmra.mxu0 %v3710
      %v3712 = vpop.f32.mrf.mxu0
      %v3713 = vadd.f32 %v3671, %v3712
      %v3714 = vand.u32 %v3529, 4294901760
      %v3715 = vsub.f32 %v3529, %v3714
      %v3716 = vand.u32 %v3715, 4294901760
      %3717 = vmatmul.f32.gmra.mxu0 %v3716
      %v3718 = vpop.f32.mrf.mxu0
      %v3719 = vadd.f32 %v3676, %v3718
      %v3720 = vand.u32 %v3532, 4294901760
      %v3721 = vsub.f32 %v3532, %v3720
      %v3722 = vand.u32 %v3721, 4294901760
      %3723 = vmatmul.f32.gmra.mxu0 %v3722
      %v3724 = vpop.f32.mrf.mxu0
      %v3725 = vadd.f32 %v3681, %v3724
      %v3726 = vand.u32 %v3535, 4294901760
      %v3727 = vsub.f32 %v3535, %v3726
      %v3728 = vand.u32 %v3727, 4294901760
      %3729 = vmatmul.f32.gmra.mxu0 %v3728
      %v3730 = vpop.f32.mrf.mxu0
      %v3731 = vadd.f32 %v3686, %v3730
      %3732 = vdwg.mxu0
      %3733 = vmatpush.msra.mxu0 0.0
      %3734 = vmatpush.msra.mxu0 0.0
      %3735 = vmatpush.msra.mxu0 0.0
      %3736 = vmatpush.msra.mxu0 0.0
      %3737 = vmatpush.msra.mxu0 0.0
      %3738 = vmatpush.msra.mxu0 0.0
      %3739 = vmatpush.msra.mxu0 0.0
      %3740 = vmatpush.msra.mxu0 0.0
      %3741 = vmatpush.msra.mxu0 0.0
      %3742 = vmatpush.msra.mxu0 0.0
      %3743 = vmatpush.msra.mxu0 0.0
      %3744 = vmatpush.msra.mxu0 0.0
      %v3745 = vand.u32 %v3518, 4294901760
      %v3746 = vsub.f32 %v3518, %v3745
      %v3747 = vand.u32 %v3746, 4294901760
      %3748 = vmatpush.msra.mxu0 %v3747
      %v3749 = vand.u32 %v3516, 4294901760
      %v3750 = vsub.f32 %v3516, %v3749
      %v3751 = vand.u32 %v3750, 4294901760
      %3752 = vmatpush.msra.mxu0 %v3751
      %v3753 = vand.u32 %v3514, 4294901760
      %v3754 = vsub.f32 %v3514, %v3753
      %v3755 = vand.u32 %v3754, 4294901760
      %3756 = vmatpush.msra.mxu0 %v3755
      %v3757 = vand.u32 %v3512, 4294901760
      %v3758 = vsub.f32 %v3512, %v3757
      %v3759 = vand.u32 %v3758, 4294901760
      %3760 = vmatpush.msra.mxu0 %v3759
      %v3761 = vand.u32 %v3526, 4294901760
      %3762 = vmatmul.f32.gmra.mxu0 %v3761
      %v3763 = vpop.f32.mrf.mxu0
      %v3764 = vadd.f32 %v3713, %v3763
      %v3765 = vand.u32 %v3529, 4294901760
      %3766 = vmatmul.f32.gmra.mxu0 %v3765
      %v3767 = vpop.f32.mrf.mxu0
      %v3768 = vadd.f32 %v3719, %v3767
      %v3769 = vand.u32 %v3532, 4294901760
      %3770 = vmatmul.f32.gmra.mxu0 %v3769
      %v3771 = vpop.f32.mrf.mxu0
      %v3772 = vadd.f32 %v3725, %v3771
      %v3773 = vand.u32 %v3535, 4294901760
      %3774 = vmatmul.f32.gmra.mxu0 %v3773
      %v3775 = vpop.f32.mrf.mxu0
      %v3776 = vadd.f32 %v3731, %v3775
      %3777 = vdwg.mxu0
      %3778 = vmatpush.msra.mxu0 0.0
      %3779 = vmatpush.msra.mxu0 0.0
      %3780 = vmatpush.msra.mxu0 0.0
      %3781 = vmatpush.msra.mxu0 0.0
      %3782 = vmatpush.msra.mxu0 0.0
      %3783 = vmatpush.msra.mxu0 0.0
      %3784 = vmatpush.msra.mxu0 0.0
      %3785 = vmatpush.msra.mxu0 0.0
      %3786 = vmatpush.msra.mxu0 0.0
      %3787 = vmatpush.msra.mxu0 0.0
      %3788 = vmatpush.msra.mxu0 0.0
      %3789 = vmatpush.msra.mxu0 0.0
      %v3790 = vand.u32 %v3518, 4294901760
      %3791 = vmatpush.msra.mxu0 %v3790
      %v3792 = vand.u32 %v3516, 4294901760
      %3793 = vmatpush.msra.mxu0 %v3792
      %v3794 = vand.u32 %v3514, 4294901760
      %3795 = vmatpush.msra.mxu0 %v3794
      %v3796 = vand.u32 %v3512, 4294901760
      %3797 = vmatpush.msra.mxu0 %v3796
      %v3798 = vand.u32 %v3526, 4294901760
      %3799 = vmatmul.f32.gmra.mxu0 %v3798
      %v3800 = vpop.f32.mrf.mxu0
      %v3801 = vadd.f32 %v3764, %v3800
      %v3802 = vand.u32 %v3529, 4294901760
      %3803 = vmatmul.f32.gmra.mxu0 %v3802
      %v3804 = vpop.f32.mrf.mxu0
      %v3805 = vadd.f32 %v3768, %v3804
      %v3806 = vand.u32 %v3532, 4294901760
      %3807 = vmatmul.f32.gmra.mxu0 %v3806
      %v3808 = vpop.f32.mrf.mxu0
      %v3809 = vadd.f32 %v3772, %v3808
      %v3810 = vand.u32 %v3535, 4294901760
      %3811 = vmatmul.f32.gmra.mxu0 %v3810
      %v3812 = vpop.f32.mrf.mxu0
      %v3813 = vadd.f32 %v3776, %v3812
      %3814 = vdwg.mxu0
      %3815 = vmatpush.msra.mxu0 0.0
      %3816 = vmatpush.msra.mxu0 0.0
      %3817 = vmatpush.msra.mxu0 0.0
      %3818 = vmatpush.msra.mxu0 0.0
      %3819 = vmatpush.msra.mxu0 0.0
      %3820 = vmatpush.msra.mxu0 0.0
      %3821 = vmatpush.msra.mxu0 0.0
      %3822 = vmatpush.msra.mxu0 0.0
      %3823 = vmatpush.msra.mxu0 0.0
      %3824 = vmatpush.msra.mxu0 0.0
      %3825 = vmatpush.msra.mxu0 0.0
      %3826 = vmatpush.msra.mxu0 0.0
      %v3827 = vand.u32 %v3519, 4294901760
      %3828 = vmatpush.msra.mxu0 %v3827
      %v3829 = vand.u32 %v3517, 4294901760
      %3830 = vmatpush.msra.mxu0 %v3829
      %v3831 = vand.u32 %v3515, 4294901760
      %3832 = vmatpush.msra.mxu0 %v3831
      %v3833 = vand.u32 %v3513, 4294901760
      %3834 = vmatpush.msra.mxu0 %v3833
      %v3835 = vand.u32 %v3526, 4294901760
      %v3836 = vsub.f32 %v3526, %v3835
      %v3837 = vand.u32 %v3836, 4294901760
      %v3838 = vsub.f32 %v3836, %v3837
      %v3839 = vand.u32 %v3838, 4294901760
      %3840 = vmatmul.f32.gmra.mxu0 %v3839
      %v3841 = vpop.f32.mrf.mxu0
      %v3842 = vadd.f32 0.0, %v3841
      %v3843 = vand.u32 %v3529, 4294901760
      %v3844 = vsub.f32 %v3529, %v3843
      %v3845 = vand.u32 %v3844, 4294901760
      %v3846 = vsub.f32 %v3844, %v3845
      %v3847 = vand.u32 %v3846, 4294901760
      %3848 = vmatmul.f32.gmra.mxu0 %v3847
      %v3849 = vpop.f32.mrf.mxu0
      %v3850 = vadd.f32 0.0, %v3849
      %v3851 = vand.u32 %v3532, 4294901760
      %v3852 = vsub.f32 %v3532, %v3851
      %v3853 = vand.u32 %v3852, 4294901760
      %v3854 = vsub.f32 %v3852, %v3853
      %v3855 = vand.u32 %v3854, 4294901760
      %3856 = vmatmul.f32.gmra.mxu0 %v3855
      %v3857 = vpop.f32.mrf.mxu0
      %v3858 = vadd.f32 0.0, %v3857
      %v3859 = vand.u32 %v3535, 4294901760
      %v3860 = vsub.f32 %v3535, %v3859
      %v3861 = vand.u32 %v3860, 4294901760
      %v3862 = vsub.f32 %v3860, %v3861
      %v3863 = vand.u32 %v3862, 4294901760
      %3864 = vmatmul.f32.gmra.mxu0 %v3863
      %v3865 = vpop.f32.mrf.mxu0
      %v3866 = vadd.f32 0.0, %v3865
      %3867 = vdwg.mxu0
      %3868 = vmatpush.msra.mxu0 0.0
      %3869 = vmatpush.msra.mxu0 0.0
      %3870 = vmatpush.msra.mxu0 0.0
      %3871 = vmatpush.msra.mxu0 0.0
      %3872 = vmatpush.msra.mxu0 0.0
      %3873 = vmatpush.msra.mxu0 0.0
      %3874 = vmatpush.msra.mxu0 0.0
      %3875 = vmatpush.msra.mxu0 0.0
      %3876 = vmatpush.msra.mxu0 0.0
      %3877 = vmatpush.msra.mxu0 0.0
      %3878 = vmatpush.msra.mxu0 0.0
      %3879 = vmatpush.msra.mxu0 0.0
      %v3880 = vand.u32 %v3519, 4294901760
      %v3881 = vsub.f32 %v3519, %v3880
      %v3882 = vand.u32 %v3881, 4294901760
      %v3883 = vsub.f32 %v3881, %v3882
      %v3884 = vand.u32 %v3883, 4294901760
      %3885 = vmatpush.msra.mxu0 %v3884
      %v3886 = vand.u32 %v3517, 4294901760
      %v3887 = vsub.f32 %v3517, %v3886
      %v3888 = vand.u32 %v3887, 4294901760
      %v3889 = vsub.f32 %v3887, %v3888
      %v3890 = vand.u32 %v3889, 4294901760
      %3891 = vmatpush.msra.mxu0 %v3890
      %v3892 = vand.u32 %v3515, 4294901760
      %v3893 = vsub.f32 %v3515, %v3892
      %v3894 = vand.u32 %v3893, 4294901760
      %v3895 = vsub.f32 %v3893, %v3894
      %v3896 = vand.u32 %v3895, 4294901760
      %3897 = vmatpush.msra.mxu0 %v3896
      %v3898 = vand.u32 %v3513, 4294901760
      %v3899 = vsub.f32 %v3513, %v3898
      %v3900 = vand.u32 %v3899, 4294901760
      %v3901 = vsub.f32 %v3899, %v3900
      %v3902 = vand.u32 %v3901, 4294901760
      %3903 = vmatpush.msra.mxu0 %v3902
      %v3904 = vand.u32 %v3526, 4294901760
      %3905 = vmatmul.f32.gmra.mxu0 %v3904
      %v3906 = vpop.f32.mrf.mxu0
      %v3907 = vadd.f32 %v3842, %v3906
      %v3908 = vand.u32 %v3529, 4294901760
      %3909 = vmatmul.f32.gmra.mxu0 %v3908
      %v3910 = vpop.f32.mrf.mxu0
      %v3911 = vadd.f32 %v3850, %v3910
      %v3912 = vand.u32 %v3532, 4294901760
      %3913 = vmatmul.f32.gmra.mxu0 %v3912
      %v3914 = vpop.f32.mrf.mxu0
      %v3915 = vadd.f32 %v3858, %v3914
      %v3916 = vand.u32 %v3535, 4294901760
      %3917 = vmatmul.f32.gmra.mxu0 %v3916
      %v3918 = vpop.f32.mrf.mxu0
      %v3919 = vadd.f32 %v3866, %v3918
      %3920 = vdwg.mxu0
      %3921 = vmatpush.msra.mxu0 0.0
      %3922 = vmatpush.msra.mxu0 0.0
      %3923 = vmatpush.msra.mxu0 0.0
      %3924 = vmatpush.msra.mxu0 0.0
      %3925 = vmatpush.msra.mxu0 0.0
      %3926 = vmatpush.msra.mxu0 0.0
      %3927 = vmatpush.msra.mxu0 0.0
      %3928 = vmatpush.msra.mxu0 0.0
      %3929 = vmatpush.msra.mxu0 0.0
      %3930 = vmatpush.msra.mxu0 0.0
      %3931 = vmatpush.msra.mxu0 0.0
      %3932 = vmatpush.msra.mxu0 0.0
      %v3933 = vand.u32 %v3519, 4294901760
      %v3934 = vsub.f32 %v3519, %v3933
      %3935 = vmatpush.msra.mxu0 %v3934
      %v3936 = vand.u32 %v3517, 4294901760
      %v3937 = vsub.f32 %v3517, %v3936
      %3938 = vmatpush.msra.mxu0 %v3937
      %v3939 = vand.u32 %v3515, 4294901760
      %v3940 = vsub.f32 %v3515, %v3939
      %3941 = vmatpush.msra.mxu0 %v3940
      %v3942 = vand.u32 %v3513, 4294901760
      %v3943 = vsub.f32 %v3513, %v3942
      %3944 = vmatpush.msra.mxu0 %v3943
      %v3945 = vand.u32 %v3526, 4294901760
      %v3946 = vsub.f32 %v3526, %v3945
      %3947 = vmatmul.f32.gmra.mxu0 %v3946
      %v3948 = vpop.f32.mrf.mxu0
      %v3949 = vadd.f32 %v3907, %v3948
      %v3950 = vand.u32 %v3529, 4294901760
      %v3951 = vsub.f32 %v3529, %v3950
      %3952 = vmatmul.f32.gmra.mxu0 %v3951
      %v3953 = vpop.f32.mrf.mxu0
      %v3954 = vadd.f32 %v3911, %v3953
      %v3955 = vand.u32 %v3532, 4294901760
      %v3956 = vsub.f32 %v3532, %v3955
      %3957 = vmatmul.f32.gmra.mxu0 %v3956
      %v3958 = vpop.f32.mrf.mxu0
      %v3959 = vadd.f32 %v3915, %v3958
      %v3960 = vand.u32 %v3535, 4294901760
      %v3961 = vsub.f32 %v3535, %v3960
      %3962 = vmatmul.f32.gmra.mxu0 %v3961
      %v3963 = vpop.f32.mrf.mxu0
      %v3964 = vadd.f32 %v3919, %v3963
      %3965 = vdwg.mxu0
      %3966 = vmatpush.msra.mxu0 0.0
      %3967 = vmatpush.msra.mxu0 0.0
      %3968 = vmatpush.msra.mxu0 0.0
      %3969 = vmatpush.msra.mxu0 0.0
      %3970 = vmatpush.msra.mxu0 0.0
      %3971 = vmatpush.msra.mxu0 0.0
      %3972 = vmatpush.msra.mxu0 0.0
      %3973 = vmatpush.msra.mxu0 0.0
      %3974 = vmatpush.msra.mxu0 0.0
      %3975 = vmatpush.msra.mxu0 0.0
      %3976 = vmatpush.msra.mxu0 0.0
      %3977 = vmatpush.msra.mxu0 0.0
      %v3978 = vand.u32 %v3519, 4294901760
      %3979 = vmatpush.msra.mxu0 %v3978
      %v3980 = vand.u32 %v3517, 4294901760
      %3981 = vmatpush.msra.mxu0 %v3980
      %v3982 = vand.u32 %v3515, 4294901760
      %3983 = vmatpush.msra.mxu0 %v3982
      %v3984 = vand.u32 %v3513, 4294901760
      %3985 = vmatpush.msra.mxu0 %v3984
      %v3986 = vand.u32 %v3526, 4294901760
      %v3987 = vsub.f32 %v3526, %v3986
      %v3988 = vand.u32 %v3987, 4294901760
      %3989 = vmatmul.f32.gmra.mxu0 %v3988
      %v3990 = vpop.f32.mrf.mxu0
      %v3991 = vadd.f32 %v3949, %v3990
      %v3992 = vand.u32 %v3529, 4294901760
      %v3993 = vsub.f32 %v3529, %v3992
      %v3994 = vand.u32 %v3993, 4294901760
      %3995 = vmatmul.f32.gmra.mxu0 %v3994
      %v3996 = vpop.f32.mrf.mxu0
      %v3997 = vadd.f32 %v3954, %v3996
      %v3998 = vand.u32 %v3532, 4294901760
      %v3999 = vsub.f32 %v3532, %v3998
      %v4000 = vand.u32 %v3999, 4294901760
      %4001 = vmatmul.f32.gmra.mxu0 %v4000
      %v4002 = vpop.f32.mrf.mxu0
      %v4003 = vadd.f32 %v3959, %v4002
      %v4004 = vand.u32 %v3535, 4294901760
      %v4005 = vsub.f32 %v3535, %v4004
      %v4006 = vand.u32 %v4005, 4294901760
      %4007 = vmatmul.f32.gmra.mxu0 %v4006
      %v4008 = vpop.f32.mrf.mxu0
      %v4009 = vadd.f32 %v3964, %v4008
      %4010 = vdwg.mxu0
      %4011 = vmatpush.msra.mxu0 0.0
      %4012 = vmatpush.msra.mxu0 0.0
      %4013 = vmatpush.msra.mxu0 0.0
      %4014 = vmatpush.msra.mxu0 0.0
      %4015 = vmatpush.msra.mxu0 0.0
      %4016 = vmatpush.msra.mxu0 0.0
      %4017 = vmatpush.msra.mxu0 0.0
      %4018 = vmatpush.msra.mxu0 0.0
      %4019 = vmatpush.msra.mxu0 0.0
      %4020 = vmatpush.msra.mxu0 0.0
      %4021 = vmatpush.msra.mxu0 0.0
      %4022 = vmatpush.msra.mxu0 0.0
      %v4023 = vand.u32 %v3519, 4294901760
      %v4024 = vsub.f32 %v3519, %v4023
      %v4025 = vand.u32 %v4024, 4294901760
      %4026 = vmatpush.msra.mxu0 %v4025
      %v4027 = vand.u32 %v3517, 4294901760
      %v4028 = vsub.f32 %v3517, %v4027
      %v4029 = vand.u32 %v4028, 4294901760
      %4030 = vmatpush.msra.mxu0 %v4029
      %v4031 = vand.u32 %v3515, 4294901760
      %v4032 = vsub.f32 %v3515, %v4031
      %v4033 = vand.u32 %v4032, 4294901760
      %4034 = vmatpush.msra.mxu0 %v4033
      %v4035 = vand.u32 %v3513, 4294901760
      %v4036 = vsub.f32 %v3513, %v4035
      %v4037 = vand.u32 %v4036, 4294901760
      %4038 = vmatpush.msra.mxu0 %v4037
      %v4039 = vand.u32 %v3526, 4294901760
      %4040 = vmatmul.f32.gmra.mxu0 %v4039
      %v4041 = vpop.f32.mrf.mxu0
      %v4042 = vadd.f32 %v3991, %v4041
      %v4043 = vand.u32 %v3529, 4294901760
      %4044 = vmatmul.f32.gmra.mxu0 %v4043
      %v4045 = vpop.f32.mrf.mxu0
      %v4046 = vadd.f32 %v3997, %v4045
      %v4047 = vand.u32 %v3532, 4294901760
      %4048 = vmatmul.f32.gmra.mxu0 %v4047
      %v4049 = vpop.f32.mrf.mxu0
      %v4050 = vadd.f32 %v4003, %v4049
      %v4051 = vand.u32 %v3535, 4294901760
      %4052 = vmatmul.f32.gmra.mxu0 %v4051
      %v4053 = vpop.f32.mrf.mxu0
      %v4054 = vadd.f32 %v4009, %v4053
      %4055 = vdwg.mxu0
      %4056 = vmatpush.msra.mxu0 0.0
      %4057 = vmatpush.msra.mxu0 0.0
      %4058 = vmatpush.msra.mxu0 0.0
      %4059 = vmatpush.msra.mxu0 0.0
      %4060 = vmatpush.msra.mxu0 0.0
      %4061 = vmatpush.msra.mxu0 0.0
      %4062 = vmatpush.msra.mxu0 0.0
      %4063 = vmatpush.msra.mxu0 0.0
      %4064 = vmatpush.msra.mxu0 0.0
      %4065 = vmatpush.msra.mxu0 0.0
      %4066 = vmatpush.msra.mxu0 0.0
      %4067 = vmatpush.msra.mxu0 0.0
      %v4068 = vand.u32 %v3519, 4294901760
      %4069 = vmatpush.msra.mxu0 %v4068
      %v4070 = vand.u32 %v3517, 4294901760
      %4071 = vmatpush.msra.mxu0 %v4070
      %v4072 = vand.u32 %v3515, 4294901760
      %4073 = vmatpush.msra.mxu0 %v4072
      %v4074 = vand.u32 %v3513, 4294901760
      %4075 = vmatpush.msra.mxu0 %v4074
      %v4076 = vand.u32 %v3526, 4294901760
      %4077 = vmatmul.f32.gmra.mxu0 %v4076
      %v4078 = vpop.f32.mrf.mxu0
      %v4079 = vadd.f32 %v4042, %v4078
      %v4080 = vand.u32 %v3529, 4294901760
      %4081 = vmatmul.f32.gmra.mxu0 %v4080
      %v4082 = vpop.f32.mrf.mxu0
      %v4083 = vadd.f32 %v4046, %v4082
      %v4084 = vand.u32 %v3532, 4294901760
      %4085 = vmatmul.f32.gmra.mxu0 %v4084
      %v4086 = vpop.f32.mrf.mxu0
      %v4087 = vadd.f32 %v4050, %v4086
      %v4088 = vand.u32 %v3535, 4294901760
      %4089 = vmatmul.f32.gmra.mxu0 %v4088
      %v4090 = vpop.f32.mrf.mxu0
      %v4091 = vadd.f32 %v4054, %v4090
      %4092 = vdwg.mxu0
      %v4093 = vadd.f32 %v3504, %v3801
      %v4094 = vadd.f32 %v3505, %v4079
      %v4095 = vadd.f32 %v3506, %v3805
      %v4096 = vadd.f32 %v3507, %v4083
      %v4097 = vadd.f32 %v3508, %v3809
      %v4098 = vadd.f32 %v3509, %v4087
      %v4099 = vadd.f32 %v3510, %v3813
      %v4100 = vadd.f32 %v3511, %v4091
      %v4101 = vld [vmem:[#allocation2 + $0x8] sm:$0xff]
      %v4102 = vld [vmem:[#allocation2 + $0x10] sm:$0xff]
      %v4103 = vld [vmem:[#allocation2 + $0x18] sm:$0xff]
      %v4104 = vld [vmem:[#allocation2 + $0x28] sm:$0xff]
      %v4105 = vld [vmem:[#allocation2 + $0x30] sm:$0xff]
      %v4106 = vld [vmem:[#allocation2 + $0x38] sm:$0xff]
      %v4107 = vld [vmem:[#allocation2 + $0x48] sm:$0xff]
      %v4108 = vld [vmem:[#allocation2 + $0x50] sm:$0xff]
      %v4109 = vld [vmem:[#allocation2 + $0x58] sm:$0xff]
      %v4110 = vld [vmem:[#allocation2 + $0x68] sm:$0xff]
      %v4111 = vld [vmem:[#allocation2 + $0x70] sm:$0xff]
      %v4112 = vld [vmem:[#allocation2 + $0x78] sm:$0xff]
      %4113 = vrot.lane.b32.xlu0 %v2200, 1
      %v4114 = vpop.permute.xlu0 %4113
      %4115 = vrot.lane.b32.xlu0 %v2201, 1
      %v4116 = vpop.permute.xlu0 %4115
      %v4117 = vsel %vm2919, %v4114, %v4116
      %v4121 = vmul.f32 %v4101, %v4114
      %v4122 = vmul.f32 %v4102, %v4117
      %v4123 = vmul.f32 %v4103, %v4116
      %v4124 = vmul.f32 %v4104, %v4114
      %v4125 = vmul.f32 %v4105, %v4117
      %v4126 = vmul.f32 %v4106, %v4116
      %v4127 = vmul.f32 %v4107, %v4114
      %v4128 = vmul.f32 %v4108, %v4117
      %v4129 = vmul.f32 %v4109, %v4116
      %v4130 = vmul.f32 %v4110, %v4114
      %v4131 = vmul.f32 %v4111, %v4117
      %v4132 = vmul.f32 %v4112, %v4116
      %s4133 = scalar_lea.vmem %s1, 160
      %v4134 = vld [vmem:[%s4133] sm:$0xff]
      %v4135 = vld [vmem:[%s4133 + $0x8] sm:$0xff]
      %v4136 = vld [vmem:[%s4133 + $0x10] sm:$0xff]
      %v4137 = vld [vmem:[%s4133 + $0x18] sm:$0xff]
      %4150 = vrot.lane.b32.xlu0 %v4121, 127
      %v4151 = vpop.permute.xlu0 %4150
      %4152 = vrot.lane.b32.xlu0 %v4122, 127
      %v4153 = vpop.permute.xlu0 %4152
      %4154 = vrot.lane.b32.xlu0 %v4123, 127
      %v4155 = vpop.permute.xlu0 %4154
      %4156 = vrot.lane.b32.xlu0 %v4124, 127
      %v4157 = vpop.permute.xlu0 %4156
      %4158 = vrot.lane.b32.xlu0 %v4125, 127
      %v4159 = vpop.permute.xlu0 %4158
      %4160 = vrot.lane.b32.xlu0 %v4126, 127
      %v4161 = vpop.permute.xlu0 %4160
      %4162 = vrot.lane.b32.xlu0 %v4127, 127
      %v4163 = vpop.permute.xlu0 %4162
      %4164 = vrot.lane.b32.xlu0 %v4128, 127
      %v4165 = vpop.permute.xlu0 %4164
      %4166 = vrot.lane.b32.xlu0 %v4129, 127
      %v4167 = vpop.permute.xlu0 %4166
      %4168 = vrot.lane.b32.xlu0 %v4130, 127
      %v4169 = vpop.permute.xlu0 %4168
      %4170 = vrot.lane.b32.xlu0 %v4131, 127
      %v4171 = vpop.permute.xlu0 %4170
      %4172 = vrot.lane.b32.xlu0 %v4132, 127
      %v4173 = vpop.permute.xlu0 %4172
      %v4174 = vsel %vm2861, %v4151, %v4153
      %v4175 = vsel %vm2861, %v4153, %v4155
      %v4176 = vsel %vm2861, %v4157, %v4159
      %v4177 = vsel %vm2861, %v4159, %v4161
      %v4178 = vsel %vm2861, %v4163, %v4165
      %v4179 = vsel %vm2861, %v4165, %v4167
      %v4180 = vsel %vm2861, %v4169, %v4171
      %v4181 = vsel %vm2861, %v4171, %v4173
      %v4191 = vsel %vm288, %v4134, 0
      %v4194 = vsel %vm288, %v4135, 0
      %v4197 = vsel %vm288, %v4136, 0
      %v4200 = vsel %vm288, %v4137, 0
      %4202 = vmatpush.msra.mxu0 0.0
      %4203 = vmatpush.msra.mxu0 0.0
      %4204 = vmatpush.msra.mxu0 0.0
      %4205 = vmatpush.msra.mxu0 0.0
      %4206 = vmatpush.msra.mxu0 0.0
      %4207 = vmatpush.msra.mxu0 0.0
      %4208 = vmatpush.msra.mxu0 0.0
      %4209 = vmatpush.msra.mxu0 0.0
      %4210 = vmatpush.msra.mxu0 0.0
      %4211 = vmatpush.msra.mxu0 0.0
      %4212 = vmatpush.msra.mxu0 0.0
      %4213 = vmatpush.msra.mxu0 0.0
      %v4214 = vand.u32 %v4180, 4294901760
      %4215 = vmatpush.msra.mxu0 %v4214
      %v4216 = vand.u32 %v4178, 4294901760
      %4217 = vmatpush.msra.mxu0 %v4216
      %v4218 = vand.u32 %v4176, 4294901760
      %4219 = vmatpush.msra.mxu0 %v4218
      %v4220 = vand.u32 %v4174, 4294901760
      %4221 = vmatpush.msra.mxu0 %v4220
      %v4222 = vand.u32 %v4191, 4294901760
      %v4223 = vsub.f32 %v4191, %v4222
      %v4224 = vand.u32 %v4223, 4294901760
      %v4225 = vsub.f32 %v4223, %v4224
      %v4226 = vand.u32 %v4225, 4294901760
      %4227 = vmatmul.f32.gmra.mxu0 %v4226
      %v4228 = vpop.f32.mrf.mxu0
      %v4229 = vadd.f32 0.0, %v4228
      %v4230 = vand.u32 %v4194, 4294901760
      %v4231 = vsub.f32 %v4194, %v4230
      %v4232 = vand.u32 %v4231, 4294901760
      %v4233 = vsub.f32 %v4231, %v4232
      %v4234 = vand.u32 %v4233, 4294901760
      %4235 = vmatmul.f32.gmra.mxu0 %v4234
      %v4236 = vpop.f32.mrf.mxu0
      %v4237 = vadd.f32 0.0, %v4236
      %v4238 = vand.u32 %v4197, 4294901760
      %v4239 = vsub.f32 %v4197, %v4238
      %v4240 = vand.u32 %v4239, 4294901760
      %v4241 = vsub.f32 %v4239, %v4240
      %v4242 = vand.u32 %v4241, 4294901760
      %4243 = vmatmul.f32.gmra.mxu0 %v4242
      %v4244 = vpop.f32.mrf.mxu0
      %v4245 = vadd.f32 0.0, %v4244
      %v4246 = vand.u32 %v4200, 4294901760
      %v4247 = vsub.f32 %v4200, %v4246
      %v4248 = vand.u32 %v4247, 4294901760
      %v4249 = vsub.f32 %v4247, %v4248
      %v4250 = vand.u32 %v4249, 4294901760
      %4251 = vmatmul.f32.gmra.mxu0 %v4250
      %v4252 = vpop.f32.mrf.mxu0
      %v4253 = vadd.f32 0.0, %v4252
      %4254 = vdwg.mxu0
      %4255 = vmatpush.msra.mxu0 0.0
      %4256 = vmatpush.msra.mxu0 0.0
      %4257 = vmatpush.msra.mxu0 0.0
      %4258 = vmatpush.msra.mxu0 0.0
      %4259 = vmatpush.msra.mxu0 0.0
      %4260 = vmatpush.msra.mxu0 0.0
      %4261 = vmatpush.msra.mxu0 0.0
      %4262 = vmatpush.msra.mxu0 0.0
      %4263 = vmatpush.msra.mxu0 0.0
      %4264 = vmatpush.msra.mxu0 0.0
      %4265 = vmatpush.msra.mxu0 0.0
      %4266 = vmatpush.msra.mxu0 0.0
      %v4267 = vand.u32 %v4180, 4294901760
      %v4268 = vsub.f32 %v4180, %v4267
      %v4269 = vand.u32 %v4268, 4294901760
      %v4270 = vsub.f32 %v4268, %v4269
      %v4271 = vand.u32 %v4270, 4294901760
      %4272 = vmatpush.msra.mxu0 %v4271
      %v4273 = vand.u32 %v4178, 4294901760
      %v4274 = vsub.f32 %v4178, %v4273
      %v4275 = vand.u32 %v4274, 4294901760
      %v4276 = vsub.f32 %v4274, %v4275
      %v4277 = vand.u32 %v4276, 4294901760
      %4278 = vmatpush.msra.mxu0 %v4277
      %v4279 = vand.u32 %v4176, 4294901760
      %v4280 = vsub.f32 %v4176, %v4279
      %v4281 = vand.u32 %v4280, 4294901760
      %v4282 = vsub.f32 %v4280, %v4281
      %v4283 = vand.u32 %v4282, 4294901760
      %4284 = vmatpush.msra.mxu0 %v4283
      %v4285 = vand.u32 %v4174, 4294901760
      %v4286 = vsub.f32 %v4174, %v4285
      %v4287 = vand.u32 %v4286, 4294901760
      %v4288 = vsub.f32 %v4286, %v4287
      %v4289 = vand.u32 %v4288, 4294901760
      %4290 = vmatpush.msra.mxu0 %v4289
      %v4291 = vand.u32 %v4191, 4294901760
      %4292 = vmatmul.f32.gmra.mxu0 %v4291
      %v4293 = vpop.f32.mrf.mxu0
      %v4294 = vadd.f32 %v4229, %v4293
      %v4295 = vand.u32 %v4194, 4294901760
      %4296 = vmatmul.f32.gmra.mxu0 %v4295
      %v4297 = vpop.f32.mrf.mxu0
      %v4298 = vadd.f32 %v4237, %v4297
      %v4299 = vand.u32 %v4197, 4294901760
      %4300 = vmatmul.f32.gmra.mxu0 %v4299
      %v4301 = vpop.f32.mrf.mxu0
      %v4302 = vadd.f32 %v4245, %v4301
      %v4303 = vand.u32 %v4200, 4294901760
      %4304 = vmatmul.f32.gmra.mxu0 %v4303
      %v4305 = vpop.f32.mrf.mxu0
      %v4306 = vadd.f32 %v4253, %v4305
      %4307 = vdwg.mxu0
      %4308 = vmatpush.msra.mxu0 0.0
      %4309 = vmatpush.msra.mxu0 0.0
      %4310 = vmatpush.msra.mxu0 0.0
      %4311 = vmatpush.msra.mxu0 0.0
      %4312 = vmatpush.msra.mxu0 0.0
      %4313 = vmatpush.msra.mxu0 0.0
      %4314 = vmatpush.msra.mxu0 0.0
      %4315 = vmatpush.msra.mxu0 0.0
      %4316 = vmatpush.msra.mxu0 0.0
      %4317 = vmatpush.msra.mxu0 0.0
      %4318 = vmatpush.msra.mxu0 0.0
      %4319 = vmatpush.msra.mxu0 0.0
      %v4320 = vand.u32 %v4180, 4294901760
      %v4321 = vsub.f32 %v4180, %v4320
      %4322 = vmatpush.msra.mxu0 %v4321
      %v4323 = vand.u32 %v4178, 4294901760
      %v4324 = vsub.f32 %v4178, %v4323
      %4325 = vmatpush.msra.mxu0 %v4324
      %v4326 = vand.u32 %v4176, 4294901760
      %v4327 = vsub.f32 %v4176, %v4326
      %4328 = vmatpush.msra.mxu0 %v4327
      %v4329 = vand.u32 %v4174, 4294901760
      %v4330 = vsub.f32 %v4174, %v4329
      %4331 = vmatpush.msra.mxu0 %v4330
      %v4332 = vand.u32 %v4191, 4294901760
      %v4333 = vsub.f32 %v4191, %v4332
      %4334 = vmatmul.f32.gmra.mxu0 %v4333
      %v4335 = vpop.f32.mrf.mxu0
      %v4336 = vadd.f32 %v4294, %v4335
      %v4337 = vand.u32 %v4194, 4294901760
      %v4338 = vsub.f32 %v4194, %v4337
      %4339 = vmatmul.f32.gmra.mxu0 %v4338
      %v4340 = vpop.f32.mrf.mxu0
      %v4341 = vadd.f32 %v4298, %v4340
      %v4342 = vand.u32 %v4197, 4294901760
      %v4343 = vsub.f32 %v4197, %v4342
      %4344 = vmatmul.f32.gmra.mxu0 %v4343
      %v4345 = vpop.f32.mrf.mxu0
      %v4346 = vadd.f32 %v4302, %v4345
      %v4347 = vand.u32 %v4200, 4294901760
      %v4348 = vsub.f32 %v4200, %v4347
      %4349 = vmatmul.f32.gmra.mxu0 %v4348
      %v4350 = vpop.f32.mrf.mxu0
      %v4351 = vadd.f32 %v4306, %v4350
      %4352 = vdwg.mxu0
      %4353 = vmatpush.msra.mxu0 0.0
      %4354 = vmatpush.msra.mxu0 0.0
      %4355 = vmatpush.msra.mxu0 0.0
      %4356 = vmatpush.msra.mxu0 0.0
      %4357 = vmatpush.msra.mxu0 0.0
      %4358 = vmatpush.msra.mxu0 0.0
      %4359 = vmatpush.msra.mxu0 0.0
      %4360 = vmatpush.msra.mxu0 0.0
      %4361 = vmatpush.msra.mxu0 0.0
      %4362 = vmatpush.msra.mxu0 0.0
      %4363 = vmatpush.msra.mxu0 0.0
      %4364 = vmatpush.msra.mxu0 0.0
      %v4365 = vand.u32 %v4180, 4294901760
      %4366 = vmatpush.msra.mxu0 %v4365
      %v4367 = vand.u32 %v4178, 4294901760
      %4368 = vmatpush.msra.mxu0 %v4367
      %v4369 = vand.u32 %v4176, 4294901760
      %4370 = vmatpush.msra.mxu0 %v4369
      %v4371 = vand.u32 %v4174, 4294901760
      %4372 = vmatpush.msra.mxu0 %v4371
      %v4373 = vand.u32 %v4191, 4294901760
      %v4374 = vsub.f32 %v4191, %v4373
      %v4375 = vand.u32 %v4374, 4294901760
      %4376 = vmatmul.f32.gmra.mxu0 %v4375
      %v4377 = vpop.f32.mrf.mxu0
      %v4378 = vadd.f32 %v4336, %v4377
      %v4379 = vand.u32 %v4194, 4294901760
      %v4380 = vsub.f32 %v4194, %v4379
      %v4381 = vand.u32 %v4380, 4294901760
      %4382 = vmatmul.f32.gmra.mxu0 %v4381
      %v4383 = vpop.f32.mrf.mxu0
      %v4384 = vadd.f32 %v4341, %v4383
      %v4385 = vand.u32 %v4197, 4294901760
      %v4386 = vsub.f32 %v4197, %v4385
      %v4387 = vand.u32 %v4386, 4294901760
      %4388 = vmatmul.f32.gmra.mxu0 %v4387
      %v4389 = vpop.f32.mrf.mxu0
      %v4390 = vadd.f32 %v4346, %v4389
      %v4391 = vand.u32 %v4200, 4294901760
      %v4392 = vsub.f32 %v4200, %v4391
      %v4393 = vand.u32 %v4392, 4294901760
      %4394 = vmatmul.f32.gmra.mxu0 %v4393
      %v4395 = vpop.f32.mrf.mxu0
      %v4396 = vadd.f32 %v4351, %v4395
      %4397 = vdwg.mxu0
      %4398 = vmatpush.msra.mxu0 0.0
      %4399 = vmatpush.msra.mxu0 0.0
      %4400 = vmatpush.msra.mxu0 0.0
      %4401 = vmatpush.msra.mxu0 0.0
      %4402 = vmatpush.msra.mxu0 0.0
      %4403 = vmatpush.msra.mxu0 0.0
      %4404 = vmatpush.msra.mxu0 0.0
      %4405 = vmatpush.msra.mxu0 0.0
      %4406 = vmatpush.msra.mxu0 0.0
      %4407 = vmatpush.msra.mxu0 0.0
      %4408 = vmatpush.msra.mxu0 0.0
      %4409 = vmatpush.msra.mxu0 0.0
      %v4410 = vand.u32 %v4180, 4294901760
      %v4411 = vsub.f32 %v4180, %v4410
      %v4412 = vand.u32 %v4411, 4294901760
      %4413 = vmatpush.msra.mxu0 %v4412
      %v4414 = vand.u32 %v4178, 4294901760
      %v4415 = vsub.f32 %v4178, %v4414
      %v4416 = vand.u32 %v4415, 4294901760
      %4417 = vmatpush.msra.mxu0 %v4416
      %v4418 = vand.u32 %v4176, 4294901760
      %v4419 = vsub.f32 %v4176, %v4418
      %v4420 = vand.u32 %v4419, 4294901760
      %4421 = vmatpush.msra.mxu0 %v4420
      %v4422 = vand.u32 %v4174, 4294901760
      %v4423 = vsub.f32 %v4174, %v4422
      %v4424 = vand.u32 %v4423, 4294901760
      %4425 = vmatpush.msra.mxu0 %v4424
      %v4426 = vand.u32 %v4191, 4294901760
      %4427 = vmatmul.f32.gmra.mxu0 %v4426
      %v4428 = vpop.f32.mrf.mxu0
      %v4429 = vadd.f32 %v4378, %v4428
      %v4430 = vand.u32 %v4194, 4294901760
      %4431 = vmatmul.f32.gmra.mxu0 %v4430
      %v4432 = vpop.f32.mrf.mxu0
      %v4433 = vadd.f32 %v4384, %v4432
      %v4434 = vand.u32 %v4197, 4294901760
      %4435 = vmatmul.f32.gmra.mxu0 %v4434
      %v4436 = vpop.f32.mrf.mxu0
      %v4437 = vadd.f32 %v4390, %v4436
      %v4438 = vand.u32 %v4200, 4294901760
      %4439 = vmatmul.f32.gmra.mxu0 %v4438
      %v4440 = vpop.f32.mrf.mxu0
      %v4441 = vadd.f32 %v4396, %v4440
      %4442 = vdwg.mxu0
      %4443 = vmatpush.msra.mxu0 0.0
      %4444 = vmatpush.msra.mxu0 0.0
      %4445 = vmatpush.msra.mxu0 0.0
      %4446 = vmatpush.msra.mxu0 0.0
      %4447 = vmatpush.msra.mxu0 0.0
      %4448 = vmatpush.msra.mxu0 0.0
      %4449 = vmatpush.msra.mxu0 0.0
      %4450 = vmatpush.msra.mxu0 0.0
      %4451 = vmatpush.msra.mxu0 0.0
      %4452 = vmatpush.msra.mxu0 0.0
      %4453 = vmatpush.msra.mxu0 0.0
      %4454 = vmatpush.msra.mxu0 0.0
      %v4455 = vand.u32 %v4180, 4294901760
      %4456 = vmatpush.msra.mxu0 %v4455
      %v4457 = vand.u32 %v4178, 4294901760
      %4458 = vmatpush.msra.mxu0 %v4457
      %v4459 = vand.u32 %v4176, 4294901760
      %4460 = vmatpush.msra.mxu0 %v4459
      %v4461 = vand.u32 %v4174, 4294901760
      %4462 = vmatpush.msra.mxu0 %v4461
      %v4463 = vand.u32 %v4191, 4294901760
      %4464 = vmatmul.f32.gmra.mxu0 %v4463
      %v4465 = vpop.f32.mrf.mxu0
      %v4466 = vadd.f32 %v4429, %v4465
      %v4467 = vand.u32 %v4194, 4294901760
      %4468 = vmatmul.f32.gmra.mxu0 %v4467
      %v4469 = vpop.f32.mrf.mxu0
      %v4470 = vadd.f32 %v4433, %v4469
      %v4471 = vand.u32 %v4197, 4294901760
      %4472 = vmatmul.f32.gmra.mxu0 %v4471
      %v4473 = vpop.f32.mrf.mxu0
      %v4474 = vadd.f32 %v4437, %v4473
      %v4475 = vand.u32 %v4200, 4294901760
      %4476 = vmatmul.f32.gmra.mxu0 %v4475
      %v4477 = vpop.f32.mrf.mxu0
      %v4478 = vadd.f32 %v4441, %v4477
      %4479 = vdwg.mxu0
      %4480 = vmatpush.msra.mxu0 0.0
      %4481 = vmatpush.msra.mxu0 0.0
      %4482 = vmatpush.msra.mxu0 0.0
      %4483 = vmatpush.msra.mxu0 0.0
      %4484 = vmatpush.msra.mxu0 0.0
      %4485 = vmatpush.msra.mxu0 0.0
      %4486 = vmatpush.msra.mxu0 0.0
      %4487 = vmatpush.msra.mxu0 0.0
      %4488 = vmatpush.msra.mxu0 0.0
      %4489 = vmatpush.msra.mxu0 0.0
      %4490 = vmatpush.msra.mxu0 0.0
      %4491 = vmatpush.msra.mxu0 0.0
      %v4492 = vand.u32 %v4181, 4294901760
      %4493 = vmatpush.msra.mxu0 %v4492
      %v4494 = vand.u32 %v4179, 4294901760
      %4495 = vmatpush.msra.mxu0 %v4494
      %v4496 = vand.u32 %v4177, 4294901760
      %4497 = vmatpush.msra.mxu0 %v4496
      %v4498 = vand.u32 %v4175, 4294901760
      %4499 = vmatpush.msra.mxu0 %v4498
      %v4500 = vand.u32 %v4191, 4294901760
      %v4501 = vsub.f32 %v4191, %v4500
      %v4502 = vand.u32 %v4501, 4294901760
      %v4503 = vsub.f32 %v4501, %v4502
      %v4504 = vand.u32 %v4503, 4294901760
      %4505 = vmatmul.f32.gmra.mxu0 %v4504
      %v4506 = vpop.f32.mrf.mxu0
      %v4507 = vadd.f32 0.0, %v4506
      %v4508 = vand.u32 %v4194, 4294901760
      %v4509 = vsub.f32 %v4194, %v4508
      %v4510 = vand.u32 %v4509, 4294901760
      %v4511 = vsub.f32 %v4509, %v4510
      %v4512 = vand.u32 %v4511, 4294901760
      %4513 = vmatmul.f32.gmra.mxu0 %v4512
      %v4514 = vpop.f32.mrf.mxu0
      %v4515 = vadd.f32 0.0, %v4514
      %v4516 = vand.u32 %v4197, 4294901760
      %v4517 = vsub.f32 %v4197, %v4516
      %v4518 = vand.u32 %v4517, 4294901760
      %v4519 = vsub.f32 %v4517, %v4518
      %v4520 = vand.u32 %v4519, 4294901760
      %4521 = vmatmul.f32.gmra.mxu0 %v4520
      %v4522 = vpop.f32.mrf.mxu0
      %v4523 = vadd.f32 0.0, %v4522
      %v4524 = vand.u32 %v4200, 4294901760
      %v4525 = vsub.f32 %v4200, %v4524
      %v4526 = vand.u32 %v4525, 4294901760
      %v4527 = vsub.f32 %v4525, %v4526
      %v4528 = vand.u32 %v4527, 4294901760
      %4529 = vmatmul.f32.gmra.mxu0 %v4528
      %v4530 = vpop.f32.mrf.mxu0
      %v4531 = vadd.f32 0.0, %v4530
      %4532 = vdwg.mxu0
      %4533 = vmatpush.msra.mxu0 0.0
      %4534 = vmatpush.msra.mxu0 0.0
      %4535 = vmatpush.msra.mxu0 0.0
      %4536 = vmatpush.msra.mxu0 0.0
      %4537 = vmatpush.msra.mxu0 0.0
      %4538 = vmatpush.msra.mxu0 0.0
      %4539 = vmatpush.msra.mxu0 0.0
      %4540 = vmatpush.msra.mxu0 0.0
      %4541 = vmatpush.msra.mxu0 0.0
      %4542 = vmatpush.msra.mxu0 0.0
      %4543 = vmatpush.msra.mxu0 0.0
      %4544 = vmatpush.msra.mxu0 0.0
      %v4545 = vand.u32 %v4181, 4294901760
      %v4546 = vsub.f32 %v4181, %v4545
      %v4547 = vand.u32 %v4546, 4294901760
      %v4548 = vsub.f32 %v4546, %v4547
      %v4549 = vand.u32 %v4548, 4294901760
      %4550 = vmatpush.msra.mxu0 %v4549
      %v4551 = vand.u32 %v4179, 4294901760
      %v4552 = vsub.f32 %v4179, %v4551
      %v4553 = vand.u32 %v4552, 4294901760
      %v4554 = vsub.f32 %v4552, %v4553
      %v4555 = vand.u32 %v4554, 4294901760
      %4556 = vmatpush.msra.mxu0 %v4555
      %v4557 = vand.u32 %v4177, 4294901760
      %v4558 = vsub.f32 %v4177, %v4557
      %v4559 = vand.u32 %v4558, 4294901760
      %v4560 = vsub.f32 %v4558, %v4559
      %v4561 = vand.u32 %v4560, 4294901760
      %4562 = vmatpush.msra.mxu0 %v4561
      %v4563 = vand.u32 %v4175, 4294901760
      %v4564 = vsub.f32 %v4175, %v4563
      %v4565 = vand.u32 %v4564, 4294901760
      %v4566 = vsub.f32 %v4564, %v4565
      %v4567 = vand.u32 %v4566, 4294901760
      %4568 = vmatpush.msra.mxu0 %v4567
      %v4569 = vand.u32 %v4191, 4294901760
      %4570 = vmatmul.f32.gmra.mxu0 %v4569
      %v4571 = vpop.f32.mrf.mxu0
      %v4572 = vadd.f32 %v4507, %v4571
      %v4573 = vand.u32 %v4194, 4294901760
      %4574 = vmatmul.f32.gmra.mxu0 %v4573
      %v4575 = vpop.f32.mrf.mxu0
      %v4576 = vadd.f32 %v4515, %v4575
      %v4577 = vand.u32 %v4197, 4294901760
      %4578 = vmatmul.f32.gmra.mxu0 %v4577
      %v4579 = vpop.f32.mrf.mxu0
      %v4580 = vadd.f32 %v4523, %v4579
      %v4581 = vand.u32 %v4200, 4294901760
      %4582 = vmatmul.f32.gmra.mxu0 %v4581
      %v4583 = vpop.f32.mrf.mxu0
      %v4584 = vadd.f32 %v4531, %v4583
      %4585 = vdwg.mxu0
      %4586 = vmatpush.msra.mxu0 0.0
      %4587 = vmatpush.msra.mxu0 0.0
      %4588 = vmatpush.msra.mxu0 0.0
      %4589 = vmatpush.msra.mxu0 0.0
      %4590 = vmatpush.msra.mxu0 0.0
      %4591 = vmatpush.msra.mxu0 0.0
      %4592 = vmatpush.msra.mxu0 0.0
      %4593 = vmatpush.msra.mxu0 0.0
      %4594 = vmatpush.msra.mxu0 0.0
      %4595 = vmatpush.msra.mxu0 0.0
      %4596 = vmatpush.msra.mxu0 0.0
      %4597 = vmatpush.msra.mxu0 0.0
      %v4598 = vand.u32 %v4181, 4294901760
      %v4599 = vsub.f32 %v4181, %v4598
      %4600 = vmatpush.msra.mxu0 %v4599
      %v4601 = vand.u32 %v4179, 4294901760
      %v4602 = vsub.f32 %v4179, %v4601
      %4603 = vmatpush.msra.mxu0 %v4602
      %v4604 = vand.u32 %v4177, 4294901760
      %v4605 = vsub.f32 %v4177, %v4604
      %4606 = vmatpush.msra.mxu0 %v4605
      %v4607 = vand.u32 %v4175, 4294901760
      %v4608 = vsub.f32 %v4175, %v4607
      %4609 = vmatpush.msra.mxu0 %v4608
      %v4610 = vand.u32 %v4191, 4294901760
      %v4611 = vsub.f32 %v4191, %v4610
      %4612 = vmatmul.f32.gmra.mxu0 %v4611
      %v4613 = vpop.f32.mrf.mxu0
      %v4614 = vadd.f32 %v4572, %v4613
      %v4615 = vand.u32 %v4194, 4294901760
      %v4616 = vsub.f32 %v4194, %v4615
      %4617 = vmatmul.f32.gmra.mxu0 %v4616
      %v4618 = vpop.f32.mrf.mxu0
      %v4619 = vadd.f32 %v4576, %v4618
      %v4620 = vand.u32 %v4197, 4294901760
      %v4621 = vsub.f32 %v4197, %v4620
      %4622 = vmatmul.f32.gmra.mxu0 %v4621
      %v4623 = vpop.f32.mrf.mxu0
      %v4624 = vadd.f32 %v4580, %v4623
      %v4625 = vand.u32 %v4200, 4294901760
      %v4626 = vsub.f32 %v4200, %v4625
      %4627 = vmatmul.f32.gmra.mxu0 %v4626
      %v4628 = vpop.f32.mrf.mxu0
      %v4629 = vadd.f32 %v4584, %v4628
      %4630 = vdwg.mxu0
      %4631 = vmatpush.msra.mxu0 0.0
      %4632 = vmatpush.msra.mxu0 0.0
      %4633 = vmatpush.msra.mxu0 0.0
      %4634 = vmatpush.msra.mxu0 0.0
      %4635 = vmatpush.msra.mxu0 0.0
      %4636 = vmatpush.msra.mxu0 0.0
      %4637 = vmatpush.msra.mxu0 0.0
      %4638 = vmatpush.msra.mxu0 0.0
      %4639 = vmatpush.msra.mxu0 0.0
      %4640 = vmatpush.msra.mxu0 0.0
      %4641 = vmatpush.msra.mxu0 0.0
      %4642 = vmatpush.msra.mxu0 0.0
      %v4643 = vand.u32 %v4181, 4294901760
      %4644 = vmatpush.msra.mxu0 %v4643
      %v4645 = vand.u32 %v4179, 4294901760
      %4646 = vmatpush.msra.mxu0 %v4645
      %v4647 = vand.u32 %v4177, 4294901760
      %4648 = vmatpush.msra.mxu0 %v4647
      %v4649 = vand.u32 %v4175, 4294901760
      %4650 = vmatpush.msra.mxu0 %v4649
      %v4651 = vand.u32 %v4191, 4294901760
      %v4652 = vsub.f32 %v4191, %v4651
      %v4653 = vand.u32 %v4652, 4294901760
      %4654 = vmatmul.f32.gmra.mxu0 %v4653
      %v4655 = vpop.f32.mrf.mxu0
      %v4656 = vadd.f32 %v4614, %v4655
      %v4657 = vand.u32 %v4194, 4294901760
      %v4658 = vsub.f32 %v4194, %v4657
      %v4659 = vand.u32 %v4658, 4294901760
      %4660 = vmatmul.f32.gmra.mxu0 %v4659
      %v4661 = vpop.f32.mrf.mxu0
      %v4662 = vadd.f32 %v4619, %v4661
      %v4663 = vand.u32 %v4197, 4294901760
      %v4664 = vsub.f32 %v4197, %v4663
      %v4665 = vand.u32 %v4664, 4294901760
      %4666 = vmatmul.f32.gmra.mxu0 %v4665
      %v4667 = vpop.f32.mrf.mxu0
      %v4668 = vadd.f32 %v4624, %v4667
      %v4669 = vand.u32 %v4200, 4294901760
      %v4670 = vsub.f32 %v4200, %v4669
      %v4671 = vand.u32 %v4670, 4294901760
      %4672 = vmatmul.f32.gmra.mxu0 %v4671
      %v4673 = vpop.f32.mrf.mxu0
      %v4674 = vadd.f32 %v4629, %v4673
      %4675 = vdwg.mxu0
      %4676 = vmatpush.msra.mxu0 0.0
      %4677 = vmatpush.msra.mxu0 0.0
      %4678 = vmatpush.msra.mxu0 0.0
      %4679 = vmatpush.msra.mxu0 0.0
      %4680 = vmatpush.msra.mxu0 0.0
      %4681 = vmatpush.msra.mxu0 0.0
      %4682 = vmatpush.msra.mxu0 0.0
      %4683 = vmatpush.msra.mxu0 0.0
      %4684 = vmatpush.msra.mxu0 0.0
      %4685 = vmatpush.msra.mxu0 0.0
      %4686 = vmatpush.msra.mxu0 0.0
      %4687 = vmatpush.msra.mxu0 0.0
      %v4688 = vand.u32 %v4181, 4294901760
      %v4689 = vsub.f32 %v4181, %v4688
      %v4690 = vand.u32 %v4689, 4294901760
      %4691 = vmatpush.msra.mxu0 %v4690
      %v4692 = vand.u32 %v4179, 4294901760
      %v4693 = vsub.f32 %v4179, %v4692
      %v4694 = vand.u32 %v4693, 4294901760
      %4695 = vmatpush.msra.mxu0 %v4694
      %v4696 = vand.u32 %v4177, 4294901760
      %v4697 = vsub.f32 %v4177, %v4696
      %v4698 = vand.u32 %v4697, 4294901760
      %4699 = vmatpush.msra.mxu0 %v4698
      %v4700 = vand.u32 %v4175, 4294901760
      %v4701 = vsub.f32 %v4175, %v4700
      %v4702 = vand.u32 %v4701, 4294901760
      %4703 = vmatpush.msra.mxu0 %v4702
      %v4704 = vand.u32 %v4191, 4294901760
      %4705 = vmatmul.f32.gmra.mxu0 %v4704
      %v4706 = vpop.f32.mrf.mxu0
      %v4707 = vadd.f32 %v4656, %v4706
      %v4708 = vand.u32 %v4194, 4294901760
      %4709 = vmatmul.f32.gmra.mxu0 %v4708
      %v4710 = vpop.f32.mrf.mxu0
      %v4711 = vadd.f32 %v4662, %v4710
      %v4712 = vand.u32 %v4197, 4294901760
      %4713 = vmatmul.f32.gmra.mxu0 %v4712
      %v4714 = vpop.f32.mrf.mxu0
      %v4715 = vadd.f32 %v4668, %v4714
      %v4716 = vand.u32 %v4200, 4294901760
      %4717 = vmatmul.f32.gmra.mxu0 %v4716
      %v4718 = vpop.f32.mrf.mxu0
      %v4719 = vadd.f32 %v4674, %v4718
      %4720 = vdwg.mxu0
      %4721 = vmatpush.msra.mxu0 0.0
      %4722 = vmatpush.msra.mxu0 0.0
      %4723 = vmatpush.msra.mxu0 0.0
      %4724 = vmatpush.msra.mxu0 0.0
      %4725 = vmatpush.msra.mxu0 0.0
      %4726 = vmatpush.msra.mxu0 0.0
      %4727 = vmatpush.msra.mxu0 0.0
      %4728 = vmatpush.msra.mxu0 0.0
      %4729 = vmatpush.msra.mxu0 0.0
      %4730 = vmatpush.msra.mxu0 0.0
      %4731 = vmatpush.msra.mxu0 0.0
      %4732 = vmatpush.msra.mxu0 0.0
      %v4733 = vand.u32 %v4181, 4294901760
      %4734 = vmatpush.msra.mxu0 %v4733
      %v4735 = vand.u32 %v4179, 4294901760
      %4736 = vmatpush.msra.mxu0 %v4735
      %v4737 = vand.u32 %v4177, 4294901760
      %4738 = vmatpush.msra.mxu0 %v4737
      %v4739 = vand.u32 %v4175, 4294901760
      %4740 = vmatpush.msra.mxu0 %v4739
      %v4741 = vand.u32 %v4191, 4294901760
      %4742 = vmatmul.f32.gmra.mxu0 %v4741
      %v4743 = vpop.f32.mrf.mxu0
      %v4744 = vadd.f32 %v4707, %v4743
      %v4745 = vand.u32 %v4194, 4294901760
      %4746 = vmatmul.f32.gmra.mxu0 %v4745
      %v4747 = vpop.f32.mrf.mxu0
      %v4748 = vadd.f32 %v4711, %v4747
      %v4749 = vand.u32 %v4197, 4294901760
      %4750 = vmatmul.f32.gmra.mxu0 %v4749
      %v4751 = vpop.f32.mrf.mxu0
      %v4752 = vadd.f32 %v4715, %v4751
      %v4753 = vand.u32 %v4200, 4294901760
      %4754 = vmatmul.f32.gmra.mxu0 %v4753
      %v4755 = vpop.f32.mrf.mxu0
      %v4756 = vadd.f32 %v4719, %v4755
      %4757 = vdwg.mxu0
      %v4758 = vadd.f32 %v4093, %v4466
      %v4759 = vadd.f32 %v4094, %v4744
      %v4760 = vadd.f32 %v4095, %v4470
      %v4761 = vadd.f32 %v4096, %v4748
      %v4762 = vadd.f32 %v4097, %v4474
      %v4763 = vadd.f32 %v4098, %v4752
      %v4764 = vadd.f32 %v4099, %v4478
      %v4765 = vadd.f32 %v4100, %v4756
      %4766 = vrot.lane.b32.xlu0 %v895, 15
      %v4767 = vpop.permute.xlu0 %4766
      %4768 = vrot.lane.b32.xlu0 %v896, 15
      %v4769 = vpop.permute.xlu0 %4768
      %v4770 = vsel %vm2264, %v4767, %v4769
      %v4774 = vmul.f32 %v4101, %v4767
      %v4775 = vmul.f32 %v4102, %v4770
      %v4776 = vmul.f32 %v4103, %v4769
      %v4777 = vmul.f32 %v4104, %v4767
      %v4778 = vmul.f32 %v4105, %v4770
      %v4779 = vmul.f32 %v4106, %v4769
      %v4780 = vmul.f32 %v4107, %v4767
      %v4781 = vmul.f32 %v4108, %v4770
      %v4782 = vmul.f32 %v4109, %v4769
      %v4783 = vmul.f32 %v4110, %v4767
      %v4784 = vmul.f32 %v4111, %v4770
      %v4785 = vmul.f32 %v4112, %v4769
      %s4786 = scalar_lea.vmem %s1, 192
      %v4787 = vld [vmem:[%s4786] sm:$0xff]
      %v4788 = vld [vmem:[%s4786 + $0x8] sm:$0xff]
      %v4789 = vld [vmem:[%s4786 + $0x10] sm:$0xff]
      %v4790 = vld [vmem:[%s4786 + $0x18] sm:$0xff]
      %4803 = vrot.lane.b32.xlu0 %v4774, 113
      %v4804 = vpop.permute.xlu0 %4803
      %4805 = vrot.lane.b32.xlu0 %v4775, 113
      %v4806 = vpop.permute.xlu0 %4805
      %4807 = vrot.lane.b32.xlu0 %v4776, 113
      %v4808 = vpop.permute.xlu0 %4807
      %4809 = vrot.lane.b32.xlu0 %v4777, 113
      %v4810 = vpop.permute.xlu0 %4809
      %4811 = vrot.lane.b32.xlu0 %v4778, 113
      %v4812 = vpop.permute.xlu0 %4811
      %4813 = vrot.lane.b32.xlu0 %v4779, 113
      %v4814 = vpop.permute.xlu0 %4813
      %4815 = vrot.lane.b32.xlu0 %v4780, 113
      %v4816 = vpop.permute.xlu0 %4815
      %4817 = vrot.lane.b32.xlu0 %v4781, 113
      %v4818 = vpop.permute.xlu0 %4817
      %4819 = vrot.lane.b32.xlu0 %v4782, 113
      %v4820 = vpop.permute.xlu0 %4819
      %4821 = vrot.lane.b32.xlu0 %v4783, 113
      %v4822 = vpop.permute.xlu0 %4821
      %4823 = vrot.lane.b32.xlu0 %v4784, 113
      %v4824 = vpop.permute.xlu0 %4823
      %4825 = vrot.lane.b32.xlu0 %v4785, 113
      %v4826 = vpop.permute.xlu0 %4825
      %v4827 = vsel %vm2206, %v4804, %v4806
      %v4828 = vsel %vm2206, %v4806, %v4808
      %v4829 = vsel %vm2206, %v4810, %v4812
      %v4830 = vsel %vm2206, %v4812, %v4814
      %v4831 = vsel %vm2206, %v4816, %v4818
      %v4832 = vsel %vm2206, %v4818, %v4820
      %v4833 = vsel %vm2206, %v4822, %v4824
      %v4834 = vsel %vm2206, %v4824, %v4826
      %v4844 = vsel %vm288, %v4787, 0
      %v4847 = vsel %vm288, %v4788, 0
      %v4850 = vsel %vm288, %v4789, 0
      %v4853 = vsel %vm288, %v4790, 0
      %4855 = vmatpush.msra.mxu0 0.0
      %4856 = vmatpush.msra.mxu0 0.0
      %4857 = vmatpush.msra.mxu0 0.0
      %4858 = vmatpush.msra.mxu0 0.0
      %4859 = vmatpush.msra.mxu0 0.0
      %4860 = vmatpush.msra.mxu0 0.0
      %4861 = vmatpush.msra.mxu0 0.0
      %4862 = vmatpush.msra.mxu0 0.0
      %4863 = vmatpush.msra.mxu0 0.0
      %4864 = vmatpush.msra.mxu0 0.0
      %4865 = vmatpush.msra.mxu0 0.0
      %4866 = vmatpush.msra.mxu0 0.0
      %v4867 = vand.u32 %v4833, 4294901760
      %4868 = vmatpush.msra.mxu0 %v4867
      %v4869 = vand.u32 %v4831, 4294901760
      %4870 = vmatpush.msra.mxu0 %v4869
      %v4871 = vand.u32 %v4829, 4294901760
      %4872 = vmatpush.msra.mxu0 %v4871
      %v4873 = vand.u32 %v4827, 4294901760
      %4874 = vmatpush.msra.mxu0 %v4873
      %v4875 = vand.u32 %v4844, 4294901760
      %v4876 = vsub.f32 %v4844, %v4875
      %v4877 = vand.u32 %v4876, 4294901760
      %v4878 = vsub.f32 %v4876, %v4877
      %v4879 = vand.u32 %v4878, 4294901760
      %4880 = vmatmul.f32.gmra.mxu0 %v4879
      %v4881 = vpop.f32.mrf.mxu0
      %v4882 = vadd.f32 0.0, %v4881
      %v4883 = vand.u32 %v4847, 4294901760
      %v4884 = vsub.f32 %v4847, %v4883
      %v4885 = vand.u32 %v4884, 4294901760
      %v4886 = vsub.f32 %v4884, %v4885
      %v4887 = vand.u32 %v4886, 4294901760
      %4888 = vmatmul.f32.gmra.mxu0 %v4887
      %v4889 = vpop.f32.mrf.mxu0
      %v4890 = vadd.f32 0.0, %v4889
      %v4891 = vand.u32 %v4850, 4294901760
      %v4892 = vsub.f32 %v4850, %v4891
      %v4893 = vand.u32 %v4892, 4294901760
      %v4894 = vsub.f32 %v4892, %v4893
      %v4895 = vand.u32 %v4894, 4294901760
      %4896 = vmatmul.f32.gmra.mxu0 %v4895
      %v4897 = vpop.f32.mrf.mxu0
      %v4898 = vadd.f32 0.0, %v4897
      %v4899 = vand.u32 %v4853, 4294901760
      %v4900 = vsub.f32 %v4853, %v4899
      %v4901 = vand.u32 %v4900, 4294901760
      %v4902 = vsub.f32 %v4900, %v4901
      %v4903 = vand.u32 %v4902, 4294901760
      %4904 = vmatmul.f32.gmra.mxu0 %v4903
      %v4905 = vpop.f32.mrf.mxu0
      %v4906 = vadd.f32 0.0, %v4905
      %4907 = vdwg.mxu0
      %4908 = vmatpush.msra.mxu0 0.0
      %4909 = vmatpush.msra.mxu0 0.0
      %4910 = vmatpush.msra.mxu0 0.0
      %4911 = vmatpush.msra.mxu0 0.0
      %4912 = vmatpush.msra.mxu0 0.0
      %4913 = vmatpush.msra.mxu0 0.0
      %4914 = vmatpush.msra.mxu0 0.0
      %4915 = vmatpush.msra.mxu0 0.0
      %4916 = vmatpush.msra.mxu0 0.0
      %4917 = vmatpush.msra.mxu0 0.0
      %4918 = vmatpush.msra.mxu0 0.0
      %4919 = vmatpush.msra.mxu0 0.0
      %v4920 = vand.u32 %v4833, 4294901760
      %v4921 = vsub.f32 %v4833, %v4920
      %v4922 = vand.u32 %v4921, 4294901760
      %v4923 = vsub.f32 %v4921, %v4922
      %v4924 = vand.u32 %v4923, 4294901760
      %4925 = vmatpush.msra.mxu0 %v4924
      %v4926 = vand.u32 %v4831, 4294901760
      %v4927 = vsub.f32 %v4831, %v4926
      %v4928 = vand.u32 %v4927, 4294901760
      %v4929 = vsub.f32 %v4927, %v4928
      %v4930 = vand.u32 %v4929, 4294901760
      %4931 = vmatpush.msra.mxu0 %v4930
      %v4932 = vand.u32 %v4829, 4294901760
      %v4933 = vsub.f32 %v4829, %v4932
      %v4934 = vand.u32 %v4933, 4294901760
      %v4935 = vsub.f32 %v4933, %v4934
      %v4936 = vand.u32 %v4935, 4294901760
      %4937 = vmatpush.msra.mxu0 %v4936
      %v4938 = vand.u32 %v4827, 4294901760
      %v4939 = vsub.f32 %v4827, %v4938
      %v4940 = vand.u32 %v4939, 4294901760
      %v4941 = vsub.f32 %v4939, %v4940
      %v4942 = vand.u32 %v4941, 4294901760
      %4943 = vmatpush.msra.mxu0 %v4942
      %v4944 = vand.u32 %v4844, 4294901760
      %4945 = vmatmul.f32.gmra.mxu0 %v4944
      %v4946 = vpop.f32.mrf.mxu0
      %v4947 = vadd.f32 %v4882, %v4946
      %v4948 = vand.u32 %v4847, 4294901760
      %4949 = vmatmul.f32.gmra.mxu0 %v4948
      %v4950 = vpop.f32.mrf.mxu0
      %v4951 = vadd.f32 %v4890, %v4950
      %v4952 = vand.u32 %v4850, 4294901760
      %4953 = vmatmul.f32.gmra.mxu0 %v4952
      %v4954 = vpop.f32.mrf.mxu0
      %v4955 = vadd.f32 %v4898, %v4954
      %v4956 = vand.u32 %v4853, 4294901760
      %4957 = vmatmul.f32.gmra.mxu0 %v4956
      %v4958 = vpop.f32.mrf.mxu0
      %v4959 = vadd.f32 %v4906, %v4958
      %4960 = vdwg.mxu0
      %4961 = vmatpush.msra.mxu0 0.0
      %4962 = vmatpush.msra.mxu0 0.0
      %4963 = vmatpush.msra.mxu0 0.0
      %4964 = vmatpush.msra.mxu0 0.0
      %4965 = vmatpush.msra.mxu0 0.0
      %4966 = vmatpush.msra.mxu0 0.0
      %4967 = vmatpush.msra.mxu0 0.0
      %4968 = vmatpush.msra.mxu0 0.0
      %4969 = vmatpush.msra.mxu0 0.0
      %4970 = vmatpush.msra.mxu0 0.0
      %4971 = vmatpush.msra.mxu0 0.0
      %4972 = vmatpush.msra.mxu0 0.0
      %v4973 = vand.u32 %v4833, 4294901760
      %v4974 = vsub.f32 %v4833, %v4973
      %4975 = vmatpush.msra.mxu0 %v4974
      %v4976 = vand.u32 %v4831, 4294901760
      %v4977 = vsub.f32 %v4831, %v4976
      %4978 = vmatpush.msra.mxu0 %v4977
      %v4979 = vand.u32 %v4829, 4294901760
      %v4980 = vsub.f32 %v4829, %v4979
      %4981 = vmatpush.msra.mxu0 %v4980
      %v4982 = vand.u32 %v4827, 4294901760
      %v4983 = vsub.f32 %v4827, %v4982
      %4984 = vmatpush.msra.mxu0 %v4983
      %v4985 = vand.u32 %v4844, 4294901760
      %v4986 = vsub.f32 %v4844, %v4985
      %4987 = vmatmul.f32.gmra.mxu0 %v4986
      %v4988 = vpop.f32.mrf.mxu0
      %v4989 = vadd.f32 %v4947, %v4988
      %v4990 = vand.u32 %v4847, 4294901760
      %v4991 = vsub.f32 %v4847, %v4990
      %4992 = vmatmul.f32.gmra.mxu0 %v4991
      %v4993 = vpop.f32.mrf.mxu0
      %v4994 = vadd.f32 %v4951, %v4993
      %v4995 = vand.u32 %v4850, 4294901760
      %v4996 = vsub.f32 %v4850, %v4995
      %4997 = vmatmul.f32.gmra.mxu0 %v4996
      %v4998 = vpop.f32.mrf.mxu0
      %v4999 = vadd.f32 %v4955, %v4998
      %v5000 = vand.u32 %v4853, 4294901760
      %v5001 = vsub.f32 %v4853, %v5000
      %5002 = vmatmul.f32.gmra.mxu0 %v5001
      %v5003 = vpop.f32.mrf.mxu0
      %v5004 = vadd.f32 %v4959, %v5003
      %5005 = vdwg.mxu0
      %5006 = vmatpush.msra.mxu0 0.0
      %5007 = vmatpush.msra.mxu0 0.0
      %5008 = vmatpush.msra.mxu0 0.0
      %5009 = vmatpush.msra.mxu0 0.0
      %5010 = vmatpush.msra.mxu0 0.0
      %5011 = vmatpush.msra.mxu0 0.0
      %5012 = vmatpush.msra.mxu0 0.0
      %5013 = vmatpush.msra.mxu0 0.0
      %5014 = vmatpush.msra.mxu0 0.0
      %5015 = vmatpush.msra.mxu0 0.0
      %5016 = vmatpush.msra.mxu0 0.0
      %5017 = vmatpush.msra.mxu0 0.0
      %v5018 = vand.u32 %v4833, 4294901760
      %5019 = vmatpush.msra.mxu0 %v5018
      %v5020 = vand.u32 %v4831, 4294901760
      %5021 = vmatpush.msra.mxu0 %v5020
      %v5022 = vand.u32 %v4829, 4294901760
      %5023 = vmatpush.msra.mxu0 %v5022
      %v5024 = vand.u32 %v4827, 4294901760
      %5025 = vmatpush.msra.mxu0 %v5024
      %v5026 = vand.u32 %v4844, 4294901760
      %v5027 = vsub.f32 %v4844, %v5026
      %v5028 = vand.u32 %v5027, 4294901760
      %5029 = vmatmul.f32.gmra.mxu0 %v5028
      %v5030 = vpop.f32.mrf.mxu0
      %v5031 = vadd.f32 %v4989, %v5030
      %v5032 = vand.u32 %v4847, 4294901760
      %v5033 = vsub.f32 %v4847, %v5032
      %v5034 = vand.u32 %v5033, 4294901760
      %5035 = vmatmul.f32.gmra.mxu0 %v5034
      %v5036 = vpop.f32.mrf.mxu0
      %v5037 = vadd.f32 %v4994, %v5036
      %v5038 = vand.u32 %v4850, 4294901760
      %v5039 = vsub.f32 %v4850, %v5038
      %v5040 = vand.u32 %v5039, 4294901760
      %5041 = vmatmul.f32.gmra.mxu0 %v5040
      %v5042 = vpop.f32.mrf.mxu0
      %v5043 = vadd.f32 %v4999, %v5042
      %v5044 = vand.u32 %v4853, 4294901760
      %v5045 = vsub.f32 %v4853, %v5044
      %v5046 = vand.u32 %v5045, 4294901760
      %5047 = vmatmul.f32.gmra.mxu0 %v5046
      %v5048 = vpop.f32.mrf.mxu0
      %v5049 = vadd.f32 %v5004, %v5048
      %5050 = vdwg.mxu0
      %5051 = vmatpush.msra.mxu0 0.0
      %5052 = vmatpush.msra.mxu0 0.0
      %5053 = vmatpush.msra.mxu0 0.0
      %5054 = vmatpush.msra.mxu0 0.0
      %5055 = vmatpush.msra.mxu0 0.0
      %5056 = vmatpush.msra.mxu0 0.0
      %5057 = vmatpush.msra.mxu0 0.0
      %5058 = vmatpush.msra.mxu0 0.0
      %5059 = vmatpush.msra.mxu0 0.0
      %5060 = vmatpush.msra.mxu0 0.0
      %5061 = vmatpush.msra.mxu0 0.0
      %5062 = vmatpush.msra.mxu0 0.0
      %v5063 = vand.u32 %v4833, 4294901760
      %v5064 = vsub.f32 %v4833, %v5063
      %v5065 = vand.u32 %v5064, 4294901760
      %5066 = vmatpush.msra.mxu0 %v5065
      %v5067 = vand.u32 %v4831, 4294901760
      %v5068 = vsub.f32 %v4831, %v5067
      %v5069 = vand.u32 %v5068, 4294901760
      %5070 = vmatpush.msra.mxu0 %v5069
      %v5071 = vand.u32 %v4829, 4294901760
      %v5072 = vsub.f32 %v4829, %v5071
      %v5073 = vand.u32 %v5072, 4294901760
      %5074 = vmatpush.msra.mxu0 %v5073
      %v5075 = vand.u32 %v4827, 4294901760
      %v5076 = vsub.f32 %v4827, %v5075
      %v5077 = vand.u32 %v5076, 4294901760
      %5078 = vmatpush.msra.mxu0 %v5077
      %v5079 = vand.u32 %v4844, 4294901760
      %5080 = vmatmul.f32.gmra.mxu0 %v5079
      %v5081 = vpop.f32.mrf.mxu0
      %v5082 = vadd.f32 %v5031, %v5081
      %v5083 = vand.u32 %v4847, 4294901760
      %5084 = vmatmul.f32.gmra.mxu0 %v5083
      %v5085 = vpop.f32.mrf.mxu0
      %v5086 = vadd.f32 %v5037, %v5085
      %v5087 = vand.u32 %v4850, 4294901760
      %5088 = vmatmul.f32.gmra.mxu0 %v5087
      %v5089 = vpop.f32.mrf.mxu0
      %v5090 = vadd.f32 %v5043, %v5089
      %v5091 = vand.u32 %v4853, 4294901760
      %5092 = vmatmul.f32.gmra.mxu0 %v5091
      %v5093 = vpop.f32.mrf.mxu0
      %v5094 = vadd.f32 %v5049, %v5093
      %5095 = vdwg.mxu0
      %5096 = vmatpush.msra.mxu0 0.0
      %5097 = vmatpush.msra.mxu0 0.0
      %5098 = vmatpush.msra.mxu0 0.0
      %5099 = vmatpush.msra.mxu0 0.0
      %5100 = vmatpush.msra.mxu0 0.0
      %5101 = vmatpush.msra.mxu0 0.0
      %5102 = vmatpush.msra.mxu0 0.0
      %5103 = vmatpush.msra.mxu0 0.0
      %5104 = vmatpush.msra.mxu0 0.0
      %5105 = vmatpush.msra.mxu0 0.0
      %5106 = vmatpush.msra.mxu0 0.0
      %5107 = vmatpush.msra.mxu0 0.0
      %v5108 = vand.u32 %v4833, 4294901760
      %5109 = vmatpush.msra.mxu0 %v5108
      %v5110 = vand.u32 %v4831, 4294901760
      %5111 = vmatpush.msra.mxu0 %v5110
      %v5112 = vand.u32 %v4829, 4294901760
      %5113 = vmatpush.msra.mxu0 %v5112
      %v5114 = vand.u32 %v4827, 4294901760
      %5115 = vmatpush.msra.mxu0 %v5114
      %v5116 = vand.u32 %v4844, 4294901760
      %5117 = vmatmul.f32.gmra.mxu0 %v5116
      %v5118 = vpop.f32.mrf.mxu0
      %v5119 = vadd.f32 %v5082, %v5118
      %v5120 = vand.u32 %v4847, 4294901760
      %5121 = vmatmul.f32.gmra.mxu0 %v5120
      %v5122 = vpop.f32.mrf.mxu0
      %v5123 = vadd.f32 %v5086, %v5122
      %v5124 = vand.u32 %v4850, 4294901760
      %5125 = vmatmul.f32.gmra.mxu0 %v5124
      %v5126 = vpop.f32.mrf.mxu0
      %v5127 = vadd.f32 %v5090, %v5126
      %v5128 = vand.u32 %v4853, 4294901760
      %5129 = vmatmul.f32.gmra.mxu0 %v5128
      %v5130 = vpop.f32.mrf.mxu0
      %v5131 = vadd.f32 %v5094, %v5130
      %5132 = vdwg.mxu0
      %5133 = vmatpush.msra.mxu0 0.0
      %5134 = vmatpush.msra.mxu0 0.0
      %5135 = vmatpush.msra.mxu0 0.0
      %5136 = vmatpush.msra.mxu0 0.0
      %5137 = vmatpush.msra.mxu0 0.0
      %5138 = vmatpush.msra.mxu0 0.0
      %5139 = vmatpush.msra.mxu0 0.0
      %5140 = vmatpush.msra.mxu0 0.0
      %5141 = vmatpush.msra.mxu0 0.0
      %5142 = vmatpush.msra.mxu0 0.0
      %5143 = vmatpush.msra.mxu0 0.0
      %5144 = vmatpush.msra.mxu0 0.0
      %v5145 = vand.u32 %v4834, 4294901760
      %5146 = vmatpush.msra.mxu0 %v5145
      %v5147 = vand.u32 %v4832, 4294901760
      %5148 = vmatpush.msra.mxu0 %v5147
      %v5149 = vand.u32 %v4830, 4294901760
      %5150 = vmatpush.msra.mxu0 %v5149
      %v5151 = vand.u32 %v4828, 4294901760
      %5152 = vmatpush.msra.mxu0 %v5151
      %v5153 = vand.u32 %v4844, 4294901760
      %v5154 = vsub.f32 %v4844, %v5153
      %v5155 = vand.u32 %v5154, 4294901760
      %v5156 = vsub.f32 %v5154, %v5155
      %v5157 = vand.u32 %v5156, 4294901760
      %5158 = vmatmul.f32.gmra.mxu0 %v5157
      %v5159 = vpop.f32.mrf.mxu0
      %v5160 = vadd.f32 0.0, %v5159
      %v5161 = vand.u32 %v4847, 4294901760
      %v5162 = vsub.f32 %v4847, %v5161
      %v5163 = vand.u32 %v5162, 4294901760
      %v5164 = vsub.f32 %v5162, %v5163
      %v5165 = vand.u32 %v5164, 4294901760
      %5166 = vmatmul.f32.gmra.mxu0 %v5165
      %v5167 = vpop.f32.mrf.mxu0
      %v5168 = vadd.f32 0.0, %v5167
      %v5169 = vand.u32 %v4850, 4294901760
      %v5170 = vsub.f32 %v4850, %v5169
      %v5171 = vand.u32 %v5170, 4294901760
      %v5172 = vsub.f32 %v5170, %v5171
      %v5173 = vand.u32 %v5172, 4294901760
      %5174 = vmatmul.f32.gmra.mxu0 %v5173
      %v5175 = vpop.f32.mrf.mxu0
      %v5176 = vadd.f32 0.0, %v5175
      %v5177 = vand.u32 %v4853, 4294901760
      %v5178 = vsub.f32 %v4853, %v5177
      %v5179 = vand.u32 %v5178, 4294901760
      %v5180 = vsub.f32 %v5178, %v5179
      %v5181 = vand.u32 %v5180, 4294901760
      %5182 = vmatmul.f32.gmra.mxu0 %v5181
      %v5183 = vpop.f32.mrf.mxu0
      %v5184 = vadd.f32 0.0, %v5183
      %5185 = vdwg.mxu0
      %5186 = vmatpush.msra.mxu0 0.0
      %5187 = vmatpush.msra.mxu0 0.0
      %5188 = vmatpush.msra.mxu0 0.0
      %5189 = vmatpush.msra.mxu0 0.0
      %5190 = vmatpush.msra.mxu0 0.0
      %5191 = vmatpush.msra.mxu0 0.0
      %5192 = vmatpush.msra.mxu0 0.0
      %5193 = vmatpush.msra.mxu0 0.0
      %5194 = vmatpush.msra.mxu0 0.0
      %5195 = vmatpush.msra.mxu0 0.0
      %5196 = vmatpush.msra.mxu0 0.0
      %5197 = vmatpush.msra.mxu0 0.0
      %v5198 = vand.u32 %v4834, 4294901760
      %v5199 = vsub.f32 %v4834, %v5198
      %v5200 = vand.u32 %v5199, 4294901760
      %v5201 = vsub.f32 %v5199, %v5200
      %v5202 = vand.u32 %v5201, 4294901760
      %5203 = vmatpush.msra.mxu0 %v5202
      %v5204 = vand.u32 %v4832, 4294901760
      %v5205 = vsub.f32 %v4832, %v5204
      %v5206 = vand.u32 %v5205, 4294901760
      %v5207 = vsub.f32 %v5205, %v5206
      %v5208 = vand.u32 %v5207, 4294901760
      %5209 = vmatpush.msra.mxu0 %v5208
      %v5210 = vand.u32 %v4830, 4294901760
      %v5211 = vsub.f32 %v4830, %v5210
      %v5212 = vand.u32 %v5211, 4294901760
      %v5213 = vsub.f32 %v5211, %v5212
      %v5214 = vand.u32 %v5213, 4294901760
      %5215 = vmatpush.msra.mxu0 %v5214
      %v5216 = vand.u32 %v4828, 4294901760
      %v5217 = vsub.f32 %v4828, %v5216
      %v5218 = vand.u32 %v5217, 4294901760
      %v5219 = vsub.f32 %v5217, %v5218
      %v5220 = vand.u32 %v5219, 4294901760
      %5221 = vmatpush.msra.mxu0 %v5220
      %v5222 = vand.u32 %v4844, 4294901760
      %5223 = vmatmul.f32.gmra.mxu0 %v5222
      %v5224 = vpop.f32.mrf.mxu0
      %v5225 = vadd.f32 %v5160, %v5224
      %v5226 = vand.u32 %v4847, 4294901760
      %5227 = vmatmul.f32.gmra.mxu0 %v5226
      %v5228 = vpop.f32.mrf.mxu0
      %v5229 = vadd.f32 %v5168, %v5228
      %v5230 = vand.u32 %v4850, 4294901760
      %5231 = vmatmul.f32.gmra.mxu0 %v5230
      %v5232 = vpop.f32.mrf.mxu0
      %v5233 = vadd.f32 %v5176, %v5232
      %v5234 = vand.u32 %v4853, 4294901760
      %5235 = vmatmul.f32.gmra.mxu0 %v5234
      %v5236 = vpop.f32.mrf.mxu0
      %v5237 = vadd.f32 %v5184, %v5236
      %5238 = vdwg.mxu0
      %5239 = vmatpush.msra.mxu0 0.0
      %5240 = vmatpush.msra.mxu0 0.0
      %5241 = vmatpush.msra.mxu0 0.0
      %5242 = vmatpush.msra.mxu0 0.0
      %5243 = vmatpush.msra.mxu0 0.0
      %5244 = vmatpush.msra.mxu0 0.0
      %5245 = vmatpush.msra.mxu0 0.0
      %5246 = vmatpush.msra.mxu0 0.0
      %5247 = vmatpush.msra.mxu0 0.0
      %5248 = vmatpush.msra.mxu0 0.0
      %5249 = vmatpush.msra.mxu0 0.0
      %5250 = vmatpush.msra.mxu0 0.0
      %v5251 = vand.u32 %v4834, 4294901760
      %v5252 = vsub.f32 %v4834, %v5251
      %5253 = vmatpush.msra.mxu0 %v5252
      %v5254 = vand.u32 %v4832, 4294901760
      %v5255 = vsub.f32 %v4832, %v5254
      %5256 = vmatpush.msra.mxu0 %v5255
      %v5257 = vand.u32 %v4830, 4294901760
      %v5258 = vsub.f32 %v4830, %v5257
      %5259 = vmatpush.msra.mxu0 %v5258
      %v5260 = vand.u32 %v4828, 4294901760
      %v5261 = vsub.f32 %v4828, %v5260
      %5262 = vmatpush.msra.mxu0 %v5261
      %v5263 = vand.u32 %v4844, 4294901760
      %v5264 = vsub.f32 %v4844, %v5263
      %5265 = vmatmul.f32.gmra.mxu0 %v5264
      %v5266 = vpop.f32.mrf.mxu0
      %v5267 = vadd.f32 %v5225, %v5266
      %v5268 = vand.u32 %v4847, 4294901760
      %v5269 = vsub.f32 %v4847, %v5268
      %5270 = vmatmul.f32.gmra.mxu0 %v5269
      %v5271 = vpop.f32.mrf.mxu0
      %v5272 = vadd.f32 %v5229, %v5271
      %v5273 = vand.u32 %v4850, 4294901760
      %v5274 = vsub.f32 %v4850, %v5273
      %5275 = vmatmul.f32.gmra.mxu0 %v5274
      %v5276 = vpop.f32.mrf.mxu0
      %v5277 = vadd.f32 %v5233, %v5276
      %v5278 = vand.u32 %v4853, 4294901760
      %v5279 = vsub.f32 %v4853, %v5278
      %5280 = vmatmul.f32.gmra.mxu0 %v5279
      %v5281 = vpop.f32.mrf.mxu0
      %v5282 = vadd.f32 %v5237, %v5281
      %5283 = vdwg.mxu0
      %5284 = vmatpush.msra.mxu0 0.0
      %5285 = vmatpush.msra.mxu0 0.0
      %5286 = vmatpush.msra.mxu0 0.0
      %5287 = vmatpush.msra.mxu0 0.0
      %5288 = vmatpush.msra.mxu0 0.0
      %5289 = vmatpush.msra.mxu0 0.0
      %5290 = vmatpush.msra.mxu0 0.0
      %5291 = vmatpush.msra.mxu0 0.0
      %5292 = vmatpush.msra.mxu0 0.0
      %5293 = vmatpush.msra.mxu0 0.0
      %5294 = vmatpush.msra.mxu0 0.0
      %5295 = vmatpush.msra.mxu0 0.0
      %v5296 = vand.u32 %v4834, 4294901760
      %5297 = vmatpush.msra.mxu0 %v5296
      %v5298 = vand.u32 %v4832, 4294901760
      %5299 = vmatpush.msra.mxu0 %v5298
      %v5300 = vand.u32 %v4830, 4294901760
      %5301 = vmatpush.msra.mxu0 %v5300
      %v5302 = vand.u32 %v4828, 4294901760
      %5303 = vmatpush.msra.mxu0 %v5302
      %v5304 = vand.u32 %v4844, 4294901760
      %v5305 = vsub.f32 %v4844, %v5304
      %v5306 = vand.u32 %v5305, 4294901760
      %5307 = vmatmul.f32.gmra.mxu0 %v5306
      %v5308 = vpop.f32.mrf.mxu0
      %v5309 = vadd.f32 %v5267, %v5308
      %v5310 = vand.u32 %v4847, 4294901760
      %v5311 = vsub.f32 %v4847, %v5310
      %v5312 = vand.u32 %v5311, 4294901760
      %5313 = vmatmul.f32.gmra.mxu0 %v5312
      %v5314 = vpop.f32.mrf.mxu0
      %v5315 = vadd.f32 %v5272, %v5314
      %v5316 = vand.u32 %v4850, 4294901760
      %v5317 = vsub.f32 %v4850, %v5316
      %v5318 = vand.u32 %v5317, 4294901760
      %5319 = vmatmul.f32.gmra.mxu0 %v5318
      %v5320 = vpop.f32.mrf.mxu0
      %v5321 = vadd.f32 %v5277, %v5320
      %v5322 = vand.u32 %v4853, 4294901760
      %v5323 = vsub.f32 %v4853, %v5322
      %v5324 = vand.u32 %v5323, 4294901760
      %5325 = vmatmul.f32.gmra.mxu0 %v5324
      %v5326 = vpop.f32.mrf.mxu0
      %v5327 = vadd.f32 %v5282, %v5326
      %5328 = vdwg.mxu0
      %5329 = vmatpush.msra.mxu0 0.0
      %5330 = vmatpush.msra.mxu0 0.0
      %5331 = vmatpush.msra.mxu0 0.0
      %5332 = vmatpush.msra.mxu0 0.0
      %5333 = vmatpush.msra.mxu0 0.0
      %5334 = vmatpush.msra.mxu0 0.0
      %5335 = vmatpush.msra.mxu0 0.0
      %5336 = vmatpush.msra.mxu0 0.0
      %5337 = vmatpush.msra.mxu0 0.0
      %5338 = vmatpush.msra.mxu0 0.0
      %5339 = vmatpush.msra.mxu0 0.0
      %5340 = vmatpush.msra.mxu0 0.0
      %v5341 = vand.u32 %v4834, 4294901760
      %v5342 = vsub.f32 %v4834, %v5341
      %v5343 = vand.u32 %v5342, 4294901760
      %5344 = vmatpush.msra.mxu0 %v5343
      %v5345 = vand.u32 %v4832, 4294901760
      %v5346 = vsub.f32 %v4832, %v5345
      %v5347 = vand.u32 %v5346, 4294901760
      %5348 = vmatpush.msra.mxu0 %v5347
      %v5349 = vand.u32 %v4830, 4294901760
      %v5350 = vsub.f32 %v4830, %v5349
      %v5351 = vand.u32 %v5350, 4294901760
      %5352 = vmatpush.msra.mxu0 %v5351
      %v5353 = vand.u32 %v4828, 4294901760
      %v5354 = vsub.f32 %v4828, %v5353
      %v5355 = vand.u32 %v5354, 4294901760
      %5356 = vmatpush.msra.mxu0 %v5355
      %v5357 = vand.u32 %v4844, 4294901760
      %5358 = vmatmul.f32.gmra.mxu0 %v5357
      %v5359 = vpop.f32.mrf.mxu0
      %v5360 = vadd.f32 %v5309, %v5359
      %v5361 = vand.u32 %v4847, 4294901760
      %5362 = vmatmul.f32.gmra.mxu0 %v5361
      %v5363 = vpop.f32.mrf.mxu0
      %v5364 = vadd.f32 %v5315, %v5363
      %v5365 = vand.u32 %v4850, 4294901760
      %5366 = vmatmul.f32.gmra.mxu0 %v5365
      %v5367 = vpop.f32.mrf.mxu0
      %v5368 = vadd.f32 %v5321, %v5367
      %v5369 = vand.u32 %v4853, 4294901760
      %5370 = vmatmul.f32.gmra.mxu0 %v5369
      %v5371 = vpop.f32.mrf.mxu0
      %v5372 = vadd.f32 %v5327, %v5371
      %5373 = vdwg.mxu0
      %5374 = vmatpush.msra.mxu0 0.0
      %5375 = vmatpush.msra.mxu0 0.0
      %5376 = vmatpush.msra.mxu0 0.0
      %5377 = vmatpush.msra.mxu0 0.0
      %5378 = vmatpush.msra.mxu0 0.0
      %5379 = vmatpush.msra.mxu0 0.0
      %5380 = vmatpush.msra.mxu0 0.0
      %5381 = vmatpush.msra.mxu0 0.0
      %5382 = vmatpush.msra.mxu0 0.0
      %5383 = vmatpush.msra.mxu0 0.0
      %5384 = vmatpush.msra.mxu0 0.0
      %5385 = vmatpush.msra.mxu0 0.0
      %v5386 = vand.u32 %v4834, 4294901760
      %5387 = vmatpush.msra.mxu0 %v5386
      %v5388 = vand.u32 %v4832, 4294901760
      %5389 = vmatpush.msra.mxu0 %v5388
      %v5390 = vand.u32 %v4830, 4294901760
      %5391 = vmatpush.msra.mxu0 %v5390
      %v5392 = vand.u32 %v4828, 4294901760
      %5393 = vmatpush.msra.mxu0 %v5392
      %v5394 = vand.u32 %v4844, 4294901760
      %5395 = vmatmul.f32.gmra.mxu0 %v5394
      %v5396 = vpop.f32.mrf.mxu0
      %v5397 = vadd.f32 %v5360, %v5396
      %v5398 = vand.u32 %v4847, 4294901760
      %5399 = vmatmul.f32.gmra.mxu0 %v5398
      %v5400 = vpop.f32.mrf.mxu0
      %v5401 = vadd.f32 %v5364, %v5400
      %v5402 = vand.u32 %v4850, 4294901760
      %5403 = vmatmul.f32.gmra.mxu0 %v5402
      %v5404 = vpop.f32.mrf.mxu0
      %v5405 = vadd.f32 %v5368, %v5404
      %v5406 = vand.u32 %v4853, 4294901760
      %5407 = vmatmul.f32.gmra.mxu0 %v5406
      %v5408 = vpop.f32.mrf.mxu0
      %v5409 = vadd.f32 %v5372, %v5408
      %5410 = vdwg.mxu0
      %v5411 = vadd.f32 %v4758, %v5119
      %v5412 = vadd.f32 %v4759, %v5397
      %v5413 = vadd.f32 %v4760, %v5123
      %v5414 = vadd.f32 %v4761, %v5401
      %v5415 = vadd.f32 %v4762, %v5127
      %v5416 = vadd.f32 %v4763, %v5405
      %v5417 = vadd.f32 %v4764, %v5131
      %v5418 = vadd.f32 %v4765, %v5409
      %5419 = vrot.lane.b32.xlu0 %v925, 16
      %v5420 = vpop.permute.xlu0 %5419
      %5421 = vrot.lane.b32.xlu0 %v926, 16
      %v5422 = vpop.permute.xlu0 %5421
      %v5423 = vsel %vm991, %v5420, %v5422
      %v5427 = vmul.f32 %v4101, %v5420
      %v5428 = vmul.f32 %v4102, %v5423
      %v5429 = vmul.f32 %v4103, %v5422
      %v5430 = vmul.f32 %v4104, %v5420
      %v5431 = vmul.f32 %v4105, %v5423
      %v5432 = vmul.f32 %v4106, %v5422
      %v5433 = vmul.f32 %v4107, %v5420
      %v5434 = vmul.f32 %v4108, %v5423
      %v5435 = vmul.f32 %v4109, %v5422
      %v5436 = vmul.f32 %v4110, %v5420
      %v5437 = vmul.f32 %v4111, %v5423
      %v5438 = vmul.f32 %v4112, %v5422
      %s5439 = scalar_lea.vmem %s1, 224
      %v5440 = vld [vmem:[%s5439] sm:$0xff]
      %v5441 = vld [vmem:[%s5439 + $0x8] sm:$0xff]
      %v5442 = vld [vmem:[%s5439 + $0x10] sm:$0xff]
      %v5443 = vld [vmem:[%s5439 + $0x18] sm:$0xff]
      %5456 = vrot.lane.b32.xlu0 %v5427, 112
      %v5457 = vpop.permute.xlu0 %5456
      %5458 = vrot.lane.b32.xlu0 %v5428, 112
      %v5459 = vpop.permute.xlu0 %5458
      %5460 = vrot.lane.b32.xlu0 %v5429, 112
      %v5461 = vpop.permute.xlu0 %5460
      %5462 = vrot.lane.b32.xlu0 %v5430, 112
      %v5463 = vpop.permute.xlu0 %5462
      %5464 = vrot.lane.b32.xlu0 %v5431, 112
      %v5465 = vpop.permute.xlu0 %5464
      %5466 = vrot.lane.b32.xlu0 %v5432, 112
      %v5467 = vpop.permute.xlu0 %5466
      %5468 = vrot.lane.b32.xlu0 %v5433, 112
      %v5469 = vpop.permute.xlu0 %5468
      %5470 = vrot.lane.b32.xlu0 %v5434, 112
      %v5471 = vpop.permute.xlu0 %5470
      %5472 = vrot.lane.b32.xlu0 %v5435, 112
      %v5473 = vpop.permute.xlu0 %5472
      %5474 = vrot.lane.b32.xlu0 %v5436, 112
      %v5475 = vpop.permute.xlu0 %5474
      %5476 = vrot.lane.b32.xlu0 %v5437, 112
      %v5477 = vpop.permute.xlu0 %5476
      %5478 = vrot.lane.b32.xlu0 %v5438, 112
      %v5479 = vpop.permute.xlu0 %5478
      %v5480 = vsel %vm933, %v5457, %v5459
      %v5481 = vsel %vm933, %v5459, %v5461
      %v5482 = vsel %vm933, %v5463, %v5465
      %v5483 = vsel %vm933, %v5465, %v5467
      %v5484 = vsel %vm933, %v5469, %v5471
      %v5485 = vsel %vm933, %v5471, %v5473
      %v5486 = vsel %vm933, %v5475, %v5477
      %v5487 = vsel %vm933, %v5477, %v5479
      %v5497 = vsel %vm288, %v5440, 0
      %v5500 = vsel %vm288, %v5441, 0
      %v5503 = vsel %vm288, %v5442, 0
      %v5506 = vsel %vm288, %v5443, 0
      %5508 = vmatpush.msra.mxu0 0.0
      %5509 = vmatpush.msra.mxu0 0.0
      %5510 = vmatpush.msra.mxu0 0.0
      %5511 = vmatpush.msra.mxu0 0.0
      %5512 = vmatpush.msra.mxu0 0.0
      %5513 = vmatpush.msra.mxu0 0.0
      %5514 = vmatpush.msra.mxu0 0.0
      %5515 = vmatpush.msra.mxu0 0.0
      %5516 = vmatpush.msra.mxu0 0.0
      %5517 = vmatpush.msra.mxu0 0.0
      %5518 = vmatpush.msra.mxu0 0.0
      %5519 = vmatpush.msra.mxu0 0.0
      %v5520 = vand.u32 %v5486, 4294901760
      %5521 = vmatpush.msra.mxu0 %v5520
      %v5522 = vand.u32 %v5484, 4294901760
      %5523 = vmatpush.msra.mxu0 %v5522
      %v5524 = vand.u32 %v5482, 4294901760
      %5525 = vmatpush.msra.mxu0 %v5524
      %v5526 = vand.u32 %v5480, 4294901760
      %5527 = vmatpush.msra.mxu0 %v5526
      %v5528 = vand.u32 %v5497, 4294901760
      %v5529 = vsub.f32 %v5497, %v5528
      %v5530 = vand.u32 %v5529, 4294901760
      %v5531 = vsub.f32 %v5529, %v5530
      %v5532 = vand.u32 %v5531, 4294901760
      %5533 = vmatmul.f32.gmra.mxu0 %v5532
      %v5534 = vpop.f32.mrf.mxu0
      %v5535 = vadd.f32 0.0, %v5534
      %v5536 = vand.u32 %v5500, 4294901760
      %v5537 = vsub.f32 %v5500, %v5536
      %v5538 = vand.u32 %v5537, 4294901760
      %v5539 = vsub.f32 %v5537, %v5538
      %v5540 = vand.u32 %v5539, 4294901760
      %5541 = vmatmul.f32.gmra.mxu0 %v5540
      %v5542 = vpop.f32.mrf.mxu0
      %v5543 = vadd.f32 0.0, %v5542
      %v5544 = vand.u32 %v5503, 4294901760
      %v5545 = vsub.f32 %v5503, %v5544
      %v5546 = vand.u32 %v5545, 4294901760
      %v5547 = vsub.f32 %v5545, %v5546
      %v5548 = vand.u32 %v5547, 4294901760
      %5549 = vmatmul.f32.gmra.mxu0 %v5548
      %v5550 = vpop.f32.mrf.mxu0
      %v5551 = vadd.f32 0.0, %v5550
      %v5552 = vand.u32 %v5506, 4294901760
      %v5553 = vsub.f32 %v5506, %v5552
      %v5554 = vand.u32 %v5553, 4294901760
      %v5555 = vsub.f32 %v5553, %v5554
      %v5556 = vand.u32 %v5555, 4294901760
      %5557 = vmatmul.f32.gmra.mxu0 %v5556
      %v5558 = vpop.f32.mrf.mxu0
      %v5559 = vadd.f32 0.0, %v5558
      %5560 = vdwg.mxu0
      %5561 = vmatpush.msra.mxu0 0.0
      %5562 = vmatpush.msra.mxu0 0.0
      %5563 = vmatpush.msra.mxu0 0.0
      %5564 = vmatpush.msra.mxu0 0.0
      %5565 = vmatpush.msra.mxu0 0.0
      %5566 = vmatpush.msra.mxu0 0.0
      %5567 = vmatpush.msra.mxu0 0.0
      %5568 = vmatpush.msra.mxu0 0.0
      %5569 = vmatpush.msra.mxu0 0.0
      %5570 = vmatpush.msra.mxu0 0.0
      %5571 = vmatpush.msra.mxu0 0.0
      %5572 = vmatpush.msra.mxu0 0.0
      %v5573 = vand.u32 %v5486, 4294901760
      %v5574 = vsub.f32 %v5486, %v5573
      %v5575 = vand.u32 %v5574, 4294901760
      %v5576 = vsub.f32 %v5574, %v5575
      %v5577 = vand.u32 %v5576, 4294901760
      %5578 = vmatpush.msra.mxu0 %v5577
      %v5579 = vand.u32 %v5484, 4294901760
      %v5580 = vsub.f32 %v5484, %v5579
      %v5581 = vand.u32 %v5580, 4294901760
      %v5582 = vsub.f32 %v5580, %v5581
      %v5583 = vand.u32 %v5582, 4294901760
      %5584 = vmatpush.msra.mxu0 %v5583
      %v5585 = vand.u32 %v5482, 4294901760
      %v5586 = vsub.f32 %v5482, %v5585
      %v5587 = vand.u32 %v5586, 4294901760
      %v5588 = vsub.f32 %v5586, %v5587
      %v5589 = vand.u32 %v5588, 4294901760
      %5590 = vmatpush.msra.mxu0 %v5589
      %v5591 = vand.u32 %v5480, 4294901760
      %v5592 = vsub.f32 %v5480, %v5591
      %v5593 = vand.u32 %v5592, 4294901760
      %v5594 = vsub.f32 %v5592, %v5593
      %v5595 = vand.u32 %v5594, 4294901760
      %5596 = vmatpush.msra.mxu0 %v5595
      %v5597 = vand.u32 %v5497, 4294901760
      %5598 = vmatmul.f32.gmra.mxu0 %v5597
      %v5599 = vpop.f32.mrf.mxu0
      %v5600 = vadd.f32 %v5535, %v5599
      %v5601 = vand.u32 %v5500, 4294901760
      %5602 = vmatmul.f32.gmra.mxu0 %v5601
      %v5603 = vpop.f32.mrf.mxu0
      %v5604 = vadd.f32 %v5543, %v5603
      %v5605 = vand.u32 %v5503, 4294901760
      %5606 = vmatmul.f32.gmra.mxu0 %v5605
      %v5607 = vpop.f32.mrf.mxu0
      %v5608 = vadd.f32 %v5551, %v5607
      %v5609 = vand.u32 %v5506, 4294901760
      %5610 = vmatmul.f32.gmra.mxu0 %v5609
      %v5611 = vpop.f32.mrf.mxu0
      %v5612 = vadd.f32 %v5559, %v5611
      %5613 = vdwg.mxu0
      %5614 = vmatpush.msra.mxu0 0.0
      %5615 = vmatpush.msra.mxu0 0.0
      %5616 = vmatpush.msra.mxu0 0.0
      %5617 = vmatpush.msra.mxu0 0.0
      %5618 = vmatpush.msra.mxu0 0.0
      %5619 = vmatpush.msra.mxu0 0.0
      %5620 = vmatpush.msra.mxu0 0.0
      %5621 = vmatpush.msra.mxu0 0.0
      %5622 = vmatpush.msra.mxu0 0.0
      %5623 = vmatpush.msra.mxu0 0.0
      %5624 = vmatpush.msra.mxu0 0.0
      %5625 = vmatpush.msra.mxu0 0.0
      %v5626 = vand.u32 %v5486, 4294901760
      %v5627 = vsub.f32 %v5486, %v5626
      %5628 = vmatpush.msra.mxu0 %v5627
      %v5629 = vand.u32 %v5484, 4294901760
      %v5630 = vsub.f32 %v5484, %v5629
      %5631 = vmatpush.msra.mxu0 %v5630
      %v5632 = vand.u32 %v5482, 4294901760
      %v5633 = vsub.f32 %v5482, %v5632
      %5634 = vmatpush.msra.mxu0 %v5633
      %v5635 = vand.u32 %v5480, 4294901760
      %v5636 = vsub.f32 %v5480, %v5635
      %5637 = vmatpush.msra.mxu0 %v5636
      %v5638 = vand.u32 %v5497, 4294901760
      %v5639 = vsub.f32 %v5497, %v5638
      %5640 = vmatmul.f32.gmra.mxu0 %v5639
      %v5641 = vpop.f32.mrf.mxu0
      %v5642 = vadd.f32 %v5600, %v5641
      %v5643 = vand.u32 %v5500, 4294901760
      %v5644 = vsub.f32 %v5500, %v5643
      %5645 = vmatmul.f32.gmra.mxu0 %v5644
      %v5646 = vpop.f32.mrf.mxu0
      %v5647 = vadd.f32 %v5604, %v5646
      %v5648 = vand.u32 %v5503, 4294901760
      %v5649 = vsub.f32 %v5503, %v5648
      %5650 = vmatmul.f32.gmra.mxu0 %v5649
      %v5651 = vpop.f32.mrf.mxu0
      %v5652 = vadd.f32 %v5608, %v5651
      %v5653 = vand.u32 %v5506, 4294901760
      %v5654 = vsub.f32 %v5506, %v5653
      %5655 = vmatmul.f32.gmra.mxu0 %v5654
      %v5656 = vpop.f32.mrf.mxu0
      %v5657 = vadd.f32 %v5612, %v5656
      %5658 = vdwg.mxu0
      %5659 = vmatpush.msra.mxu0 0.0
      %5660 = vmatpush.msra.mxu0 0.0
      %5661 = vmatpush.msra.mxu0 0.0
      %5662 = vmatpush.msra.mxu0 0.0
      %5663 = vmatpush.msra.mxu0 0.0
      %5664 = vmatpush.msra.mxu0 0.0
      %5665 = vmatpush.msra.mxu0 0.0
      %5666 = vmatpush.msra.mxu0 0.0
      %5667 = vmatpush.msra.mxu0 0.0
      %5668 = vmatpush.msra.mxu0 0.0
      %5669 = vmatpush.msra.mxu0 0.0
      %5670 = vmatpush.msra.mxu0 0.0
      %v5671 = vand.u32 %v5486, 4294901760
      %5672 = vmatpush.msra.mxu0 %v5671
      %v5673 = vand.u32 %v5484, 4294901760
      %5674 = vmatpush.msra.mxu0 %v5673
      %v5675 = vand.u32 %v5482, 4294901760
      %5676 = vmatpush.msra.mxu0 %v5675
      %v5677 = vand.u32 %v5480, 4294901760
      %5678 = vmatpush.msra.mxu0 %v5677
      %v5679 = vand.u32 %v5497, 4294901760
      %v5680 = vsub.f32 %v5497, %v5679
      %v5681 = vand.u32 %v5680, 4294901760
      %5682 = vmatmul.f32.gmra.mxu0 %v5681
      %v5683 = vpop.f32.mrf.mxu0
      %v5684 = vadd.f32 %v5642, %v5683
      %v5685 = vand.u32 %v5500, 4294901760
      %v5686 = vsub.f32 %v5500, %v5685
      %v5687 = vand.u32 %v5686, 4294901760
      %5688 = vmatmul.f32.gmra.mxu0 %v5687
      %v5689 = vpop.f32.mrf.mxu0
      %v5690 = vadd.f32 %v5647, %v5689
      %v5691 = vand.u32 %v5503, 4294901760
      %v5692 = vsub.f32 %v5503, %v5691
      %v5693 = vand.u32 %v5692, 4294901760
      %5694 = vmatmul.f32.gmra.mxu0 %v5693
      %v5695 = vpop.f32.mrf.mxu0
      %v5696 = vadd.f32 %v5652, %v5695
      %v5697 = vand.u32 %v5506, 4294901760
      %v5698 = vsub.f32 %v5506, %v5697
      %v5699 = vand.u32 %v5698, 4294901760
      %5700 = vmatmul.f32.gmra.mxu0 %v5699
      %v5701 = vpop.f32.mrf.mxu0
      %v5702 = vadd.f32 %v5657, %v5701
      %5703 = vdwg.mxu0
      %5704 = vmatpush.msra.mxu0 0.0
      %5705 = vmatpush.msra.mxu0 0.0
      %5706 = vmatpush.msra.mxu0 0.0
      %5707 = vmatpush.msra.mxu0 0.0
      %5708 = vmatpush.msra.mxu0 0.0
      %5709 = vmatpush.msra.mxu0 0.0
      %5710 = vmatpush.msra.mxu0 0.0
      %5711 = vmatpush.msra.mxu0 0.0
      %5712 = vmatpush.msra.mxu0 0.0
      %5713 = vmatpush.msra.mxu0 0.0
      %5714 = vmatpush.msra.mxu0 0.0
      %5715 = vmatpush.msra.mxu0 0.0
      %v5716 = vand.u32 %v5486, 4294901760
      %v5717 = vsub.f32 %v5486, %v5716
      %v5718 = vand.u32 %v5717, 4294901760
      %5719 = vmatpush.msra.mxu0 %v5718
      %v5720 = vand.u32 %v5484, 4294901760
      %v5721 = vsub.f32 %v5484, %v5720
      %v5722 = vand.u32 %v5721, 4294901760
      %5723 = vmatpush.msra.mxu0 %v5722
      %v5724 = vand.u32 %v5482, 4294901760
      %v5725 = vsub.f32 %v5482, %v5724
      %v5726 = vand.u32 %v5725, 4294901760
      %5727 = vmatpush.msra.mxu0 %v5726
      %v5728 = vand.u32 %v5480, 4294901760
      %v5729 = vsub.f32 %v5480, %v5728
      %v5730 = vand.u32 %v5729, 4294901760
      %5731 = vmatpush.msra.mxu0 %v5730
      %v5732 = vand.u32 %v5497, 4294901760
      %5733 = vmatmul.f32.gmra.mxu0 %v5732
      %v5734 = vpop.f32.mrf.mxu0
      %v5735 = vadd.f32 %v5684, %v5734
      %v5736 = vand.u32 %v5500, 4294901760
      %5737 = vmatmul.f32.gmra.mxu0 %v5736
      %v5738 = vpop.f32.mrf.mxu0
      %v5739 = vadd.f32 %v5690, %v5738
      %v5740 = vand.u32 %v5503, 4294901760
      %5741 = vmatmul.f32.gmra.mxu0 %v5740
      %v5742 = vpop.f32.mrf.mxu0
      %v5743 = vadd.f32 %v5696, %v5742
      %v5744 = vand.u32 %v5506, 4294901760
      %5745 = vmatmul.f32.gmra.mxu0 %v5744
      %v5746 = vpop.f32.mrf.mxu0
      %v5747 = vadd.f32 %v5702, %v5746
      %5748 = vdwg.mxu0
      %5749 = vmatpush.msra.mxu0 0.0
      %5750 = vmatpush.msra.mxu0 0.0
      %5751 = vmatpush.msra.mxu0 0.0
      %5752 = vmatpush.msra.mxu0 0.0
      %5753 = vmatpush.msra.mxu0 0.0
      %5754 = vmatpush.msra.mxu0 0.0
      %5755 = vmatpush.msra.mxu0 0.0
      %5756 = vmatpush.msra.mxu0 0.0
      %5757 = vmatpush.msra.mxu0 0.0
      %5758 = vmatpush.msra.mxu0 0.0
      %5759 = vmatpush.msra.mxu0 0.0
      %5760 = vmatpush.msra.mxu0 0.0
      %v5761 = vand.u32 %v5486, 4294901760
      %5762 = vmatpush.msra.mxu0 %v5761
      %v5763 = vand.u32 %v5484, 4294901760
      %5764 = vmatpush.msra.mxu0 %v5763
      %v5765 = vand.u32 %v5482, 4294901760
      %5766 = vmatpush.msra.mxu0 %v5765
      %v5767 = vand.u32 %v5480, 4294901760
      %5768 = vmatpush.msra.mxu0 %v5767
      %v5769 = vand.u32 %v5497, 4294901760
      %5770 = vmatmul.f32.gmra.mxu0 %v5769
      %v5771 = vpop.f32.mrf.mxu0
      %v5772 = vadd.f32 %v5735, %v5771
      %v5773 = vand.u32 %v5500, 4294901760
      %5774 = vmatmul.f32.gmra.mxu0 %v5773
      %v5775 = vpop.f32.mrf.mxu0
      %v5776 = vadd.f32 %v5739, %v5775
      %v5777 = vand.u32 %v5503, 4294901760
      %5778 = vmatmul.f32.gmra.mxu0 %v5777
      %v5779 = vpop.f32.mrf.mxu0
      %v5780 = vadd.f32 %v5743, %v5779
      %v5781 = vand.u32 %v5506, 4294901760
      %5782 = vmatmul.f32.gmra.mxu0 %v5781
      %v5783 = vpop.f32.mrf.mxu0
      %v5784 = vadd.f32 %v5747, %v5783
      %5785 = vdwg.mxu0
      %5786 = vmatpush.msra.mxu0 0.0
      %5787 = vmatpush.msra.mxu0 0.0
      %5788 = vmatpush.msra.mxu0 0.0
      %5789 = vmatpush.msra.mxu0 0.0
      %5790 = vmatpush.msra.mxu0 0.0
      %5791 = vmatpush.msra.mxu0 0.0
      %5792 = vmatpush.msra.mxu0 0.0
      %5793 = vmatpush.msra.mxu0 0.0
      %5794 = vmatpush.msra.mxu0 0.0
      %5795 = vmatpush.msra.mxu0 0.0
      %5796 = vmatpush.msra.mxu0 0.0
      %5797 = vmatpush.msra.mxu0 0.0
      %v5798 = vand.u32 %v5487, 4294901760
      %5799 = vmatpush.msra.mxu0 %v5798
      %v5800 = vand.u32 %v5485, 4294901760
      %5801 = vmatpush.msra.mxu0 %v5800
      %v5802 = vand.u32 %v5483, 4294901760
      %5803 = vmatpush.msra.mxu0 %v5802
      %v5804 = vand.u32 %v5481, 4294901760
      %5805 = vmatpush.msra.mxu0 %v5804
      %v5806 = vand.u32 %v5497, 4294901760
      %v5807 = vsub.f32 %v5497, %v5806
      %v5808 = vand.u32 %v5807, 4294901760
      %v5809 = vsub.f32 %v5807, %v5808
      %v5810 = vand.u32 %v5809, 4294901760
      %5811 = vmatmul.f32.gmra.mxu0 %v5810
      %v5812 = vpop.f32.mrf.mxu0
      %v5813 = vadd.f32 0.0, %v5812
      %v5814 = vand.u32 %v5500, 4294901760
      %v5815 = vsub.f32 %v5500, %v5814
      %v5816 = vand.u32 %v5815, 4294901760
      %v5817 = vsub.f32 %v5815, %v5816
      %v5818 = vand.u32 %v5817, 4294901760
      %5819 = vmatmul.f32.gmra.mxu0 %v5818
      %v5820 = vpop.f32.mrf.mxu0
      %v5821 = vadd.f32 0.0, %v5820
      %v5822 = vand.u32 %v5503, 4294901760
      %v5823 = vsub.f32 %v5503, %v5822
      %v5824 = vand.u32 %v5823, 4294901760
      %v5825 = vsub.f32 %v5823, %v5824
      %v5826 = vand.u32 %v5825, 4294901760
      %5827 = vmatmul.f32.gmra.mxu0 %v5826
      %v5828 = vpop.f32.mrf.mxu0
      %v5829 = vadd.f32 0.0, %v5828
      %v5830 = vand.u32 %v5506, 4294901760
      %v5831 = vsub.f32 %v5506, %v5830
      %v5832 = vand.u32 %v5831, 4294901760
      %v5833 = vsub.f32 %v5831, %v5832
      %v5834 = vand.u32 %v5833, 4294901760
      %5835 = vmatmul.f32.gmra.mxu0 %v5834
      %v5836 = vpop.f32.mrf.mxu0
      %v5837 = vadd.f32 0.0, %v5836
      %5838 = vdwg.mxu0
      %5839 = vmatpush.msra.mxu0 0.0
      %5840 = vmatpush.msra.mxu0 0.0
      %5841 = vmatpush.msra.mxu0 0.0
      %5842 = vmatpush.msra.mxu0 0.0
      %5843 = vmatpush.msra.mxu0 0.0
      %5844 = vmatpush.msra.mxu0 0.0
      %5845 = vmatpush.msra.mxu0 0.0
      %5846 = vmatpush.msra.mxu0 0.0
      %5847 = vmatpush.msra.mxu0 0.0
      %5848 = vmatpush.msra.mxu0 0.0
      %5849 = vmatpush.msra.mxu0 0.0
      %5850 = vmatpush.msra.mxu0 0.0
      %v5851 = vand.u32 %v5487, 4294901760
      %v5852 = vsub.f32 %v5487, %v5851
      %v5853 = vand.u32 %v5852, 4294901760
      %v5854 = vsub.f32 %v5852, %v5853
      %v5855 = vand.u32 %v5854, 4294901760
      %5856 = vmatpush.msra.mxu0 %v5855
      %v5857 = vand.u32 %v5485, 4294901760
      %v5858 = vsub.f32 %v5485, %v5857
      %v5859 = vand.u32 %v5858, 4294901760
      %v5860 = vsub.f32 %v5858, %v5859
      %v5861 = vand.u32 %v5860, 4294901760
      %5862 = vmatpush.msra.mxu0 %v5861
      %v5863 = vand.u32 %v5483, 4294901760
      %v5864 = vsub.f32 %v5483, %v5863
      %v5865 = vand.u32 %v5864, 4294901760
      %v5866 = vsub.f32 %v5864, %v5865
      %v5867 = vand.u32 %v5866, 4294901760
      %5868 = vmatpush.msra.mxu0 %v5867
      %v5869 = vand.u32 %v5481, 4294901760
      %v5870 = vsub.f32 %v5481, %v5869
      %v5871 = vand.u32 %v5870, 4294901760
      %v5872 = vsub.f32 %v5870, %v5871
      %v5873 = vand.u32 %v5872, 4294901760
      %5874 = vmatpush.msra.mxu0 %v5873
      %v5875 = vand.u32 %v5497, 4294901760
      %5876 = vmatmul.f32.gmra.mxu0 %v5875
      %v5877 = vpop.f32.mrf.mxu0
      %v5878 = vadd.f32 %v5813, %v5877
      %v5879 = vand.u32 %v5500, 4294901760
      %5880 = vmatmul.f32.gmra.mxu0 %v5879
      %v5881 = vpop.f32.mrf.mxu0
      %v5882 = vadd.f32 %v5821, %v5881
      %v5883 = vand.u32 %v5503, 4294901760
      %5884 = vmatmul.f32.gmra.mxu0 %v5883
      %v5885 = vpop.f32.mrf.mxu0
      %v5886 = vadd.f32 %v5829, %v5885
      %v5887 = vand.u32 %v5506, 4294901760
      %5888 = vmatmul.f32.gmra.mxu0 %v5887
      %v5889 = vpop.f32.mrf.mxu0
      %v5890 = vadd.f32 %v5837, %v5889
      %5891 = vdwg.mxu0
      %5892 = vmatpush.msra.mxu0 0.0
      %5893 = vmatpush.msra.mxu0 0.0
      %5894 = vmatpush.msra.mxu0 0.0
      %5895 = vmatpush.msra.mxu0 0.0
      %5896 = vmatpush.msra.mxu0 0.0
      %5897 = vmatpush.msra.mxu0 0.0
      %5898 = vmatpush.msra.mxu0 0.0
      %5899 = vmatpush.msra.mxu0 0.0
      %5900 = vmatpush.msra.mxu0 0.0
      %5901 = vmatpush.msra.mxu0 0.0
      %5902 = vmatpush.msra.mxu0 0.0
      %5903 = vmatpush.msra.mxu0 0.0
      %v5904 = vand.u32 %v5487, 4294901760
      %v5905 = vsub.f32 %v5487, %v5904
      %5906 = vmatpush.msra.mxu0 %v5905
      %v5907 = vand.u32 %v5485, 4294901760
      %v5908 = vsub.f32 %v5485, %v5907
      %5909 = vmatpush.msra.mxu0 %v5908
      %v5910 = vand.u32 %v5483, 4294901760
      %v5911 = vsub.f32 %v5483, %v5910
      %5912 = vmatpush.msra.mxu0 %v5911
      %v5913 = vand.u32 %v5481, 4294901760
      %v5914 = vsub.f32 %v5481, %v5913
      %5915 = vmatpush.msra.mxu0 %v5914
      %v5916 = vand.u32 %v5497, 4294901760
      %v5917 = vsub.f32 %v5497, %v5916
      %5918 = vmatmul.f32.gmra.mxu0 %v5917
      %v5919 = vpop.f32.mrf.mxu0
      %v5920 = vadd.f32 %v5878, %v5919
      %v5921 = vand.u32 %v5500, 4294901760
      %v5922 = vsub.f32 %v5500, %v5921
      %5923 = vmatmul.f32.gmra.mxu0 %v5922
      %v5924 = vpop.f32.mrf.mxu0
      %v5925 = vadd.f32 %v5882, %v5924
      %v5926 = vand.u32 %v5503, 4294901760
      %v5927 = vsub.f32 %v5503, %v5926
      %5928 = vmatmul.f32.gmra.mxu0 %v5927
      %v5929 = vpop.f32.mrf.mxu0
      %v5930 = vadd.f32 %v5886, %v5929
      %v5931 = vand.u32 %v5506, 4294901760
      %v5932 = vsub.f32 %v5506, %v5931
      %5933 = vmatmul.f32.gmra.mxu0 %v5932
      %v5934 = vpop.f32.mrf.mxu0
      %v5935 = vadd.f32 %v5890, %v5934
      %5936 = vdwg.mxu0
      %5937 = vmatpush.msra.mxu0 0.0
      %5938 = vmatpush.msra.mxu0 0.0
      %5939 = vmatpush.msra.mxu0 0.0
      %5940 = vmatpush.msra.mxu0 0.0
      %5941 = vmatpush.msra.mxu0 0.0
      %5942 = vmatpush.msra.mxu0 0.0
      %5943 = vmatpush.msra.mxu0 0.0
      %5944 = vmatpush.msra.mxu0 0.0
      %5945 = vmatpush.msra.mxu0 0.0
      %5946 = vmatpush.msra.mxu0 0.0
      %5947 = vmatpush.msra.mxu0 0.0
      %5948 = vmatpush.msra.mxu0 0.0
      %v5949 = vand.u32 %v5487, 4294901760
      %5950 = vmatpush.msra.mxu0 %v5949
      %v5951 = vand.u32 %v5485, 4294901760
      %5952 = vmatpush.msra.mxu0 %v5951
      %v5953 = vand.u32 %v5483, 4294901760
      %5954 = vmatpush.msra.mxu0 %v5953
      %v5955 = vand.u32 %v5481, 4294901760
      %5956 = vmatpush.msra.mxu0 %v5955
      %v5957 = vand.u32 %v5497, 4294901760
      %v5958 = vsub.f32 %v5497, %v5957
      %v5959 = vand.u32 %v5958, 4294901760
      %5960 = vmatmul.f32.gmra.mxu0 %v5959
      %v5961 = vpop.f32.mrf.mxu0
      %v5962 = vadd.f32 %v5920, %v5961
      %v5963 = vand.u32 %v5500, 4294901760
      %v5964 = vsub.f32 %v5500, %v5963
      %v5965 = vand.u32 %v5964, 4294901760
      %5966 = vmatmul.f32.gmra.mxu0 %v5965
      %v5967 = vpop.f32.mrf.mxu0
      %v5968 = vadd.f32 %v5925, %v5967
      %v5969 = vand.u32 %v5503, 4294901760
      %v5970 = vsub.f32 %v5503, %v5969
      %v5971 = vand.u32 %v5970, 4294901760
      %5972 = vmatmul.f32.gmra.mxu0 %v5971
      %v5973 = vpop.f32.mrf.mxu0
      %v5974 = vadd.f32 %v5930, %v5973
      %v5975 = vand.u32 %v5506, 4294901760
      %v5976 = vsub.f32 %v5506, %v5975
      %v5977 = vand.u32 %v5976, 4294901760
      %5978 = vmatmul.f32.gmra.mxu0 %v5977
      %v5979 = vpop.f32.mrf.mxu0
      %v5980 = vadd.f32 %v5935, %v5979
      %5981 = vdwg.mxu0
      %5982 = vmatpush.msra.mxu0 0.0
      %5983 = vmatpush.msra.mxu0 0.0
      %5984 = vmatpush.msra.mxu0 0.0
      %5985 = vmatpush.msra.mxu0 0.0
      %5986 = vmatpush.msra.mxu0 0.0
      %5987 = vmatpush.msra.mxu0 0.0
      %5988 = vmatpush.msra.mxu0 0.0
      %5989 = vmatpush.msra.mxu0 0.0
      %5990 = vmatpush.msra.mxu0 0.0
      %5991 = vmatpush.msra.mxu0 0.0
      %5992 = vmatpush.msra.mxu0 0.0
      %5993 = vmatpush.msra.mxu0 0.0
      %v5994 = vand.u32 %v5487, 4294901760
      %v5995 = vsub.f32 %v5487, %v5994
      %v5996 = vand.u32 %v5995, 4294901760
      %5997 = vmatpush.msra.mxu0 %v5996
      %v5998 = vand.u32 %v5485, 4294901760
      %v5999 = vsub.f32 %v5485, %v5998
      %v6000 = vand.u32 %v5999, 4294901760
      %6001 = vmatpush.msra.mxu0 %v6000
      %v6002 = vand.u32 %v5483, 4294901760
      %v6003 = vsub.f32 %v5483, %v6002
      %v6004 = vand.u32 %v6003, 4294901760
      %6005 = vmatpush.msra.mxu0 %v6004
      %v6006 = vand.u32 %v5481, 4294901760
      %v6007 = vsub.f32 %v5481, %v6006
      %v6008 = vand.u32 %v6007, 4294901760
      %6009 = vmatpush.msra.mxu0 %v6008
      %v6010 = vand.u32 %v5497, 4294901760
      %6011 = vmatmul.f32.gmra.mxu0 %v6010
      %v6012 = vpop.f32.mrf.mxu0
      %v6013 = vadd.f32 %v5962, %v6012
      %v6014 = vand.u32 %v5500, 4294901760
      %6015 = vmatmul.f32.gmra.mxu0 %v6014
      %v6016 = vpop.f32.mrf.mxu0
      %v6017 = vadd.f32 %v5968, %v6016
      %v6018 = vand.u32 %v5503, 4294901760
      %6019 = vmatmul.f32.gmra.mxu0 %v6018
      %v6020 = vpop.f32.mrf.mxu0
      %v6021 = vadd.f32 %v5974, %v6020
      %v6022 = vand.u32 %v5506, 4294901760
      %6023 = vmatmul.f32.gmra.mxu0 %v6022
      %v6024 = vpop.f32.mrf.mxu0
      %v6025 = vadd.f32 %v5980, %v6024
      %6026 = vdwg.mxu0
      %6027 = vmatpush.msra.mxu0 0.0
      %6028 = vmatpush.msra.mxu0 0.0
      %6029 = vmatpush.msra.mxu0 0.0
      %6030 = vmatpush.msra.mxu0 0.0
      %6031 = vmatpush.msra.mxu0 0.0
      %6032 = vmatpush.msra.mxu0 0.0
      %6033 = vmatpush.msra.mxu0 0.0
      %6034 = vmatpush.msra.mxu0 0.0
      %6035 = vmatpush.msra.mxu0 0.0
      %6036 = vmatpush.msra.mxu0 0.0
      %6037 = vmatpush.msra.mxu0 0.0
      %6038 = vmatpush.msra.mxu0 0.0
      %v6039 = vand.u32 %v5487, 4294901760
      %6040 = vmatpush.msra.mxu0 %v6039
      %v6041 = vand.u32 %v5485, 4294901760
      %6042 = vmatpush.msra.mxu0 %v6041
      %v6043 = vand.u32 %v5483, 4294901760
      %6044 = vmatpush.msra.mxu0 %v6043
      %v6045 = vand.u32 %v5481, 4294901760
      %6046 = vmatpush.msra.mxu0 %v6045
      %v6047 = vand.u32 %v5497, 4294901760
      %6048 = vmatmul.f32.gmra.mxu0 %v6047
      %v6049 = vpop.f32.mrf.mxu0
      %v6050 = vadd.f32 %v6013, %v6049
      %v6051 = vand.u32 %v5500, 4294901760
      %6052 = vmatmul.f32.gmra.mxu0 %v6051
      %v6053 = vpop.f32.mrf.mxu0
      %v6054 = vadd.f32 %v6017, %v6053
      %v6055 = vand.u32 %v5503, 4294901760
      %6056 = vmatmul.f32.gmra.mxu0 %v6055
      %v6057 = vpop.f32.mrf.mxu0
      %v6058 = vadd.f32 %v6021, %v6057
      %v6059 = vand.u32 %v5506, 4294901760
      %6060 = vmatmul.f32.gmra.mxu0 %v6059
      %v6061 = vpop.f32.mrf.mxu0
      %v6062 = vadd.f32 %v6025, %v6061
      %6063 = vdwg.mxu0
      %v6064 = vadd.f32 %v5411, %v5772
      %v6065 = vadd.f32 %v5412, %v6050
      %v6066 = vadd.f32 %v5413, %v5776
      %v6067 = vadd.f32 %v5414, %v6054
      %v6068 = vadd.f32 %v5415, %v5780
      %v6069 = vadd.f32 %v5416, %v6058
      %v6070 = vadd.f32 %v5417, %v5784
      %v6071 = vadd.f32 %v5418, %v6062
      %6072 = vrot.lane.b32.xlu0 %v2200, 17
      %v6073 = vpop.permute.xlu0 %6072
      %6074 = vrot.lane.b32.xlu0 %v2201, 17
      %v6075 = vpop.permute.xlu0 %6074
      %v6076 = vsel %vm1612, %v6073, %v6075
      %v6080 = vmul.f32 %v4101, %v6073
      %v6081 = vmul.f32 %v4102, %v6076
      %v6082 = vmul.f32 %v4103, %v6075
      %v6083 = vmul.f32 %v4104, %v6073
      %v6084 = vmul.f32 %v4105, %v6076
      %v6085 = vmul.f32 %v4106, %v6075
      %v6086 = vmul.f32 %v4107, %v6073
      %v6087 = vmul.f32 %v4108, %v6076
      %v6088 = vmul.f32 %v4109, %v6075
      %v6089 = vmul.f32 %v4110, %v6073
      %v6090 = vmul.f32 %v4111, %v6076
      %v6091 = vmul.f32 %v4112, %v6075
      %s6092 = scalar_lea.vmem %s1, 256
      %v6093 = vld [vmem:[%s6092] sm:$0xff]
      %v6094 = vld [vmem:[%s6092 + $0x8] sm:$0xff]
      %v6095 = vld [vmem:[%s6092 + $0x10] sm:$0xff]
      %v6096 = vld [vmem:[%s6092 + $0x18] sm:$0xff]
      %6109 = vrot.lane.b32.xlu0 %v6080, 111
      %v6110 = vpop.permute.xlu0 %6109
      %6111 = vrot.lane.b32.xlu0 %v6081, 111
      %v6112 = vpop.permute.xlu0 %6111
      %6113 = vrot.lane.b32.xlu0 %v6082, 111
      %v6114 = vpop.permute.xlu0 %6113
      %6115 = vrot.lane.b32.xlu0 %v6083, 111
      %v6116 = vpop.permute.xlu0 %6115
      %6117 = vrot.lane.b32.xlu0 %v6084, 111
      %v6118 = vpop.permute.xlu0 %6117
      %6119 = vrot.lane.b32.xlu0 %v6085, 111
      %v6120 = vpop.permute.xlu0 %6119
      %6121 = vrot.lane.b32.xlu0 %v6086, 111
      %v6122 = vpop.permute.xlu0 %6121
      %6123 = vrot.lane.b32.xlu0 %v6087, 111
      %v6124 = vpop.permute.xlu0 %6123
      %6125 = vrot.lane.b32.xlu0 %v6088, 111
      %v6126 = vpop.permute.xlu0 %6125
      %6127 = vrot.lane.b32.xlu0 %v6089, 111
      %v6128 = vpop.permute.xlu0 %6127
      %6129 = vrot.lane.b32.xlu0 %v6090, 111
      %v6130 = vpop.permute.xlu0 %6129
      %6131 = vrot.lane.b32.xlu0 %v6091, 111
      %v6132 = vpop.permute.xlu0 %6131
      %v6133 = vsel %vm901, %v6110, %v6112
      %v6134 = vsel %vm901, %v6112, %v6114
      %v6135 = vsel %vm901, %v6116, %v6118
      %v6136 = vsel %vm901, %v6118, %v6120
      %v6137 = vsel %vm901, %v6122, %v6124
      %v6138 = vsel %vm901, %v6124, %v6126
      %v6139 = vsel %vm901, %v6128, %v6130
      %v6140 = vsel %vm901, %v6130, %v6132
      %v6150 = vsel %vm288, %v6093, 0
      %v6153 = vsel %vm288, %v6094, 0
      %v6156 = vsel %vm288, %v6095, 0
      %v6159 = vsel %vm288, %v6096, 0
      %6161 = vmatpush.msra.mxu0 0.0
      %6162 = vmatpush.msra.mxu0 0.0
      %6163 = vmatpush.msra.mxu0 0.0
      %6164 = vmatpush.msra.mxu0 0.0
      %6165 = vmatpush.msra.mxu0 0.0
      %6166 = vmatpush.msra.mxu0 0.0
      %6167 = vmatpush.msra.mxu0 0.0
      %6168 = vmatpush.msra.mxu0 0.0
      %6169 = vmatpush.msra.mxu0 0.0
      %6170 = vmatpush.msra.mxu0 0.0
      %6171 = vmatpush.msra.mxu0 0.0
      %6172 = vmatpush.msra.mxu0 0.0
      %v6173 = vand.u32 %v6139, 4294901760
      %6174 = vmatpush.msra.mxu0 %v6173
      %v6175 = vand.u32 %v6137, 4294901760
      %6176 = vmatpush.msra.mxu0 %v6175
      %v6177 = vand.u32 %v6135, 4294901760
      %6178 = vmatpush.msra.mxu0 %v6177
      %v6179 = vand.u32 %v6133, 4294901760
      %6180 = vmatpush.msra.mxu0 %v6179
      %v6181 = vand.u32 %v6150, 4294901760
      %v6182 = vsub.f32 %v6150, %v6181
      %v6183 = vand.u32 %v6182, 4294901760
      %v6184 = vsub.f32 %v6182, %v6183
      %v6185 = vand.u32 %v6184, 4294901760
      %6186 = vmatmul.f32.gmra.mxu0 %v6185
      %v6187 = vpop.f32.mrf.mxu0
      %v6188 = vadd.f32 0.0, %v6187
      %v6189 = vand.u32 %v6153, 4294901760
      %v6190 = vsub.f32 %v6153, %v6189
      %v6191 = vand.u32 %v6190, 4294901760
      %v6192 = vsub.f32 %v6190, %v6191
      %v6193 = vand.u32 %v6192, 4294901760
      %6194 = vmatmul.f32.gmra.mxu0 %v6193
      %v6195 = vpop.f32.mrf.mxu0
      %v6196 = vadd.f32 0.0, %v6195
      %v6197 = vand.u32 %v6156, 4294901760
      %v6198 = vsub.f32 %v6156, %v6197
      %v6199 = vand.u32 %v6198, 4294901760
      %v6200 = vsub.f32 %v6198, %v6199
      %v6201 = vand.u32 %v6200, 4294901760
      %6202 = vmatmul.f32.gmra.mxu0 %v6201
      %v6203 = vpop.f32.mrf.mxu0
      %v6204 = vadd.f32 0.0, %v6203
      %v6205 = vand.u32 %v6159, 4294901760
      %v6206 = vsub.f32 %v6159, %v6205
      %v6207 = vand.u32 %v6206, 4294901760
      %v6208 = vsub.f32 %v6206, %v6207
      %v6209 = vand.u32 %v6208, 4294901760
      %6210 = vmatmul.f32.gmra.mxu0 %v6209
      %v6211 = vpop.f32.mrf.mxu0
      %v6212 = vadd.f32 0.0, %v6211
      %6213 = vdwg.mxu0
      %6214 = vmatpush.msra.mxu0 0.0
      %6215 = vmatpush.msra.mxu0 0.0
      %6216 = vmatpush.msra.mxu0 0.0
      %6217 = vmatpush.msra.mxu0 0.0
      %6218 = vmatpush.msra.mxu0 0.0
      %6219 = vmatpush.msra.mxu0 0.0
      %6220 = vmatpush.msra.mxu0 0.0
      %6221 = vmatpush.msra.mxu0 0.0
      %6222 = vmatpush.msra.mxu0 0.0
      %6223 = vmatpush.msra.mxu0 0.0
      %6224 = vmatpush.msra.mxu0 0.0
      %6225 = vmatpush.msra.mxu0 0.0
      %v6226 = vand.u32 %v6139, 4294901760
      %v6227 = vsub.f32 %v6139, %v6226
      %v6228 = vand.u32 %v6227, 4294901760
      %v6229 = vsub.f32 %v6227, %v6228
      %v6230 = vand.u32 %v6229, 4294901760
      %6231 = vmatpush.msra.mxu0 %v6230
      %v6232 = vand.u32 %v6137, 4294901760
      %v6233 = vsub.f32 %v6137, %v6232
      %v6234 = vand.u32 %v6233, 4294901760
      %v6235 = vsub.f32 %v6233, %v6234
      %v6236 = vand.u32 %v6235, 4294901760
      %6237 = vmatpush.msra.mxu0 %v6236
      %v6238 = vand.u32 %v6135, 4294901760
      %v6239 = vsub.f32 %v6135, %v6238
      %v6240 = vand.u32 %v6239, 4294901760
      %v6241 = vsub.f32 %v6239, %v6240
      %v6242 = vand.u32 %v6241, 4294901760
      %6243 = vmatpush.msra.mxu0 %v6242
      %v6244 = vand.u32 %v6133, 4294901760
      %v6245 = vsub.f32 %v6133, %v6244
      %v6246 = vand.u32 %v6245, 4294901760
      %v6247 = vsub.f32 %v6245, %v6246
      %v6248 = vand.u32 %v6247, 4294901760
      %6249 = vmatpush.msra.mxu0 %v6248
      %v6250 = vand.u32 %v6150, 4294901760
      %6251 = vmatmul.f32.gmra.mxu0 %v6250
      %v6252 = vpop.f32.mrf.mxu0
      %v6253 = vadd.f32 %v6188, %v6252
      %v6254 = vand.u32 %v6153, 4294901760
      %6255 = vmatmul.f32.gmra.mxu0 %v6254
      %v6256 = vpop.f32.mrf.mxu0
      %v6257 = vadd.f32 %v6196, %v6256
      %v6258 = vand.u32 %v6156, 4294901760
      %6259 = vmatmul.f32.gmra.mxu0 %v6258
      %v6260 = vpop.f32.mrf.mxu0
      %v6261 = vadd.f32 %v6204, %v6260
      %v6262 = vand.u32 %v6159, 4294901760
      %6263 = vmatmul.f32.gmra.mxu0 %v6262
      %v6264 = vpop.f32.mrf.mxu0
      %v6265 = vadd.f32 %v6212, %v6264
      %6266 = vdwg.mxu0
      %6267 = vmatpush.msra.mxu0 0.0
      %6268 = vmatpush.msra.mxu0 0.0
      %6269 = vmatpush.msra.mxu0 0.0
      %6270 = vmatpush.msra.mxu0 0.0
      %6271 = vmatpush.msra.mxu0 0.0
      %6272 = vmatpush.msra.mxu0 0.0
      %6273 = vmatpush.msra.mxu0 0.0
      %6274 = vmatpush.msra.mxu0 0.0
      %6275 = vmatpush.msra.mxu0 0.0
      %6276 = vmatpush.msra.mxu0 0.0
      %6277 = vmatpush.msra.mxu0 0.0
      %6278 = vmatpush.msra.mxu0 0.0
      %v6279 = vand.u32 %v6139, 4294901760
      %v6280 = vsub.f32 %v6139, %v6279
      %6281 = vmatpush.msra.mxu0 %v6280
      %v6282 = vand.u32 %v6137, 4294901760
      %v6283 = vsub.f32 %v6137, %v6282
      %6284 = vmatpush.msra.mxu0 %v6283
      %v6285 = vand.u32 %v6135, 4294901760
      %v6286 = vsub.f32 %v6135, %v6285
      %6287 = vmatpush.msra.mxu0 %v6286
      %v6288 = vand.u32 %v6133, 4294901760
      %v6289 = vsub.f32 %v6133, %v6288
      %6290 = vmatpush.msra.mxu0 %v6289
      %v6291 = vand.u32 %v6150, 4294901760
      %v6292 = vsub.f32 %v6150, %v6291
      %6293 = vmatmul.f32.gmra.mxu0 %v6292
      %v6294 = vpop.f32.mrf.mxu0
      %v6295 = vadd.f32 %v6253, %v6294
      %v6296 = vand.u32 %v6153, 4294901760
      %v6297 = vsub.f32 %v6153, %v6296
      %6298 = vmatmul.f32.gmra.mxu0 %v6297
      %v6299 = vpop.f32.mrf.mxu0
      %v6300 = vadd.f32 %v6257, %v6299
      %v6301 = vand.u32 %v6156, 4294901760
      %v6302 = vsub.f32 %v6156, %v6301
      %6303 = vmatmul.f32.gmra.mxu0 %v6302
      %v6304 = vpop.f32.mrf.mxu0
      %v6305 = vadd.f32 %v6261, %v6304
      %v6306 = vand.u32 %v6159, 4294901760
      %v6307 = vsub.f32 %v6159, %v6306
      %6308 = vmatmul.f32.gmra.mxu0 %v6307
      %v6309 = vpop.f32.mrf.mxu0
      %v6310 = vadd.f32 %v6265, %v6309
      %6311 = vdwg.mxu0
      %6312 = vmatpush.msra.mxu0 0.0
      %6313 = vmatpush.msra.mxu0 0.0
      %6314 = vmatpush.msra.mxu0 0.0
      %6315 = vmatpush.msra.mxu0 0.0
      %6316 = vmatpush.msra.mxu0 0.0
      %6317 = vmatpush.msra.mxu0 0.0
      %6318 = vmatpush.msra.mxu0 0.0
      %6319 = vmatpush.msra.mxu0 0.0
      %6320 = vmatpush.msra.mxu0 0.0
      %6321 = vmatpush.msra.mxu0 0.0
      %6322 = vmatpush.msra.mxu0 0.0
      %6323 = vmatpush.msra.mxu0 0.0
      %v6324 = vand.u32 %v6139, 4294901760
      %6325 = vmatpush.msra.mxu0 %v6324
      %v6326 = vand.u32 %v6137, 4294901760
      %6327 = vmatpush.msra.mxu0 %v6326
      %v6328 = vand.u32 %v6135, 4294901760
      %6329 = vmatpush.msra.mxu0 %v6328
      %v6330 = vand.u32 %v6133, 4294901760
      %6331 = vmatpush.msra.mxu0 %v6330
      %v6332 = vand.u32 %v6150, 4294901760
      %v6333 = vsub.f32 %v6150, %v6332
      %v6334 = vand.u32 %v6333, 4294901760
      %6335 = vmatmul.f32.gmra.mxu0 %v6334
      %v6336 = vpop.f32.mrf.mxu0
      %v6337 = vadd.f32 %v6295, %v6336
      %v6338 = vand.u32 %v6153, 4294901760
      %v6339 = vsub.f32 %v6153, %v6338
      %v6340 = vand.u32 %v6339, 4294901760
      %6341 = vmatmul.f32.gmra.mxu0 %v6340
      %v6342 = vpop.f32.mrf.mxu0
      %v6343 = vadd.f32 %v6300, %v6342
      %v6344 = vand.u32 %v6156, 4294901760
      %v6345 = vsub.f32 %v6156, %v6344
      %v6346 = vand.u32 %v6345, 4294901760
      %6347 = vmatmul.f32.gmra.mxu0 %v6346
      %v6348 = vpop.f32.mrf.mxu0
      %v6349 = vadd.f32 %v6305, %v6348
      %v6350 = vand.u32 %v6159, 4294901760
      %v6351 = vsub.f32 %v6159, %v6350
      %v6352 = vand.u32 %v6351, 4294901760
      %6353 = vmatmul.f32.gmra.mxu0 %v6352
      %v6354 = vpop.f32.mrf.mxu0
      %v6355 = vadd.f32 %v6310, %v6354
      %6356 = vdwg.mxu0
      %6357 = vmatpush.msra.mxu0 0.0
      %6358 = vmatpush.msra.mxu0 0.0
      %6359 = vmatpush.msra.mxu0 0.0
      %6360 = vmatpush.msra.mxu0 0.0
      %6361 = vmatpush.msra.mxu0 0.0
      %6362 = vmatpush.msra.mxu0 0.0
      %6363 = vmatpush.msra.mxu0 0.0
      %6364 = vmatpush.msra.mxu0 0.0
      %6365 = vmatpush.msra.mxu0 0.0
      %6366 = vmatpush.msra.mxu0 0.0
      %6367 = vmatpush.msra.mxu0 0.0
      %6368 = vmatpush.msra.mxu0 0.0
      %v6369 = vand.u32 %v6139, 4294901760
      %v6370 = vsub.f32 %v6139, %v6369
      %v6371 = vand.u32 %v6370, 4294901760
      %6372 = vmatpush.msra.mxu0 %v6371
      %v6373 = vand.u32 %v6137, 4294901760
      %v6374 = vsub.f32 %v6137, %v6373
      %v6375 = vand.u32 %v6374, 4294901760
      %6376 = vmatpush.msra.mxu0 %v6375
      %v6377 = vand.u32 %v6135, 4294901760
      %v6378 = vsub.f32 %v6135, %v6377
      %v6379 = vand.u32 %v6378, 4294901760
      %6380 = vmatpush.msra.mxu0 %v6379
      %v6381 = vand.u32 %v6133, 4294901760
      %v6382 = vsub.f32 %v6133, %v6381
      %v6383 = vand.u32 %v6382, 4294901760
      %6384 = vmatpush.msra.mxu0 %v6383
      %v6385 = vand.u32 %v6150, 4294901760
      %6386 = vmatmul.f32.gmra.mxu0 %v6385
      %v6387 = vpop.f32.mrf.mxu0
      %v6388 = vadd.f32 %v6337, %v6387
      %v6389 = vand.u32 %v6153, 4294901760
      %6390 = vmatmul.f32.gmra.mxu0 %v6389
      %v6391 = vpop.f32.mrf.mxu0
      %v6392 = vadd.f32 %v6343, %v6391
      %v6393 = vand.u32 %v6156, 4294901760
      %6394 = vmatmul.f32.gmra.mxu0 %v6393
      %v6395 = vpop.f32.mrf.mxu0
      %v6396 = vadd.f32 %v6349, %v6395
      %v6397 = vand.u32 %v6159, 4294901760
      %6398 = vmatmul.f32.gmra.mxu0 %v6397
      %v6399 = vpop.f32.mrf.mxu0
      %v6400 = vadd.f32 %v6355, %v6399
      %6401 = vdwg.mxu0
      %6402 = vmatpush.msra.mxu0 0.0
      %6403 = vmatpush.msra.mxu0 0.0
      %6404 = vmatpush.msra.mxu0 0.0
      %6405 = vmatpush.msra.mxu0 0.0
      %6406 = vmatpush.msra.mxu0 0.0
      %6407 = vmatpush.msra.mxu0 0.0
      %6408 = vmatpush.msra.mxu0 0.0
      %6409 = vmatpush.msra.mxu0 0.0
      %6410 = vmatpush.msra.mxu0 0.0
      %6411 = vmatpush.msra.mxu0 0.0
      %6412 = vmatpush.msra.mxu0 0.0
      %6413 = vmatpush.msra.mxu0 0.0
      %v6414 = vand.u32 %v6139, 4294901760
      %6415 = vmatpush.msra.mxu0 %v6414
      %v6416 = vand.u32 %v6137, 4294901760
      %6417 = vmatpush.msra.mxu0 %v6416
      %v6418 = vand.u32 %v6135, 4294901760
      %6419 = vmatpush.msra.mxu0 %v6418
      %v6420 = vand.u32 %v6133, 4294901760
      %6421 = vmatpush.msra.mxu0 %v6420
      %v6422 = vand.u32 %v6150, 4294901760
      %6423 = vmatmul.f32.gmra.mxu0 %v6422
      %v6424 = vpop.f32.mrf.mxu0
      %v6425 = vadd.f32 %v6388, %v6424
      %v6426 = vand.u32 %v6153, 4294901760
      %6427 = vmatmul.f32.gmra.mxu0 %v6426
      %v6428 = vpop.f32.mrf.mxu0
      %v6429 = vadd.f32 %v6392, %v6428
      %v6430 = vand.u32 %v6156, 4294901760
      %6431 = vmatmul.f32.gmra.mxu0 %v6430
      %v6432 = vpop.f32.mrf.mxu0
      %v6433 = vadd.f32 %v6396, %v6432
      %v6434 = vand.u32 %v6159, 4294901760
      %6435 = vmatmul.f32.gmra.mxu0 %v6434
      %v6436 = vpop.f32.mrf.mxu0
      %v6437 = vadd.f32 %v6400, %v6436
      %6438 = vdwg.mxu0
      %6439 = vmatpush.msra.mxu0 0.0
      %6440 = vmatpush.msra.mxu0 0.0
      %6441 = vmatpush.msra.mxu0 0.0
      %6442 = vmatpush.msra.mxu0 0.0
      %6443 = vmatpush.msra.mxu0 0.0
      %6444 = vmatpush.msra.mxu0 0.0
      %6445 = vmatpush.msra.mxu0 0.0
      %6446 = vmatpush.msra.mxu0 0.0
      %6447 = vmatpush.msra.mxu0 0.0
      %6448 = vmatpush.msra.mxu0 0.0
      %6449 = vmatpush.msra.mxu0 0.0
      %6450 = vmatpush.msra.mxu0 0.0
      %v6451 = vand.u32 %v6140, 4294901760
      %6452 = vmatpush.msra.mxu0 %v6451
      %v6453 = vand.u32 %v6138, 4294901760
      %6454 = vmatpush.msra.mxu0 %v6453
      %v6455 = vand.u32 %v6136, 4294901760
      %6456 = vmatpush.msra.mxu0 %v6455
      %v6457 = vand.u32 %v6134, 4294901760
      %6458 = vmatpush.msra.mxu0 %v6457
      %v6459 = vand.u32 %v6150, 4294901760
      %v6460 = vsub.f32 %v6150, %v6459
      %v6461 = vand.u32 %v6460, 4294901760
      %v6462 = vsub.f32 %v6460, %v6461
      %v6463 = vand.u32 %v6462, 4294901760
      %6464 = vmatmul.f32.gmra.mxu0 %v6463
      %v6465 = vpop.f32.mrf.mxu0
      %v6466 = vadd.f32 0.0, %v6465
      %v6467 = vand.u32 %v6153, 4294901760
      %v6468 = vsub.f32 %v6153, %v6467
      %v6469 = vand.u32 %v6468, 4294901760
      %v6470 = vsub.f32 %v6468, %v6469
      %v6471 = vand.u32 %v6470, 4294901760
      %6472 = vmatmul.f32.gmra.mxu0 %v6471
      %v6473 = vpop.f32.mrf.mxu0
      %v6474 = vadd.f32 0.0, %v6473
      %v6475 = vand.u32 %v6156, 4294901760
      %v6476 = vsub.f32 %v6156, %v6475
      %v6477 = vand.u32 %v6476, 4294901760
      %v6478 = vsub.f32 %v6476, %v6477
      %v6479 = vand.u32 %v6478, 4294901760
      %6480 = vmatmul.f32.gmra.mxu0 %v6479
      %v6481 = vpop.f32.mrf.mxu0
      %v6482 = vadd.f32 0.0, %v6481
      %v6483 = vand.u32 %v6159, 4294901760
      %v6484 = vsub.f32 %v6159, %v6483
      %v6485 = vand.u32 %v6484, 4294901760
      %v6486 = vsub.f32 %v6484, %v6485
      %v6487 = vand.u32 %v6486, 4294901760
      %6488 = vmatmul.f32.gmra.mxu0 %v6487
      %v6489 = vpop.f32.mrf.mxu0
      %v6490 = vadd.f32 0.0, %v6489
      %6491 = vdwg.mxu0
      %6492 = vmatpush.msra.mxu0 0.0
      %6493 = vmatpush.msra.mxu0 0.0
      %6494 = vmatpush.msra.mxu0 0.0
      %6495 = vmatpush.msra.mxu0 0.0
      %6496 = vmatpush.msra.mxu0 0.0
      %6497 = vmatpush.msra.mxu0 0.0
      %6498 = vmatpush.msra.mxu0 0.0
      %6499 = vmatpush.msra.mxu0 0.0
      %6500 = vmatpush.msra.mxu0 0.0
      %6501 = vmatpush.msra.mxu0 0.0
      %6502 = vmatpush.msra.mxu0 0.0
      %6503 = vmatpush.msra.mxu0 0.0
      %v6504 = vand.u32 %v6140, 4294901760
      %v6505 = vsub.f32 %v6140, %v6504
      %v6506 = vand.u32 %v6505, 4294901760
      %v6507 = vsub.f32 %v6505, %v6506
      %v6508 = vand.u32 %v6507, 4294901760
      %6509 = vmatpush.msra.mxu0 %v6508
      %v6510 = vand.u32 %v6138, 4294901760
      %v6511 = vsub.f32 %v6138, %v6510
      %v6512 = vand.u32 %v6511, 4294901760
      %v6513 = vsub.f32 %v6511, %v6512
      %v6514 = vand.u32 %v6513, 4294901760
      %6515 = vmatpush.msra.mxu0 %v6514
      %v6516 = vand.u32 %v6136, 4294901760
      %v6517 = vsub.f32 %v6136, %v6516
      %v6518 = vand.u32 %v6517, 4294901760
      %v6519 = vsub.f32 %v6517, %v6518
      %v6520 = vand.u32 %v6519, 4294901760
      %6521 = vmatpush.msra.mxu0 %v6520
      %v6522 = vand.u32 %v6134, 4294901760
      %v6523 = vsub.f32 %v6134, %v6522
      %v6524 = vand.u32 %v6523, 4294901760
      %v6525 = vsub.f32 %v6523, %v6524
      %v6526 = vand.u32 %v6525, 4294901760
      %6527 = vmatpush.msra.mxu0 %v6526
      %v6528 = vand.u32 %v6150, 4294901760
      %6529 = vmatmul.f32.gmra.mxu0 %v6528
      %v6530 = vpop.f32.mrf.mxu0
      %v6531 = vadd.f32 %v6466, %v6530
      %v6532 = vand.u32 %v6153, 4294901760
      %6533 = vmatmul.f32.gmra.mxu0 %v6532
      %v6534 = vpop.f32.mrf.mxu0
      %v6535 = vadd.f32 %v6474, %v6534
      %v6536 = vand.u32 %v6156, 4294901760
      %6537 = vmatmul.f32.gmra.mxu0 %v6536
      %v6538 = vpop.f32.mrf.mxu0
      %v6539 = vadd.f32 %v6482, %v6538
      %v6540 = vand.u32 %v6159, 4294901760
      %6541 = vmatmul.f32.gmra.mxu0 %v6540
      %v6542 = vpop.f32.mrf.mxu0
      %v6543 = vadd.f32 %v6490, %v6542
      %6544 = vdwg.mxu0
      %6545 = vmatpush.msra.mxu0 0.0
      %6546 = vmatpush.msra.mxu0 0.0
      %6547 = vmatpush.msra.mxu0 0.0
      %6548 = vmatpush.msra.mxu0 0.0
      %6549 = vmatpush.msra.mxu0 0.0
      %6550 = vmatpush.msra.mxu0 0.0
      %6551 = vmatpush.msra.mxu0 0.0
      %6552 = vmatpush.msra.mxu0 0.0
      %6553 = vmatpush.msra.mxu0 0.0
      %6554 = vmatpush.msra.mxu0 0.0
      %6555 = vmatpush.msra.mxu0 0.0
      %6556 = vmatpush.msra.mxu0 0.0
      %v6557 = vand.u32 %v6140, 4294901760
      %v6558 = vsub.f32 %v6140, %v6557
      %6559 = vmatpush.msra.mxu0 %v6558
      %v6560 = vand.u32 %v6138, 4294901760
      %v6561 = vsub.f32 %v6138, %v6560
      %6562 = vmatpush.msra.mxu0 %v6561
      %v6563 = vand.u32 %v6136, 4294901760
      %v6564 = vsub.f32 %v6136, %v6563
      %6565 = vmatpush.msra.mxu0 %v6564
      %v6566 = vand.u32 %v6134, 4294901760
      %v6567 = vsub.f32 %v6134, %v6566
      %6568 = vmatpush.msra.mxu0 %v6567
      %v6569 = vand.u32 %v6150, 4294901760
      %v6570 = vsub.f32 %v6150, %v6569
      %6571 = vmatmul.f32.gmra.mxu0 %v6570
      %v6572 = vpop.f32.mrf.mxu0
      %v6573 = vadd.f32 %v6531, %v6572
      %v6574 = vand.u32 %v6153, 4294901760
      %v6575 = vsub.f32 %v6153, %v6574
      %6576 = vmatmul.f32.gmra.mxu0 %v6575
      %v6577 = vpop.f32.mrf.mxu0
      %v6578 = vadd.f32 %v6535, %v6577
      %v6579 = vand.u32 %v6156, 4294901760
      %v6580 = vsub.f32 %v6156, %v6579
      %6581 = vmatmul.f32.gmra.mxu0 %v6580
      %v6582 = vpop.f32.mrf.mxu0
      %v6583 = vadd.f32 %v6539, %v6582
      %v6584 = vand.u32 %v6159, 4294901760
      %v6585 = vsub.f32 %v6159, %v6584
      %6586 = vmatmul.f32.gmra.mxu0 %v6585
      %v6587 = vpop.f32.mrf.mxu0
      %v6588 = vadd.f32 %v6543, %v6587
      %6589 = vdwg.mxu0
      %6590 = vmatpush.msra.mxu0 0.0
      %6591 = vmatpush.msra.mxu0 0.0
      %6592 = vmatpush.msra.mxu0 0.0
      %6593 = vmatpush.msra.mxu0 0.0
      %6594 = vmatpush.msra.mxu0 0.0
      %6595 = vmatpush.msra.mxu0 0.0
      %6596 = vmatpush.msra.mxu0 0.0
      %6597 = vmatpush.msra.mxu0 0.0
      %6598 = vmatpush.msra.mxu0 0.0
      %6599 = vmatpush.msra.mxu0 0.0
      %6600 = vmatpush.msra.mxu0 0.0
      %6601 = vmatpush.msra.mxu0 0.0
      %v6602 = vand.u32 %v6140, 4294901760
      %6603 = vmatpush.msra.mxu0 %v6602
      %v6604 = vand.u32 %v6138, 4294901760
      %6605 = vmatpush.msra.mxu0 %v6604
      %v6606 = vand.u32 %v6136, 4294901760
      %6607 = vmatpush.msra.mxu0 %v6606
      %v6608 = vand.u32 %v6134, 4294901760
      %6609 = vmatpush.msra.mxu0 %v6608
      %v6610 = vand.u32 %v6150, 4294901760
      %v6611 = vsub.f32 %v6150, %v6610
      %v6612 = vand.u32 %v6611, 4294901760
      %6613 = vmatmul.f32.gmra.mxu0 %v6612
      %v6614 = vpop.f32.mrf.mxu0
      %v6615 = vadd.f32 %v6573, %v6614
      %v6616 = vand.u32 %v6153, 4294901760
      %v6617 = vsub.f32 %v6153, %v6616
      %v6618 = vand.u32 %v6617, 4294901760
      %6619 = vmatmul.f32.gmra.mxu0 %v6618
      %v6620 = vpop.f32.mrf.mxu0
      %v6621 = vadd.f32 %v6578, %v6620
      %v6622 = vand.u32 %v6156, 4294901760
      %v6623 = vsub.f32 %v6156, %v6622
      %v6624 = vand.u32 %v6623, 4294901760
      %6625 = vmatmul.f32.gmra.mxu0 %v6624
      %v6626 = vpop.f32.mrf.mxu0
      %v6627 = vadd.f32 %v6583, %v6626
      %v6628 = vand.u32 %v6159, 4294901760
      %v6629 = vsub.f32 %v6159, %v6628
      %v6630 = vand.u32 %v6629, 4294901760
      %6631 = vmatmul.f32.gmra.mxu0 %v6630
      %v6632 = vpop.f32.mrf.mxu0
      %v6633 = vadd.f32 %v6588, %v6632
      %6634 = vdwg.mxu0
      %6635 = vmatpush.msra.mxu0 0.0
      %6636 = vmatpush.msra.mxu0 0.0
      %6637 = vmatpush.msra.mxu0 0.0
      %6638 = vmatpush.msra.mxu0 0.0
      %6639 = vmatpush.msra.mxu0 0.0
      %6640 = vmatpush.msra.mxu0 0.0
      %6641 = vmatpush.msra.mxu0 0.0
      %6642 = vmatpush.msra.mxu0 0.0
      %6643 = vmatpush.msra.mxu0 0.0
      %6644 = vmatpush.msra.mxu0 0.0
      %6645 = vmatpush.msra.mxu0 0.0
      %6646 = vmatpush.msra.mxu0 0.0
      %v6647 = vand.u32 %v6140, 4294901760
      %v6648 = vsub.f32 %v6140, %v6647
      %v6649 = vand.u32 %v6648, 4294901760
      %6650 = vmatpush.msra.mxu0 %v6649
      %v6651 = vand.u32 %v6138, 4294901760
      %v6652 = vsub.f32 %v6138, %v6651
      %v6653 = vand.u32 %v6652, 4294901760
      %6654 = vmatpush.msra.mxu0 %v6653
      %v6655 = vand.u32 %v6136, 4294901760
      %v6656 = vsub.f32 %v6136, %v6655
      %v6657 = vand.u32 %v6656, 4294901760
      %6658 = vmatpush.msra.mxu0 %v6657
      %v6659 = vand.u32 %v6134, 4294901760
      %v6660 = vsub.f32 %v6134, %v6659
      %v6661 = vand.u32 %v6660, 4294901760
      %6662 = vmatpush.msra.mxu0 %v6661
      %v6663 = vand.u32 %v6150, 4294901760
      %6664 = vmatmul.f32.gmra.mxu0 %v6663
      %v6665 = vpop.f32.mrf.mxu0
      %v6666 = vadd.f32 %v6615, %v6665
      %v6667 = vand.u32 %v6153, 4294901760
      %6668 = vmatmul.f32.gmra.mxu0 %v6667
      %v6669 = vpop.f32.mrf.mxu0
      %v6670 = vadd.f32 %v6621, %v6669
      %v6671 = vand.u32 %v6156, 4294901760
      %6672 = vmatmul.f32.gmra.mxu0 %v6671
      %v6673 = vpop.f32.mrf.mxu0
      %v6674 = vadd.f32 %v6627, %v6673
      %v6675 = vand.u32 %v6159, 4294901760
      %6676 = vmatmul.f32.gmra.mxu0 %v6675
      %v6677 = vpop.f32.mrf.mxu0
      %v6678 = vadd.f32 %v6633, %v6677
      %6679 = vdwg.mxu0
      %6680 = vmatpush.msra.mxu0 0.0
      %6681 = vmatpush.msra.mxu0 0.0
      %6682 = vmatpush.msra.mxu0 0.0
      %6683 = vmatpush.msra.mxu0 0.0
      %6684 = vmatpush.msra.mxu0 0.0
      %6685 = vmatpush.msra.mxu0 0.0
      %6686 = vmatpush.msra.mxu0 0.0
      %6687 = vmatpush.msra.mxu0 0.0
      %6688 = vmatpush.msra.mxu0 0.0
      %6689 = vmatpush.msra.mxu0 0.0
      %6690 = vmatpush.msra.mxu0 0.0
      %6691 = vmatpush.msra.mxu0 0.0
      %v6692 = vand.u32 %v6140, 4294901760
      %6693 = vmatpush.msra.mxu0 %v6692
      %v6694 = vand.u32 %v6138, 4294901760
      %6695 = vmatpush.msra.mxu0 %v6694
      %v6696 = vand.u32 %v6136, 4294901760
      %6697 = vmatpush.msra.mxu0 %v6696
      %v6698 = vand.u32 %v6134, 4294901760
      %6699 = vmatpush.msra.mxu0 %v6698
      %v6700 = vand.u32 %v6150, 4294901760
      %6701 = vmatmul.f32.gmra.mxu0 %v6700
      %v6702 = vpop.f32.mrf.mxu0
      %v6703 = vadd.f32 %v6666, %v6702
      %v6704 = vand.u32 %v6153, 4294901760
      %6705 = vmatmul.f32.gmra.mxu0 %v6704
      %v6706 = vpop.f32.mrf.mxu0
      %v6707 = vadd.f32 %v6670, %v6706
      %v6708 = vand.u32 %v6156, 4294901760
      %6709 = vmatmul.f32.gmra.mxu0 %v6708
      %v6710 = vpop.f32.mrf.mxu0
      %v6711 = vadd.f32 %v6674, %v6710
      %v6712 = vand.u32 %v6159, 4294901760
      %6713 = vmatmul.f32.gmra.mxu0 %v6712
      %v6714 = vpop.f32.mrf.mxu0
      %v6715 = vadd.f32 %v6678, %v6714
      %6716 = vdwg.mxu0
      %v6717 = vadd.f32 %v6064, %v6425
      %v6718 = vadd.f32 %v6065, %v6703
      %v6719 = vadd.f32 %v6066, %v6429
      %v6720 = vadd.f32 %v6067, %v6707
      %v6721 = vadd.f32 %v6068, %v6433
      %v6722 = vadd.f32 %v6069, %v6711
      %v6723 = vadd.f32 %v6070, %v6437
      %v6724 = vadd.f32 %v6071, %v6715
      %v6725 = vld [vmem:[%s4] sm:$0xff]
      %v6726 = vld [vmem:[%s4 + $0x8] sm:$0xff]
      %v6727 = vld [vmem:[%s4 + $0x10] sm:$0xff]
      %v6728 = vld [vmem:[%s4 + $0x18] sm:$0xff]
      %6730 = vset.pattern.permute.xlu0 0
      %6731 = vperm.xlu0 %6730, %v6725
      %v6732 = vpop.permute.xlu0 %6731
      %6735 = vset.pattern.permute.xlu0 0
      %6736 = vperm.xlu0 %6735, %v6726
      %v6737 = vpop.permute.xlu0 %6736
      %6740 = vset.pattern.permute.xlu0 0
      %6741 = vperm.xlu0 %6740, %v6727
      %v6742 = vpop.permute.xlu0 %6741
      %6745 = vset.pattern.permute.xlu0 0
      %6746 = vperm.xlu0 %6745, %v6728
      %v6747 = vpop.permute.xlu0 %6746
      %v6749 = vadd.f32 %v6717, %v6732
      %v6750 = vadd.f32 %v6718, %v6732
      %v6751 = vadd.f32 %v6719, %v6737
      %v6752 = vadd.f32 %v6720, %v6737
      %v6753 = vadd.f32 %v6721, %v6742
      %v6754 = vadd.f32 %v6722, %v6742
      %v6755 = vadd.f32 %v6723, %v6747
      %v6756 = vadd.f32 %v6724, %v6747
      %v6757 = vtanh.pop %v6749
      %v6758 = vtanh.pop %v6750
      %v6759 = vtanh.pop %v6751
      %v6760 = vtanh.pop %v6752
      %v6761 = vtanh.pop %v6753
      %v6762 = vtanh.pop %v6754
      %v6763 = vtanh.pop %v6755
      %v6764 = vtanh.pop %v6756
      %6765 = vst [vmem:[%s251] sm:$0xff] %v6757
      %6766 = vst [vmem:[%s251 + $0x8] sm:$0xff] %v6758
      %6767 = vst [vmem:[%s251 + $0x10] sm:$0xff] %v6759
      %6768 = vst [vmem:[%s251 + $0x18] sm:$0xff] %v6760
      %6769 = vst [vmem:[%s251 + $0x20] sm:$0xff] %v6761
      %6770 = vst [vmem:[%s251 + $0x28] sm:$0xff] %v6762
      %6771 = vst [vmem:[%s251 + $0x30] sm:$0xff] %v6763
      %6772 = vst [vmem:[%s251 + $0x38] sm:$0xff] %v6764
      %p6773 = scmp.lt.s32.totalorder %s17, 1
      %s6774 = scalar_select %p6773, %s17, 1
      %s6775 = smul.addr %s6774, 8
      %s6776 = smul.addr %s6775, 8
      %s6777 = scalar_lea.vmem %s6, %s6776
      // Predicated region
      $region45: #{cstm_forward.1} parent=43 // pred_check
        %p6778 = pneg %p166
      $region46: #{cstm_forward.1} parent=43 // pred_check_branch
        %6780 = sbr.rel (%p6778) target = $region48
      $region47: #{cstm_forward.1} parent=43 // pred_region
        _
      $region48: #{cstm_forward.1} parent=43 // pred_fallthru
        _
    $region44: #{cstm_forward.1} parent=5 // pred_fallthru
      _
    %p6781 = scmp.le.s32.totalorder 2, %s12
    // Predicated region
    $region49: #{cstm_forward.1} parent=5 // pred_check
      %p6782 = pneg %p6781
    $region50: #{cstm_forward.1} parent=5 // pred_check_branch
      %6784 = sbr.rel (%p6782) target = $region52
    $region51: #{cstm_forward.1} parent=5 // pred_region
      %s6785 = ssub.s32 %s12, 2
      // Predicated region
      $region53: #{cstm_forward.1} parent=51 // pred_check
        %p6786 = pneg %p172
      $region54: #{cstm_forward.1} parent=51 // pred_check_branch
        %6788 = sbr.rel (%p6786) target = $region56
      $region55: #{cstm_forward.1} parent=51 // pred_region
        %p6789 = scmp.lt.s32.totalorder %s18, 1
        %s6790 = scalar_select %p6789, %s18, 1
        %s6791 = smul.addr %s6790, 8
        %s6792 = smul.addr %s6791, 8
        %s6793 = scalar_lea.vmem %s6, %s6792
      $region56: #{cstm_forward.1} parent=51 // pred_fallthru
        _
    $region52: #{cstm_forward.1} parent=5 // pred_fallthru
      _
  $region6: #{cstm_forward.1} parent=0 // loop_footer
    %s16 = sadd.s32 1, %s12
  $region7: #{cstm_forward.1} parent=0 // loop_footer_branch
    %11 = sbr.rel target = $region3
  $region8: #{cstm_forward.1} parent=0 // loop_exit
    _

</llo_original>
